<compile_context>
chip_gen: v7x
topology: tpu7x:2x2x1
jax: 0.10.0
libtpu: 0.0.40
codegen_flags: <defaults>
</compile_context>

<pallas_src>
import jax
import jax.numpy as jnp
import numpy as np
from jax import lax
from jax.experimental import pallas as pl
from jax.experimental.pallas import tpu as pltpu


# ----------------------------------------------------------------------------
# helpers
# ----------------------------------------------------------------------------
def _rms(v, w, eps):
    # v: (rows, C) f32, w: (1, C) f32
    return v * lax.rsqrt(jnp.mean(v * v, axis=-1, keepdims=True) + eps) * w


def _choose(cands, n):
    for c in cands:
        if n >= c and n % c == 0:
            return c
    return n


def _vmem_capacity_bytes():
    try:
        cap = int(pltpu.get_tpu_info().vmem_capacity_bytes)
        if cap > 0:
            return cap
    except Exception:
        pass
    try:
        kind = jax.devices()[0].device_kind.lower()
    except Exception:
        kind = ""
    if "v7" in kind:
        return 64 * 2**20
    return 128 * 2**20


def _vmem_budget():
    cap = _vmem_capacity_bytes()
    # leave headroom for the compiler; per-generation scoped limit
    return max(min(int(cap * 0.85), 112 * 2**20), 32 * 2**20)


_BUFFERED_SUPPORTED = None


def _buffered_supported():
    global _BUFFERED_SUPPORTED
    if _BUFFERED_SUPPORTED is None:
        ok = hasattr(pl, "Buffered")
        if ok:
            try:
                pl.BlockSpec((8, 128), lambda i: (0, 0),
                             pipeline_mode=pl.Buffered(1))
            except Exception:
                ok = False
        _BUFFERED_SUPPORTED = ok
    return _BUFFERED_SUPPORTED


def _make_spec(shape, index_map, single_buffer=False):
    """BlockSpec; grid-invariant blocks get one VMEM buffer when supported."""
    if single_buffer and _buffered_supported():
        return pl.BlockSpec(shape, index_map, pipeline_mode=pl.Buffered(1))
    return pl.BlockSpec(shape, index_map)


def _auto_tiles(S, D, Dh, rep, kv_heads, inner, itemsize, budget):
    small_vmem = budget < 60 * 2**20                 # v7x-class (64 MiB physical)
    TS = _choose((256, 128) if small_vmem else (512, 256, 128), S)
    TQ = _choose((256, 128) if small_vmem else (512, 256, 128), S)
    TI = _choose((512, 256, 128) if small_vmem
                 else (2048, 1024, 512, 256, 128), inner)
    # K/V resident per (batch, kv-head): fetch once instead of once per q-tile.
    if 2 * S * Dh * itemsize <= 8 * 2**20:
        TK = S
    else:
        TK = _choose((2048, 1024, 512, 256, 128), S)

    def k3_bytes(ts, ti):
        streamed_w = 2 * (2 * D * ti + ti * D) * itemsize      # w13 + w2, 2 bufs
        scratch = ts * D * (4 + 4 + itemsize)                  # h1, acc, ffn_in
        invariant = kv_heads * rep * Dh * D * itemsize         # wo
        blocks = 2 * ts * (kv_heads * rep * Dh + 2 * D) * itemsize
        return streamed_w + scratch + invariant + blocks

    while k3_bytes(TS, TI) > budget and TI > 128 and inner % (TI // 2) == 0:
        TI //= 2
    while k3_bytes(TS, TI) > budget and TS > 128 and S % (TS // 2) == 0:
        TS //= 2
    return TS, TQ, TK, TI


# ----------------------------------------------------------------------------
# Kernel 1: modulated RMSNorm + fused QKV projection + per-head RMSNorm + RoPE
# ----------------------------------------------------------------------------
def make_qkv_kernel(*, heads, kv_heads, dim_head, eps_attn, eps_norm):
    rep = heads // kv_heads
    dh = dim_head
    dh2 = dh // 2

    def kernel(x_ref, smsa_ref, wn1_ref, ra_ref, rb_ref, rc_ref, rd_ref,
               wqkv_ref, wnq_ref, wnk_ref, q_out, k_out, v_out):
        x = x_ref[0].astype(jnp.float32)                       # (TS, D)
        nx = _rms(x, wn1_ref[...], eps_norm) * (1.0 + smsa_ref[0])
        qkv = jnp.dot(nx.astype(wqkv_ref.dtype), wqkv_ref[...],
                      preferred_element_type=jnp.float32)      # (TS, (H+2KVH)*dh)

        ra = ra_ref[0]          # (TS, dh2) f32 rope coefficients (even/odd split)
        rb = rb_ref[0]
        rc = rc_ref[0]
        rd = rd_ref[0]

        def norm_rope(t, w):
            # t: (TS, dh) f32 in even/odd-permuted channel order.
            tn = t * lax.rsqrt(jnp.mean(t * t, axis=-1, keepdims=True)
                               + eps_attn) * w
            te = tn[:, :dh2]
            to = tn[:, dh2:]
            return ra * te + rb * to, rc * te + rd * to

        wnq = wnq_ref[...]      # includes folded 1/sqrt(dh) softmax scale
        wnk = wnk_ref[...]

        for h in range(heads):
            kh, r = divmod(h, rep)
            oe, oo = norm_rope(qkv[:, h * dh:(h + 1) * dh], wnq)
            q_out[0, kh, :, r * dh:r * dh + dh2] = oe.astype(q_out.dtype)
            q_out[0, kh, :, r * dh + dh2:(r + 1) * dh] = oo.astype(q_out.dtype)

        kb = heads * dh
        for h in range(kv_heads):
            oe, oo = norm_rope(qkv[:, kb + h * dh: kb + (h + 1) * dh], wnk)
            k_out[0, h, :, :dh2] = oe.astype(k_out.dtype)
            k_out[0, h, :, dh2:] = oo.astype(k_out.dtype)

        vb = (heads + kv_heads) * dh
        for h in range(kv_heads):
            v_out[0, h] = qkv[:, vb + h * dh: vb + (h + 1) * dh].astype(v_out.dtype)

    return kernel


# ----------------------------------------------------------------------------
# Kernel 2: flash attention, rep heads of one kv-group folded into the kernel
# ----------------------------------------------------------------------------
def make_flash_kernel(*, rep, dim_head, kv_axis=3):
    dh = dim_head

    def kernel(q_ref, k_ref, v_ref, bias_ref, o_ref, m_s, l_s, acc_s):
        ki = pl.program_id(kv_axis)

        @pl.when(ki == 0)
        def _():
            m_s[...] = jnp.full(m_s.shape, -1e30, jnp.float32)
            l_s[...] = jnp.zeros(l_s.shape, jnp.float32)
            acc_s[...] = jnp.zeros(acc_s.shape, jnp.float32)

        q_all = q_ref[0, 0]                 # (TQ, rep*dh), scale already folded
        k = k_ref[0, 0]                     # (TK, dh)
        v = v_ref[0, 0]                     # (TK, dh)
        bias = bias_ref[0]                  # (1, TK) additive key bias

        for r in range(rep):
            q = q_all[:, r * dh:(r + 1) * dh]
            s = lax.dot_general(q, k, (((1,), (1,)), ((), ())),
                                preferred_element_type=jnp.float32) + bias
            m_prev = m_s[r]
            m_new = jnp.maximum(m_prev, jnp.max(s, axis=-1, keepdims=True))
            alpha = jnp.exp(m_prev - m_new)
            p = jnp.exp(s - m_new)
            l_s[r] = alpha * l_s[r] + jnp.sum(p, axis=-1, keepdims=True)
            acc_s[r] = alpha * acc_s[r] + jnp.dot(
                p.astype(v.dtype), v, preferred_element_type=jnp.float32)
            m_s[r] = m_new

        @pl.when(ki == pl.num_programs(kv_axis) - 1)
        def _():
            for r in range(rep):
                o_ref[0, 0, :, r * dh:(r + 1) * dh] = (
                    acc_s[r] * pl.reciprocal(l_s[r], approx=True)
                ).astype(o_ref.dtype)

    return kernel


# ----------------------------------------------------------------------------
# Kernel 3: out-projection + gated residual + SwiGLU FFN (inner-dim tiled)
# ----------------------------------------------------------------------------
def make_out_ffn_kernel(*, kv_heads, eps, ti):
    def kernel(attn_ref, wo_ref, x_ref, gmsa_ref, smlp_ref, gmlp_ref,
               wn2_ref, wfn1_ref, wfn2_ref, w13_ref, w2_ref,
               out_ref, h1_s, ffn_in_s, acc_s):
        it = pl.program_id(2)

        @pl.when(it == 0)
        def _():
            proj = jnp.zeros(h1_s.shape, jnp.float32)
            for kh in range(kv_heads):
                proj = proj + jnp.dot(attn_ref[0, kh], wo_ref[kh],
                                      preferred_element_type=jnp.float32)
            x = x_ref[0].astype(jnp.float32)
            h1 = x + gmsa_ref[0] * _rms(proj, wn2_ref[...], eps)
            h1_s[...] = h1
            ffn_in = _rms(h1, wfn1_ref[...], eps) * (1.0 + smlp_ref[0])
            ffn_in_s[...] = ffn_in.astype(ffn_in_s.dtype)
            acc_s[...] = jnp.zeros(acc_s.shape, jnp.float32)

        ffn_in = ffn_in_s[...]
        aw = jnp.dot(ffn_in, w13_ref[...], preferred_element_type=jnp.float32)
        a = aw[:, :ti]
        c = aw[:, ti:]
        g = (a * jax.nn.sigmoid(a)) * c
        acc_s[...] += jnp.dot(g.astype(w2_ref.dtype), w2_ref[...],
                              preferred_element_type=jnp.float32)

        @pl.when(it == pl.num_programs(2) - 1)
        def _():
            out = h1_s[...] + gmlp_ref[0] * _rms(acc_s[...], wfn2_ref[...], eps)
            out_ref[0] = out.astype(out_ref.dtype)

    return kernel


# ----------------------------------------------------------------------------
# Wrapper
# ----------------------------------------------------------------------------
def omnigen2_transformer_block(params, hidden_states, key_bias, image_rotary_emb,
                               temb, *, heads, kv_heads, eps=1e-5,
                               tiles=None, single_buffer_invariants=True):
    # TODO(synk): modulation=False branch and arbitrary dense (S,S) attention
    # masks are not implemented; key padding enters as a (B, S) additive bias.
    B, S, D = hidden_states.shape
    assert D % heads == 0 and heads % kv_heads == 0 and S % 8 == 0
    dt = hidden_states.dtype
    f32 = jnp.float32
    Dh = D // heads
    assert Dh % 2 == 0
    Dh2 = Dh // 2
    rep = heads // kv_heads
    inner = params["ff.w1"].shape[0]
    attn_eps = 1e-5
    scale = Dh ** -0.5
    itemsize = jnp.dtype(dt).itemsize
    sb = single_buffer_invariants

    # ---- generation-aware VMEM budget & tile selection -----------------------
    budget = _vmem_budget()
    if tiles is None:
        TS, TQ, TK, TI = _auto_tiles(S, D, Dh, rep, kv_heads, inner,
                                     itemsize, budget)
    else:
        TS, TQ, TK, TI = tiles["TS"], tiles["TQ"], tiles["TK"], tiles["TI"]
    assert S % TS == 0 and S % TQ == 0 and S % TK == 0 and inner % TI == 0
    assert TK == S or TK % 128 == 0
    NS, NQ, NK, NI = S // TS, S // TQ, S // TK, inner // TI

    # ---- modulation linear hoisted out of the kernels (M=1 matmul) -----------
    emb = (jax.nn.silu(temb.astype(f32)) @ params["norm1.linear.w"].T.astype(f32)
           + params["norm1.linear.b"].astype(f32))                     # (B, 4D)
    scale_msa, gate_msa, scale_mlp, gate_mlp = jnp.split(emb, 4, axis=-1)
    scale_msa = scale_msa.reshape(B, 1, D)
    gate_msa_t = jnp.tanh(gate_msa).reshape(B, 1, D)
    scale_mlp = scale_mlp.reshape(B, 1, D)
    gate_mlp_t = jnp.tanh(gate_mlp).reshape(B, 1, D)

    # ---- RoPE coefficients, even/odd-split channel layout --------------------
    fr = image_rotary_emb[:, :, 0].astype(f32)            # (B, S, Dh//2, 2, 2)
    ra = fr[..., 0, 0]                                     # out_even <- x_even
    rb = fr[..., 0, 1]                                     # out_even <- x_odd
    rc = fr[..., 1, 0]                                     # out_odd  <- x_even
    rd = fr[..., 1, 1]                                     # out_odd  <- x_odd

    # even/odd channel permutation of the head dim (dot products invariant)
    perm = np.concatenate([np.arange(0, Dh, 2), np.arange(1, Dh, 2)])

    def head_cols(w, nh, permute):     # torch Linear weight (nh*Dh, D) -> (D, nh*Dh)
        wt = w.T.reshape(D, nh, Dh)
        if permute:
            wt = wt[:, :, perm]
        return wt.reshape(D, nh * Dh)

    wqkv = jnp.concatenate(
        [head_cols(params["attn.to_q.w"], heads, True),
         head_cols(params["attn.to_k.w"], kv_heads, True),
         head_cols(params["attn.to_v.w"], kv_heads, False)], axis=1).astype(dt)
    QC = (heads + 2 * kv_heads) * Dh

    # softmax 1/sqrt(Dh) folded into the q-head RMSNorm weight (RoPE is linear)
    wnq = (params["attn.norm_q.w"][perm] * scale).reshape(1, Dh).astype(f32)
    wnk = params["attn.norm_k.w"][perm].reshape(1, Dh).astype(f32)

    wo = params["attn.to_out.w"].T.reshape(kv_heads, rep * Dh, D).astype(dt)

    wn1 = params["norm1.norm.w"].reshape(1, D).astype(f32)
    wn2 = params["norm2.w"].reshape(1, D).astype(f32)
    wfn1 = params["ffn_norm1.w"].reshape(1, D).astype(f32)
    wfn2 = params["ffn_norm2.w"].reshape(1, D).astype(f32)

    # w1/w3 fused per inner tile -> one wide matmul per kernel-3 step
    w1 = params["ff.w1"].T                                  # (D, inner)
    w3 = params["ff.w3"].T
    w13 = jnp.concatenate([w1.reshape(D, NI, TI), w3.reshape(D, NI, TI)],
                          axis=2).reshape(D, 2 * inner).astype(dt)
    w2 = params["ff.w2"].T.astype(dt)                       # (inner, D)

    key_bias3 = key_bias.reshape(B, 1, S).astype(f32)

    def cp(sem):
        return pltpu.CompilerParams(dimension_semantics=sem,
                                    vmem_limit_bytes=int(budget))

    # ==================== kernel 1: fused QKV + norm + RoPE ====================
    seq1 = lambda d: pl.BlockSpec((1, TS, d), lambda b, st: (b, st, 0))
    q, k, v = pl.pallas_call(
        make_qkv_kernel(heads=heads, kv_heads=kv_heads, dim_head=Dh,
                        eps_attn=attn_eps, eps_norm=eps),
        out_shape=(jax.ShapeDtypeStruct((B, kv_heads, S, rep * Dh), dt),
                   jax.ShapeDtypeStruct((B, kv_heads, S, Dh), dt),
                   jax.ShapeDtypeStruct((B, kv_heads, S, Dh), dt)),
        grid=(B, NS),
        in_specs=[
            seq1(D),                                                  # x
            pl.BlockSpec((1, 1, D), lambda b, st: (b, 0, 0)),         # scale_msa
            _make_spec((1, D), lambda b, st: (0, 0), sb),             # wn1
            seq1(Dh2), seq1(Dh2), seq1(Dh2), seq1(Dh2),               # rope coeffs
            _make_spec((D, QC), lambda b, st: (0, 0), sb),            # wqkv
            _make_spec((1, Dh), lambda b, st: (0, 0), sb),            # wnq
            _make_spec((1, Dh), lambda b, st: (0, 0), sb),            # wnk
        ],
        out_specs=(
            pl.BlockSpec((1, kv_heads, TS, rep * Dh), lambda b, st: (b, 0, st, 0)),
            pl.BlockSpec((1, kv_heads, TS, Dh), lambda b, st: (b, 0, st, 0)),
            pl.BlockSpec((1, kv_heads, TS, Dh), lambda b, st: (b, 0, st, 0)),
        ),
        compiler_params=cp(("parallel", "parallel")),
    )(hidden_states, scale_msa, wn1, ra, rb, rc, rd, wqkv, wnq, wnk)

    # ==================== kernel 2: flash attention (GQA folded) ===============
    attn = pl.pallas_call(
        make_flash_kernel(rep=rep, dim_head=Dh, kv_axis=3),
        out_shape=jax.ShapeDtypeStruct((B, kv_heads, S, rep * Dh), dt),
        grid=(B, kv_heads, NQ, NK),
        in_specs=[
            pl.BlockSpec((1, 1, TQ, rep * Dh),
                         lambda b, kh, qi, ki: (b, kh, qi, 0)),
            pl.BlockSpec((1, 1, TK, Dh), lambda b, kh, qi, ki: (b, kh, ki, 0)),
            pl.BlockSpec((1, 1, TK, Dh), lambda b, kh, qi, ki: (b, kh, ki, 0)),
            pl.BlockSpec((1, 1, TK), lambda b, kh, qi, ki: (b, 0, ki)),
        ],
        out_specs=pl.BlockSpec((1, 1, TQ, rep * Dh),
                               lambda b, kh, qi, ki: (b, kh, qi, 0)),
        scratch_shapes=[pltpu.VMEM((rep, TQ, 1), jnp.float32),
                        pltpu.VMEM((rep, TQ, 1), jnp.float32),
                        pltpu.VMEM((rep, TQ, Dh), jnp.float32)],
        compiler_params=cp(("parallel", "parallel", "parallel", "arbitrary")),
    )(q, k, v, key_bias3)

    # ==================== kernel 3: out-proj + residual + SwiGLU FFN ===========
    seq3 = lambda d: pl.BlockSpec((1, TS, d), lambda b, st, it: (b, st, 0))
    row3 = lambda: pl.BlockSpec((1, 1, D), lambda b, st, it: (b, 0, 0))
    out = pl.pallas_call(
        make_out_ffn_kernel(kv_heads=kv_heads, eps=eps, ti=TI),
        out_shape=jax.ShapeDtypeStruct((B, S, D), dt),
        grid=(B, NS, NI),
        in_specs=[
            pl.BlockSpec((1, kv_heads, TS, rep * Dh),
                         lambda b, st, it: (b, 0, st, 0)),            # attn
            _make_spec((kv_heads, rep * Dh, D),
                       lambda b, st, it: (0, 0, 0), sb),              # wo
            seq3(D),                                                  # x
            row3(), row3(), row3(),                                   # gates/scale
            _make_spec((1, D), lambda b, st, it: (0, 0), sb),         # wn2
            _make_spec((1, D), lambda b, st, it: (0, 0), sb),         # wfn1
            _make_spec((1, D), lambda b, st, it: (0, 0), sb),         # wfn2
            pl.BlockSpec((D, 2 * TI), lambda b, st, it: (0, it)),     # w13
            pl.BlockSpec((TI, D), lambda b, st, it: (it, 0)),         # w2
        ],
        out_specs=seq3(D),
        scratch_shapes=[pltpu.VMEM((TS, D), jnp.float32),
                        pltpu.VMEM((TS, D), dt),
                        pltpu.VMEM((TS, D), jnp.float32)],
        compiler_params=cp(("parallel", "parallel", "arbitrary")),
    )(attn, wo, hidden_states, gate_msa_t, scale_mlp, gate_mlp_t,
      wn2, wfn1, wfn2, w13, w2)
    return out


# ----------------------------------------------------------------------------
# Pure-JAX reference (mirrors the PyTorch forward exactly)
# ----------------------------------------------------------------------------
def reference_forward(params, hs, key_bias, rope, temb, *, heads, kv_heads, eps):
    B, S, D = hs.shape
    Dh = D // heads
    mask = key_bias[:, None, None, :]                       # (B,1,1,S) additive

    def rmsnorm(x, w, e):
        return x * lax.rsqrt(jnp.mean(x * x, axis=-1, keepdims=True) + e) * w

    def apply_rope(x, freqs):    # x (B,S,H,Dh), freqs (B,S,1,Dh//2,2,2)
        t_ = x.reshape(*x.shape[:-1], -1, 1, 2)
        t_out = freqs[..., 0] * t_[..., 0] + freqs[..., 1] * t_[..., 1]
        return t_out.reshape(x.shape)

    emb = jax.nn.silu(temb) @ params["norm1.linear.w"].T + params["norm1.linear.b"]
    scale_msa, gate_msa, scale_mlp, gate_mlp = jnp.split(emb, 4, axis=1)
    nx = rmsnorm(hs, params["norm1.norm.w"], eps) * (1 + scale_msa[:, None])

    q = (nx @ params["attn.to_q.w"].T).reshape(B, S, heads, Dh)
    k = (nx @ params["attn.to_k.w"].T).reshape(B, S, kv_heads, Dh)
    v = (nx @ params["attn.to_v.w"].T).reshape(B, S, kv_heads, Dh)
    q = rmsnorm(q, params["attn.norm_q.w"], 1e-5)
    k = rmsnorm(k, params["attn.norm_k.w"], 1e-5)
    q = apply_rope(q, rope)
    k = apply_rope(k, rope)
    q, k, v = (t.transpose(0, 2, 1, 3) for t in (q, k, v))
    rep = heads // kv_heads
    k = jnp.repeat(k, rep, axis=1)
    v = jnp.repeat(v, rep, axis=1)
    scores = jnp.einsum("bhqd,bhkd->bhqk", q, k) * (Dh ** -0.5) + mask
    probs = jax.nn.softmax(scores, axis=-1)
    attn = jnp.einsum("bhqk,bhkd->bhqd", probs, v).transpose(0, 2, 1, 3).reshape(B, S, D)
    attn = attn @ params["attn.to_out.w"].T

    h1 = hs + jnp.tanh(gate_msa)[:, None] * rmsnorm(attn, params["norm2.w"], eps)
    ffn_in = rmsnorm(h1, params["ffn_norm1.w"], eps) * (1 + scale_mlp[:, None])
    a = ffn_in @ params["ff.w1"].T
    c = ffn_in @ params["ff.w3"].T
    mlp = (jax.nn.silu(a) * c) @ params["ff.w2"].T
    return h1 + jnp.tanh(gate_mlp)[:, None] * rmsnorm(mlp, params["ffn_norm2.w"], eps)


# ----------------------------------------------------------------------------
# Deterministic synthetic parameters
# ----------------------------------------------------------------------------
def init_params(key, dim, heads, kv_heads, multiple_of, temb_dim):
    inner = multiple_of * ((4 * dim + multiple_of - 1) // multiple_of)
    Dh = dim // heads
    ks = jax.random.split(key, 16)

    def w(k, shape, s):
        return (s * jax.random.normal(k, shape)).astype(jnp.float32)

    def nw(k, n):
        return (1.0 + 0.1 * jax.random.normal(k, (n,))).astype(jnp.float32)

    params = {
        "norm1.linear.w": w(ks[0], (4 * dim, temb_dim), 0.1),
        "norm1.linear.b": w(ks[1], (4 * dim,), 0.1),
        "norm1.norm.w": nw(ks[2], dim),
        "attn.to_q.w": w(ks[3], (heads * Dh, dim), 0.2),
        "attn.to_k.w": w(ks[4], (kv_heads * Dh, dim), 0.2),
        "attn.to_v.w": w(ks[5], (kv_heads * Dh, dim), 0.2),
        "attn.norm_q.w": nw(ks[6], Dh),
        "attn.norm_k.w": nw(ks[7], Dh),
        "attn.to_out.w": w(ks[8], (dim, heads * Dh), 0.1),
        "norm2.w": nw(ks[9], dim),
        "ffn_norm1.w": nw(ks[10], dim),
        "ff.w1": w(ks[11], (inner, dim), 0.1),
        "ff.w3": w(ks[12], (inner, dim), 0.1),
        "ff.w2": w(ks[13], (dim, inner), 0.1),
        "ffn_norm2.w": nw(ks[14], dim),
    }
    return params, inner


# ----------------------------------------------------------------------------
if __name__ == "__main__":
    B, S, dim = 2, 256, 64
    heads, kv_heads, multiple_of = 4, 2, 64
    Dh = dim // heads
    temb_dim = min(dim, 1024)

    key = jax.random.PRNGKey(0)
    kp, kx, kt, kr = jax.random.split(key, 4)
    params, inner = init_params(kp, dim, heads, kv_heads, multiple_of, temb_dim)

    hidden = jax.random.normal(kx, (B, S, dim), jnp.float32)
    temb = jax.random.normal(kt, (B, temb_dim), jnp.float32)

    # rotary embedding freqs_cis: (B, S, 1, Dh//2, 2, 2) rotation matrices
    theta = jax.random.uniform(kr, (B, S, Dh // 2), minval=-3.0, maxval=3.0)
    cos, sin = jnp.cos(theta), jnp.sin(theta)
    rope = jnp.stack([jnp.stack([cos, -sin], axis=-1),
                      jnp.stack([sin, cos], axis=-1)], axis=-2)[:, :, None]

    # additive per-key padding bias (B, S): second batch has 57 padded keys
    lengths = jnp.array([S, S - 57])
    key_bias = jnp.where(jnp.arange(S)[None, :] < lengths[:, None],
                         0.0, -1e4).astype(jnp.float32)

    def run(hs, te, **kw):
        try:
            return omnigen2_transformer_block(
                params, hs, key_bias, rope, te,
                heads=heads, kv_heads=kv_heads, eps=1e-5, **kw)
        except Exception:
            # fall back to plain double-buffered specs if Buffered(1) is
            # unsupported by this Pallas build
            return omnigen2_transformer_block(
                params, hs, key_bias, rope, te,
                heads=heads, kv_heads=kv_heads, eps=1e-5,
                single_buffer_invariants=False, **kw)

    # forced small tiles: >= 2 tiles on EVERY grid axis (exercises multi-tile
    # accumulator / online-softmax carry / pipelining paths)
    forced = dict(TS=128, TQ=128, TK=128, TI=128)
    out = jax.block_until_ready(run(hidden, temb, tiles=forced))

    ref = reference_forward(params, hidden, key_bias, rope, temb,
                            heads=heads, kv_heads=kv_heads, eps=1e-5)
    np.testing.assert_allclose(np.asarray(out), np.asarray(ref),
                               rtol=1e-2, atol=1e-2)

    # auto-tiled path (K/V resident per kv-head, NK=1) with bf16 MXU operands
    out_bf16 = run(hidden.astype(jnp.bfloat16), temb.astype(jnp.bfloat16))
    out_bf16 = np.asarray(jax.block_until_ready(out_bf16)).astype(np.float32)
    diff = np.abs(out_bf16 - np.asarray(ref))
    assert np.all(np.isfinite(out_bf16))
    assert np.mean(diff) < 0.05 and np.max(diff) < 1.0

    print("KERNEL_OK")
</pallas_src>

<mosaic_0001>
module attributes {stable_mosaic.version = 11 : i64} {
  func.func @kernel(%arg0: i32, %arg1: i32, %arg2: memref<1x128x64xf32, #tpu.memory_space<vmem>>, %arg3: memref<1x1x64xf32, #tpu.memory_space<vmem>>, %arg4: memref<1x64xf32, #tpu.memory_space<vmem>>, %arg5: memref<1x128x8xf32, #tpu.memory_space<vmem>>, %arg6: memref<1x128x8xf32, #tpu.memory_space<vmem>>, %arg7: memref<1x128x8xf32, #tpu.memory_space<vmem>>, %arg8: memref<1x128x8xf32, #tpu.memory_space<vmem>>, %arg9: memref<64x128xf32, #tpu.memory_space<vmem>>, %arg10: memref<1x16xf32, #tpu.memory_space<vmem>>, %arg11: memref<1x16xf32, #tpu.memory_space<vmem>>, %arg12: memref<1x2x128x32xf32, #tpu.memory_space<vmem>>, %arg13: memref<1x2x128x16xf32, #tpu.memory_space<vmem>>, %arg14: memref<1x2x128x16xf32, #tpu.memory_space<vmem>>) attributes {dimension_semantics = [#tpu.dimension_semantics<parallel>, #tpu.dimension_semantics<parallel>], iteration_bounds = array<i64: 2, 2>, scalar_prefetch = 0 : i64, scratch_operands = 0 : i64, tpu.core_type = #tpu.core_type<tc>, window_params = [{transform_indices = @transform_0, window_bounds = array<i64: 1, 128, 64>}, {transform_indices = @transform_1, window_bounds = array<i64: 1, 1, 64>}, {pipeline_mode = #tpu.pipeline_mode<synchronous>, transform_indices = @transform_2, window_bounds = array<i64: 1, 64>}, {transform_indices = @transform_3, window_bounds = array<i64: 1, 128, 8>}, {transform_indices = @transform_4, window_bounds = array<i64: 1, 128, 8>}, {transform_indices = @transform_5, window_bounds = array<i64: 1, 128, 8>}, {transform_indices = @transform_6, window_bounds = array<i64: 1, 128, 8>}, {pipeline_mode = #tpu.pipeline_mode<synchronous>, transform_indices = @transform_7, window_bounds = array<i64: 64, 128>}, {pipeline_mode = #tpu.pipeline_mode<synchronous>, transform_indices = @transform_8, window_bounds = array<i64: 1, 16>}, {pipeline_mode = #tpu.pipeline_mode<synchronous>, transform_indices = @transform_9, window_bounds = array<i64: 1, 16>}, {transform_indices = @transform_10, window_bounds = array<i64: 1, 2, 128, 32>}, {transform_indices = @transform_11, window_bounds = array<i64: 1, 2, 128, 16>}, {transform_indices = @transform_12, window_bounds = array<i64: 1, 2, 128, 16>}]} {
    %c0 = arith.constant 0 : index
    %c0_0 = arith.constant 0 : index
    %c0_1 = arith.constant 0 : index
    %0 = vector.load %arg2[%c0, %c0_0, %c0_1] : memref<1x128x64xf32, #tpu.memory_space<vmem>>, vector<1x128x64xf32>
    %1 = vector.shape_cast %0 : vector<1x128x64xf32> to vector<128x64xf32>
    %c0_2 = arith.constant 0 : index
    %c0_3 = arith.constant 0 : index
    %2 = vector.load %arg4[%c0_2, %c0_3] : memref<1x64xf32, #tpu.memory_space<vmem>>, vector<1x64xf32>
    %3 = arith.mulf %1, %1 : vector<128x64xf32>
    %cst = arith.constant dense<0.000000e+00> : vector<128xf32>
    %4 = vector.multi_reduction <add>, %3, %cst [1] : vector<128x64xf32> to vector<128xf32>
    %5 = vector.shape_cast %4 : vector<128xf32> to vector<128x1xf32>
    %cst_4 = arith.constant 6.400000e+01 : f32
    %6 = vector.broadcast %cst_4 : f32 to vector<128x1xf32>
    %7 = arith.divf %5, %6 : vector<128x1xf32>
    %cst_5 = arith.constant 9.99999974E-6 : f32
    %8 = vector.broadcast %cst_5 : f32 to vector<128x1xf32>
    %9 = arith.addf %7, %8 : vector<128x1xf32>
    %10 = math.rsqrt %9 : vector<128x1xf32>
    %11 = vector.broadcast %10 : vector<128x1xf32> to vector<128x64xf32>
    %12 = arith.mulf %1, %11 : vector<128x64xf32>
    %13 = vector.broadcast %2 : vector<1x64xf32> to vector<128x64xf32>
    %14 = arith.mulf %12, %13 : vector<128x64xf32>
    %c0_6 = arith.constant 0 : index
    %c0_7 = arith.constant 0 : index
    %c0_8 = arith.constant 0 : index
    %15 = vector.load %arg3[%c0_6, %c0_7, %c0_8] : memref<1x1x64xf32, #tpu.memory_space<vmem>>, vector<1x1x64xf32>
    %16 = vector.shape_cast %15 : vector<1x1x64xf32> to vector<1x64xf32>
    %cst_9 = arith.constant 1.000000e+00 : f32
    %17 = vector.broadcast %cst_9 : f32 to vector<1x64xf32>
    %18 = arith.addf %17, %16 : vector<1x64xf32>
    %19 = vector.broadcast %18 : vector<1x64xf32> to vector<128x64xf32>
    %20 = arith.mulf %14, %19 : vector<128x64xf32>
    %c0_10 = arith.constant 0 : index
    %c0_11 = arith.constant 0 : index
    %21 = vector.load %arg9[%c0_10, %c0_11] : memref<64x128xf32, #tpu.memory_space<vmem>>, vector<64x128xf32>
    %cst_12 = arith.constant dense<0.000000e+00> : vector<128x128xf32>
    %22 = tpu.matmul %20, %21, %cst_12 {dimension_numbers = #tpu.dot_dimension_numbers<[1], [0], [0], [1], [0, 0, 1, 1], [], []>} : vector<128x64xf32>, vector<64x128xf32>, vector<128x128xf32> -> vector<128x128xf32>
    %c0_13 = arith.constant 0 : index
    %c0_14 = arith.constant 0 : index
    %c0_15 = arith.constant 0 : index
    %23 = vector.load %arg5[%c0_13, %c0_14, %c0_15] : memref<1x128x8xf32, #tpu.memory_space<vmem>>, vector<1x128x8xf32>
    %24 = vector.shape_cast %23 : vector<1x128x8xf32> to vector<128x8xf32>
    %c0_16 = arith.constant 0 : index
    %c0_17 = arith.constant 0 : index
    %c0_18 = arith.constant 0 : index
    %25 = vector.load %arg6[%c0_16, %c0_17, %c0_18] : memref<1x128x8xf32, #tpu.memory_space<vmem>>, vector<1x128x8xf32>
    %26 = vector.shape_cast %25 : vector<1x128x8xf32> to vector<128x8xf32>
    %c0_19 = arith.constant 0 : index
    %c0_20 = arith.constant 0 : index
    %c0_21 = arith.constant 0 : index
    %27 = vector.load %arg7[%c0_19, %c0_20, %c0_21] : memref<1x128x8xf32, #tpu.memory_space<vmem>>, vector<1x128x8xf32>
    %28 = vector.shape_cast %27 : vector<1x128x8xf32> to vector<128x8xf32>
    %c0_22 = arith.constant 0 : index
    %c0_23 = arith.constant 0 : index
    %c0_24 = arith.constant 0 : index
    %29 = vector.load %arg8[%c0_22, %c0_23, %c0_24] : memref<1x128x8xf32, #tpu.memory_space<vmem>>, vector<1x128x8xf32>
    %30 = vector.shape_cast %29 : vector<1x128x8xf32> to vector<128x8xf32>
    %c0_25 = arith.constant 0 : index
    %c0_26 = arith.constant 0 : index
    %31 = vector.load %arg10[%c0_25, %c0_26] : memref<1x16xf32, #tpu.memory_space<vmem>>, vector<1x16xf32>
    %c0_27 = arith.constant 0 : index
    %c0_28 = arith.constant 0 : index
    %32 = vector.load %arg11[%c0_27, %c0_28] : memref<1x16xf32, #tpu.memory_space<vmem>>, vector<1x16xf32>
    %33 = vector.extract_strided_slice %22 {offsets = [0, 0], sizes = [128, 16], strides = [1, 1]} : vector<128x128xf32> to vector<128x16xf32>
    %34 = arith.mulf %33, %33 : vector<128x16xf32>
    %cst_29 = arith.constant dense<0.000000e+00> : vector<128xf32>
    %35 = vector.multi_reduction <add>, %34, %cst_29 [1] : vector<128x16xf32> to vector<128xf32>
    %36 = vector.shape_cast %35 : vector<128xf32> to vector<128x1xf32>
    %cst_30 = arith.constant 1.600000e+01 : f32
    %37 = vector.broadcast %cst_30 : f32 to vector<128x1xf32>
    %38 = arith.divf %36, %37 : vector<128x1xf32>
    %cst_31 = arith.constant 9.99999974E-6 : f32
    %39 = vector.broadcast %cst_31 : f32 to vector<128x1xf32>
    %40 = arith.addf %38, %39 : vector<128x1xf32>
    %41 = math.rsqrt %40 : vector<128x1xf32>
    %42 = vector.broadcast %41 : vector<128x1xf32> to vector<128x16xf32>
    %43 = arith.mulf %33, %42 : vector<128x16xf32>
    %44 = vector.broadcast %31 : vector<1x16xf32> to vector<128x16xf32>
    %45 = arith.mulf %43, %44 : vector<128x16xf32>
    %46 = vector.extract_strided_slice %45 {offsets = [0, 0], sizes = [128, 8], strides = [1, 1]} : vector<128x16xf32> to vector<128x8xf32>
    %47 = vector.extract_strided_slice %45 {offsets = [0, 8], sizes = [128, 8], strides = [1, 1]} : vector<128x16xf32> to vector<128x8xf32>
    %48 = arith.mulf %24, %46 : vector<128x8xf32>
    %49 = arith.mulf %26, %47 : vector<128x8xf32>
    %50 = arith.addf %48, %49 : vector<128x8xf32>
    %51 = arith.mulf %28, %46 : vector<128x8xf32>
    %52 = arith.mulf %30, %47 : vector<128x8xf32>
    %53 = arith.addf %51, %52 : vector<128x8xf32>
    %c0_32 = arith.constant 0 : index
    %c0_33 = arith.constant 0 : index
    %c0_34 = arith.constant 0 : index
    %c0_35 = arith.constant 0 : index
    %54 = vector.load %arg12[%c0_32, %c0_33, %c0_34, %c0_35] : memref<1x2x128x32xf32, #tpu.memory_space<vmem>>, vector<1x1x128x8xf32>
    %55 = vector.shape_cast %54 : vector<1x1x128x8xf32> to vector<128x8xf32>
    %56 = vector.shape_cast %50 : vector<128x8xf32> to vector<1x1x128x8xf32>
    tpu.vector_store %arg12[%c0_32, %c0_33, %c0_34, %c0_35], %56 {strides = array<i32>} : memref<1x2x128x32xf32, #tpu.memory_space<vmem>>, vector<1x1x128x8xf32>,
    %c0_36 = arith.constant 0 : index
    %c0_37 = arith.constant 0 : index
    %c0_38 = arith.constant 0 : index
    %c8 = arith.constant 8 : index
    %57 = vector.load %arg12[%c0_36, %c0_37, %c0_38, %c8] : memref<1x2x128x32xf32, #tpu.memory_space<vmem>>, vector<1x1x128x8xf32>
    %58 = vector.shape_cast %57 : vector<1x1x128x8xf32> to vector<128x8xf32>
    %59 = vector.shape_cast %53 : vector<128x8xf32> to vector<1x1x128x8xf32>
    tpu.vector_store %arg12[%c0_36, %c0_37, %c0_38, %c8], %59 {strides = array<i32>} : memref<1x2x128x32xf32, #tpu.memory_space<vmem>>, vector<1x1x128x8xf32>,
    %60 = vector.extract_strided_slice %22 {offsets = [0, 16], sizes = [128, 16], strides = [1, 1]} : vector<128x128xf32> to vector<128x16xf32>
    %61 = arith.mulf %60, %60 : vector<128x16xf32>
    %cst_39 = arith.constant dense<0.000000e+00> : vector<128xf32>
    %62 = vector.multi_reduction <add>, %61, %cst_39 [1] : vector<128x16xf32> to vector<128xf32>
    %63 = vector.shape_cast %62 : vector<128xf32> to vector<128x1xf32>
    %cst_40 = arith.constant 1.600000e+01 : f32
    %64 = vector.broadcast %cst_40 : f32 to vector<128x1xf32>
    %65 = arith.divf %63, %64 : vector<128x1xf32>
    %cst_41 = arith.constant 9.99999974E-6 : f32
    %66 = vector.broadcast %cst_41 : f32 to vector<128x1xf32>
    %67 = arith.addf %65, %66 : vector<128x1xf32>
    %68 = math.rsqrt %67 : vector<128x1xf32>
    %69 = vector.broadcast %68 : vector<128x1xf32> to vector<128x16xf32>
    %70 = arith.mulf %60, %69 : vector<128x16xf32>
    %71 = vector.broadcast %31 : vector<1x16xf32> to vector<128x16xf32>
    %72 = arith.mulf %70, %71 : vector<128x16xf32>
    %73 = vector.extract_strided_slice %72 {offsets = [0, 0], sizes = [128, 8], strides = [1, 1]} : vector<128x16xf32> to vector<128x8xf32>
    %74 = vector.extract_strided_slice %72 {offsets = [0, 8], sizes = [128, 8], strides = [1, 1]} : vector<128x16xf32> to vector<128x8xf32>
    %75 = arith.mulf %24, %73 : vector<128x8xf32>
    %76 = arith.mulf %26, %74 : vector<128x8xf32>
    %77 = arith.addf %75, %76 : vector<128x8xf32>
    %78 = arith.mulf %28, %73 : vector<128x8xf32>
    %79 = arith.mulf %30, %74 : vector<128x8xf32>
    %80 = arith.addf %78, %79 : vector<128x8xf32>
    %c0_42 = arith.constant 0 : index
    %c0_43 = arith.constant 0 : index
    %c0_44 = arith.constant 0 : index
    %c16 = arith.constant 16 : index
    %81 = vector.load %arg12[%c0_42, %c0_43, %c0_44, %c16] : memref<1x2x128x32xf32, #tpu.memory_space<vmem>>, vector<1x1x128x8xf32>
    %82 = vector.shape_cast %81 : vector<1x1x128x8xf32> to vector<128x8xf32>
    %83 = vector.shape_cast %77 : vector<128x8xf32> to vector<1x1x128x8xf32>
    tpu.vector_store %arg12[%c0_42, %c0_43, %c0_44, %c16], %83 {strides = array<i32>} : memref<1x2x128x32xf32, #tpu.memory_space<vmem>>, vector<1x1x128x8xf32>,
    %c0_45 = arith.constant 0 : index
    %c0_46 = arith.constant 0 : index
    %c0_47 = arith.constant 0 : index
    %c24 = arith.constant 24 : index
    %84 = vector.load %arg12[%c0_45, %c0_46, %c0_47, %c24] : memref<1x2x128x32xf32, #tpu.memory_space<vmem>>, vector<1x1x128x8xf32>
    %85 = vector.shape_cast %84 : vector<1x1x128x8xf32> to vector<128x8xf32>
    %86 = vector.shape_cast %80 : vector<128x8xf32> to vector<1x1x128x8xf32>
    tpu.vector_store %arg12[%c0_45, %c0_46, %c0_47, %c24], %86 {strides = array<i32>} : memref<1x2x128x32xf32, #tpu.memory_space<vmem>>, vector<1x1x128x8xf32>,
    %87 = vector.extract_strided_slice %22 {offsets = [0, 32], sizes = [128, 16], strides = [1, 1]} : vector<128x128xf32> to vector<128x16xf32>
    %88 = arith.mulf %87, %87 : vector<128x16xf32>
    %cst_48 = arith.constant dense<0.000000e+00> : vector<128xf32>
    %89 = vector.multi_reduction <add>, %88, %cst_48 [1] : vector<128x16xf32> to vector<128xf32>
    %90 = vector.shape_cast %89 : vector<128xf32> to vector<128x1xf32>
    %cst_49 = arith.constant 1.600000e+01 : f32
    %91 = vector.broadcast %cst_49 : f32 to vector<128x1xf32>
    %92 = arith.divf %90, %91 : vector<128x1xf32>
    %cst_50 = arith.constant 9.99999974E-6 : f32
    %93 = vector.broadcast %cst_50 : f32 to vector<128x1xf32>
    %94 = arith.addf %92, %93 : vector<128x1xf32>
    %95 = math.rsqrt %94 : vector<128x1xf32>
    %96 = vector.broadcast %95 : vector<128x1xf32> to vector<128x16xf32>
    %97 = arith.mulf %87, %96 : vector<128x16xf32>
    %98 = vector.broadcast %31 : vector<1x16xf32> to vector<128x16xf32>
    %99 = arith.mulf %97, %98 : vector<128x16xf32>
    %100 = vector.extract_strided_slice %99 {offsets = [0, 0], sizes = [128, 8], strides = [1, 1]} : vector<128x16xf32> to vector<128x8xf32>
    %101 = vector.extract_strided_slice %99 {offsets = [0, 8], sizes = [128, 8], strides = [1, 1]} : vector<128x16xf32> to vector<128x8xf32>
    %102 = arith.mulf %24, %100 : vector<128x8xf32>
    %103 = arith.mulf %26, %101 : vector<128x8xf32>
    %104 = arith.addf %102, %103 : vector<128x8xf32>
    %105 = arith.mulf %28, %100 : vector<128x8xf32>
    %106 = arith.mulf %30, %101 : vector<128x8xf32>
    %107 = arith.addf %105, %106 : vector<128x8xf32>
    %c0_51 = arith.constant 0 : index
    %c1 = arith.constant 1 : index
    %c0_52 = arith.constant 0 : index
    %c0_53 = arith.constant 0 : index
    %108 = vector.load %arg12[%c0_51, %c1, %c0_52, %c0_53] : memref<1x2x128x32xf32, #tpu.memory_space<vmem>>, vector<1x1x128x8xf32>
    %109 = vector.shape_cast %108 : vector<1x1x128x8xf32> to vector<128x8xf32>
    %110 = vector.shape_cast %104 : vector<128x8xf32> to vector<1x1x128x8xf32>
    tpu.vector_store %arg12[%c0_51, %c1, %c0_52, %c0_53], %110 {strides = array<i32>} : memref<1x2x128x32xf32, #tpu.memory_space<vmem>>, vector<1x1x128x8xf32>,
    %c0_54 = arith.constant 0 : index
    %c1_55 = arith.constant 1 : index
    %c0_56 = arith.constant 0 : index
    %c8_57 = arith.constant 8 : index
    %111 = vector.load %arg12[%c0_54, %c1_55, %c0_56, %c8_57] : memref<1x2x128x32xf32, #tpu.memory_space<vmem>>, vector<1x1x128x8xf32>
    %112 = vector.shape_cast %111 : vector<1x1x128x8xf32> to vector<128x8xf32>
    %113 = vector.shape_cast %107 : vector<128x8xf32> to vector<1x1x128x8xf32>
    tpu.vector_store %arg12[%c0_54, %c1_55, %c0_56, %c8_57], %113 {strides = array<i32>} : memref<1x2x128x32xf32, #tpu.memory_space<vmem>>, vector<1x1x128x8xf32>,
    %114 = vector.extract_strided_slice %22 {offsets = [0, 48], sizes = [128, 16], strides = [1, 1]} : vector<128x128xf32> to vector<128x16xf32>
    %115 = arith.mulf %114, %114 : vector<128x16xf32>
    %cst_58 = arith.constant dense<0.000000e+00> : vector<128xf32>
    %116 = vector.multi_reduction <add>, %115, %cst_58 [1] : vector<128x16xf32> to vector<128xf32>
    %117 = vector.shape_cast %116 : vector<128xf32> to vector<128x1xf32>
    %cst_59 = arith.constant 1.600000e+01 : f32
    %118 = vector.broadcast %cst_59 : f32 to vector<128x1xf32>
    %119 = arith.divf %117, %118 : vector<128x1xf32>
    %cst_60 = arith.constant 9.99999974E-6 : f32
    %120 = vector.broadcast %cst_60 : f32 to vector<128x1xf32>
    %121 = arith.addf %119, %120 : vector<128x1xf32>
    %122 = math.rsqrt %121 : vector<128x1xf32>
    %123 = vector.broadcast %122 : vector<128x1xf32> to vector<128x16xf32>
    %124 = arith.mulf %114, %123 : vector<128x16xf32>
    %125 = vector.broadcast %31 : vector<1x16xf32> to vector<128x16xf32>
    %126 = arith.mulf %124, %125 : vector<128x16xf32>
    %127 = vector.extract_strided_slice %126 {offsets = [0, 0], sizes = [128, 8], strides = [1, 1]} : vector<128x16xf32> to vector<128x8xf32>
    %128 = vector.extract_strided_slice %126 {offsets = [0, 8], sizes = [128, 8], strides = [1, 1]} : vector<128x16xf32> to vector<128x8xf32>
    %129 = arith.mulf %24, %127 : vector<128x8xf32>
    %130 = arith.mulf %26, %128 : vector<128x8xf32>
    %131 = arith.addf %129, %130 : vector<128x8xf32>
    %132 = arith.mulf %28, %127 : vector<128x8xf32>
    %133 = arith.mulf %30, %128 : vector<128x8xf32>
    %134 = arith.addf %132, %133 : vector<128x8xf32>
    %c0_61 = arith.constant 0 : index
    %c1_62 = arith.constant 1 : index
    %c0_63 = arith.constant 0 : index
    %c16_64 = arith.constant 16 : index
    %135 = vector.load %arg12[%c0_61, %c1_62, %c0_63, %c16_64] : memref<1x2x128x32xf32, #tpu.memory_space<vmem>>, vector<1x1x128x8xf32>
    %136 = vector.shape_cast %135 : vector<1x1x128x8xf32> to vector<128x8xf32>
    %137 = vector.shape_cast %131 : vector<128x8xf32> to vector<1x1x128x8xf32>
    tpu.vector_store %arg12[%c0_61, %c1_62, %c0_63, %c16_64], %137 {strides = array<i32>} : memref<1x2x128x32xf32, #tpu.memory_space<vmem>>, vector<1x1x128x8xf32>,
    %c0_65 = arith.constant 0 : index
    %c1_66 = arith.constant 1 : index
    %c0_67 = arith.constant 0 : index
    %c24_68 = arith.constant 24 : index
    %138 = vector.load %arg12[%c0_65, %c1_66, %c0_67, %c24_68] : memref<1x2x128x32xf32, #tpu.memory_space<vmem>>, vector<1x1x128x8xf32>
    %139 = vector.shape_cast %138 : vector<1x1x128x8xf32> to vector<128x8xf32>
    %140 = vector.shape_cast %134 : vector<128x8xf32> to vector<1x1x128x8xf32>
    tpu.vector_store %arg12[%c0_65, %c1_66, %c0_67, %c24_68], %140 {strides = array<i32>} : memref<1x2x128x32xf32, #tpu.memory_space<vmem>>, vector<1x1x128x8xf32>,
    %141 = vector.extract_strided_slice %22 {offsets = [0, 64], sizes = [128, 16], strides = [1, 1]} : vector<128x128xf32> to vector<128x16xf32>
    %142 = arith.mulf %141, %141 : vector<128x16xf32>
    %cst_69 = arith.constant dense<0.000000e+00> : vector<128xf32>
    %143 = vector.multi_reduction <add>, %142, %cst_69 [1] : vector<128x16xf32> to vector<128xf32>
    %144 = vector.shape_cast %143 : vector<128xf32> to vector<128x1xf32>
    %cst_70 = arith.constant 1.600000e+01 : f32
    %145 = vector.broadcast %cst_70 : f32 to vector<128x1xf32>
    %146 = arith.divf %144, %145 : vector<128x1xf32>
    %cst_71 = arith.constant 9.99999974E-6 : f32
    %147 = vector.broadcast %cst_71 : f32 to vector<128x1xf32>
    %148 = arith.addf %146, %147 : vector<128x1xf32>
    %149 = math.rsqrt %148 : vector<128x1xf32>
    %150 = vector.broadcast %149 : vector<128x1xf32> to vector<128x16xf32>
    %151 = arith.mulf %141, %150 : vector<128x16xf32>
    %152 = vector.broadcast %32 : vector<1x16xf32> to vector<128x16xf32>
    %153 = arith.mulf %151, %152 : vector<128x16xf32>
    %154 = vector.extract_strided_slice %153 {offsets = [0, 0], sizes = [128, 8], strides = [1, 1]} : vector<128x16xf32> to vector<128x8xf32>
    %155 = vector.extract_strided_slice %153 {offsets = [0, 8], sizes = [128, 8], strides = [1, 1]} : vector<128x16xf32> to vector<128x8xf32>
    %156 = arith.mulf %24, %154 : vector<128x8xf32>
    %157 = arith.mulf %26, %155 : vector<128x8xf32>
    %158 = arith.addf %156, %157 : vector<128x8xf32>
    %159 = arith.mulf %28, %154 : vector<128x8xf32>
    %160 = arith.mulf %30, %155 : vector<128x8xf32>
    %161 = arith.addf %159, %160 : vector<128x8xf32>
    %c0_72 = arith.constant 0 : index
    %c0_73 = arith.constant 0 : index
    %c0_74 = arith.constant 0 : index
    %c0_75 = arith.constant 0 : index
    %162 = vector.load %arg13[%c0_72, %c0_73, %c0_74, %c0_75] : memref<1x2x128x16xf32, #tpu.memory_space<vmem>>, vector<1x1x128x8xf32>
    %163 = vector.shape_cast %162 : vector<1x1x128x8xf32> to vector<128x8xf32>
    %164 = vector.shape_cast %158 : vector<128x8xf32> to vector<1x1x128x8xf32>
    tpu.vector_store %arg13[%c0_72, %c0_73, %c0_74, %c0_75], %164 {strides = array<i32>} : memref<1x2x128x16xf32, #tpu.memory_space<vmem>>, vector<1x1x128x8xf32>,
    %c0_76 = arith.constant 0 : index
    %c0_77 = arith.constant 0 : index
    %c0_78 = arith.constant 0 : index
    %c8_79 = arith.constant 8 : index
    %165 = vector.load %arg13[%c0_76, %c0_77, %c0_78, %c8_79] : memref<1x2x128x16xf32, #tpu.memory_space<vmem>>, vector<1x1x128x8xf32>
    %166 = vector.shape_cast %165 : vector<1x1x128x8xf32> to vector<128x8xf32>
    %167 = vector.shape_cast %161 : vector<128x8xf32> to vector<1x1x128x8xf32>
    tpu.vector_store %arg13[%c0_76, %c0_77, %c0_78, %c8_79], %167 {strides = array<i32>} : memref<1x2x128x16xf32, #tpu.memory_space<vmem>>, vector<1x1x128x8xf32>,
    %168 = vector.extract_strided_slice %22 {offsets = [0, 80], sizes = [128, 16], strides = [1, 1]} : vector<128x128xf32> to vector<128x16xf32>
    %169 = arith.mulf %168, %168 : vector<128x16xf32>
    %cst_80 = arith.constant dense<0.000000e+00> : vector<128xf32>
    %170 = vector.multi_reduction <add>, %169, %cst_80 [1] : vector<128x16xf32> to vector<128xf32>
    %171 = vector.shape_cast %170 : vector<128xf32> to vector<128x1xf32>
    %cst_81 = arith.constant 1.600000e+01 : f32
    %172 = vector.broadcast %cst_81 : f32 to vector<128x1xf32>
    %173 = arith.divf %171, %172 : vector<128x1xf32>
    %cst_82 = arith.constant 9.99999974E-6 : f32
    %174 = vector.broadcast %cst_82 : f32 to vector<128x1xf32>
    %175 = arith.addf %173, %174 : vector<128x1xf32>
    %176 = math.rsqrt %175 : vector<128x1xf32>
    %177 = vector.broadcast %176 : vector<128x1xf32> to vector<128x16xf32>
    %178 = arith.mulf %168, %177 : vector<128x16xf32>
    %179 = vector.broadcast %32 : vector<1x16xf32> to vector<128x16xf32>
    %180 = arith.mulf %178, %179 : vector<128x16xf32>
    %181 = vector.extract_strided_slice %180 {offsets = [0, 0], sizes = [128, 8], strides = [1, 1]} : vector<128x16xf32> to vector<128x8xf32>
    %182 = vector.extract_strided_slice %180 {offsets = [0, 8], sizes = [128, 8], strides = [1, 1]} : vector<128x16xf32> to vector<128x8xf32>
    %183 = arith.mulf %24, %181 : vector<128x8xf32>
    %184 = arith.mulf %26, %182 : vector<128x8xf32>
    %185 = arith.addf %183, %184 : vector<128x8xf32>
    %186 = arith.mulf %28, %181 : vector<128x8xf32>
    %187 = arith.mulf %30, %182 : vector<128x8xf32>
    %188 = arith.addf %186, %187 : vector<128x8xf32>
    %c0_83 = arith.constant 0 : index
    %c1_84 = arith.constant 1 : index
    %c0_85 = arith.constant 0 : index
    %c0_86 = arith.constant 0 : index
    %189 = vector.load %arg13[%c0_83, %c1_84, %c0_85, %c0_86] : memref<1x2x128x16xf32, #tpu.memory_space<vmem>>, vector<1x1x128x8xf32>
    %190 = vector.shape_cast %189 : vector<1x1x128x8xf32> to vector<128x8xf32>
    %191 = vector.shape_cast %185 : vector<128x8xf32> to vector<1x1x128x8xf32>
    tpu.vector_store %arg13[%c0_83, %c1_84, %c0_85, %c0_86], %191 {strides = array<i32>} : memref<1x2x128x16xf32, #tpu.memory_space<vmem>>, vector<1x1x128x8xf32>,
    %c0_87 = arith.constant 0 : index
    %c1_88 = arith.constant 1 : index
    %c0_89 = arith.constant 0 : index
    %c8_90 = arith.constant 8 : index
    %192 = vector.load %arg13[%c0_87, %c1_88, %c0_89, %c8_90] : memref<1x2x128x16xf32, #tpu.memory_space<vmem>>, vector<1x1x128x8xf32>
    %193 = vector.shape_cast %192 : vector<1x1x128x8xf32> to vector<128x8xf32>
    %194 = vector.shape_cast %188 : vector<128x8xf32> to vector<1x1x128x8xf32>
    tpu.vector_store %arg13[%c0_87, %c1_88, %c0_89, %c8_90], %194 {strides = array<i32>} : memref<1x2x128x16xf32, #tpu.memory_space<vmem>>, vector<1x1x128x8xf32>,
    %195 = vector.extract_strided_slice %22 {offsets = [0, 96], sizes = [128, 16], strides = [1, 1]} : vector<128x128xf32> to vector<128x16xf32>
    %c0_91 = arith.constant 0 : index
    %c0_92 = arith.constant 0 : index
    %c0_93 = arith.constant 0 : index
    %c0_94 = arith.constant 0 : index
    %196 = vector.load %arg14[%c0_91, %c0_92, %c0_93, %c0_94] : memref<1x2x128x16xf32, #tpu.memory_space<vmem>>, vector<1x1x128x16xf32>
    %197 = vector.shape_cast %196 : vector<1x1x128x16xf32> to vector<128x16xf32>
    %198 = vector.shape_cast %195 : vector<128x16xf32> to vector<1x1x128x16xf32>
    tpu.vector_store %arg14[%c0_91, %c0_92, %c0_93, %c0_94], %198 {strides = array<i32>} : memref<1x2x128x16xf32, #tpu.memory_space<vmem>>, vector<1x1x128x16xf32>,
    %199 = vector.extract_strided_slice %22 {offsets = [0, 112], sizes = [128, 16], strides = [1, 1]} : vector<128x128xf32> to vector<128x16xf32>
    %c0_95 = arith.constant 0 : index
    %c1_96 = arith.constant 1 : index
    %c0_97 = arith.constant 0 : index
    %c0_98 = arith.constant 0 : index
    %200 = vector.load %arg14[%c0_95, %c1_96, %c0_97, %c0_98] : memref<1x2x128x16xf32, #tpu.memory_space<vmem>>, vector<1x1x128x16xf32>
    %201 = vector.shape_cast %200 : vector<1x1x128x16xf32> to vector<128x16xf32>
    %202 = vector.shape_cast %199 : vector<128x16xf32> to vector<1x1x128x16xf32>
    tpu.vector_store %arg14[%c0_95, %c1_96, %c0_97, %c0_98], %202 {strides = array<i32>} : memref<1x2x128x16xf32, #tpu.memory_space<vmem>>, vector<1x1x128x16xf32>,
    return
  }
  func.func @transform_0(%arg0: i32, %arg1: i32) -> (i32, i32, i32) {
    %c0_i32 = arith.constant 0 : i32
    %c0_i32_0 = arith.constant 0 : i32
    return %arg0, %arg1, %c0_i32 : i32, i32, i32
  }
  func.func @transform_1(%arg0: i32, %arg1: i32) -> (i32, i32, i32) {
    %c0_i32 = arith.constant 0 : i32
    %c0_i32_0 = arith.constant 0 : i32
    %c0_i32_1 = arith.constant 0 : i32
    return %arg0, %c0_i32, %c0_i32_0 : i32, i32, i32
  }
  func.func @transform_2(%arg0: i32, %arg1: i32) -> (i32, i32) {
    %c0_i32 = arith.constant 0 : i32
    %c0_i32_0 = arith.constant 0 : i32
    %c0_i32_1 = arith.constant 0 : i32
    return %c0_i32, %c0_i32_0 : i32, i32
  }
  func.func @transform_3(%arg0: i32, %arg1: i32) -> (i32, i32, i32) {
    %c0_i32 = arith.constant 0 : i32
    %c0_i32_0 = arith.constant 0 : i32
    return %arg0, %arg1, %c0_i32 : i32, i32, i32
  }
  func.func @transform_4(%arg0: i32, %arg1: i32) -> (i32, i32, i32) {
    %c0_i32 = arith.constant 0 : i32
    %c0_i32_0 = arith.constant 0 : i32
    return %arg0, %arg1, %c0_i32 : i32, i32, i32
  }
  func.func @transform_5(%arg0: i32, %arg1: i32) -> (i32, i32, i32) {
    %c0_i32 = arith.constant 0 : i32
    %c0_i32_0 = arith.constant 0 : i32
    return %arg0, %arg1, %c0_i32 : i32, i32, i32
  }
  func.func @transform_6(%arg0: i32, %arg1: i32) -> (i32, i32, i32) {
    %c0_i32 = arith.constant 0 : i32
    %c0_i32_0 = arith.constant 0 : i32
    return %arg0, %arg1, %c0_i32 : i32, i32, i32
  }
  func.func @transform_7(%arg0: i32, %arg1: i32) -> (i32, i32) {
    %c0_i32 = arith.constant 0 : i32
    %c0_i32_0 = arith.constant 0 : i32
    %c0_i32_1 = arith.constant 0 : i32
    return %c0_i32, %c0_i32_0 : i32, i32
  }
  func.func @transform_8(%arg0: i32, %arg1: i32) -> (i32, i32) {
    %c0_i32 = arith.constant 0 : i32
    %c0_i32_0 = arith.constant 0 : i32
    %c0_i32_1 = arith.constant 0 : i32
    return %c0_i32, %c0_i32_0 : i32, i32
  }
  func.func @transform_9(%arg0: i32, %arg1: i32) -> (i32, i32) {
    %c0_i32 = arith.constant 0 : i32
    %c0_i32_0 = arith.constant 0 : i32
    %c0_i32_1 = arith.constant 0 : i32
    return %c0_i32, %c0_i32_0 : i32, i32
  }
  func.func @transform_10(%arg0: i32, %arg1: i32) -> (i32, i32, i32, i32) {
    %c0_i32 = arith.constant 0 : i32
    %c0_i32_0 = arith.constant 0 : i32
    %c0_i32_1 = arith.constant 0 : i32
    return %arg0, %c0_i32, %arg1, %c0_i32_0 : i32, i32, i32, i32
  }
  func.func @transform_11(%arg0: i32, %arg1: i32) -> (i32, i32, i32, i32) {
    %c0_i32 = arith.constant 0 : i32
    %c0_i32_0 = arith.constant 0 : i32
    %c0_i32_1 = arith.constant 0 : i32
    return %arg0, %c0_i32, %arg1, %c0_i32_0 : i32, i32, i32, i32
  }
  func.func @transform_12(%arg0: i32, %arg1: i32) -> (i32, i32, i32, i32) {
    %c0_i32 = arith.constant 0 : i32
    %c0_i32_0 = arith.constant 0 : i32
    %c0_i32_1 = arith.constant 0 : i32
    return %arg0, %c0_i32, %arg1, %c0_i32_0 : i32, i32, i32, i32
  }
}

module attributes {stable_mosaic.version = 11 : i64} {
  func.func @kernel(%arg0: i32, %arg1: i32, %arg2: memref<1x128x64xf32, #tpu.memory_space<vmem>>, %arg3: memref<1x1x64xf32, #tpu.memory_space<vmem>>, %arg4: memref<1x64xf32, #tpu.memory_space<vmem>>, %arg5: memref<1x128x8xf32, #tpu.memory_space<vmem>>, %arg6: memref<1x128x8xf32, #tpu.memory_space<vmem>>, %arg7: memref<1x128x8xf32, #tpu.memory_space<vmem>>, %arg8: memref<1x128x8xf32, #tpu.memory_space<vmem>>, %arg9: memref<64x128xf32, #tpu.memory_space<vmem>>, %arg10: memref<1x16xf32, #tpu.memory_space<vmem>>, %arg11: memref<1x16xf32, #tpu.memory_space<vmem>>, %arg12: memref<1x2x128x32xf32, #tpu.memory_space<vmem>>, %arg13: memref<1x2x128x16xf32, #tpu.memory_space<vmem>>, %arg14: memref<1x2x128x16xf32, #tpu.memory_space<vmem>>) attributes {dimension_semantics = [#tpu.dimension_semantics<parallel>, #tpu.dimension_semantics<parallel>], iteration_bounds = array<i64: 2, 2>, scalar_prefetch = 0 : i64, scratch_operands = 0 : i64, tpu.core_type = #tpu.core_type<tc>, window_params = [{transform_indices = @transform_0, window_bounds = array<i64: 1, 128, 64>}, {transform_indices = @transform_1, window_bounds = array<i64: 1, 1, 64>}, {pipeline_mode = #tpu.pipeline_mode<synchronous>, transform_indices = @transform_2, window_bounds = array<i64: 1, 64>}, {transform_indices = @transform_3, window_bounds = array<i64: 1, 128, 8>}, {transform_indices = @transform_4, window_bounds = array<i64: 1, 128, 8>}, {transform_indices = @transform_5, window_bounds = array<i64: 1, 128, 8>}, {transform_indices = @transform_6, window_bounds = array<i64: 1, 128, 8>}, {pipeline_mode = #tpu.pipeline_mode<synchronous>, transform_indices = @transform_7, window_bounds = array<i64: 64, 128>}, {pipeline_mode = #tpu.pipeline_mode<synchronous>, transform_indices = @transform_8, window_bounds = array<i64: 1, 16>}, {pipeline_mode = #tpu.pipeline_mode<synchronous>, transform_indices = @transform_9, window_bounds = array<i64: 1, 16>}, {transform_indices = @transform_10, window_bounds = array<i64: 1, 2, 128, 32>}, {transform_indices = @transform_11, window_bounds = array<i64: 1, 2, 128, 16>}, {transform_indices = @transform_12, window_bounds = array<i64: 1, 2, 128, 16>}]} {
    %c0 = arith.constant 0 : index
    %c0_0 = arith.constant 0 : index
    %c0_1 = arith.constant 0 : index
    %0 = vector.load %arg2[%c0, %c0_0, %c0_1] : memref<1x128x64xf32, #tpu.memory_space<vmem>>, vector<1x128x64xf32>
    %1 = vector.shape_cast %0 : vector<1x128x64xf32> to vector<128x64xf32>
    %c0_2 = arith.constant 0 : index
    %c0_3 = arith.constant 0 : index
    %2 = vector.load %arg4[%c0_2, %c0_3] : memref<1x64xf32, #tpu.memory_space<vmem>>, vector<1x64xf32>
    %3 = arith.mulf %1, %1 : vector<128x64xf32>
    %cst = arith.constant dense<0.000000e+00> : vector<128xf32>
    %4 = vector.multi_reduction <add>, %3, %cst [1] : vector<128x64xf32> to vector<128xf32>
    %5 = vector.shape_cast %4 : vector<128xf32> to vector<128x1xf32>
    %cst_4 = arith.constant 6.400000e+01 : f32
    %6 = vector.broadcast %cst_4 : f32 to vector<128x1xf32>
    %7 = arith.divf %5, %6 : vector<128x1xf32>
    %cst_5 = arith.constant 9.99999974E-6 : f32
    %8 = vector.broadcast %cst_5 : f32 to vector<128x1xf32>
    %9 = arith.addf %7, %8 : vector<128x1xf32>
    %10 = math.rsqrt %9 : vector<128x1xf32>
    %11 = vector.broadcast %10 : vector<128x1xf32> to vector<128x64xf32>
    %12 = arith.mulf %1, %11 : vector<128x64xf32>
    %13 = vector.broadcast %2 : vector<1x64xf32> to vector<128x64xf32>
    %14 = arith.mulf %12, %13 : vector<128x64xf32>
    %c0_6 = arith.constant 0 : index
    %c0_7 = arith.constant 0 : index
    %c0_8 = arith.constant 0 : index
    %15 = vector.load %arg3[%c0_6, %c0_7, %c0_8] : memref<1x1x64xf32, #tpu.memory_space<vmem>>, vector<1x1x64xf32>
    %16 = vector.shape_cast %15 : vector<1x1x64xf32> to vector<1x64xf32>
    %cst_9 = arith.constant 1.000000e+00 : f32
    %17 = vector.broadcast %cst_9 : f32 to vector<1x64xf32>
    %18 = arith.addf %17, %16 : vector<1x64xf32>
    %19 = vector.broadcast %18 : vector<1x64xf32> to vector<128x64xf32>
    %20 = arith.mulf %14, %19 : vector<128x64xf32>
    %c0_10 = arith.constant 0 : index
    %c0_11 = arith.constant 0 : index
    %21 = vector.load %arg9[%c0_10, %c0_11] : memref<64x128xf32, #tpu.memory_space<vmem>>, vector<64x128xf32>
    %cst_12 = arith.constant dense<0.000000e+00> : vector<128x128xf32>
    %22 = tpu.matmul %20, %21, %cst_12 {dimension_numbers = #tpu.dot_dimension_numbers<[1], [0], [0], [1], [0, 0, 1, 1], [], []>} : vector<128x64xf32>, vector<64x128xf32>, vector<128x128xf32> -> vector<128x128xf32>
    %c0_13 = arith.constant 0 : index
    %c0_14 = arith.constant 0 : index
    %c0_15 = arith.constant 0 : index
    %23 = vector.load %arg5[%c0_13, %c0_14, %c0_15] : memref<1x128x8xf32, #tpu.memory_space<vmem>>, vector<1x128x8xf32>
    %24 = vector.shape_cast %23 : vector<1x128x8xf32> to vector<128x8xf32>
    %c0_16 = arith.constant 0 : index
    %c0_17 = arith.constant 0 : index
    %c0_18 = arith.constant 0 : index
    %25 = vector.load %arg6[%c0_16, %c0_17, %c0_18] : memref<1x128x8xf32, #tpu.memory_space<vmem>>, vector<1x128x8xf32>
    %26 = vector.shape_cast %25 : vector<1x128x8xf32> to vector<128x8xf32>
    %c0_19 = arith.constant 0 : index
    %c0_20 = arith.constant 0 : index
    %c0_21 = arith.constant 0 : index
    %27 = vector.load %arg7[%c0_19, %c0_20, %c0_21] : memref<1x128x8xf32, #tpu.memory_space<vmem>>, vector<1x128x8xf32>
    %28 = vector.shape_cast %27 : vector<1x128x8xf32> to vector<128x8xf32>
    %c0_22 = arith.constant 0 : index
    %c0_23 = arith.constant 0 : index
    %c0_24 = arith.constant 0 : index
    %29 = vector.load %arg8[%c0_22, %c0_23, %c0_24] : memref<1x128x8xf32, #tpu.memory_space<vmem>>, vector<1x128x8xf32>
    %30 = vector.shape_cast %29 : vector<1x128x8xf32> to vector<128x8xf32>
    %c0_25 = arith.constant 0 : index
    %c0_26 = arith.constant 0 : index
    %31 = vector.load %arg10[%c0_25, %c0_26] : memref<1x16xf32, #tpu.memory_space<vmem>>, vector<1x16xf32>
    %c0_27 = arith.constant 0 : index
    %c0_28 = arith.constant 0 : index
    %32 = vector.load %arg11[%c0_27, %c0_28] : memref<1x16xf32, #tpu.memory_space<vmem>>, vector<1x16xf32>
    %33 = vector.extract_strided_slice %22 {offsets = [0, 0], sizes = [128, 16], strides = [1, 1]} : vector<128x128xf32> to vector<128x16xf32>
    %34 = arith.mulf %33, %33 : vector<128x16xf32>
    %cst_29 = arith.constant dense<0.000000e+00> : vector<128xf32>
    %35 = vector.multi_reduction <add>, %34, %cst_29 [1] : vector<128x16xf32> to vector<128xf32>
    %36 = vector.shape_cast %35 : vector<128xf32> to vector<128x1xf32>
    %cst_30 = arith.constant 1.600000e+01 : f32
    %37 = vector.broadcast %cst_30 : f32 to vector<128x1xf32>
    %38 = arith.divf %36, %37 : vector<128x1xf32>
    %cst_31 = arith.constant 9.99999974E-6 : f32
    %39 = vector.broadcast %cst_31 : f32 to vector<128x1xf32>
    %40 = arith.addf %38, %39 : vector<128x1xf32>
    %41 = math.rsqrt %40 : vector<128x1xf32>
    %42 = vector.broadcast %41 : vector<128x1xf32> to vector<128x16xf32>
    %43 = arith.mulf %33, %42 : vector<128x16xf32>
    %44 = vector.broadcast %31 : vector<1x16xf32> to vector<128x16xf32>
    %45 = arith.mulf %43, %44 : vector<128x16xf32>
    %46 = vector.extract_strided_slice %45 {offsets = [0, 0], sizes = [128, 8], strides = [1, 1]} : vector<128x16xf32> to vector<128x8xf32>
    %47 = vector.extract_strided_slice %45 {offsets = [0, 8], sizes = [128, 8], strides = [1, 1]} : vector<128x16xf32> to vector<128x8xf32>
    %48 = arith.mulf %24, %46 : vector<128x8xf32>
    %49 = arith.mulf %26, %47 : vector<128x8xf32>
    %50 = arith.addf %48, %49 : vector<128x8xf32>
    %51 = arith.mulf %28, %46 : vector<128x8xf32>
    %52 = arith.mulf %30, %47 : vector<128x8xf32>
    %53 = arith.addf %51, %52 : vector<128x8xf32>
    %c0_32 = arith.constant 0 : index
    %c0_33 = arith.constant 0 : index
    %c0_34 = arith.constant 0 : index
    %c0_35 = arith.constant 0 : index
    %54 = vector.load %arg12[%c0_32, %c0_33, %c0_34, %c0_35] : memref<1x2x128x32xf32, #tpu.memory_space<vmem>>, vector<1x1x128x8xf32>
    %55 = vector.shape_cast %54 : vector<1x1x128x8xf32> to vector<128x8xf32>
    %56 = vector.shape_cast %50 : vector<128x8xf32> to vector<1x1x128x8xf32>
    tpu.vector_store %arg12[%c0_32, %c0_33, %c0_34, %c0_35], %56 {strides = array<i32>} : memref<1x2x128x32xf32, #tpu.memory_space<vmem>>, vector<1x1x128x8xf32>,
    %c0_36 = arith.constant 0 : index
    %c0_37 = arith.constant 0 : index
    %c0_38 = arith.constant 0 : index
    %c8 = arith.constant 8 : index
    %57 = vector.load %arg12[%c0_36, %c0_37, %c0_38, %c8] : memref<1x2x128x32xf32, #tpu.memory_space<vmem>>, vector<1x1x128x8xf32>
    %58 = vector.shape_cast %57 : vector<1x1x128x8xf32> to vector<128x8xf32>
    %59 = vector.shape_cast %53 : vector<128x8xf32> to vector<1x1x128x8xf32>
    tpu.vector_store %arg12[%c0_36, %c0_37, %c0_38, %c8], %59 {strides = array<i32>} : memref<1x2x128x32xf32, #tpu.memory_space<vmem>>, vector<1x1x128x8xf32>,
    %60 = vector.extract_strided_slice %22 {offsets = [0, 16], sizes = [128, 16], strides = [1, 1]} : vector<128x128xf32> to vector<128x16xf32>
    %61 = arith.mulf %60, %60 : vector<128x16xf32>
    %cst_39 = arith.constant dense<0.000000e+00> : vector<128xf32>
    %62 = vector.multi_reduction <add>, %61, %cst_39 [1] : vector<128x16xf32> to vector<128xf32>
    %63 = vector.shape_cast %62 : vector<128xf32> to vector<128x1xf32>
    %cst_40 = arith.constant 1.600000e+01 : f32
    %64 = vector.broadcast %cst_40 : f32 to vector<128x1xf32>
    %65 = arith.divf %63, %64 : vector<128x1xf32>
    %cst_41 = arith.constant 9.99999974E-6 : f32
    %66 = vector.broadcast %cst_41 : f32 to vector<128x1xf32>
    %67 = arith.addf %65, %66 : vector<128x1xf32>
    %68 = math.rsqrt %67 : vector<128x1xf32>
    %69 = vector.broadcast %68 : vector<128x1xf32> to vector<128x16xf32>
    %70 = arith.mulf %60, %69 : vector<128x16xf32>
    %71 = vector.broadcast %31 : vector<1x16xf32> to vector<128x16xf32>
    %72 = arith.mulf %70, %71 : vector<128x16xf32>
    %73 = vector.extract_strided_slice %72 {offsets = [0, 0], sizes = [128, 8], strides = [1, 1]} : vector<128x16xf32> to vector<128x8xf32>
    %74 = vector.extract_strided_slice %72 {offsets = [0, 8], sizes = [128, 8], strides = [1, 1]} : vector<128x16xf32> to vector<128x8xf32>
    %75 = arith.mulf %24, %73 : vector<128x8xf32>
    %76 = arith.mulf %26, %74 : vector<128x8xf32>
    %77 = arith.addf %75, %76 : vector<128x8xf32>
    %78 = arith.mulf %28, %73 : vector<128x8xf32>
    %79 = arith.mulf %30, %74 : vector<128x8xf32>
    %80 = arith.addf %78, %79 : vector<128x8xf32>
    %c0_42 = arith.constant 0 : index
    %c0_43 = arith.constant 0 : index
    %c0_44 = arith.constant 0 : index
    %c16 = arith.constant 16 : index
    %81 = vector.load %arg12[%c0_42, %c0_43, %c0_44, %c16] : memref<1x2x128x32xf32, #tpu.memory_space<vmem>>, vector<1x1x128x8xf32>
    %82 = vector.shape_cast %81 : vector<1x1x128x8xf32> to vector<128x8xf32>
    %83 = vector.shape_cast %77 : vector<128x8xf32> to vector<1x1x128x8xf32>
    tpu.vector_store %arg12[%c0_42, %c0_43, %c0_44, %c16], %83 {strides = array<i32>} : memref<1x2x128x32xf32, #tpu.memory_space<vmem>>, vector<1x1x128x8xf32>,
    %c0_45 = arith.constant 0 : index
    %c0_46 = arith.constant 0 : index
    %c0_47 = arith.constant 0 : index
    %c24 = arith.constant 24 : index
    %84 = vector.load %arg12[%c0_45, %c0_46, %c0_47, %c24] : memref<1x2x128x32xf32, #tpu.memory_space<vmem>>, vector<1x1x128x8xf32>
    %85 = vector.shape_cast %84 : vector<1x1x128x8xf32> to vector<128x8xf32>
    %86 = vector.shape_cast %80 : vector<128x8xf32> to vector<1x1x128x8xf32>
    tpu.vector_store %arg12[%c0_45, %c0_46, %c0_47, %c24], %86 {strides = array<i32>} : memref<1x2x128x32xf32, #tpu.memory_space<vmem>>, vector<1x1x128x8xf32>,
    %87 = vector.extract_strided_slice %22 {offsets = [0, 32], sizes = [128, 16], strides = [1, 1]} : vector<128x128xf32> to vector<128x16xf32>
    %88 = arith.mulf %87, %87 : vector<128x16xf32>
    %cst_48 = arith.constant dense<0.000000e+00> : vector<128xf32>
    %89 = vector.multi_reduction <add>, %88, %cst_48 [1] : vector<128x16xf32> to vector<128xf32>
    %90 = vector.shape_cast %89 : vector<128xf32> to vector<128x1xf32>
    %cst_49 = arith.constant 1.600000e+01 : f32
    %91 = vector.broadcast %cst_49 : f32 to vector<128x1xf32>
    %92 = arith.divf %90, %91 : vector<128x1xf32>
    %cst_50 = arith.constant 9.99999974E-6 : f32
    %93 = vector.broadcast %cst_50 : f32 to vector<128x1xf32>
    %94 = arith.addf %92, %93 : vector<128x1xf32>
    %95 = math.rsqrt %94 : vector<128x1xf32>
    %96 = vector.broadcast %95 : vector<128x1xf32> to vector<128x16xf32>
    %97 = arith.mulf %87, %96 : vector<128x16xf32>
    %98 = vector.broadcast %31 : vector<1x16xf32> to vector<128x16xf32>
    %99 = arith.mulf %97, %98 : vector<128x16xf32>
    %100 = vector.extract_strided_slice %99 {offsets = [0, 0], sizes = [128, 8], strides = [1, 1]} : vector<128x16xf32> to vector<128x8xf32>
    %101 = vector.extract_strided_slice %99 {offsets = [0, 8], sizes = [128, 8], strides = [1, 1]} : vector<128x16xf32> to vector<128x8xf32>
    %102 = arith.mulf %24, %100 : vector<128x8xf32>
    %103 = arith.mulf %26, %101 : vector<128x8xf32>
    %104 = arith.addf %102, %103 : vector<128x8xf32>
    %105 = arith.mulf %28, %100 : vector<128x8xf32>
    %106 = arith.mulf %30, %101 : vector<128x8xf32>
    %107 = arith.addf %105, %106 : vector<128x8xf32>
    %c0_51 = arith.constant 0 : index
    %c1 = arith.constant 1 : index
    %c0_52 = arith.constant 0 : index
    %c0_53 = arith.constant 0 : index
    %108 = vector.load %arg12[%c0_51, %c1, %c0_52, %c0_53] : memref<1x2x128x32xf32, #tpu.memory_space<vmem>>, vector<1x1x128x8xf32>
    %109 = vector.shape_cast %108 : vector<1x1x128x8xf32> to vector<128x8xf32>
    %110 = vector.shape_cast %104 : vector<128x8xf32> to vector<1x1x128x8xf32>
    tpu.vector_store %arg12[%c0_51, %c1, %c0_52, %c0_53], %110 {strides = array<i32>} : memref<1x2x128x32xf32, #tpu.memory_space<vmem>>, vector<1x1x128x8xf32>,
    %c0_54 = arith.constant 0 : index
    %c1_55 = arith.constant 1 : index
    %c0_56 = arith.constant 0 : index
    %c8_57 = arith.constant 8 : index
    %111 = vector.load %arg12[%c0_54, %c1_55, %c0_56, %c8_57] : memref<1x2x128x32xf32, #tpu.memory_space<vmem>>, vector<1x1x128x8xf32>
    %112 = vector.shape_cast %111 : vector<1x1x128x8xf32> to vector<128x8xf32>
    %113 = vector.shape_cast %107 : vector<128x8xf32> to vector<1x1x128x8xf32>
    tpu.vector_store %arg12[%c0_54, %c1_55, %c0_56, %c8_57], %113 {strides = array<i32>} : memref<1x2x128x32xf32, #tpu.memory_space<vmem>>, vector<1x1x128x8xf32>,
    %114 = vector.extract_strided_slice %22 {offsets = [0, 48], sizes = [128, 16], strides = [1, 1]} : vector<128x128xf32> to vector<128x16xf32>
    %115 = arith.mulf %114, %114 : vector<128x16xf32>
    %cst_58 = arith.constant dense<0.000000e+00> : vector<128xf32>
    %116 = vector.multi_reduction <add>, %115, %cst_58 [1] : vector<128x16xf32> to vector<128xf32>
    %117 = vector.shape_cast %116 : vector<128xf32> to vector<128x1xf32>
    %cst_59 = arith.constant 1.600000e+01 : f32
    %118 = vector.broadcast %cst_59 : f32 to vector<128x1xf32>
    %119 = arith.divf %117, %118 : vector<128x1xf32>
    %cst_60 = arith.constant 9.99999974E-6 : f32
    %120 = vector.broadcast %cst_60 : f32 to vector<128x1xf32>
    %121 = arith.addf %119, %120 : vector<128x1xf32>
    %122 = math.rsqrt %121 : vector<128x1xf32>
    %123 = vector.broadcast %122 : vector<128x1xf32> to vector<128x16xf32>
    %124 = arith.mulf %114, %123 : vector<128x16xf32>
    %125 = vector.broadcast %31 : vector<1x16xf32> to vector<128x16xf32>
    %126 = arith.mulf %124, %125 : vector<128x16xf32>
    %127 = vector.extract_strided_slice %126 {offsets = [0, 0], sizes = [128, 8], strides = [1, 1]} : vector<128x16xf32> to vector<128x8xf32>
    %128 = vector.extract_strided_slice %126 {offsets = [0, 8], sizes = [128, 8], strides = [1, 1]} : vector<128x16xf32> to vector<128x8xf32>
    %129 = arith.mulf %24, %127 : vector<128x8xf32>
    %130 = arith.mulf %26, %128 : vector<128x8xf32>
    %131 = arith.addf %129, %130 : vector<128x8xf32>
    %132 = arith.mulf %28, %127 : vector<128x8xf32>
    %133 = arith.mulf %30, %128 : vector<128x8xf32>
    %134 = arith.addf %132, %133 : vector<128x8xf32>
    %c0_61 = arith.constant 0 : index
    %c1_62 = arith.constant 1 : index
    %c0_63 = arith.constant 0 : index
    %c16_64 = arith.constant 16 : index
    %135 = vector.load %arg12[%c0_61, %c1_62, %c0_63, %c16_64] : memref<1x2x128x32xf32, #tpu.memory_space<vmem>>, vector<1x1x128x8xf32>
    %136 = vector.shape_cast %135 : vector<1x1x128x8xf32> to vector<128x8xf32>
    %137 = vector.shape_cast %131 : vector<128x8xf32> to vector<1x1x128x8xf32>
    tpu.vector_store %arg12[%c0_61, %c1_62, %c0_63, %c16_64], %137 {strides = array<i32>} : memref<1x2x128x32xf32, #tpu.memory_space<vmem>>, vector<1x1x128x8xf32>,
    %c0_65 = arith.constant 0 : index
    %c1_66 = arith.constant 1 : index
    %c0_67 = arith.constant 0 : index
    %c24_68 = arith.constant 24 : index
    %138 = vector.load %arg12[%c0_65, %c1_66, %c0_67, %c24_68] : memref<1x2x128x32xf32, #tpu.memory_space<vmem>>, vector<1x1x128x8xf32>
    %139 = vector.shape_cast %138 : vector<1x1x128x8xf32> to vector<128x8xf32>
    %140 = vector.shape_cast %134 : vector<128x8xf32> to vector<1x1x128x8xf32>
    tpu.vector_store %arg12[%c0_65, %c1_66, %c0_67, %c24_68], %140 {strides = array<i32>} : memref<1x2x128x32xf32, #tpu.memory_space<vmem>>, vector<1x1x128x8xf32>,
    %141 = vector.extract_strided_slice %22 {offsets = [0, 64], sizes = [128, 16], strides = [1, 1]} : vector<128x128xf32> to vector<128x16xf32>
    %142 = arith.mulf %141, %141 : vector<128x16xf32>
    %cst_69 = arith.constant dense<0.000000e+00> : vector<128xf32>
    %143 = vector.multi_reduction <add>, %142, %cst_69 [1] : vector<128x16xf32> to vector<128xf32>
    %144 = vector.shape_cast %143 : vector<128xf32> to vector<128x1xf32>
    %cst_70 = arith.constant 1.600000e+01 : f32
    %145 = vector.broadcast %cst_70 : f32 to vector<128x1xf32>
    %146 = arith.divf %144, %145 : vector<128x1xf32>
    %cst_71 = arith.constant 9.99999974E-6 : f32
    %147 = vector.broadcast %cst_71 : f32 to vector<128x1xf32>
    %148 = arith.addf %146, %147 : vector<128x1xf32>
    %149 = math.rsqrt %148 : vector<128x1xf32>
    %150 = vector.broadcast %149 : vector<128x1xf32> to vector<128x16xf32>
    %151 = arith.mulf %141, %150 : vector<128x16xf32>
    %152 = vector.broadcast %32 : vector<1x16xf32> to vector<128x16xf32>
    %153 = arith.mulf %151, %152 : vector<128x16xf32>
    %154 = vector.extract_strided_slice %153 {offsets = [0, 0], sizes = [128, 8], strides = [1, 1]} : vector<128x16xf32> to vector<128x8xf32>
    %155 = vector.extract_strided_slice %153 {offsets = [0, 8], sizes = [128, 8], strides = [1, 1]} : vector<128x16xf32> to vector<128x8xf32>
    %156 = arith.mulf %24, %154 : vector<128x8xf32>
    %157 = arith.mulf %26, %155 : vector<128x8xf32>
    %158 = arith.addf %156, %157 : vector<128x8xf32>
    %159 = arith.mulf %28, %154 : vector<128x8xf32>
    %160 = arith.mulf %30, %155 : vector<128x8xf32>
    %161 = arith.addf %159, %160 : vector<128x8xf32>
    %c0_72 = arith.constant 0 : index
    %c0_73 = arith.constant 0 : index
    %c0_74 = arith.constant 0 : index
    %c0_75 = arith.constant 0 : index
    %162 = vector.load %arg13[%c0_72, %c0_73, %c0_74, %c0_75] : memref<1x2x128x16xf32, #tpu.memory_space<vmem>>, vector<1x1x128x8xf32>
    %163 = vector.shape_cast %162 : vector<1x1x128x8xf32> to vector<128x8xf32>
    %164 = vector.shape_cast %158 : vector<128x8xf32> to vector<1x1x128x8xf32>
    tpu.vector_store %arg13[%c0_72, %c0_73, %c0_74, %c0_75], %164 {strides = array<i32>} : memref<1x2x128x16xf32, #tpu.memory_space<vmem>>, vector<1x1x128x8xf32>,
    %c0_76 = arith.constant 0 : index
    %c0_77 = arith.constant 0 : index
    %c0_78 = arith.constant 0 : index
    %c8_79 = arith.constant 8 : index
    %165 = vector.load %arg13[%c0_76, %c0_77, %c0_78, %c8_79] : memref<1x2x128x16xf32, #tpu.memory_space<vmem>>, vector<1x1x128x8xf32>
    %166 = vector.shape_cast %165 : vector<1x1x128x8xf32> to vector<128x8xf32>
    %167 = vector.shape_cast %161 : vector<128x8xf32> to vector<1x1x128x8xf32>
    tpu.vector_store %arg13[%c0_76, %c0_77, %c0_78, %c8_79], %167 {strides = array<i32>} : memref<1x2x128x16xf32, #tpu.memory_space<vmem>>, vector<1x1x128x8xf32>,
    %168 = vector.extract_strided_slice %22 {offsets = [0, 80], sizes = [128, 16], strides = [1, 1]} : vector<128x128xf32> to vector<128x16xf32>
    %169 = arith.mulf %168, %168 : vector<128x16xf32>
    %cst_80 = arith.constant dense<0.000000e+00> : vector<128xf32>
    %170 = vector.multi_reduction <add>, %169, %cst_80 [1] : vector<128x16xf32> to vector<128xf32>
    %171 = vector.shape_cast %170 : vector<128xf32> to vector<128x1xf32>
    %cst_81 = arith.constant 1.600000e+01 : f32
    %172 = vector.broadcast %cst_81 : f32 to vector<128x1xf32>
    %173 = arith.divf %171, %172 : vector<128x1xf32>
    %cst_82 = arith.constant 9.99999974E-6 : f32
    %174 = vector.broadcast %cst_82 : f32 to vector<128x1xf32>
    %175 = arith.addf %173, %174 : vector<128x1xf32>
    %176 = math.rsqrt %175 : vector<128x1xf32>
    %177 = vector.broadcast %176 : vector<128x1xf32> to vector<128x16xf32>
    %178 = arith.mulf %168, %177 : vector<128x16xf32>
    %179 = vector.broadcast %32 : vector<1x16xf32> to vector<128x16xf32>
    %180 = arith.mulf %178, %179 : vector<128x16xf32>
    %181 = vector.extract_strided_slice %180 {offsets = [0, 0], sizes = [128, 8], strides = [1, 1]} : vector<128x16xf32> to vector<128x8xf32>
    %182 = vector.extract_strided_slice %180 {offsets = [0, 8], sizes = [128, 8], strides = [1, 1]} : vector<128x16xf32> to vector<128x8xf32>
    %183 = arith.mulf %24, %181 : vector<128x8xf32>
    %184 = arith.mulf %26, %182 : vector<128x8xf32>
    %185 = arith.addf %183, %184 : vector<128x8xf32>
    %186 = arith.mulf %28, %181 : vector<128x8xf32>
    %187 = arith.mulf %30, %182 : vector<128x8xf32>
    %188 = arith.addf %186, %187 : vector<128x8xf32>
    %c0_83 = arith.constant 0 : index
    %c1_84 = arith.constant 1 : index
    %c0_85 = arith.constant 0 : index
    %c0_86 = arith.constant 0 : index
    %189 = vector.load %arg13[%c0_83, %c1_84, %c0_85, %c0_86] : memref<1x2x128x16xf32, #tpu.memory_space<vmem>>, vector<1x1x128x8xf32>
    %190 = vector.shape_cast %189 : vector<1x1x128x8xf32> to vector<128x8xf32>
    %191 = vector.shape_cast %185 : vector<128x8xf32> to vector<1x1x128x8xf32>
    tpu.vector_store %arg13[%c0_83, %c1_84, %c0_85, %c0_86], %191 {strides = array<i32>} : memref<1x2x128x16xf32, #tpu.memory_space<vmem>>, vector<1x1x128x8xf32>,
    %c0_87 = arith.constant 0 : index
    %c1_88 = arith.constant 1 : index
    %c0_89 = arith.constant 0 : index
    %c8_90 = arith.constant 8 : index
    %192 = vector.load %arg13[%c0_87, %c1_88, %c0_89, %c8_90] : memref<1x2x128x16xf32, #tpu.memory_space<vmem>>, vector<1x1x128x8xf32>
    %193 = vector.shape_cast %192 : vector<1x1x128x8xf32> to vector<128x8xf32>
    %194 = vector.shape_cast %188 : vector<128x8xf32> to vector<1x1x128x8xf32>
    tpu.vector_store %arg13[%c0_87, %c1_88, %c0_89, %c8_90], %194 {strides = array<i32>} : memref<1x2x128x16xf32, #tpu.memory_space<vmem>>, vector<1x1x128x8xf32>,
    %195 = vector.extract_strided_slice %22 {offsets = [0, 96], sizes = [128, 16], strides = [1, 1]} : vector<128x128xf32> to vector<128x16xf32>
    %c0_91 = arith.constant 0 : index
    %c0_92 = arith.constant 0 : index
    %c0_93 = arith.constant 0 : index
    %c0_94 = arith.constant 0 : index
    %196 = vector.load %arg14[%c0_91, %c0_92, %c0_93, %c0_94] : memref<1x2x128x16xf32, #tpu.memory_space<vmem>>, vector<1x1x128x16xf32>
    %197 = vector.shape_cast %196 : vector<1x1x128x16xf32> to vector<128x16xf32>
    %198 = vector.shape_cast %195 : vector<128x16xf32> to vector<1x1x128x16xf32>
    tpu.vector_store %arg14[%c0_91, %c0_92, %c0_93, %c0_94], %198 {strides = array<i32>} : memref<1x2x128x16xf32, #tpu.memory_space<vmem>>, vector<1x1x128x16xf32>,
    %199 = vector.extract_strided_slice %22 {offsets = [0, 112], sizes = [128, 16], strides = [1, 1]} : vector<128x128xf32> to vector<128x16xf32>
    %c0_95 = arith.constant 0 : index
    %c1_96 = arith.constant 1 : index
    %c0_97 = arith.constant 0 : index
    %c0_98 = arith.constant 0 : index
    %200 = vector.load %arg14[%c0_95, %c1_96, %c0_97, %c0_98] : memref<1x2x128x16xf32, #tpu.memory_space<vmem>>, vector<1x1x128x16xf32>
    %201 = vector.shape_cast %200 : vector<1x1x128x16xf32> to vector<128x16xf32>
    %202 = vector.shape_cast %199 : vector<128x16xf32> to vector<1x1x128x16xf32>
    tpu.vector_store %arg14[%c0_95, %c1_96, %c0_97, %c0_98], %202 {strides = array<i32>} : memref<1x2x128x16xf32, #tpu.memory_space<vmem>>, vector<1x1x128x16xf32>,
    return
  }
  func.func @transform_0(%arg0: i32, %arg1: i32) -> (i32, i32, i32) {
    %c0_i32 = arith.constant 0 : i32
    %c0_i32_0 = arith.constant 0 : i32
    return %arg0, %arg1, %c0_i32 : i32, i32, i32
  }
  func.func @transform_1(%arg0: i32, %arg1: i32) -> (i32, i32, i32) {
    %c0_i32 = arith.constant 0 : i32
    %c0_i32_0 = arith.constant 0 : i32
    %c0_i32_1 = arith.constant 0 : i32
    return %arg0, %c0_i32, %c0_i32_0 : i32, i32, i32
  }
  func.func @transform_2(%arg0: i32, %arg1: i32) -> (i32, i32) {
    %c0_i32 = arith.constant 0 : i32
    %c0_i32_0 = arith.constant 0 : i32
    %c0_i32_1 = arith.constant 0 : i32
    return %c0_i32, %c0_i32_0 : i32, i32
  }
  func.func @transform_3(%arg0: i32, %arg1: i32) -> (i32, i32, i32) {
    %c0_i32 = arith.constant 0 : i32
    %c0_i32_0 = arith.constant 0 : i32
    return %arg0, %arg1, %c0_i32 : i32, i32, i32
  }
  func.func @transform_4(%arg0: i32, %arg1: i32) -> (i32, i32, i32) {
    %c0_i32 = arith.constant 0 : i32
    %c0_i32_0 = arith.constant 0 : i32
    return %arg0, %arg1, %c0_i32 : i32, i32, i32
  }
  func.func @transform_5(%arg0: i32, %arg1: i32) -> (i32, i32, i32) {
    %c0_i32 = arith.constant 0 : i32
    %c0_i32_0 = arith.constant 0 : i32
    return %arg0, %arg1, %c0_i32 : i32, i32, i32
  }
  func.func @transform_6(%arg0: i32, %arg1: i32) -> (i32, i32, i32) {
    %c0_i32 = arith.constant 0 : i32
    %c0_i32_0 = arith.constant 0 : i32
    return %arg0, %arg1, %c0_i32 : i32, i32, i32
  }
  func.func @transform_7(%arg0: i32, %arg1: i32) -> (i32, i32) {
    %c0_i32 = arith.constant 0 : i32
    %c0_i32_0 = arith.constant 0 : i32
    %c0_i32_1 = arith.constant 0 : i32
    return %c0_i32, %c0_i32_0 : i32, i32
  }
  func.func @transform_8(%arg0: i32, %arg1: i32) -> (i32, i32) {
    %c0_i32 = arith.constant 0 : i32
    %c0_i32_0 = arith.constant 0 : i32
    %c0_i32_1 = arith.constant 0 : i32
    return %c0_i32, %c0_i32_0 : i32, i32
  }
  func.func @transform_9(%arg0: i32, %arg1: i32) -> (i32, i32) {
    %c0_i32 = arith.constant 0 : i32
    %c0_i32_0 = arith.constant 0 : i32
    %c0_i32_1 = arith.constant 0 : i32
    return %c0_i32, %c0_i32_0 : i32, i32
  }
  func.func @transform_10(%arg0: i32, %arg1: i32) -> (i32, i32, i32, i32) {
    %c0_i32 = arith.constant 0 : i32
    %c0_i32_0 = arith.constant 0 : i32
    %c0_i32_1 = arith.constant 0 : i32
    return %arg0, %c0_i32, %arg1, %c0_i32_0 : i32, i32, i32, i32
  }
  func.func @transform_11(%arg0: i32, %arg1: i32) -> (i32, i32, i32, i32) {
    %c0_i32 = arith.constant 0 : i32
    %c0_i32_0 = arith.constant 0 : i32
    %c0_i32_1 = arith.constant 0 : i32
    return %arg0, %c0_i32, %arg1, %c0_i32_0 : i32, i32, i32, i32
  }
  func.func @transform_12(%arg0: i32, %arg1: i32) -> (i32, i32, i32, i32) {
    %c0_i32 = arith.constant 0 : i32
    %c0_i32_0 = arith.constant 0 : i32
    %c0_i32_1 = arith.constant 0 : i32
    return %arg0, %c0_i32, %arg1, %c0_i32_0 : i32, i32, i32, i32
  }
}

</mosaic_0001>

<llo_original>
// kernel: tpu_custom_call.1
$region0: #{tpu_custom_call.1}
  #allocation0 [shape = 'u32[]', space=smem, size = 0x4, offset = 0x4, fixed_abs, tag = 'smem constant byte address 0x4 - core index']
  #allocation1 [shape = 'u32[144,128]{1,0:T(1,128)}', space=vmem, size = 0x12000, scoped, tag = 'internal scratch']
  #allocation23 [shape = 's32[]', space=sflag, size = 0x4, offset = 0, fixed_abs, tag = 'sflag constant byte address 0x0 - dummy sync flag']
  #allocation25 [shape = 's32[]', space=sflag, size = 0x4, offset = 0, fixed_abs, tag = 'sflag constant byte address 0x0 - dummy sync flag']
  #allocation27 [shape = 's32[]', space=sflag, size = 0x4, offset = 0, fixed_abs, tag = 'sflag constant byte address 0x0 - dummy sync flag']
  %s0 = inlined_call_operand.hbm [shape: f32[2,256,64], index: 0, kind: input, shape index: {}]
  %s1 = inlined_call_operand.hbm [shape: f32[2,1,64], index: 1, kind: input, shape index: {}]
  %s2 = inlined_call_operand.hbm [shape: f32[1,64], index: 2, kind: input, shape index: {}]
  %s3 = inlined_call_operand.hbm [shape: f32[2,256,8], index: 3, kind: input, shape index: {}]
  %s4 = inlined_call_operand.hbm [shape: f32[2,256,8], index: 4, kind: input, shape index: {}]
  %s5 = inlined_call_operand.hbm [shape: f32[2,256,8], index: 5, kind: input, shape index: {}]
  %s6 = inlined_call_operand.hbm [shape: f32[2,256,8], index: 6, kind: input, shape index: {}]
  %s7 = inlined_call_operand.hbm [shape: f32[64,128], index: 7, kind: input, shape index: {}]
  %s8 = inlined_call_operand.hbm [shape: f32[1,16], index: 8, kind: input, shape index: {}]
  %s9 = inlined_call_operand.hbm [shape: f32[1,16], index: 9, kind: input, shape index: {}]
  %s10 = inlined_call_operand.hbm [shape: f32[2,2,256,32], index: 10, kind: output, shape index: {0}]
  %s11 = inlined_call_operand.hbm [shape: f32[2,2,256,16], index: 11, kind: output, shape index: {1}]
  %s12 = inlined_call_operand.hbm [shape: f32[2,2,256,16], index: 12, kind: output, shape index: {2}]
  %13 = xla_tuple %s10, %s11, %s12
  %s14 = sld [smem:[#allocation0]]
  $region129: #{tpu_custom_call.1} parent=0
    _
  %s16 = ssub.s32 1, %s14
  %s17 = scalar_select 0, %s16, %s14
  $region1: #{tpu_custom_call.1} parent=0
    #allocation2 [shape = 'u8[131072]{0}', space=vmem, size = 0x20000, scoped, tag = 'input window, operand 0']
    #allocation3 [shape = 's32[2]{0}', space=sflag, size = 0x8, scoped, tag = 'scoped memory for tpu_custom_call.1']
    #allocation4 [shape = 's32[2]{0}', space=sflag, size = 0x8, scoped, tag = 'scoped memory for tpu_custom_call.1']
    #allocation5 [shape = 'u8[1024]{0}', space=vmem, size = 0x400, scoped, tag = 'input window, operand 1']
    #allocation6 [shape = 's32[2]{0}', space=sflag, size = 0x8, scoped, tag = 'scoped memory for tpu_custom_call.1']
    #allocation7 [shape = 'u8[512]{0}', space=vmem, size = 0x400, scoped, tag = 'input window, operand 2, single buffered']
    #allocation8 [shape = 'u8[131072]{0}', space=vmem, size = 0x20000, scoped, tag = 'input window, operand 3']
    #allocation9 [shape = 's32[2]{0}', space=sflag, size = 0x8, scoped, tag = 'scoped memory for tpu_custom_call.1']
    #allocation10 [shape = 'u8[131072]{0}', space=vmem, size = 0x20000, scoped, tag = 'input window, operand 4']
    #allocation11 [shape = 'u8[131072]{0}', space=vmem, size = 0x20000, scoped, tag = 'input window, operand 5']
    #allocation12 [shape = 's32[2]{0}', space=sflag, size = 0x8, scoped, tag = 'scoped memory for tpu_custom_call.1']
    #allocation13 [shape = 'u8[131072]{0}', space=vmem, size = 0x20000, scoped, tag = 'input window, operand 6']
    #allocation14 [shape = 'u8[32768]{0}', space=vmem, size = 0x8000, scoped, tag = 'input window, operand 7, single buffered']
    #allocation15 [shape = 's32[1]{0}', space=sflag, size = 0x4, scoped, tag = 'scoped memory for tpu_custom_call.1']
    #allocation16 [shape = 'u8[512]{0}', space=vmem, size = 0x400, scoped, tag = 'input window, operand 8, single buffered']
    #allocation17 [shape = 'u8[512]{0}', space=vmem, size = 0x400, scoped, tag = 'input window, operand 9, single buffered']
    #allocation18 [shape = 's32[1]{0}', space=sflag, size = 0x4, scoped, tag = 'scoped memory for tpu_custom_call.1']
    #allocation19 [shape = 'u8[262144]{0}', space=vmem, size = 0x40000, scoped, tag = 'output window, operand 0']
    #allocation20 [shape = 'u8[262144]{0}', space=vmem, size = 0x40000, scoped, tag = 'output window, operand 1']
    #allocation21 [shape = 's32[2]{0}', space=sflag, size = 0x8, scoped, tag = 'scoped memory for tpu_custom_call.1']
    #allocation22 [shape = 'u8[262144]{0}', space=vmem, size = 0x40000, scoped, tag = 'output window, operand 2']
    %18 = vsyncpa [#allocation3], 0
    %s19 = scalar_lea.sflag [#allocation3], 1
    %20 = vsyncpa %s19, 0
    %21 = vsyncpa [#allocation6], 0
    %s22 = scalar_lea.sflag [#allocation6], 1
    %23 = vsyncpa %s22, 0
    %24 = vsyncpa [#allocation9], 0
    %s25 = scalar_lea.sflag [#allocation9], 1
    %26 = vsyncpa %s25, 0
    %27 = vsyncpa [#allocation12], 0
    %s28 = scalar_lea.sflag [#allocation12], 1
    %29 = vsyncpa %s28, 0
    %30 = vsyncpa [#allocation15], 0
    %31 = vsyncpa [#allocation18], 0
    %32 = vsyncpa [#allocation4], 0
    %s33 = scalar_lea.sflag [#allocation4], 1
    %34 = vsyncpa %s33, 0
    %35 = vsyncpa [#allocation21], 0
    %s36 = scalar_lea.sflag [#allocation21], 1
    %37 = vsyncpa %s36, 0
    loop: start=0, step=1, limit=6
    $region2: #{tpu_custom_call.1} parent=1 // loop_pre_header
      _
    $region3: #{tpu_custom_call.1} parent=1 // loop_header
      %s39 = sphi 0, %s43
      %p40 = scmp.ge.s32.totalorder %s39, 6
      %s46 = sphi 0, %s58
      %s47 = sphi 0, %s54
      %s48 = sphi 0, %s46
      %s49 = sphi 0, %s47
      %s50 = sphi 0, %s48
      %s51 = sphi 0, %s49
      %s63 = sphi 0, %s65
      %s66 = sphi 0, %s63
      %s67 = sphi 0, %s66
      %s83 = sphi 0, %s67
      %s89 = sphi 0, %s91
      %s92 = sphi 0, %s89
      %s93 = sphi 0, %s92
      %s109 = sphi 0, %s93
      %s113 = sphi 0, %s113
      %s115 = sphi 0, %s113
      %s116 = sphi 0, %s115
      %s130 = sphi 0, %s116
      %s138 = sphi 0, %s140
      %s141 = sphi 0, %s138
      %s142 = sphi 0, %s141
      %s158 = sphi 0, %s142
      %s166 = sphi 0, %s168
      %s169 = sphi 0, %s166
      %s170 = sphi 0, %s169
      %s186 = sphi 0, %s170
      %s194 = sphi 0, %s196
      %s197 = sphi 0, %s194
      %s198 = sphi 0, %s197
      %s214 = sphi 0, %s198
      %s222 = sphi 0, %s224
      %s225 = sphi 0, %s222
      %s226 = sphi 0, %s225
      %s242 = sphi 0, %s226
      %s246 = sphi 0, %s246
      %s248 = sphi 0, %s246
      %s249 = sphi 0, %s248
      %s263 = sphi 0, %s249
      %s267 = sphi 0, %s267
      %s269 = sphi 0, %s267
      %s270 = sphi 0, %s269
      %s284 = sphi 0, %s270
      %s288 = sphi 0, %s288
      %s290 = sphi 0, %s288
      %s291 = sphi 0, %s290
      %s305 = sphi 0, %s291
      %s313 = sphi 0, %s315
      %s316 = sphi 0, %s313
      %s317 = sphi 0, %s316
      %s333 = sphi 0, %s317
      %s341 = sphi 0, %s343
      %s344 = sphi 0, %s341
      %s345 = sphi 0, %s344
      %s361 = sphi 0, %s345
      %s369 = sphi 0, %s371
      %s372 = sphi 0, %s369
      %s373 = sphi 0, %s372
      %s389 = sphi 0, %s373
    $region4: #{tpu_custom_call.1} parent=1 // loop_header_branch
      %42 = sbr.rel (%p40) target = $region8
    $region5: #{tpu_custom_call.1} parent=1 // loop_body
      %s44 = ssub.s32 %s39, 1
      %s45 = ssub.s32 %s39, 2
      %s52 = sadd.s32 1, %s47
      %p53 = scmp.ge.s32.totalorder %s52, 2
      %s54 = scalar_select %p53, 0, %s52
      %s55 = sadd.s32 1, %s46
      %s56 = scalar_select %p53, %s55, %s46
      %p57 = scmp.ge.s32.totalorder %s56, 2
      %s58 = scalar_select %p57, 0, %s56
      %s59 = ssub.s32 %s46, %s58
      %s60 = ssub.s32 %s47, %s54
      %s61 = sor.u32 %s59, %s60
      %p62 = scmp.eq.s32.totalorder %s61, 0
      %s64 = sadd.s32 %s63, 1
      %s65 = scalar_select %p62, %s63, %s64
      %p68 = pneg %p62
      %p69 = scmp.eq.s32.totalorder %s39, 3
      %p70 = por %p68, %p69
      %p71 = scmp.ne.s32.totalorder %s63, %s66
      %p72 = scmp.eq.s32.totalorder %s39, 0
      %p73 = por %p71, %p72
      %p74 = scmp.ne.s32.totalorder %s63, %s66
      %p75 = scmp.eq.s32.totalorder %s44, 3
      %p76 = por %p74, %p75
      %p77 = scmp.ne.s32.totalorder %s66, %s67
      %p78 = scmp.eq.s32.totalorder %s44, 0
      %p79 = por %p77, %p78
      %p80 = scmp.ne.s32.totalorder %s66, %s67
      %p81 = scmp.eq.s32.totalorder %s45, 3
      %p82 = por %p80, %p81
      %p84 = scmp.ne.s32.totalorder %s67, %s83
      %p85 = scmp.eq.s32.totalorder %s45, 0
      %p86 = por %p84, %p85
      %s87 = ssub.s32 %s46, %s58
      %p88 = scmp.eq.s32.totalorder %s87, 0
      %s90 = sadd.s32 %s89, 1
      %s91 = scalar_select %p88, %s89, %s90
      %p94 = pneg %p88
      %p95 = scmp.eq.s32.totalorder %s39, 3
      %p96 = por %p94, %p95
      %p97 = scmp.ne.s32.totalorder %s89, %s92
      %p98 = scmp.eq.s32.totalorder %s39, 0
      %p99 = por %p97, %p98
      %p100 = scmp.ne.s32.totalorder %s89, %s92
      %p101 = scmp.eq.s32.totalorder %s44, 3
      %p102 = por %p100, %p101
      %p103 = scmp.ne.s32.totalorder %s92, %s93
      %p104 = scmp.eq.s32.totalorder %s44, 0
      %p105 = por %p103, %p104
      %p106 = scmp.ne.s32.totalorder %s92, %s93
      %p107 = scmp.eq.s32.totalorder %s45, 3
      %p108 = por %p106, %p107
      %p110 = scmp.ne.s32.totalorder %s93, %s109
      %p111 = scmp.eq.s32.totalorder %s45, 0
      %p112 = por %p110, %p111
      %s114 = sadd.s32 %s113, 1
      %p117 = scmp.eq.s32.totalorder %s39, 3
      %p118 = scmp.ne.s32.totalorder %s113, %s115
      %p119 = scmp.eq.s32.totalorder %s39, 0
      %p120 = por %p118, %p119
      %p121 = scmp.ne.s32.totalorder %s113, %s115
      %p122 = scmp.eq.s32.totalorder %s44, 3
      %p123 = por %p121, %p122
      %p124 = scmp.ne.s32.totalorder %s115, %s116
      %p125 = scmp.eq.s32.totalorder %s44, 0
      %p126 = por %p124, %p125
      %p127 = scmp.ne.s32.totalorder %s115, %s116
      %p128 = scmp.eq.s32.totalorder %s45, 3
      %p129 = por %p127, %p128
      %p131 = scmp.ne.s32.totalorder %s116, %s130
      %p132 = scmp.eq.s32.totalorder %s45, 0
      %p133 = por %p131, %p132
      %s134 = ssub.s32 %s46, %s58
      %s135 = ssub.s32 %s47, %s54
      %s136 = sor.u32 %s134, %s135
      %p137 = scmp.eq.s32.totalorder %s136, 0
      %s139 = sadd.s32 %s138, 1
      %s140 = scalar_select %p137, %s138, %s139
      %p143 = pneg %p137
      %p144 = scmp.eq.s32.totalorder %s39, 3
      %p145 = por %p143, %p144
      %p146 = scmp.ne.s32.totalorder %s138, %s141
      %p147 = scmp.eq.s32.totalorder %s39, 0
      %p148 = por %p146, %p147
      %p149 = scmp.ne.s32.totalorder %s138, %s141
      %p150 = scmp.eq.s32.totalorder %s44, 3
      %p151 = por %p149, %p150
      %p152 = scmp.ne.s32.totalorder %s141, %s142
      %p153 = scmp.eq.s32.totalorder %s44, 0
      %p154 = por %p152, %p153
      %p155 = scmp.ne.s32.totalorder %s141, %s142
      %p156 = scmp.eq.s32.totalorder %s45, 3
      %p157 = por %p155, %p156
      %p159 = scmp.ne.s32.totalorder %s142, %s158
      %p160 = scmp.eq.s32.totalorder %s45, 0
      %p161 = por %p159, %p160
      %s162 = ssub.s32 %s46, %s58
      %s163 = ssub.s32 %s47, %s54
      %s164 = sor.u32 %s162, %s163
      %p165 = scmp.eq.s32.totalorder %s164, 0
      %s167 = sadd.s32 %s166, 1
      %s168 = scalar_select %p165, %s166, %s167
      %p171 = pneg %p165
      %p172 = scmp.eq.s32.totalorder %s39, 3
      %p173 = por %p171, %p172
      %p174 = scmp.ne.s32.totalorder %s166, %s169
      %p175 = scmp.eq.s32.totalorder %s39, 0
      %p176 = por %p174, %p175
      %p177 = scmp.ne.s32.totalorder %s166, %s169
      %p178 = scmp.eq.s32.totalorder %s44, 3
      %p179 = por %p177, %p178
      %p180 = scmp.ne.s32.totalorder %s169, %s170
      %p181 = scmp.eq.s32.totalorder %s44, 0
      %p182 = por %p180, %p181
      %p183 = scmp.ne.s32.totalorder %s169, %s170
      %p184 = scmp.eq.s32.totalorder %s45, 3
      %p185 = por %p183, %p184
      %p187 = scmp.ne.s32.totalorder %s170, %s186
      %p188 = scmp.eq.s32.totalorder %s45, 0
      %p189 = por %p187, %p188
      %s190 = ssub.s32 %s46, %s58
      %s191 = ssub.s32 %s47, %s54
      %s192 = sor.u32 %s190, %s191
      %p193 = scmp.eq.s32.totalorder %s192, 0
      %s195 = sadd.s32 %s194, 1
      %s196 = scalar_select %p193, %s194, %s195
      %p199 = pneg %p193
      %p200 = scmp.eq.s32.totalorder %s39, 3
      %p201 = por %p199, %p200
      %p202 = scmp.ne.s32.totalorder %s194, %s197
      %p203 = scmp.eq.s32.totalorder %s39, 0
      %p204 = por %p202, %p203
      %p205 = scmp.ne.s32.totalorder %s194, %s197
      %p206 = scmp.eq.s32.totalorder %s44, 3
      %p207 = por %p205, %p206
      %p208 = scmp.ne.s32.totalorder %s197, %s198
      %p209 = scmp.eq.s32.totalorder %s44, 0
      %p210 = por %p208, %p209
      %p211 = scmp.ne.s32.totalorder %s197, %s198
      %p212 = scmp.eq.s32.totalorder %s45, 3
      %p213 = por %p211, %p212
      %p215 = scmp.ne.s32.totalorder %s198, %s214
      %p216 = scmp.eq.s32.totalorder %s45, 0
      %p217 = por %p215, %p216
      %s218 = ssub.s32 %s46, %s58
      %s219 = ssub.s32 %s47, %s54
      %s220 = sor.u32 %s218, %s219
      %p221 = scmp.eq.s32.totalorder %s220, 0
      %s223 = sadd.s32 %s222, 1
      %s224 = scalar_select %p221, %s222, %s223
      %p227 = pneg %p221
      %p228 = scmp.eq.s32.totalorder %s39, 3
      %p229 = por %p227, %p228
      %p230 = scmp.ne.s32.totalorder %s222, %s225
      %p231 = scmp.eq.s32.totalorder %s39, 0
      %p232 = por %p230, %p231
      %p233 = scmp.ne.s32.totalorder %s222, %s225
      %p234 = scmp.eq.s32.totalorder %s44, 3
      %p235 = por %p233, %p234
      %p236 = scmp.ne.s32.totalorder %s225, %s226
      %p237 = scmp.eq.s32.totalorder %s44, 0
      %p238 = por %p236, %p237
      %p239 = scmp.ne.s32.totalorder %s225, %s226
      %p240 = scmp.eq.s32.totalorder %s45, 3
      %p241 = por %p239, %p240
      %p243 = scmp.ne.s32.totalorder %s226, %s242
      %p244 = scmp.eq.s32.totalorder %s45, 0
      %p245 = por %p243, %p244
      %s247 = sadd.s32 %s246, 1
      %p250 = scmp.eq.s32.totalorder %s39, 3
      %p251 = scmp.ne.s32.totalorder %s246, %s248
      %p252 = scmp.eq.s32.totalorder %s39, 0
      %p253 = por %p251, %p252
      %p254 = scmp.ne.s32.totalorder %s246, %s248
      %p255 = scmp.eq.s32.totalorder %s44, 3
      %p256 = por %p254, %p255
      %p257 = scmp.ne.s32.totalorder %s248, %s249
      %p258 = scmp.eq.s32.totalorder %s44, 0
      %p259 = por %p257, %p258
      %p260 = scmp.ne.s32.totalorder %s248, %s249
      %p261 = scmp.eq.s32.totalorder %s45, 3
      %p262 = por %p260, %p261
      %p264 = scmp.ne.s32.totalorder %s249, %s263
      %p265 = scmp.eq.s32.totalorder %s45, 0
      %p266 = por %p264, %p265
      %s268 = sadd.s32 %s267, 1
      %p271 = scmp.eq.s32.totalorder %s39, 3
      %p272 = scmp.ne.s32.totalorder %s267, %s269
      %p273 = scmp.eq.s32.totalorder %s39, 0
      %p274 = por %p272, %p273
      %p275 = scmp.ne.s32.totalorder %s267, %s269
      %p276 = scmp.eq.s32.totalorder %s44, 3
      %p277 = por %p275, %p276
      %p278 = scmp.ne.s32.totalorder %s269, %s270
      %p279 = scmp.eq.s32.totalorder %s44, 0
      %p280 = por %p278, %p279
      %p281 = scmp.ne.s32.totalorder %s269, %s270
      %p282 = scmp.eq.s32.totalorder %s45, 3
      %p283 = por %p281, %p282
      %p285 = scmp.ne.s32.totalorder %s270, %s284
      %p286 = scmp.eq.s32.totalorder %s45, 0
      %p287 = por %p285, %p286
      %s289 = sadd.s32 %s288, 1
      %p292 = scmp.eq.s32.totalorder %s39, 3
      %p293 = scmp.ne.s32.totalorder %s288, %s290
      %p294 = scmp.eq.s32.totalorder %s39, 0
      %p295 = por %p293, %p294
      %p296 = scmp.ne.s32.totalorder %s288, %s290
      %p297 = scmp.eq.s32.totalorder %s44, 3
      %p298 = por %p296, %p297
      %p299 = scmp.ne.s32.totalorder %s290, %s291
      %p300 = scmp.eq.s32.totalorder %s44, 0
      %p301 = por %p299, %p300
      %p302 = scmp.ne.s32.totalorder %s290, %s291
      %p303 = scmp.eq.s32.totalorder %s45, 3
      %p304 = por %p302, %p303
      %p306 = scmp.ne.s32.totalorder %s291, %s305
      %p307 = scmp.eq.s32.totalorder %s45, 0
      %p308 = por %p306, %p307
      %s309 = ssub.s32 %s46, %s58
      %s310 = ssub.s32 %s47, %s54
      %s311 = sor.u32 %s309, %s310
      %p312 = scmp.eq.s32.totalorder %s311, 0
      %s314 = sadd.s32 %s313, 1
      %s315 = scalar_select %p312, %s313, %s314
      %p318 = pneg %p312
      %p319 = scmp.eq.s32.totalorder %s39, 3
      %p320 = por %p318, %p319
      %p321 = scmp.ne.s32.totalorder %s313, %s316
      %p322 = scmp.eq.s32.totalorder %s39, 0
      %p323 = por %p321, %p322
      %p324 = scmp.ne.s32.totalorder %s313, %s316
      %p325 = scmp.eq.s32.totalorder %s44, 3
      %p326 = por %p324, %p325
      %p327 = scmp.ne.s32.totalorder %s316, %s317
      %p328 = scmp.eq.s32.totalorder %s44, 0
      %p329 = por %p327, %p328
      %p330 = scmp.ne.s32.totalorder %s316, %s317
      %p331 = scmp.eq.s32.totalorder %s45, 3
      %p332 = por %p330, %p331
      %p334 = scmp.ne.s32.totalorder %s317, %s333
      %p335 = scmp.eq.s32.totalorder %s45, 0
      %p336 = por %p334, %p335
      %s337 = ssub.s32 %s46, %s58
      %s338 = ssub.s32 %s47, %s54
      %s339 = sor.u32 %s337, %s338
      %p340 = scmp.eq.s32.totalorder %s339, 0
      %s342 = sadd.s32 %s341, 1
      %s343 = scalar_select %p340, %s341, %s342
      %p346 = pneg %p340
      %p347 = scmp.eq.s32.totalorder %s39, 3
      %p348 = por %p346, %p347
      %p349 = scmp.ne.s32.totalorder %s341, %s344
      %p350 = scmp.eq.s32.totalorder %s39, 0
      %p351 = por %p349, %p350
      %p352 = scmp.ne.s32.totalorder %s341, %s344
      %p353 = scmp.eq.s32.totalorder %s44, 3
      %p354 = por %p352, %p353
      %p355 = scmp.ne.s32.totalorder %s344, %s345
      %p356 = scmp.eq.s32.totalorder %s44, 0
      %p357 = por %p355, %p356
      %p358 = scmp.ne.s32.totalorder %s344, %s345
      %p359 = scmp.eq.s32.totalorder %s45, 3
      %p360 = por %p358, %p359
      %p362 = scmp.ne.s32.totalorder %s345, %s361
      %p363 = scmp.eq.s32.totalorder %s45, 0
      %p364 = por %p362, %p363
      %s365 = ssub.s32 %s46, %s58
      %s366 = ssub.s32 %s47, %s54
      %s367 = sor.u32 %s365, %s366
      %p368 = scmp.eq.s32.totalorder %s367, 0
      %s370 = sadd.s32 %s369, 1
      %s371 = scalar_select %p368, %s369, %s370
      %p374 = pneg %p368
      %p375 = scmp.eq.s32.totalorder %s39, 3
      %p376 = por %p374, %p375
      %p377 = scmp.ne.s32.totalorder %s369, %s372
      %p378 = scmp.eq.s32.totalorder %s39, 0
      %p379 = por %p377, %p378
      %p380 = scmp.ne.s32.totalorder %s369, %s372
      %p381 = scmp.eq.s32.totalorder %s44, 3
      %p382 = por %p380, %p381
      %p383 = scmp.ne.s32.totalorder %s372, %s373
      %p384 = scmp.eq.s32.totalorder %s44, 0
      %p385 = por %p383, %p384
      %p386 = scmp.ne.s32.totalorder %s372, %s373
      %p387 = scmp.eq.s32.totalorder %s45, 3
      %p388 = por %p386, %p387
      %p390 = scmp.ne.s32.totalorder %s373, %s389
      %p391 = scmp.eq.s32.totalorder %s45, 0
      %p392 = por %p390, %p391
      %p393 = scmp.le.s32.totalorder 1, %s39
      %p394 = scmp.lt.s32.totalorder %s39, 5
      %p395 = pnand %p393, %p394
      %p396 = pneg %p395
      // Predicated region
      $region9: #{tpu_custom_call.1} parent=5 // pred_check
        _
      $region10: #{tpu_custom_call.1} parent=5 // pred_check_branch
        %398 = sbr.rel (%p395) target = $region12
      $region11: #{tpu_custom_call.1} parent=5 // pred_region
        %s399 = ssub.s32 %s39, 1
        // Predicated region
        $region13: #{tpu_custom_call.1} parent=11 // pred_check
          %p400 = pneg %p126
        $region14: #{tpu_custom_call.1} parent=11 // pred_check_branch
          %402 = sbr.rel (%p400) target = $region16
        $region15: #{tpu_custom_call.1} parent=11 // pred_region
          %s404 = ssub.s32 16, 16
          %405 = vsyncadd [#allocation6], %s404
          %s407 = sshll.u32 [#allocation7], 4
          %s408 = int_to_ptr.vmem [resolvable:$true] %s407
          %410 = dma.hbm_to_vmem [thread:$0]  %s2, 16, %s408, [#allocation6]
        $region16: #{tpu_custom_call.1} parent=11 // pred_fallthru
          _
        // Predicated region
        $region17: #{tpu_custom_call.1} parent=11 // pred_check
          %p411 = pneg %p259
        $region18: #{tpu_custom_call.1} parent=11 // pred_check_branch
          %413 = sbr.rel (%p411) target = $region20
        $region19: #{tpu_custom_call.1} parent=11 // pred_region
          %s415 = ssub.s32 1024, 1024
          %416 = vsyncadd [#allocation15], %s415
          %s417 = sshll.u32 [#allocation14], 4
          %s418 = int_to_ptr.vmem [resolvable:$true] %s417
          %423 = dma.hbm_to_vmem [thread:$0]  %s7, 1024, %s418, [#allocation15], 128, 128, 8
        $region20: #{tpu_custom_call.1} parent=11 // pred_fallthru
          _
        // Predicated region
        $region21: #{tpu_custom_call.1} parent=11 // pred_check
          %p424 = pneg %p280
        $region22: #{tpu_custom_call.1} parent=11 // pred_check_branch
          %426 = sbr.rel (%p424) target = $region24
        $region23: #{tpu_custom_call.1} parent=11 // pred_region
          %s428 = ssub.s32 16, 16
          %429 = vsyncadd [#allocation15], %s428
          %s431 = sshll.u32 [#allocation16], 4
          %s432 = int_to_ptr.vmem [resolvable:$true] %s431
          %434 = dma.hbm_to_vmem [thread:$0]  %s8, 16, %s432, [#allocation15]
        $region24: #{tpu_custom_call.1} parent=11 // pred_fallthru
          _
        // Predicated region
        $region25: #{tpu_custom_call.1} parent=11 // pred_check
          %p435 = pneg %p301
        $region26: #{tpu_custom_call.1} parent=11 // pred_check_branch
          %437 = sbr.rel (%p435) target = $region28
        $region27: #{tpu_custom_call.1} parent=11 // pred_region
          %s439 = ssub.s32 16, 16
          %440 = vsyncadd [#allocation18], %s439
          %s442 = sshll.u32 [#allocation17], 4
          %s443 = int_to_ptr.vmem [resolvable:$true] %s442
          %445 = dma.hbm_to_vmem [thread:$0]  %s9, 16, %s443, [#allocation18]
        $region28: #{tpu_custom_call.1} parent=11 // pred_fallthru
          _
      $region12: #{tpu_custom_call.1} parent=5 // pred_fallthru
        _
      %p446 = scmp.lt.s32.totalorder %s39, 4
      // Predicated region
      $region29: #{tpu_custom_call.1} parent=5 // pred_check
        %p447 = pneg %p446
      $region30: #{tpu_custom_call.1} parent=5 // pred_check_branch
        %449 = sbr.rel (%p447) target = $region32
      $region31: #{tpu_custom_call.1} parent=5 // pred_region
        // Predicated region
        $region33: #{tpu_custom_call.1} parent=31 // pred_check
          %p450 = pneg %p73
        $region34: #{tpu_custom_call.1} parent=31 // pred_check_branch
          %452 = sbr.rel (%p450) target = $region36
        $region35: #{tpu_custom_call.1} parent=31 // pred_region
          %s453 = sand.u32 %s63, 1
          %s454 = scalar_lea.sflag [#allocation3], %s453
          %s455 = sand.u32 %s63, 1
          %s456 = smul.addr %s455, 128
          %s457 = scalar_lea.vmem [#allocation2], %s456
          %s458 = smul.u32 16, %s47
          %s460 = ssub.s32 2048, 2048
          %461 = vsyncadd %s454, %s460
          %s462 = smul.addr %s46, 32
          %s463 = sadd.s32 %s458, %s462
          %s464 = smul.addr %s463, 128
          %s465 = scalar_lea.hbm %s0, %s464
          %s466 = sshll.u32 %s457, 4
          %s467 = int_to_ptr.vmem [resolvable:$true] %s466
          %472 = dma.hbm_to_vmem [thread:$0]  %s465, 2048, %s467, %s454, 128, 128, 8
        $region36: #{tpu_custom_call.1} parent=31 // pred_fallthru
          _
        // Predicated region
        $region37: #{tpu_custom_call.1} parent=31 // pred_check
          %p473 = pneg %p99
        $region38: #{tpu_custom_call.1} parent=31 // pred_check_branch
          %475 = sbr.rel (%p473) target = $region40
        $region39: #{tpu_custom_call.1} parent=31 // pred_region
          %s476 = sand.u32 %s39, 1
          %s477 = scalar_lea.sflag [#allocation6], %s476
          %s478 = sand.u32 %s89, 1
          %s479 = scalar_lea.vmem [#allocation5], %s478
          %s481 = ssub.s32 16, 16
          %482 = vsyncadd %s477, %s481
          %s483 = smul.addr %s46, 16
          %s484 = scalar_lea.hbm %s1, %s483
          %s486 = sshll.u32 %s479, 4
          %s487 = int_to_ptr.vmem [resolvable:$true] %s486
          %489 = dma.hbm_to_vmem [thread:$0]  %s484, 16, %s487, %s477
        $region40: #{tpu_custom_call.1} parent=31 // pred_fallthru
          _
        // Predicated region
        $region41: #{tpu_custom_call.1} parent=31 // pred_check
          %p490 = pneg %p148
        $region42: #{tpu_custom_call.1} parent=31 // pred_check_branch
          %492 = sbr.rel (%p490) target = $region44
        $region43: #{tpu_custom_call.1} parent=31 // pred_region
          %s493 = sand.u32 %s39, 1
          %s494 = scalar_lea.sflag [#allocation9], %s493
          %s495 = sand.u32 %s138, 1
          %s496 = smul.addr %s495, 128
          %s497 = scalar_lea.vmem [#allocation8], %s496
          %s498 = smul.u32 16, %s47
          %s500 = ssub.s32 2048, 2048
          %501 = vsyncadd %s494, %s500
          %s502 = smul.addr %s46, 32
          %s503 = sadd.s32 %s498, %s502
          %s504 = smul.addr %s503, 128
          %s505 = scalar_lea.hbm %s3, %s504
          %s506 = sshll.u32 %s497, 4
          %s507 = int_to_ptr.vmem [resolvable:$true] %s506
          %512 = dma.hbm_to_vmem [thread:$0]  %s505, 2048, %s507, %s494, 128, 128, 8
        $region44: #{tpu_custom_call.1} parent=31 // pred_fallthru
          _
        // Predicated region
        $region45: #{tpu_custom_call.1} parent=31 // pred_check
          %p513 = pneg %p176
        $region46: #{tpu_custom_call.1} parent=31 // pred_check_branch
          %515 = sbr.rel (%p513) target = $region48
        $region47: #{tpu_custom_call.1} parent=31 // pred_region
          %s516 = sand.u32 %s39, 1
          %s517 = scalar_lea.sflag [#allocation9], %s516
          %s518 = sand.u32 %s166, 1
          %s519 = smul.addr %s518, 128
          %s520 = scalar_lea.vmem [#allocation10], %s519
          %s521 = smul.u32 16, %s47
          %s523 = ssub.s32 2048, 2048
          %524 = vsyncadd %s517, %s523
          %s525 = smul.addr %s46, 32
          %s526 = sadd.s32 %s521, %s525
          %s527 = smul.addr %s526, 128
          %s528 = scalar_lea.hbm %s4, %s527
          %s529 = sshll.u32 %s520, 4
          %s530 = int_to_ptr.vmem [resolvable:$true] %s529
          %535 = dma.hbm_to_vmem [thread:$0]  %s528, 2048, %s530, %s517, 128, 128, 8
        $region48: #{tpu_custom_call.1} parent=31 // pred_fallthru
          _
        // Predicated region
        $region49: #{tpu_custom_call.1} parent=31 // pred_check
          %p536 = pneg %p204
        $region50: #{tpu_custom_call.1} parent=31 // pred_check_branch
          %538 = sbr.rel (%p536) target = $region52
        $region51: #{tpu_custom_call.1} parent=31 // pred_region
          %s539 = sand.u32 %s39, 1
          %s540 = scalar_lea.sflag [#allocation12], %s539
          %s541 = sand.u32 %s194, 1
          %s542 = smul.addr %s541, 128
          %s543 = scalar_lea.vmem [#allocation11], %s542
          %s544 = smul.u32 16, %s47
          %s546 = ssub.s32 2048, 2048
          %547 = vsyncadd %s540, %s546
          %s548 = smul.addr %s46, 32
          %s549 = sadd.s32 %s544, %s548
          %s550 = smul.addr %s549, 128
          %s551 = scalar_lea.hbm %s5, %s550
          %s552 = sshll.u32 %s543, 4
          %s553 = int_to_ptr.vmem [resolvable:$true] %s552
          %558 = dma.hbm_to_vmem [thread:$0]  %s551, 2048, %s553, %s540, 128, 128, 8
        $region52: #{tpu_custom_call.1} parent=31 // pred_fallthru
          _
        // Predicated region
        $region53: #{tpu_custom_call.1} parent=31 // pred_check
          %p559 = pneg %p232
        $region54: #{tpu_custom_call.1} parent=31 // pred_check_branch
          %561 = sbr.rel (%p559) target = $region56
        $region55: #{tpu_custom_call.1} parent=31 // pred_region
          %s562 = sand.u32 %s39, 1
          %s563 = scalar_lea.sflag [#allocation12], %s562
          %s564 = sand.u32 %s222, 1
          %s565 = smul.addr %s564, 128
          %s566 = scalar_lea.vmem [#allocation13], %s565
          %s567 = smul.u32 16, %s47
          %s569 = ssub.s32 2048, 2048
          %570 = vsyncadd %s563, %s569
          %s571 = smul.addr %s46, 32
          %s572 = sadd.s32 %s567, %s571
          %s573 = smul.addr %s572, 128
          %s574 = scalar_lea.hbm %s6, %s573
          %s575 = sshll.u32 %s566, 4
          %s576 = int_to_ptr.vmem [resolvable:$true] %s575
          %581 = dma.hbm_to_vmem [thread:$0]  %s574, 2048, %s576, %s563, 128, 128, 8
        $region56: #{tpu_custom_call.1} parent=31 // pred_fallthru
          _
      $region32: #{tpu_custom_call.1} parent=5 // pred_fallthru
        _
      %p582 = scmp.le.s32.totalorder 1, %s39
      %p583 = scmp.lt.s32.totalorder %s39, 5
      %p584 = pnand %p582, %p583
      %p585 = pneg %p584
      // Predicated region
      $region57: #{tpu_custom_call.1} parent=5 // pred_check
        _
      $region58: #{tpu_custom_call.1} parent=5 // pred_check_branch
        %587 = sbr.rel (%p584) target = $region60
      $region59: #{tpu_custom_call.1} parent=5 // pred_region
        %s588 = ssub.s32 %s39, 1
        %s589 = sand.u32 %s66, 1
        %s590 = scalar_lea.sflag [#allocation3], %s589
        %s591 = sand.u32 %s66, 1
        %s592 = smul.addr %s591, 128
        %s593 = scalar_lea.vmem [#allocation2], %s592
        // Predicated region
        $region61: #{tpu_custom_call.1} parent=59 // pred_check
          %p594 = pneg %p79
        $region62: #{tpu_custom_call.1} parent=59 // pred_check_branch
          %596 = sbr.rel (%p594) target = $region64
        $region63: #{tpu_custom_call.1} parent=59 // pred_region
          %597 = dma.done %s590, 2048
        $region64: #{tpu_custom_call.1} parent=59 // pred_fallthru
          _
        %s598 = sand.u32 %s44, 1
        %s599 = scalar_lea.sflag [#allocation6], %s598
        %s600 = sand.u32 %s92, 1
        %s601 = scalar_lea.vmem [#allocation5], %s600
        // Predicated region
        $region65: #{tpu_custom_call.1} parent=59 // pred_check
          %p602 = pneg %p105
        $region66: #{tpu_custom_call.1} parent=59 // pred_check_branch
          %604 = sbr.rel (%p602) target = $region68
        $region67: #{tpu_custom_call.1} parent=59 // pred_region
          %605 = dma.done %s599, 16
        $region68: #{tpu_custom_call.1} parent=59 // pred_fallthru
          _
        // Predicated region
        $region69: #{tpu_custom_call.1} parent=59 // pred_check
          %p606 = pneg %p126
        $region70: #{tpu_custom_call.1} parent=59 // pred_check_branch
          %608 = sbr.rel (%p606) target = $region72
        $region71: #{tpu_custom_call.1} parent=59 // pred_region
          %609 = dma.done [#allocation6], 16
        $region72: #{tpu_custom_call.1} parent=59 // pred_fallthru
          _
        %s610 = sand.u32 %s44, 1
        %s611 = scalar_lea.sflag [#allocation9], %s610
        %s612 = sand.u32 %s141, 1
        %s613 = smul.addr %s612, 128
        %s614 = scalar_lea.vmem [#allocation8], %s613
        // Predicated region
        $region73: #{tpu_custom_call.1} parent=59 // pred_check
          %p615 = pneg %p154
        $region74: #{tpu_custom_call.1} parent=59 // pred_check_branch
          %617 = sbr.rel (%p615) target = $region76
        $region75: #{tpu_custom_call.1} parent=59 // pred_region
          %618 = dma.done %s611, 2048
        $region76: #{tpu_custom_call.1} parent=59 // pred_fallthru
          _
        %s619 = sand.u32 %s44, 1
        %s620 = scalar_lea.sflag [#allocation9], %s619
        %s621 = sand.u32 %s169, 1
        %s622 = smul.addr %s621, 128
        %s623 = scalar_lea.vmem [#allocation10], %s622
        // Predicated region
        $region77: #{tpu_custom_call.1} parent=59 // pred_check
          %p624 = pneg %p182
        $region78: #{tpu_custom_call.1} parent=59 // pred_check_branch
          %626 = sbr.rel (%p624) target = $region80
        $region79: #{tpu_custom_call.1} parent=59 // pred_region
          %627 = dma.done %s620, 2048
        $region80: #{tpu_custom_call.1} parent=59 // pred_fallthru
          _
        %s628 = sand.u32 %s44, 1
        %s629 = scalar_lea.sflag [#allocation12], %s628
        %s630 = sand.u32 %s197, 1
        %s631 = smul.addr %s630, 128
        %s632 = scalar_lea.vmem [#allocation11], %s631
        // Predicated region
        $region81: #{tpu_custom_call.1} parent=59 // pred_check
          %p633 = pneg %p210
        $region82: #{tpu_custom_call.1} parent=59 // pred_check_branch
          %635 = sbr.rel (%p633) target = $region84
        $region83: #{tpu_custom_call.1} parent=59 // pred_region
          %636 = dma.done %s629, 2048
        $region84: #{tpu_custom_call.1} parent=59 // pred_fallthru
          _
        %s637 = sand.u32 %s44, 1
        %s638 = scalar_lea.sflag [#allocation12], %s637
        %s639 = sand.u32 %s225, 1
        %s640 = smul.addr %s639, 128
        %s641 = scalar_lea.vmem [#allocation13], %s640
        // Predicated region
        $region85: #{tpu_custom_call.1} parent=59 // pred_check
          %p642 = pneg %p238
        $region86: #{tpu_custom_call.1} parent=59 // pred_check_branch
          %644 = sbr.rel (%p642) target = $region88
        $region87: #{tpu_custom_call.1} parent=59 // pred_region
          %645 = dma.done %s638, 2048
        $region88: #{tpu_custom_call.1} parent=59 // pred_fallthru
          _
        // Predicated region
        $region89: #{tpu_custom_call.1} parent=59 // pred_check
          %p646 = pneg %p259
        $region90: #{tpu_custom_call.1} parent=59 // pred_check_branch
          %648 = sbr.rel (%p646) target = $region92
        $region91: #{tpu_custom_call.1} parent=59 // pred_region
          %649 = dma.done [#allocation15], 1024
        $region92: #{tpu_custom_call.1} parent=59 // pred_fallthru
          _
        // Predicated region
        $region93: #{tpu_custom_call.1} parent=59 // pred_check
          %p650 = pneg %p280
        $region94: #{tpu_custom_call.1} parent=59 // pred_check_branch
          %652 = sbr.rel (%p650) target = $region96
        $region95: #{tpu_custom_call.1} parent=59 // pred_region
          %653 = dma.done [#allocation15], 16
        $region96: #{tpu_custom_call.1} parent=59 // pred_fallthru
          _
        // Predicated region
        $region97: #{tpu_custom_call.1} parent=59 // pred_check
          %p654 = pneg %p301
        $region98: #{tpu_custom_call.1} parent=59 // pred_check_branch
          %656 = sbr.rel (%p654) target = $region100
        $region99: #{tpu_custom_call.1} parent=59 // pred_region
          %657 = dma.done [#allocation18], 16
        $region100: #{tpu_custom_call.1} parent=59 // pred_fallthru
          _
        %s658 = sand.u32 %s66, 1
        %s659 = scalar_lea.sflag [#allocation3], %s658
        %s660 = sand.u32 %s66, 1
        %s661 = smul.addr %s660, 128
        %s662 = scalar_lea.vmem [#allocation2], %s661
        %p663 = pneg %p79
        %p664 = pneg %p76
        %s665 = sand.u32 %s44, 1
        %s666 = scalar_lea.sflag [#allocation6], %s665
        %s667 = sand.u32 %s92, 1
        %s668 = scalar_lea.vmem [#allocation5], %s667
        %p669 = pneg %p105
        %p670 = pneg %p102
        %p671 = pneg %p126
        %p672 = pneg %p123
        %s673 = sand.u32 %s44, 1
        %s674 = scalar_lea.sflag [#allocation9], %s673
        %s675 = sand.u32 %s141, 1
        %s676 = smul.addr %s675, 128
        %s677 = scalar_lea.vmem [#allocation8], %s676
        %p678 = pneg %p154
        %p679 = pneg %p151
        %s680 = sand.u32 %s44, 1
        %s681 = scalar_lea.sflag [#allocation9], %s680
        %s682 = sand.u32 %s169, 1
        %s683 = smul.addr %s682, 128
        %s684 = scalar_lea.vmem [#allocation10], %s683
        %p685 = pneg %p182
        %p686 = pneg %p179
        %s687 = sand.u32 %s44, 1
        %s688 = scalar_lea.sflag [#allocation12], %s687
        %s689 = sand.u32 %s197, 1
        %s690 = smul.addr %s689, 128
        %s691 = scalar_lea.vmem [#allocation11], %s690
        %p692 = pneg %p210
        %p693 = pneg %p207
        %s694 = sand.u32 %s44, 1
        %s695 = scalar_lea.sflag [#allocation12], %s694
        %s696 = sand.u32 %s225, 1
        %s697 = smul.addr %s696, 128
        %s698 = scalar_lea.vmem [#allocation13], %s697
        %p699 = pneg %p238
        %p700 = pneg %p235
        %p701 = pneg %p259
        %p702 = pneg %p256
        %p703 = pneg %p280
        %p704 = pneg %p277
        %p705 = pneg %p301
        %p706 = pneg %p298
        %p707 = pneg %p329
        %p708 = pneg %p326
        %s709 = sand.u32 %s316, 1
        %s710 = scalar_lea.sflag [#allocation4], %s709
        %s711 = sand.u32 %s316, 1
        %s712 = smul.addr %s711, 256
        %s713 = scalar_lea.vmem [#allocation19], %s712
        %p714 = pneg %p357
        %p715 = pneg %p354
        %s716 = sand.u32 %s44, 1
        %s717 = scalar_lea.sflag [#allocation21], %s716
        %s718 = sand.u32 %s344, 1
        %s719 = smul.addr %s718, 256
        %s720 = scalar_lea.vmem [#allocation20], %s719
        %p721 = pneg %p385
        %p722 = pneg %p382
        %s723 = sand.u32 %s44, 1
        %s724 = scalar_lea.sflag [#allocation21], %s723
        %s725 = sand.u32 %s372, 1
        %s726 = smul.addr %s725, 256
        %s727 = scalar_lea.vmem [#allocation22], %s726
        %s728 = smul.u32 16, %s49
        %s729 = smul.u32 16, %s49
        %s730 = smul.u32 16, %s49
        %s731 = smul.u32 16, %s49
        %s732 = smul.u32 16, %s49
        %s733 = smul.u32 16, %s49
        %s734 = smul.u32 16, %s49
        %s735 = smul.u32 16, %s49
        %v736 = vld [vmem:[%s593] sm:$0xff]
        %v737 = vld [vmem:[%s593 + $0x8] sm:$0xff]
        %v738 = vld [vmem:[%s593 + $0x10] sm:$0xff]
        %v739 = vld [vmem:[%s593 + $0x18] sm:$0xff]
        %v740 = vld [vmem:[%s593 + $0x20] sm:$0xff]
        %v741 = vld [vmem:[%s593 + $0x28] sm:$0xff]
        %v742 = vld [vmem:[%s593 + $0x30] sm:$0xff]
        %v743 = vld [vmem:[%s593 + $0x38] sm:$0xff]
        %v744 = vld [vmem:[%s593 + $0x40] sm:$0xff]
        %v745 = vld [vmem:[%s593 + $0x48] sm:$0xff]
        %v746 = vld [vmem:[%s593 + $0x50] sm:$0xff]
        %v747 = vld [vmem:[%s593 + $0x58] sm:$0xff]
        %v748 = vld [vmem:[%s593 + $0x60] sm:$0xff]
        %v749 = vld [vmem:[%s593 + $0x68] sm:$0xff]
        %v750 = vld [vmem:[%s593 + $0x70] sm:$0xff]
        %v751 = vld [vmem:[%s593 + $0x78] sm:$0xff]
        %v752 = vld [vmem:[#allocation7] sm:$0x1]
        %v753 = vmul.f32 %v736, %v736
        %v754 = vmul.f32 %v737, %v737
        %v755 = vmul.f32 %v738, %v738
        %v756 = vmul.f32 %v739, %v739
        %v757 = vmul.f32 %v740, %v740
        %v758 = vmul.f32 %v741, %v741
        %v759 = vmul.f32 %v742, %v742
        %v760 = vmul.f32 %v743, %v743
        %v761 = vmul.f32 %v744, %v744
        %v762 = vmul.f32 %v745, %v745
        %v763 = vmul.f32 %v746, %v746
        %v764 = vmul.f32 %v747, %v747
        %v765 = vmul.f32 %v748, %v748
        %v766 = vmul.f32 %v749, %v749
        %v767 = vmul.f32 %v750, %v750
        %v768 = vmul.f32 %v751, %v751
        %vm769 = vcmask 523264
        %v770 = vsel %vm769, %v753, 0.0
        %771 = vadd.xlane.f32.xlu0 %v770
        %v772 = vpop.xlane.xlu0 %771
        %v773 = vsel %vm769, %v754, 0.0
        %774 = vadd.xlane.f32.xlu0 %v773
        %v775 = vpop.xlane.xlu0 %774
        %v776 = vsel %vm769, %v755, 0.0
        %777 = vadd.xlane.f32.xlu0 %v776
        %v778 = vpop.xlane.xlu0 %777
        %v779 = vsel %vm769, %v756, 0.0
        %780 = vadd.xlane.f32.xlu0 %v779
        %v781 = vpop.xlane.xlu0 %780
        %v782 = vsel %vm769, %v757, 0.0
        %783 = vadd.xlane.f32.xlu0 %v782
        %v784 = vpop.xlane.xlu0 %783
        %v785 = vsel %vm769, %v758, 0.0
        %786 = vadd.xlane.f32.xlu0 %v785
        %v787 = vpop.xlane.xlu0 %786
        %v788 = vsel %vm769, %v759, 0.0
        %789 = vadd.xlane.f32.xlu0 %v788
        %v790 = vpop.xlane.xlu0 %789
        %v791 = vsel %vm769, %v760, 0.0
        %792 = vadd.xlane.f32.xlu0 %v791
        %v793 = vpop.xlane.xlu0 %792
        %v794 = vsel %vm769, %v761, 0.0
        %795 = vadd.xlane.f32.xlu0 %v794
        %v796 = vpop.xlane.xlu0 %795
        %v797 = vsel %vm769, %v762, 0.0
        %798 = vadd.xlane.f32.xlu0 %v797
        %v799 = vpop.xlane.xlu0 %798
        %v800 = vsel %vm769, %v763, 0.0
        %801 = vadd.xlane.f32.xlu0 %v800
        %v802 = vpop.xlane.xlu0 %801
        %v803 = vsel %vm769, %v764, 0.0
        %804 = vadd.xlane.f32.xlu0 %v803
        %v805 = vpop.xlane.xlu0 %804
        %v806 = vsel %vm769, %v765, 0.0
        %807 = vadd.xlane.f32.xlu0 %v806
        %v808 = vpop.xlane.xlu0 %807
        %v809 = vsel %vm769, %v766, 0.0
        %810 = vadd.xlane.f32.xlu0 %v809
        %v811 = vpop.xlane.xlu0 %810
        %v812 = vsel %vm769, %v767, 0.0
        %813 = vadd.xlane.f32.xlu0 %v812
        %v814 = vpop.xlane.xlu0 %813
        %v815 = vsel %vm769, %v768, 0.0
        %816 = vadd.xlane.f32.xlu0 %v815
        %v817 = vpop.xlane.xlu0 %816
        %v818 = vrcp.pop 64.0
        %v819 = vmul.f32 %v772, %v818
        %v820 = vmul.f32 %v775, %v818
        %v821 = vmul.f32 %v778, %v818
        %v822 = vmul.f32 %v781, %v818
        %v823 = vmul.f32 %v784, %v818
        %v824 = vmul.f32 %v787, %v818
        %v825 = vmul.f32 %v790, %v818
        %v826 = vmul.f32 %v793, %v818
        %v827 = vmul.f32 %v796, %v818
        %v828 = vmul.f32 %v799, %v818
        %v829 = vmul.f32 %v802, %v818
        %v830 = vmul.f32 %v805, %v818
        %v831 = vmul.f32 %v808, %v818
        %v832 = vmul.f32 %v811, %v818
        %v833 = vmul.f32 %v814, %v818
        %v834 = vmul.f32 %v817, %v818
        %v835 = vadd.f32 %v819, 1e-05
        %v836 = vadd.f32 %v820, 1e-05
        %v837 = vadd.f32 %v821, 1e-05
        %v838 = vadd.f32 %v822, 1e-05
        %v839 = vadd.f32 %v823, 1e-05
        %v840 = vadd.f32 %v824, 1e-05
        %v841 = vadd.f32 %v825, 1e-05
        %v842 = vadd.f32 %v826, 1e-05
        %v843 = vadd.f32 %v827, 1e-05
        %v844 = vadd.f32 %v828, 1e-05
        %v845 = vadd.f32 %v829, 1e-05
        %v846 = vadd.f32 %v830, 1e-05
        %v847 = vadd.f32 %v831, 1e-05
        %v848 = vadd.f32 %v832, 1e-05
        %v849 = vadd.f32 %v833, 1e-05
        %v850 = vadd.f32 %v834, 1e-05
        %v851 = vrsqrt.pop %v835
        %v852 = vrsqrt.pop %v836
        %v853 = vrsqrt.pop %v837
        %v854 = vrsqrt.pop %v838
        %v855 = vrsqrt.pop %v839
        %v856 = vrsqrt.pop %v840
        %v857 = vrsqrt.pop %v841
        %v858 = vrsqrt.pop %v842
        %v859 = vrsqrt.pop %v843
        %v860 = vrsqrt.pop %v844
        %v861 = vrsqrt.pop %v845
        %v862 = vrsqrt.pop %v846
        %v863 = vrsqrt.pop %v847
        %v864 = vrsqrt.pop %v848
        %v865 = vrsqrt.pop %v849
        %v866 = vrsqrt.pop %v850
        %v867 = vmul.f32 %v736, %v851
        %v868 = vmul.f32 %v737, %v852
        %v869 = vmul.f32 %v738, %v853
        %v870 = vmul.f32 %v739, %v854
        %v871 = vmul.f32 %v740, %v855
        %v872 = vmul.f32 %v741, %v856
        %v873 = vmul.f32 %v742, %v857
        %v874 = vmul.f32 %v743, %v858
        %v875 = vmul.f32 %v744, %v859
        %v876 = vmul.f32 %v745, %v860
        %v877 = vmul.f32 %v746, %v861
        %v878 = vmul.f32 %v747, %v862
        %v879 = vmul.f32 %v748, %v863
        %v880 = vmul.f32 %v749, %v864
        %v881 = vmul.f32 %v750, %v865
        %v882 = vmul.f32 %v751, %v866
        %v884 = vlaneseq
        %v885 = vshrl.u32 %v884, 7
        %v886 = vsub.s32 0, %v885
        %v887 = vrot.slane %v752, %v886
        %v889 = vmul.f32 %v867, %v887
        %v890 = vmul.f32 %v868, %v887
        %v891 = vmul.f32 %v869, %v887
        %v892 = vmul.f32 %v870, %v887
        %v893 = vmul.f32 %v871, %v887
        %v894 = vmul.f32 %v872, %v887
        %v895 = vmul.f32 %v873, %v887
        %v896 = vmul.f32 %v874, %v887
        %v897 = vmul.f32 %v875, %v887
        %v898 = vmul.f32 %v876, %v887
        %v899 = vmul.f32 %v877, %v887
        %v900 = vmul.f32 %v878, %v887
        %v901 = vmul.f32 %v879, %v887
        %v902 = vmul.f32 %v880, %v887
        %v903 = vmul.f32 %v881, %v887
        %v904 = vmul.f32 %v882, %v887
        %v905 = vld [vmem:[%s601] sm:$0x1]
        %v906 = vadd.f32 %v905, 1.0
        %v908 = vlaneseq
        %v909 = vshrl.u32 %v908, 7
        %v910 = vsub.s32 0, %v909
        %v911 = vrot.slane %v906, %v910
        %v913 = vmul.f32 %v889, %v911
        %v914 = vmul.f32 %v890, %v911
        %v915 = vmul.f32 %v891, %v911
        %v916 = vmul.f32 %v892, %v911
        %v917 = vmul.f32 %v893, %v911
        %v918 = vmul.f32 %v894, %v911
        %v919 = vmul.f32 %v895, %v911
        %v920 = vmul.f32 %v896, %v911
        %v921 = vmul.f32 %v897, %v911
        %v922 = vmul.f32 %v898, %v911
        %v923 = vmul.f32 %v899, %v911
        %v924 = vmul.f32 %v900, %v911
        %v925 = vmul.f32 %v901, %v911
        %v926 = vmul.f32 %v902, %v911
        %v927 = vmul.f32 %v903, %v911
        %v928 = vmul.f32 %v904, %v911
        %v929 = vld [vmem:[#allocation14] sm:$0xff]
        %v930 = vld [vmem:[#allocation14 + $0x8] sm:$0xff]
        %v931 = vld [vmem:[#allocation14 + $0x10] sm:$0xff]
        %v932 = vld [vmem:[#allocation14 + $0x18] sm:$0xff]
        %v933 = vld [vmem:[#allocation14 + $0x20] sm:$0xff]
        %v934 = vld [vmem:[#allocation14 + $0x28] sm:$0xff]
        %v935 = vld [vmem:[#allocation14 + $0x30] sm:$0xff]
        %v936 = vld [vmem:[#allocation14 + $0x38] sm:$0xff]
        %v938 = vsel %vm769, %v913, 0
        %v941 = vsel %vm769, %v914, 0
        %v944 = vsel %vm769, %v915, 0
        %v947 = vsel %vm769, %v916, 0
        %v950 = vsel %vm769, %v917, 0
        %v953 = vsel %vm769, %v918, 0
        %v956 = vsel %vm769, %v919, 0
        %v959 = vsel %vm769, %v920, 0
        %v962 = vsel %vm769, %v921, 0
        %v965 = vsel %vm769, %v922, 0
        %v968 = vsel %vm769, %v923, 0
        %v971 = vsel %vm769, %v924, 0
        %v974 = vsel %vm769, %v925, 0
        %v977 = vsel %vm769, %v926, 0
        %v980 = vsel %vm769, %v927, 0
        %v983 = vsel %vm769, %v928, 0
        %985 = vmatprep.subr.mxu0 0.0
        %986 = vmatpush1.msra.mxu0 %v929
        %987 = vmatprep.subr.mxu0 0.0
        %988 = vmatpush1.msra.mxu0 %v930
        %989 = vmatprep.subr.mxu0 0.0
        %990 = vmatpush1.msra.mxu0 %v931
        %991 = vmatprep.subr.mxu0 0.0
        %992 = vmatpush1.msra.mxu0 %v932
        %993 = vmatprep.subr.mxu0 0.0
        %994 = vmatpush1.msra.mxu0 %v933
        %995 = vmatprep.subr.mxu0 0.0
        %996 = vmatpush1.msra.mxu0 %v934
        %997 = vmatprep.subr.mxu0 0.0
        %998 = vmatpush1.msra.mxu0 %v935
        %999 = vmatprep.subr.mxu0 0.0
        %1000 = vmatpush1.msra.mxu0 %v936
        %1001 = vmatprep.subr.mxu0 0.0
        %1002 = vmatpush1.msra.mxu0 0.0
        %1003 = vmatprep.subr.mxu0 0.0
        %1004 = vmatpush1.msra.mxu0 0.0
        %1005 = vmatprep.subr.mxu0 0.0
        %1006 = vmatpush1.msra.mxu0 0.0
        %1007 = vmatprep.subr.mxu0 0.0
        %1008 = vmatpush1.msra.mxu0 0.0
        %1009 = vmatprep.subr.mxu0 0.0
        %1010 = vmatpush1.msra.mxu0 0.0
        %1011 = vmatprep.subr.mxu0 0.0
        %1012 = vmatpush1.msra.mxu0 0.0
        %1013 = vmatprep.subr.mxu0 0.0
        %1014 = vmatpush1.msra.mxu0 0.0
        %1015 = vmatprep.subr.mxu0 0.0
        %1016 = vmatpush1.msra.mxu0 0.0
        %1017 = vmatprep.subr.mxu0 0.0
        %1018 = vmatpush1.msra.mxu0 0.0
        %1019 = vmatprep.subr.mxu0 0.0
        %1020 = vmatpush1.msra.mxu0 0.0
        %1021 = vmatprep.subr.mxu0 0.0
        %1022 = vmatpush1.msra.mxu0 0.0
        %1023 = vmatprep.subr.mxu0 0.0
        %1024 = vmatpush1.msra.mxu0 0.0
        %1025 = vmatprep.subr.mxu0 0.0
        %1026 = vmatpush1.msra.mxu0 0.0
        %1027 = vmatprep.subr.mxu0 0.0
        %1028 = vmatpush1.msra.mxu0 0.0
        %1029 = vmatprep.subr.mxu0 0.0
        %1030 = vmatpush1.msra.mxu0 0.0
        %1031 = vmatprep.subr.mxu0 0.0
        %1032 = vmatpush1.msra.mxu0 0.0
        %1033 = vmatprep.subr.mxu0 0.0
        %1034 = vmatpush1.msra.mxu0 0.0
        %1035 = vmatprep.subr.mxu0 0.0
        %1036 = vmatpush1.msra.mxu0 0.0
        %1037 = vmatprep.subr.mxu0 0.0
        %1038 = vmatpush1.msra.mxu0 0.0
        %1039 = vmatprep.subr.mxu0 0.0
        %1040 = vmatpush1.msra.mxu0 0.0
        %1041 = vmatprep.subr.mxu0 0.0
        %1042 = vmatpush1.msra.mxu0 0.0
        %1043 = vmatprep.subr.mxu0 0.0
        %1044 = vmatpush1.msra.mxu0 0.0
        %1045 = vmatprep.subr.mxu0 0.0
        %1046 = vmatpush1.msra.mxu0 0.0
        %1047 = vmatprep.subr.mxu0 0.0
        %1048 = vmatpush1.msra.mxu0 0.0
        %1049 = vmatprep.mubr.f32.mxu0 0.0
        %1050 = vmatmul.mubr.f32.gmra.mrb[0].mxu0 %v938
        %v1051 = vpop.f32.mrb[0].mxu0
        %v1052 = vadd.f32 0.0, %v1051
        %v1053 = vpop.f32.mrb[0].mxu0
        %1054 = vmatprep.mubr.f32.mxu0 0.0
        %1055 = vmatmul.mubr.f32.gmra.mrb[0].mxu0 %v941
        %v1056 = vpop.f32.mrb[0].mxu0
        %v1057 = vadd.f32 0.0, %v1056
        %v1058 = vpop.f32.mrb[0].mxu0
        %1059 = vmatprep.mubr.f32.mxu0 0.0
        %1060 = vmatmul.mubr.f32.gmra.mrb[0].mxu0 %v944
        %v1061 = vpop.f32.mrb[0].mxu0
        %v1062 = vadd.f32 0.0, %v1061
        %v1063 = vpop.f32.mrb[0].mxu0
        %1064 = vmatprep.mubr.f32.mxu0 0.0
        %1065 = vmatmul.mubr.f32.gmra.mrb[0].mxu0 %v947
        %v1066 = vpop.f32.mrb[0].mxu0
        %v1067 = vadd.f32 0.0, %v1066
        %v1068 = vpop.f32.mrb[0].mxu0
        %1069 = vmatprep.mubr.f32.mxu0 0.0
        %1070 = vmatmul.mubr.f32.gmra.mrb[0].mxu0 %v950
        %v1071 = vpop.f32.mrb[0].mxu0
        %v1072 = vadd.f32 0.0, %v1071
        %v1073 = vpop.f32.mrb[0].mxu0
        %1074 = vmatprep.mubr.f32.mxu0 0.0
        %1075 = vmatmul.mubr.f32.gmra.mrb[0].mxu0 %v953
        %v1076 = vpop.f32.mrb[0].mxu0
        %v1077 = vadd.f32 0.0, %v1076
        %v1078 = vpop.f32.mrb[0].mxu0
        %1079 = vmatprep.mubr.f32.mxu0 0.0
        %1080 = vmatmul.mubr.f32.gmra.mrb[0].mxu0 %v956
        %v1081 = vpop.f32.mrb[0].mxu0
        %v1082 = vadd.f32 0.0, %v1081
        %v1083 = vpop.f32.mrb[0].mxu0
        %1084 = vmatprep.mubr.f32.mxu0 0.0
        %1085 = vmatmul.mubr.f32.gmra.mrb[0].mxu0 %v959
        %v1086 = vpop.f32.mrb[0].mxu0
        %v1087 = vadd.f32 0.0, %v1086
        %v1088 = vpop.f32.mrb[0].mxu0
        %1089 = vmatprep.mubr.f32.mxu0 0.0
        %1090 = vmatmul.mubr.f32.gmra.mrb[0].mxu0 %v962
        %v1091 = vpop.f32.mrb[0].mxu0
        %v1092 = vadd.f32 0.0, %v1091
        %v1093 = vpop.f32.mrb[0].mxu0
        %1094 = vmatprep.mubr.f32.mxu0 0.0
        %1095 = vmatmul.mubr.f32.gmra.mrb[0].mxu0 %v965
        %v1096 = vpop.f32.mrb[0].mxu0
        %v1097 = vadd.f32 0.0, %v1096
        %v1098 = vpop.f32.mrb[0].mxu0
        %1099 = vmatprep.mubr.f32.mxu0 0.0
        %1100 = vmatmul.mubr.f32.gmra.mrb[0].mxu0 %v968
        %v1101 = vpop.f32.mrb[0].mxu0
        %v1102 = vadd.f32 0.0, %v1101
        %v1103 = vpop.f32.mrb[0].mxu0
        %1104 = vmatprep.mubr.f32.mxu0 0.0
        %1105 = vmatmul.mubr.f32.gmra.mrb[0].mxu0 %v971
        %v1106 = vpop.f32.mrb[0].mxu0
        %v1107 = vadd.f32 0.0, %v1106
        %v1108 = vpop.f32.mrb[0].mxu0
        %1109 = vmatprep.mubr.f32.mxu0 0.0
        %1110 = vmatmul.mubr.f32.gmra.mrb[0].mxu0 %v974
        %v1111 = vpop.f32.mrb[0].mxu0
        %v1112 = vadd.f32 0.0, %v1111
        %v1113 = vpop.f32.mrb[0].mxu0
        %1114 = vmatprep.mubr.f32.mxu0 0.0
        %1115 = vmatmul.mubr.f32.gmra.mrb[0].mxu0 %v977
        %v1116 = vpop.f32.mrb[0].mxu0
        %v1117 = vadd.f32 0.0, %v1116
        %v1118 = vpop.f32.mrb[0].mxu0
        %1119 = vmatprep.mubr.f32.mxu0 0.0
        %1120 = vmatmul.mubr.f32.gmra.mrb[0].mxu0 %v980
        %v1121 = vpop.f32.mrb[0].mxu0
        %v1122 = vadd.f32 0.0, %v1121
        %v1123 = vpop.f32.mrb[0].mxu0
        %1124 = vmatprep.mubr.f32.mxu0 0.0
        %1125 = vmatmul.mubr.f32.gmra.mrb[0].mxu0 %v983
        %v1126 = vpop.f32.mrb[0].mxu0
        %v1127 = vadd.f32 0.0, %v1126
        %v1128 = vpop.f32.mrb[0].mxu0
        %1129 = vdwg.mxu0
        %v1130 = vld [vmem:[%s614] sm:$0xff]
        %v1131 = vld [vmem:[%s614 + $0x8] sm:$0xff]
        %v1132 = vld [vmem:[%s614 + $0x10] sm:$0xff]
        %v1133 = vld [vmem:[%s614 + $0x18] sm:$0xff]
        %v1134 = vld [vmem:[%s614 + $0x20] sm:$0xff]
        %v1135 = vld [vmem:[%s614 + $0x28] sm:$0xff]
        %v1136 = vld [vmem:[%s614 + $0x30] sm:$0xff]
        %v1137 = vld [vmem:[%s614 + $0x38] sm:$0xff]
        %v1138 = vld [vmem:[%s614 + $0x40] sm:$0xff]
        %v1139 = vld [vmem:[%s614 + $0x48] sm:$0xff]
        %v1140 = vld [vmem:[%s614 + $0x50] sm:$0xff]
        %v1141 = vld [vmem:[%s614 + $0x58] sm:$0xff]
        %v1142 = vld [vmem:[%s614 + $0x60] sm:$0xff]
        %v1143 = vld [vmem:[%s614 + $0x68] sm:$0xff]
        %v1144 = vld [vmem:[%s614 + $0x70] sm:$0xff]
        %v1145 = vld [vmem:[%s614 + $0x78] sm:$0xff]
        %v1146 = vld [vmem:[%s623] sm:$0xff]
        %v1147 = vld [vmem:[%s623 + $0x8] sm:$0xff]
        %v1148 = vld [vmem:[%s623 + $0x10] sm:$0xff]
        %v1149 = vld [vmem:[%s623 + $0x18] sm:$0xff]
        %v1150 = vld [vmem:[%s623 + $0x20] sm:$0xff]
        %v1151 = vld [vmem:[%s623 + $0x28] sm:$0xff]
        %v1152 = vld [vmem:[%s623 + $0x30] sm:$0xff]
        %v1153 = vld [vmem:[%s623 + $0x38] sm:$0xff]
        %v1154 = vld [vmem:[%s623 + $0x40] sm:$0xff]
        %v1155 = vld [vmem:[%s623 + $0x48] sm:$0xff]
        %v1156 = vld [vmem:[%s623 + $0x50] sm:$0xff]
        %v1157 = vld [vmem:[%s623 + $0x58] sm:$0xff]
        %v1158 = vld [vmem:[%s623 + $0x60] sm:$0xff]
        %v1159 = vld [vmem:[%s623 + $0x68] sm:$0xff]
        %v1160 = vld [vmem:[%s623 + $0x70] sm:$0xff]
        %v1161 = vld [vmem:[%s623 + $0x78] sm:$0xff]
        %v1162 = vld [vmem:[%s632] sm:$0xff]
        %v1163 = vld [vmem:[%s632 + $0x8] sm:$0xff]
        %v1164 = vld [vmem:[%s632 + $0x10] sm:$0xff]
        %v1165 = vld [vmem:[%s632 + $0x18] sm:$0xff]
        %v1166 = vld [vmem:[%s632 + $0x20] sm:$0xff]
        %v1167 = vld [vmem:[%s632 + $0x28] sm:$0xff]
        %v1168 = vld [vmem:[%s632 + $0x30] sm:$0xff]
        %v1169 = vld [vmem:[%s632 + $0x38] sm:$0xff]
        %v1170 = vld [vmem:[%s632 + $0x40] sm:$0xff]
        %v1171 = vld [vmem:[%s632 + $0x48] sm:$0xff]
        %v1172 = vld [vmem:[%s632 + $0x50] sm:$0xff]
        %v1173 = vld [vmem:[%s632 + $0x58] sm:$0xff]
        %v1174 = vld [vmem:[%s632 + $0x60] sm:$0xff]
        %v1175 = vld [vmem:[%s632 + $0x68] sm:$0xff]
        %v1176 = vld [vmem:[%s632 + $0x70] sm:$0xff]
        %v1177 = vld [vmem:[%s632 + $0x78] sm:$0xff]
        %v1178 = vld [vmem:[%s641] sm:$0xff]
        %v1179 = vld [vmem:[%s641 + $0x8] sm:$0xff]
        %v1180 = vld [vmem:[%s641 + $0x10] sm:$0xff]
        %v1181 = vld [vmem:[%s641 + $0x18] sm:$0xff]
        %v1182 = vld [vmem:[%s641 + $0x20] sm:$0xff]
        %v1183 = vld [vmem:[%s641 + $0x28] sm:$0xff]
        %v1184 = vld [vmem:[%s641 + $0x30] sm:$0xff]
        %v1185 = vld [vmem:[%s641 + $0x38] sm:$0xff]
        %v1186 = vld [vmem:[%s641 + $0x40] sm:$0xff]
        %v1187 = vld [vmem:[%s641 + $0x48] sm:$0xff]
        %v1188 = vld [vmem:[%s641 + $0x50] sm:$0xff]
        %v1189 = vld [vmem:[%s641 + $0x58] sm:$0xff]
        %v1190 = vld [vmem:[%s641 + $0x60] sm:$0xff]
        %v1191 = vld [vmem:[%s641 + $0x68] sm:$0xff]
        %v1192 = vld [vmem:[%s641 + $0x70] sm:$0xff]
        %v1193 = vld [vmem:[%s641 + $0x78] sm:$0xff]
        %v1194 = vld [vmem:[#allocation16] sm:$0x1]
        %v1195 = vld [vmem:[#allocation17] sm:$0x1]
        %v1196 = vmul.f32 %v1052, %v1052
        %v1197 = vmul.f32 %v1057, %v1057
        %v1198 = vmul.f32 %v1062, %v1062
        %v1199 = vmul.f32 %v1067, %v1067
        %v1200 = vmul.f32 %v1072, %v1072
        %v1201 = vmul.f32 %v1077, %v1077
        %v1202 = vmul.f32 %v1082, %v1082
        %v1203 = vmul.f32 %v1087, %v1087
        %v1204 = vmul.f32 %v1092, %v1092
        %v1205 = vmul.f32 %v1097, %v1097
        %v1206 = vmul.f32 %v1102, %v1102
        %v1207 = vmul.f32 %v1107, %v1107
        %v1208 = vmul.f32 %v1112, %v1112
        %v1209 = vmul.f32 %v1117, %v1117
        %v1210 = vmul.f32 %v1122, %v1122
        %v1211 = vmul.f32 %v1127, %v1127
        %vm1212 = vcmask 130048
        %v1213 = vsel %vm1212, %v1196, 0.0
        %1214 = vadd.xlane.f32.xlu0 %v1213
        %v1215 = vpop.xlane.xlu0 %1214
        %v1216 = vsel %vm1212, %v1197, 0.0
        %1217 = vadd.xlane.f32.xlu0 %v1216
        %v1218 = vpop.xlane.xlu0 %1217
        %v1219 = vsel %vm1212, %v1198, 0.0
        %1220 = vadd.xlane.f32.xlu0 %v1219
        %v1221 = vpop.xlane.xlu0 %1220
        %v1222 = vsel %vm1212, %v1199, 0.0
        %1223 = vadd.xlane.f32.xlu0 %v1222
        %v1224 = vpop.xlane.xlu0 %1223
        %v1225 = vsel %vm1212, %v1200, 0.0
        %1226 = vadd.xlane.f32.xlu0 %v1225
        %v1227 = vpop.xlane.xlu0 %1226
        %v1228 = vsel %vm1212, %v1201, 0.0
        %1229 = vadd.xlane.f32.xlu0 %v1228
        %v1230 = vpop.xlane.xlu0 %1229
        %v1231 = vsel %vm1212, %v1202, 0.0
        %1232 = vadd.xlane.f32.xlu0 %v1231
        %v1233 = vpop.xlane.xlu0 %1232
        %v1234 = vsel %vm1212, %v1203, 0.0
        %1235 = vadd.xlane.f32.xlu0 %v1234
        %v1236 = vpop.xlane.xlu0 %1235
        %v1237 = vsel %vm1212, %v1204, 0.0
        %1238 = vadd.xlane.f32.xlu0 %v1237
        %v1239 = vpop.xlane.xlu0 %1238
        %v1240 = vsel %vm1212, %v1205, 0.0
        %1241 = vadd.xlane.f32.xlu0 %v1240
        %v1242 = vpop.xlane.xlu0 %1241
        %v1243 = vsel %vm1212, %v1206, 0.0
        %1244 = vadd.xlane.f32.xlu0 %v1243
        %v1245 = vpop.xlane.xlu0 %1244
        %v1246 = vsel %vm1212, %v1207, 0.0
        %1247 = vadd.xlane.f32.xlu0 %v1246
        %v1248 = vpop.xlane.xlu0 %1247
        %v1249 = vsel %vm1212, %v1208, 0.0
        %1250 = vadd.xlane.f32.xlu0 %v1249
        %v1251 = vpop.xlane.xlu0 %1250
        %v1252 = vsel %vm1212, %v1209, 0.0
        %1253 = vadd.xlane.f32.xlu0 %v1252
        %v1254 = vpop.xlane.xlu0 %1253
        %v1255 = vsel %vm1212, %v1210, 0.0
        %1256 = vadd.xlane.f32.xlu0 %v1255
        %v1257 = vpop.xlane.xlu0 %1256
        %v1258 = vsel %vm1212, %v1211, 0.0
        %1259 = vadd.xlane.f32.xlu0 %v1258
        %v1260 = vpop.xlane.xlu0 %1259
        %v1261 = vrcp.pop 16.0
        %v1262 = vmul.f32 %v1215, %v1261
        %v1263 = vmul.f32 %v1218, %v1261
        %v1264 = vmul.f32 %v1221, %v1261
        %v1265 = vmul.f32 %v1224, %v1261
        %v1266 = vmul.f32 %v1227, %v1261
        %v1267 = vmul.f32 %v1230, %v1261
        %v1268 = vmul.f32 %v1233, %v1261
        %v1269 = vmul.f32 %v1236, %v1261
        %v1270 = vmul.f32 %v1239, %v1261
        %v1271 = vmul.f32 %v1242, %v1261
        %v1272 = vmul.f32 %v1245, %v1261
        %v1273 = vmul.f32 %v1248, %v1261
        %v1274 = vmul.f32 %v1251, %v1261
        %v1275 = vmul.f32 %v1254, %v1261
        %v1276 = vmul.f32 %v1257, %v1261
        %v1277 = vmul.f32 %v1260, %v1261
        %v1278 = vadd.f32 %v1262, 1e-05
        %v1279 = vadd.f32 %v1263, 1e-05
        %v1280 = vadd.f32 %v1264, 1e-05
        %v1281 = vadd.f32 %v1265, 1e-05
        %v1282 = vadd.f32 %v1266, 1e-05
        %v1283 = vadd.f32 %v1267, 1e-05
        %v1284 = vadd.f32 %v1268, 1e-05
        %v1285 = vadd.f32 %v1269, 1e-05
        %v1286 = vadd.f32 %v1270, 1e-05
        %v1287 = vadd.f32 %v1271, 1e-05
        %v1288 = vadd.f32 %v1272, 1e-05
        %v1289 = vadd.f32 %v1273, 1e-05
        %v1290 = vadd.f32 %v1274, 1e-05
        %v1291 = vadd.f32 %v1275, 1e-05
        %v1292 = vadd.f32 %v1276, 1e-05
        %v1293 = vadd.f32 %v1277, 1e-05
        %v1294 = vrsqrt.pop %v1278
        %v1295 = vrsqrt.pop %v1279
        %v1296 = vrsqrt.pop %v1280
        %v1297 = vrsqrt.pop %v1281
        %v1298 = vrsqrt.pop %v1282
        %v1299 = vrsqrt.pop %v1283
        %v1300 = vrsqrt.pop %v1284
        %v1301 = vrsqrt.pop %v1285
        %v1302 = vrsqrt.pop %v1286
        %v1303 = vrsqrt.pop %v1287
        %v1304 = vrsqrt.pop %v1288
        %v1305 = vrsqrt.pop %v1289
        %v1306 = vrsqrt.pop %v1290
        %v1307 = vrsqrt.pop %v1291
        %v1308 = vrsqrt.pop %v1292
        %v1309 = vrsqrt.pop %v1293
        %v1310 = vmul.f32 %v1052, %v1294
        %v1311 = vmul.f32 %v1057, %v1295
        %v1312 = vmul.f32 %v1062, %v1296
        %v1313 = vmul.f32 %v1067, %v1297
        %v1314 = vmul.f32 %v1072, %v1298
        %v1315 = vmul.f32 %v1077, %v1299
        %v1316 = vmul.f32 %v1082, %v1300
        %v1317 = vmul.f32 %v1087, %v1301
        %v1318 = vmul.f32 %v1092, %v1302
        %v1319 = vmul.f32 %v1097, %v1303
        %v1320 = vmul.f32 %v1102, %v1304
        %v1321 = vmul.f32 %v1107, %v1305
        %v1322 = vmul.f32 %v1112, %v1306
        %v1323 = vmul.f32 %v1117, %v1307
        %v1324 = vmul.f32 %v1122, %v1308
        %v1325 = vmul.f32 %v1127, %v1309
        %v1327 = vlaneseq
        %v1328 = vshrl.u32 %v1327, 7
        %v1329 = vsub.s32 0, %v1328
        %v1330 = vrot.slane %v1194, %v1329
        %v1332 = vmul.f32 %v1310, %v1330
        %v1333 = vmul.f32 %v1311, %v1330
        %v1334 = vmul.f32 %v1312, %v1330
        %v1335 = vmul.f32 %v1313, %v1330
        %v1336 = vmul.f32 %v1314, %v1330
        %v1337 = vmul.f32 %v1315, %v1330
        %v1338 = vmul.f32 %v1316, %v1330
        %v1339 = vmul.f32 %v1317, %v1330
        %v1340 = vmul.f32 %v1318, %v1330
        %v1341 = vmul.f32 %v1319, %v1330
        %v1342 = vmul.f32 %v1320, %v1330
        %v1343 = vmul.f32 %v1321, %v1330
        %v1344 = vmul.f32 %v1322, %v1330
        %v1345 = vmul.f32 %v1323, %v1330
        %v1346 = vmul.f32 %v1324, %v1330
        %v1347 = vmul.f32 %v1325, %v1330
        %v1348 = vmul.f32 %v1130, %v1332
        %v1349 = vmul.f32 %v1131, %v1333
        %v1350 = vmul.f32 %v1132, %v1334
        %v1351 = vmul.f32 %v1133, %v1335
        %v1352 = vmul.f32 %v1134, %v1336
        %v1353 = vmul.f32 %v1135, %v1337
        %v1354 = vmul.f32 %v1136, %v1338
        %v1355 = vmul.f32 %v1137, %v1339
        %v1356 = vmul.f32 %v1138, %v1340
        %v1357 = vmul.f32 %v1139, %v1341
        %v1358 = vmul.f32 %v1140, %v1342
        %v1359 = vmul.f32 %v1141, %v1343
        %v1360 = vmul.f32 %v1142, %v1344
        %v1361 = vmul.f32 %v1143, %v1345
        %v1362 = vmul.f32 %v1144, %v1346
        %v1363 = vmul.f32 %v1145, %v1347
        %1380 = vrot.lane.b32.xlu0 %v1332, 120
        %v1381 = vpop.permute.xlu0 %1380
        %1382 = vrot.lane.b32.xlu0 %v1333, 120
        %v1383 = vpop.permute.xlu0 %1382
        %1384 = vrot.lane.b32.xlu0 %v1334, 120
        %v1385 = vpop.permute.xlu0 %1384
        %1386 = vrot.lane.b32.xlu0 %v1335, 120
        %v1387 = vpop.permute.xlu0 %1386
        %1388 = vrot.lane.b32.xlu0 %v1336, 120
        %v1389 = vpop.permute.xlu0 %1388
        %1390 = vrot.lane.b32.xlu0 %v1337, 120
        %v1391 = vpop.permute.xlu0 %1390
        %1392 = vrot.lane.b32.xlu0 %v1338, 120
        %v1393 = vpop.permute.xlu0 %1392
        %1394 = vrot.lane.b32.xlu0 %v1339, 120
        %v1395 = vpop.permute.xlu0 %1394
        %1396 = vrot.lane.b32.xlu0 %v1340, 120
        %v1397 = vpop.permute.xlu0 %1396
        %1398 = vrot.lane.b32.xlu0 %v1341, 120
        %v1399 = vpop.permute.xlu0 %1398
        %1400 = vrot.lane.b32.xlu0 %v1342, 120
        %v1401 = vpop.permute.xlu0 %1400
        %1402 = vrot.lane.b32.xlu0 %v1343, 120
        %v1403 = vpop.permute.xlu0 %1402
        %1404 = vrot.lane.b32.xlu0 %v1344, 120
        %v1405 = vpop.permute.xlu0 %1404
        %1406 = vrot.lane.b32.xlu0 %v1345, 120
        %v1407 = vpop.permute.xlu0 %1406
        %1408 = vrot.lane.b32.xlu0 %v1346, 120
        %v1409 = vpop.permute.xlu0 %1408
        %1410 = vrot.lane.b32.xlu0 %v1347, 120
        %v1411 = vpop.permute.xlu0 %1410
        %v1428 = vmul.f32 %v1146, %v1381
        %v1429 = vmul.f32 %v1147, %v1383
        %v1430 = vmul.f32 %v1148, %v1385
        %v1431 = vmul.f32 %v1149, %v1387
        %v1432 = vmul.f32 %v1150, %v1389
        %v1433 = vmul.f32 %v1151, %v1391
        %v1434 = vmul.f32 %v1152, %v1393
        %v1435 = vmul.f32 %v1153, %v1395
        %v1436 = vmul.f32 %v1154, %v1397
        %v1437 = vmul.f32 %v1155, %v1399
        %v1438 = vmul.f32 %v1156, %v1401
        %v1439 = vmul.f32 %v1157, %v1403
        %v1440 = vmul.f32 %v1158, %v1405
        %v1441 = vmul.f32 %v1159, %v1407
        %v1442 = vmul.f32 %v1160, %v1409
        %v1443 = vmul.f32 %v1161, %v1411
        %v1444 = vadd.f32 %v1348, %v1428
        %v1445 = vadd.f32 %v1349, %v1429
        %v1446 = vadd.f32 %v1350, %v1430
        %v1447 = vadd.f32 %v1351, %v1431
        %v1448 = vadd.f32 %v1352, %v1432
        %v1449 = vadd.f32 %v1353, %v1433
        %v1450 = vadd.f32 %v1354, %v1434
        %v1451 = vadd.f32 %v1355, %v1435
        %v1452 = vadd.f32 %v1356, %v1436
        %v1453 = vadd.f32 %v1357, %v1437
        %v1454 = vadd.f32 %v1358, %v1438
        %v1455 = vadd.f32 %v1359, %v1439
        %v1456 = vadd.f32 %v1360, %v1440
        %v1457 = vadd.f32 %v1361, %v1441
        %v1458 = vadd.f32 %v1362, %v1442
        %v1459 = vadd.f32 %v1363, %v1443
        %v1460 = vmul.f32 %v1162, %v1332
        %v1461 = vmul.f32 %v1163, %v1333
        %v1462 = vmul.f32 %v1164, %v1334
        %v1463 = vmul.f32 %v1165, %v1335
        %v1464 = vmul.f32 %v1166, %v1336
        %v1465 = vmul.f32 %v1167, %v1337
        %v1466 = vmul.f32 %v1168, %v1338
        %v1467 = vmul.f32 %v1169, %v1339
        %v1468 = vmul.f32 %v1170, %v1340
        %v1469 = vmul.f32 %v1171, %v1341
        %v1470 = vmul.f32 %v1172, %v1342
        %v1471 = vmul.f32 %v1173, %v1343
        %v1472 = vmul.f32 %v1174, %v1344
        %v1473 = vmul.f32 %v1175, %v1345
        %v1474 = vmul.f32 %v1176, %v1346
        %v1475 = vmul.f32 %v1177, %v1347
        %v1476 = vmul.f32 %v1178, %v1381
        %v1477 = vmul.f32 %v1179, %v1383
        %v1478 = vmul.f32 %v1180, %v1385
        %v1479 = vmul.f32 %v1181, %v1387
        %v1480 = vmul.f32 %v1182, %v1389
        %v1481 = vmul.f32 %v1183, %v1391
        %v1482 = vmul.f32 %v1184, %v1393
        %v1483 = vmul.f32 %v1185, %v1395
        %v1484 = vmul.f32 %v1186, %v1397
        %v1485 = vmul.f32 %v1187, %v1399
        %v1486 = vmul.f32 %v1188, %v1401
        %v1487 = vmul.f32 %v1189, %v1403
        %v1488 = vmul.f32 %v1190, %v1405
        %v1489 = vmul.f32 %v1191, %v1407
        %v1490 = vmul.f32 %v1192, %v1409
        %v1491 = vmul.f32 %v1193, %v1411
        %v1492 = vadd.f32 %v1460, %v1476
        %v1493 = vadd.f32 %v1461, %v1477
        %v1494 = vadd.f32 %v1462, %v1478
        %v1495 = vadd.f32 %v1463, %v1479
        %v1496 = vadd.f32 %v1464, %v1480
        %v1497 = vadd.f32 %v1465, %v1481
        %v1498 = vadd.f32 %v1466, %v1482
        %v1499 = vadd.f32 %v1467, %v1483
        %v1500 = vadd.f32 %v1468, %v1484
        %v1501 = vadd.f32 %v1469, %v1485
        %v1502 = vadd.f32 %v1470, %v1486
        %v1503 = vadd.f32 %v1471, %v1487
        %v1504 = vadd.f32 %v1472, %v1488
        %v1505 = vadd.f32 %v1473, %v1489
        %v1506 = vadd.f32 %v1474, %v1490
        %v1507 = vadd.f32 %v1475, %v1491
        %vm1508 = vcmask 64512
        %1509 = vst.msk [vmem:[%s713] sm:$0xff] %vm1508, %v1444
        %1510 = vst.msk [vmem:[%s713 + $0x8] sm:$0xff] %vm1508, %v1445
        %1511 = vst.msk [vmem:[%s713 + $0x10] sm:$0xff] %vm1508, %v1446
        %1512 = vst.msk [vmem:[%s713 + $0x18] sm:$0xff] %vm1508, %v1447
        %1513 = vst.msk [vmem:[%s713 + $0x20] sm:$0xff] %vm1508, %v1448
        %1514 = vst.msk [vmem:[%s713 + $0x28] sm:$0xff] %vm1508, %v1449
        %1515 = vst.msk [vmem:[%s713 + $0x30] sm:$0xff] %vm1508, %v1450
        %1516 = vst.msk [vmem:[%s713 + $0x38] sm:$0xff] %vm1508, %v1451
        %1517 = vst.msk [vmem:[%s713 + $0x40] sm:$0xff] %vm1508, %v1452
        %1518 = vst.msk [vmem:[%s713 + $0x48] sm:$0xff] %vm1508, %v1453
        %1519 = vst.msk [vmem:[%s713 + $0x50] sm:$0xff] %vm1508, %v1454
        %1520 = vst.msk [vmem:[%s713 + $0x58] sm:$0xff] %vm1508, %v1455
        %1521 = vst.msk [vmem:[%s713 + $0x60] sm:$0xff] %vm1508, %v1456
        %1522 = vst.msk [vmem:[%s713 + $0x68] sm:$0xff] %vm1508, %v1457
        %1523 = vst.msk [vmem:[%s713 + $0x70] sm:$0xff] %vm1508, %v1458
        %1524 = vst.msk [vmem:[%s713 + $0x78] sm:$0xff] %vm1508, %v1459
        %1541 = vrot.lane.b32.xlu0 %v1492, 8
        %v1542 = vpop.permute.xlu0 %1541
        %1543 = vrot.lane.b32.xlu0 %v1493, 8
        %v1544 = vpop.permute.xlu0 %1543
        %1545 = vrot.lane.b32.xlu0 %v1494, 8
        %v1546 = vpop.permute.xlu0 %1545
        %1547 = vrot.lane.b32.xlu0 %v1495, 8
        %v1548 = vpop.permute.xlu0 %1547
        %1549 = vrot.lane.b32.xlu0 %v1496, 8
        %v1550 = vpop.permute.xlu0 %1549
        %1551 = vrot.lane.b32.xlu0 %v1497, 8
        %v1552 = vpop.permute.xlu0 %1551
        %1553 = vrot.lane.b32.xlu0 %v1498, 8
        %v1554 = vpop.permute.xlu0 %1553
        %1555 = vrot.lane.b32.xlu0 %v1499, 8
        %v1556 = vpop.permute.xlu0 %1555
        %1557 = vrot.lane.b32.xlu0 %v1500, 8
        %v1558 = vpop.permute.xlu0 %1557
        %1559 = vrot.lane.b32.xlu0 %v1501, 8
        %v1560 = vpop.permute.xlu0 %1559
        %1561 = vrot.lane.b32.xlu0 %v1502, 8
        %v1562 = vpop.permute.xlu0 %1561
        %1563 = vrot.lane.b32.xlu0 %v1503, 8
        %v1564 = vpop.permute.xlu0 %1563
        %1565 = vrot.lane.b32.xlu0 %v1504, 8
        %v1566 = vpop.permute.xlu0 %1565
        %1567 = vrot.lane.b32.xlu0 %v1505, 8
        %v1568 = vpop.permute.xlu0 %1567
        %1569 = vrot.lane.b32.xlu0 %v1506, 8
        %v1570 = vpop.permute.xlu0 %1569
        %1571 = vrot.lane.b32.xlu0 %v1507, 8
        %v1572 = vpop.permute.xlu0 %1571
        %vm1589 = vcmask 130112
        %1590 = vst.msk [vmem:[%s713] sm:$0xff] %vm1589, %v1542
        %1591 = vst.msk [vmem:[%s713 + $0x8] sm:$0xff] %vm1589, %v1544
        %1592 = vst.msk [vmem:[%s713 + $0x10] sm:$0xff] %vm1589, %v1546
        %1593 = vst.msk [vmem:[%s713 + $0x18] sm:$0xff] %vm1589, %v1548
        %1594 = vst.msk [vmem:[%s713 + $0x20] sm:$0xff] %vm1589, %v1550
        %1595 = vst.msk [vmem:[%s713 + $0x28] sm:$0xff] %vm1589, %v1552
        %1596 = vst.msk [vmem:[%s713 + $0x30] sm:$0xff] %vm1589, %v1554
        %1597 = vst.msk [vmem:[%s713 + $0x38] sm:$0xff] %vm1589, %v1556
        %1598 = vst.msk [vmem:[%s713 + $0x40] sm:$0xff] %vm1589, %v1558
        %1599 = vst.msk [vmem:[%s713 + $0x48] sm:$0xff] %vm1589, %v1560
        %1600 = vst.msk [vmem:[%s713 + $0x50] sm:$0xff] %vm1589, %v1562
        %1601 = vst.msk [vmem:[%s713 + $0x58] sm:$0xff] %vm1589, %v1564
        %1602 = vst.msk [vmem:[%s713 + $0x60] sm:$0xff] %vm1589, %v1566
        %1603 = vst.msk [vmem:[%s713 + $0x68] sm:$0xff] %vm1589, %v1568
        %1604 = vst.msk [vmem:[%s713 + $0x70] sm:$0xff] %vm1589, %v1570
        %1605 = vst.msk [vmem:[%s713 + $0x78] sm:$0xff] %vm1589, %v1572
        %1622 = vrot.lane.b32.xlu0 %v1196, 112
        %v1623 = vpop.permute.xlu0 %1622
        %1624 = vrot.lane.b32.xlu0 %v1197, 112
        %v1625 = vpop.permute.xlu0 %1624
        %1626 = vrot.lane.b32.xlu0 %v1198, 112
        %v1627 = vpop.permute.xlu0 %1626
        %1628 = vrot.lane.b32.xlu0 %v1199, 112
        %v1629 = vpop.permute.xlu0 %1628
        %1630 = vrot.lane.b32.xlu0 %v1200, 112
        %v1631 = vpop.permute.xlu0 %1630
        %1632 = vrot.lane.b32.xlu0 %v1201, 112
        %v1633 = vpop.permute.xlu0 %1632
        %1634 = vrot.lane.b32.xlu0 %v1202, 112
        %v1635 = vpop.permute.xlu0 %1634
        %1636 = vrot.lane.b32.xlu0 %v1203, 112
        %v1637 = vpop.permute.xlu0 %1636
        %1638 = vrot.lane.b32.xlu0 %v1204, 112
        %v1639 = vpop.permute.xlu0 %1638
        %1640 = vrot.lane.b32.xlu0 %v1205, 112
        %v1641 = vpop.permute.xlu0 %1640
        %1642 = vrot.lane.b32.xlu0 %v1206, 112
        %v1643 = vpop.permute.xlu0 %1642
        %1644 = vrot.lane.b32.xlu0 %v1207, 112
        %v1645 = vpop.permute.xlu0 %1644
        %1646 = vrot.lane.b32.xlu0 %v1208, 112
        %v1647 = vpop.permute.xlu0 %1646
        %1648 = vrot.lane.b32.xlu0 %v1209, 112
        %v1649 = vpop.permute.xlu0 %1648
        %1650 = vrot.lane.b32.xlu0 %v1210, 112
        %v1651 = vpop.permute.xlu0 %1650
        %1652 = vrot.lane.b32.xlu0 %v1211, 112
        %v1653 = vpop.permute.xlu0 %1652
        %v1670 = vsel %vm1212, %v1623, 0.0
        %1671 = vadd.xlane.f32.xlu0 %v1670
        %v1672 = vpop.xlane.xlu0 %1671
        %v1673 = vsel %vm1212, %v1625, 0.0
        %1674 = vadd.xlane.f32.xlu0 %v1673
        %v1675 = vpop.xlane.xlu0 %1674
        %v1676 = vsel %vm1212, %v1627, 0.0
        %1677 = vadd.xlane.f32.xlu0 %v1676
        %v1678 = vpop.xlane.xlu0 %1677
        %v1679 = vsel %vm1212, %v1629, 0.0
        %1680 = vadd.xlane.f32.xlu0 %v1679
        %v1681 = vpop.xlane.xlu0 %1680
        %v1682 = vsel %vm1212, %v1631, 0.0
        %1683 = vadd.xlane.f32.xlu0 %v1682
        %v1684 = vpop.xlane.xlu0 %1683
        %v1685 = vsel %vm1212, %v1633, 0.0
        %1686 = vadd.xlane.f32.xlu0 %v1685
        %v1687 = vpop.xlane.xlu0 %1686
        %v1688 = vsel %vm1212, %v1635, 0.0
        %1689 = vadd.xlane.f32.xlu0 %v1688
        %v1690 = vpop.xlane.xlu0 %1689
        %v1691 = vsel %vm1212, %v1637, 0.0
        %1692 = vadd.xlane.f32.xlu0 %v1691
        %v1693 = vpop.xlane.xlu0 %1692
        %v1694 = vsel %vm1212, %v1639, 0.0
        %1695 = vadd.xlane.f32.xlu0 %v1694
        %v1696 = vpop.xlane.xlu0 %1695
        %v1697 = vsel %vm1212, %v1641, 0.0
        %1698 = vadd.xlane.f32.xlu0 %v1697
        %v1699 = vpop.xlane.xlu0 %1698
        %v1700 = vsel %vm1212, %v1643, 0.0
        %1701 = vadd.xlane.f32.xlu0 %v1700
        %v1702 = vpop.xlane.xlu0 %1701
        %v1703 = vsel %vm1212, %v1645, 0.0
        %1704 = vadd.xlane.f32.xlu0 %v1703
        %v1705 = vpop.xlane.xlu0 %1704
        %v1706 = vsel %vm1212, %v1647, 0.0
        %1707 = vadd.xlane.f32.xlu0 %v1706
        %v1708 = vpop.xlane.xlu0 %1707
        %v1709 = vsel %vm1212, %v1649, 0.0
        %1710 = vadd.xlane.f32.xlu0 %v1709
        %v1711 = vpop.xlane.xlu0 %1710
        %v1712 = vsel %vm1212, %v1651, 0.0
        %1713 = vadd.xlane.f32.xlu0 %v1712
        %v1714 = vpop.xlane.xlu0 %1713
        %v1715 = vsel %vm1212, %v1653, 0.0
        %1716 = vadd.xlane.f32.xlu0 %v1715
        %v1717 = vpop.xlane.xlu0 %1716
        %v1718 = vmul.f32 %v1672, %v1261
        %v1719 = vmul.f32 %v1675, %v1261
        %v1720 = vmul.f32 %v1678, %v1261
        %v1721 = vmul.f32 %v1681, %v1261
        %v1722 = vmul.f32 %v1684, %v1261
        %v1723 = vmul.f32 %v1687, %v1261
        %v1724 = vmul.f32 %v1690, %v1261
        %v1725 = vmul.f32 %v1693, %v1261
        %v1726 = vmul.f32 %v1696, %v1261
        %v1727 = vmul.f32 %v1699, %v1261
        %v1728 = vmul.f32 %v1702, %v1261
        %v1729 = vmul.f32 %v1705, %v1261
        %v1730 = vmul.f32 %v1708, %v1261
        %v1731 = vmul.f32 %v1711, %v1261
        %v1732 = vmul.f32 %v1714, %v1261
        %v1733 = vmul.f32 %v1717, %v1261
        %v1734 = vadd.f32 %v1718, 1e-05
        %v1735 = vadd.f32 %v1719, 1e-05
        %v1736 = vadd.f32 %v1720, 1e-05
        %v1737 = vadd.f32 %v1721, 1e-05
        %v1738 = vadd.f32 %v1722, 1e-05
        %v1739 = vadd.f32 %v1723, 1e-05
        %v1740 = vadd.f32 %v1724, 1e-05
        %v1741 = vadd.f32 %v1725, 1e-05
        %v1742 = vadd.f32 %v1726, 1e-05
        %v1743 = vadd.f32 %v1727, 1e-05
        %v1744 = vadd.f32 %v1728, 1e-05
        %v1745 = vadd.f32 %v1729, 1e-05
        %v1746 = vadd.f32 %v1730, 1e-05
        %v1747 = vadd.f32 %v1731, 1e-05
        %v1748 = vadd.f32 %v1732, 1e-05
        %v1749 = vadd.f32 %v1733, 1e-05
        %v1750 = vrsqrt.pop %v1734
        %v1751 = vrsqrt.pop %v1735
        %v1752 = vrsqrt.pop %v1736
        %v1753 = vrsqrt.pop %v1737
        %v1754 = vrsqrt.pop %v1738
        %v1755 = vrsqrt.pop %v1739
        %v1756 = vrsqrt.pop %v1740
        %v1757 = vrsqrt.pop %v1741
        %v1758 = vrsqrt.pop %v1742
        %v1759 = vrsqrt.pop %v1743
        %v1760 = vrsqrt.pop %v1744
        %v1761 = vrsqrt.pop %v1745
        %v1762 = vrsqrt.pop %v1746
        %v1763 = vrsqrt.pop %v1747
        %v1764 = vrsqrt.pop %v1748
        %v1765 = vrsqrt.pop %v1749
        %v1766 = vmul.f32 %v1052, %v1750
        %v1767 = vmul.f32 %v1057, %v1751
        %v1768 = vmul.f32 %v1062, %v1752
        %v1769 = vmul.f32 %v1067, %v1753
        %v1770 = vmul.f32 %v1072, %v1754
        %v1771 = vmul.f32 %v1077, %v1755
        %v1772 = vmul.f32 %v1082, %v1756
        %v1773 = vmul.f32 %v1087, %v1757
        %v1774 = vmul.f32 %v1092, %v1758
        %v1775 = vmul.f32 %v1097, %v1759
        %v1776 = vmul.f32 %v1102, %v1760
        %v1777 = vmul.f32 %v1107, %v1761
        %v1778 = vmul.f32 %v1112, %v1762
        %v1779 = vmul.f32 %v1117, %v1763
        %v1780 = vmul.f32 %v1122, %v1764
        %v1781 = vmul.f32 %v1127, %v1765
        %1782 = vrot.lane.b32.xlu0 %v1330, 16
        %v1783 = vpop.permute.xlu0 %1782
        %v1785 = vmul.f32 %v1766, %v1783
        %v1786 = vmul.f32 %v1767, %v1783
        %v1787 = vmul.f32 %v1768, %v1783
        %v1788 = vmul.f32 %v1769, %v1783
        %v1789 = vmul.f32 %v1770, %v1783
        %v1790 = vmul.f32 %v1771, %v1783
        %v1791 = vmul.f32 %v1772, %v1783
        %v1792 = vmul.f32 %v1773, %v1783
        %v1793 = vmul.f32 %v1774, %v1783
        %v1794 = vmul.f32 %v1775, %v1783
        %v1795 = vmul.f32 %v1776, %v1783
        %v1796 = vmul.f32 %v1777, %v1783
        %v1797 = vmul.f32 %v1778, %v1783
        %v1798 = vmul.f32 %v1779, %v1783
        %v1799 = vmul.f32 %v1780, %v1783
        %v1800 = vmul.f32 %v1781, %v1783
        %1817 = vrot.lane.b32.xlu0 %v1785, 112
        %v1818 = vpop.permute.xlu0 %1817
        %1819 = vrot.lane.b32.xlu0 %v1786, 112
        %v1820 = vpop.permute.xlu0 %1819
        %1821 = vrot.lane.b32.xlu0 %v1787, 112
        %v1822 = vpop.permute.xlu0 %1821
        %1823 = vrot.lane.b32.xlu0 %v1788, 112
        %v1824 = vpop.permute.xlu0 %1823
        %1825 = vrot.lane.b32.xlu0 %v1789, 112
        %v1826 = vpop.permute.xlu0 %1825
        %1827 = vrot.lane.b32.xlu0 %v1790, 112
        %v1828 = vpop.permute.xlu0 %1827
        %1829 = vrot.lane.b32.xlu0 %v1791, 112
        %v1830 = vpop.permute.xlu0 %1829
        %1831 = vrot.lane.b32.xlu0 %v1792, 112
        %v1832 = vpop.permute.xlu0 %1831
        %1833 = vrot.lane.b32.xlu0 %v1793, 112
        %v1834 = vpop.permute.xlu0 %1833
        %1835 = vrot.lane.b32.xlu0 %v1794, 112
        %v1836 = vpop.permute.xlu0 %1835
        %1837 = vrot.lane.b32.xlu0 %v1795, 112
        %v1838 = vpop.permute.xlu0 %1837
        %1839 = vrot.lane.b32.xlu0 %v1796, 112
        %v1840 = vpop.permute.xlu0 %1839
        %1841 = vrot.lane.b32.xlu0 %v1797, 112
        %v1842 = vpop.permute.xlu0 %1841
        %1843 = vrot.lane.b32.xlu0 %v1798, 112
        %v1844 = vpop.permute.xlu0 %1843
        %1845 = vrot.lane.b32.xlu0 %v1799, 112
        %v1846 = vpop.permute.xlu0 %1845
        %1847 = vrot.lane.b32.xlu0 %v1800, 112
        %v1848 = vpop.permute.xlu0 %1847
        %v1865 = vmul.f32 %v1130, %v1818
        %v1866 = vmul.f32 %v1131, %v1820
        %v1867 = vmul.f32 %v1132, %v1822
        %v1868 = vmul.f32 %v1133, %v1824
        %v1869 = vmul.f32 %v1134, %v1826
        %v1870 = vmul.f32 %v1135, %v1828
        %v1871 = vmul.f32 %v1136, %v1830
        %v1872 = vmul.f32 %v1137, %v1832
        %v1873 = vmul.f32 %v1138, %v1834
        %v1874 = vmul.f32 %v1139, %v1836
        %v1875 = vmul.f32 %v1140, %v1838
        %v1876 = vmul.f32 %v1141, %v1840
        %v1877 = vmul.f32 %v1142, %v1842
        %v1878 = vmul.f32 %v1143, %v1844
        %v1879 = vmul.f32 %v1144, %v1846
        %v1880 = vmul.f32 %v1145, %v1848
        %1881 = vrot.lane.b32.xlu0 %v1785, 104
        %v1882 = vpop.permute.xlu0 %1881
        %1883 = vrot.lane.b32.xlu0 %v1786, 104
        %v1884 = vpop.permute.xlu0 %1883
        %1885 = vrot.lane.b32.xlu0 %v1787, 104
        %v1886 = vpop.permute.xlu0 %1885
        %1887 = vrot.lane.b32.xlu0 %v1788, 104
        %v1888 = vpop.permute.xlu0 %1887
        %1889 = vrot.lane.b32.xlu0 %v1789, 104
        %v1890 = vpop.permute.xlu0 %1889
        %1891 = vrot.lane.b32.xlu0 %v1790, 104
        %v1892 = vpop.permute.xlu0 %1891
        %1893 = vrot.lane.b32.xlu0 %v1791, 104
        %v1894 = vpop.permute.xlu0 %1893
        %1895 = vrot.lane.b32.xlu0 %v1792, 104
        %v1896 = vpop.permute.xlu0 %1895
        %1897 = vrot.lane.b32.xlu0 %v1793, 104
        %v1898 = vpop.permute.xlu0 %1897
        %1899 = vrot.lane.b32.xlu0 %v1794, 104
        %v1900 = vpop.permute.xlu0 %1899
        %1901 = vrot.lane.b32.xlu0 %v1795, 104
        %v1902 = vpop.permute.xlu0 %1901
        %1903 = vrot.lane.b32.xlu0 %v1796, 104
        %v1904 = vpop.permute.xlu0 %1903
        %1905 = vrot.lane.b32.xlu0 %v1797, 104
        %v1906 = vpop.permute.xlu0 %1905
        %1907 = vrot.lane.b32.xlu0 %v1798, 104
        %v1908 = vpop.permute.xlu0 %1907
        %1909 = vrot.lane.b32.xlu0 %v1799, 104
        %v1910 = vpop.permute.xlu0 %1909
        %1911 = vrot.lane.b32.xlu0 %v1800, 104
        %v1912 = vpop.permute.xlu0 %1911
        %v1929 = vmul.f32 %v1146, %v1882
        %v1930 = vmul.f32 %v1147, %v1884
        %v1931 = vmul.f32 %v1148, %v1886
        %v1932 = vmul.f32 %v1149, %v1888
        %v1933 = vmul.f32 %v1150, %v1890
        %v1934 = vmul.f32 %v1151, %v1892
        %v1935 = vmul.f32 %v1152, %v1894
        %v1936 = vmul.f32 %v1153, %v1896
        %v1937 = vmul.f32 %v1154, %v1898
        %v1938 = vmul.f32 %v1155, %v1900
        %v1939 = vmul.f32 %v1156, %v1902
        %v1940 = vmul.f32 %v1157, %v1904
        %v1941 = vmul.f32 %v1158, %v1906
        %v1942 = vmul.f32 %v1159, %v1908
        %v1943 = vmul.f32 %v1160, %v1910
        %v1944 = vmul.f32 %v1161, %v1912
        %v1945 = vadd.f32 %v1865, %v1929
        %v1946 = vadd.f32 %v1866, %v1930
        %v1947 = vadd.f32 %v1867, %v1931
        %v1948 = vadd.f32 %v1868, %v1932
        %v1949 = vadd.f32 %v1869, %v1933
        %v1950 = vadd.f32 %v1870, %v1934
        %v1951 = vadd.f32 %v1871, %v1935
        %v1952 = vadd.f32 %v1872, %v1936
        %v1953 = vadd.f32 %v1873, %v1937
        %v1954 = vadd.f32 %v1874, %v1938
        %v1955 = vadd.f32 %v1875, %v1939
        %v1956 = vadd.f32 %v1876, %v1940
        %v1957 = vadd.f32 %v1877, %v1941
        %v1958 = vadd.f32 %v1878, %v1942
        %v1959 = vadd.f32 %v1879, %v1943
        %v1960 = vadd.f32 %v1880, %v1944
        %v1961 = vmul.f32 %v1162, %v1818
        %v1962 = vmul.f32 %v1163, %v1820
        %v1963 = vmul.f32 %v1164, %v1822
        %v1964 = vmul.f32 %v1165, %v1824
        %v1965 = vmul.f32 %v1166, %v1826
        %v1966 = vmul.f32 %v1167, %v1828
        %v1967 = vmul.f32 %v1168, %v1830
        %v1968 = vmul.f32 %v1169, %v1832
        %v1969 = vmul.f32 %v1170, %v1834
        %v1970 = vmul.f32 %v1171, %v1836
        %v1971 = vmul.f32 %v1172, %v1838
        %v1972 = vmul.f32 %v1173, %v1840
        %v1973 = vmul.f32 %v1174, %v1842
        %v1974 = vmul.f32 %v1175, %v1844
        %v1975 = vmul.f32 %v1176, %v1846
        %v1976 = vmul.f32 %v1177, %v1848
        %v1977 = vmul.f32 %v1178, %v1882
        %v1978 = vmul.f32 %v1179, %v1884
        %v1979 = vmul.f32 %v1180, %v1886
        %v1980 = vmul.f32 %v1181, %v1888
        %v1981 = vmul.f32 %v1182, %v1890
        %v1982 = vmul.f32 %v1183, %v1892
        %v1983 = vmul.f32 %v1184, %v1894
        %v1984 = vmul.f32 %v1185, %v1896
        %v1985 = vmul.f32 %v1186, %v1898
        %v1986 = vmul.f32 %v1187, %v1900
        %v1987 = vmul.f32 %v1188, %v1902
        %v1988 = vmul.f32 %v1189, %v1904
        %v1989 = vmul.f32 %v1190, %v1906
        %v1990 = vmul.f32 %v1191, %v1908
        %v1991 = vmul.f32 %v1192, %v1910
        %v1992 = vmul.f32 %v1193, %v1912
        %v1993 = vadd.f32 %v1961, %v1977
        %v1994 = vadd.f32 %v1962, %v1978
        %v1995 = vadd.f32 %v1963, %v1979
        %v1996 = vadd.f32 %v1964, %v1980
        %v1997 = vadd.f32 %v1965, %v1981
        %v1998 = vadd.f32 %v1966, %v1982
        %v1999 = vadd.f32 %v1967, %v1983
        %v2000 = vadd.f32 %v1968, %v1984
        %v2001 = vadd.f32 %v1969, %v1985
        %v2002 = vadd.f32 %v1970, %v1986
        %v2003 = vadd.f32 %v1971, %v1987
        %v2004 = vadd.f32 %v1972, %v1988
        %v2005 = vadd.f32 %v1973, %v1989
        %v2006 = vadd.f32 %v1974, %v1990
        %v2007 = vadd.f32 %v1975, %v1991
        %v2008 = vadd.f32 %v1976, %v1992
        %2025 = vrot.lane.b32.xlu0 %v1945, 16
        %v2026 = vpop.permute.xlu0 %2025
        %2027 = vrot.lane.b32.xlu0 %v1946, 16
        %v2028 = vpop.permute.xlu0 %2027
        %2029 = vrot.lane.b32.xlu0 %v1947, 16
        %v2030 = vpop.permute.xlu0 %2029
        %2031 = vrot.lane.b32.xlu0 %v1948, 16
        %v2032 = vpop.permute.xlu0 %2031
        %2033 = vrot.lane.b32.xlu0 %v1949, 16
        %v2034 = vpop.permute.xlu0 %2033
        %2035 = vrot.lane.b32.xlu0 %v1950, 16
        %v2036 = vpop.permute.xlu0 %2035
        %2037 = vrot.lane.b32.xlu0 %v1951, 16
        %v2038 = vpop.permute.xlu0 %2037
        %2039 = vrot.lane.b32.xlu0 %v1952, 16
        %v2040 = vpop.permute.xlu0 %2039
        %2041 = vrot.lane.b32.xlu0 %v1953, 16
        %v2042 = vpop.permute.xlu0 %2041
        %2043 = vrot.lane.b32.xlu0 %v1954, 16
        %v2044 = vpop.permute.xlu0 %2043
        %2045 = vrot.lane.b32.xlu0 %v1955, 16
        %v2046 = vpop.permute.xlu0 %2045
        %2047 = vrot.lane.b32.xlu0 %v1956, 16
        %v2048 = vpop.permute.xlu0 %2047
        %2049 = vrot.lane.b32.xlu0 %v1957, 16
        %v2050 = vpop.permute.xlu0 %2049
        %2051 = vrot.lane.b32.xlu0 %v1958, 16
        %v2052 = vpop.permute.xlu0 %2051
        %2053 = vrot.lane.b32.xlu0 %v1959, 16
        %v2054 = vpop.permute.xlu0 %2053
        %2055 = vrot.lane.b32.xlu0 %v1960, 16
        %v2056 = vpop.permute.xlu0 %2055
        %vm2073 = vcmask 195712
        %2074 = vst.msk [vmem:[%s713] sm:$0xff] %vm2073, %v2026
        %2075 = vst.msk [vmem:[%s713 + $0x8] sm:$0xff] %vm2073, %v2028
        %2076 = vst.msk [vmem:[%s713 + $0x10] sm:$0xff] %vm2073, %v2030
        %2077 = vst.msk [vmem:[%s713 + $0x18] sm:$0xff] %vm2073, %v2032
        %2078 = vst.msk [vmem:[%s713 + $0x20] sm:$0xff] %vm2073, %v2034
        %2079 = vst.msk [vmem:[%s713 + $0x28] sm:$0xff] %vm2073, %v2036
        %2080 = vst.msk [vmem:[%s713 + $0x30] sm:$0xff] %vm2073, %v2038
        %2081 = vst.msk [vmem:[%s713 + $0x38] sm:$0xff] %vm2073, %v2040
        %2082 = vst.msk [vmem:[%s713 + $0x40] sm:$0xff] %vm2073, %v2042
        %2083 = vst.msk [vmem:[%s713 + $0x48] sm:$0xff] %vm2073, %v2044
        %2084 = vst.msk [vmem:[%s713 + $0x50] sm:$0xff] %vm2073, %v2046
        %2085 = vst.msk [vmem:[%s713 + $0x58] sm:$0xff] %vm2073, %v2048
        %2086 = vst.msk [vmem:[%s713 + $0x60] sm:$0xff] %vm2073, %v2050
        %2087 = vst.msk [vmem:[%s713 + $0x68] sm:$0xff] %vm2073, %v2052
        %2088 = vst.msk [vmem:[%s713 + $0x70] sm:$0xff] %vm2073, %v2054
        %2089 = vst.msk [vmem:[%s713 + $0x78] sm:$0xff] %vm2073, %v2056
        %2106 = vrot.lane.b32.xlu0 %v1993, 24
        %v2107 = vpop.permute.xlu0 %2106
        %2108 = vrot.lane.b32.xlu0 %v1994, 24
        %v2109 = vpop.permute.xlu0 %2108
        %2110 = vrot.lane.b32.xlu0 %v1995, 24
        %v2111 = vpop.permute.xlu0 %2110
        %2112 = vrot.lane.b32.xlu0 %v1996, 24
        %v2113 = vpop.permute.xlu0 %2112
        %2114 = vrot.lane.b32.xlu0 %v1997, 24
        %v2115 = vpop.permute.xlu0 %2114
        %2116 = vrot.lane.b32.xlu0 %v1998, 24
        %v2117 = vpop.permute.xlu0 %2116
        %2118 = vrot.lane.b32.xlu0 %v1999, 24
        %v2119 = vpop.permute.xlu0 %2118
        %2120 = vrot.lane.b32.xlu0 %v2000, 24
        %v2121 = vpop.permute.xlu0 %2120
        %2122 = vrot.lane.b32.xlu0 %v2001, 24
        %v2123 = vpop.permute.xlu0 %2122
        %2124 = vrot.lane.b32.xlu0 %v2002, 24
        %v2125 = vpop.permute.xlu0 %2124
        %2126 = vrot.lane.b32.xlu0 %v2003, 24
        %v2127 = vpop.permute.xlu0 %2126
        %2128 = vrot.lane.b32.xlu0 %v2004, 24
        %v2129 = vpop.permute.xlu0 %2128
        %2130 = vrot.lane.b32.xlu0 %v2005, 24
        %v2131 = vpop.permute.xlu0 %2130
        %2132 = vrot.lane.b32.xlu0 %v2006, 24
        %v2133 = vpop.permute.xlu0 %2132
        %2134 = vrot.lane.b32.xlu0 %v2007, 24
        %v2135 = vpop.permute.xlu0 %2134
        %2136 = vrot.lane.b32.xlu0 %v2008, 24
        %v2137 = vpop.permute.xlu0 %2136
        %vm2154 = vcmask 261312
        %2155 = vst.msk [vmem:[%s713] sm:$0xff] %vm2154, %v2107
        %2156 = vst.msk [vmem:[%s713 + $0x8] sm:$0xff] %vm2154, %v2109
        %2157 = vst.msk [vmem:[%s713 + $0x10] sm:$0xff] %vm2154, %v2111
        %2158 = vst.msk [vmem:[%s713 + $0x18] sm:$0xff] %vm2154, %v2113
        %2159 = vst.msk [vmem:[%s713 + $0x20] sm:$0xff] %vm2154, %v2115
        %2160 = vst.msk [vmem:[%s713 + $0x28] sm:$0xff] %vm2154, %v2117
        %2161 = vst.msk [vmem:[%s713 + $0x30] sm:$0xff] %vm2154, %v2119
        %2162 = vst.msk [vmem:[%s713 + $0x38] sm:$0xff] %vm2154, %v2121
        %2163 = vst.msk [vmem:[%s713 + $0x40] sm:$0xff] %vm2154, %v2123
        %2164 = vst.msk [vmem:[%s713 + $0x48] sm:$0xff] %vm2154, %v2125
        %2165 = vst.msk [vmem:[%s713 + $0x50] sm:$0xff] %vm2154, %v2127
        %2166 = vst.msk [vmem:[%s713 + $0x58] sm:$0xff] %vm2154, %v2129
        %2167 = vst.msk [vmem:[%s713 + $0x60] sm:$0xff] %vm2154, %v2131
        %2168 = vst.msk [vmem:[%s713 + $0x68] sm:$0xff] %vm2154, %v2133
        %2169 = vst.msk [vmem:[%s713 + $0x70] sm:$0xff] %vm2154, %v2135
        %2170 = vst.msk [vmem:[%s713 + $0x78] sm:$0xff] %vm2154, %v2137
        %2171 = vrot.lane.b32.xlu0 %v1196, 96
        %v2172 = vpop.permute.xlu0 %2171
        %2173 = vrot.lane.b32.xlu0 %v1197, 96
        %v2174 = vpop.permute.xlu0 %2173
        %2175 = vrot.lane.b32.xlu0 %v1198, 96
        %v2176 = vpop.permute.xlu0 %2175
        %2177 = vrot.lane.b32.xlu0 %v1199, 96
        %v2178 = vpop.permute.xlu0 %2177
        %2179 = vrot.lane.b32.xlu0 %v1200, 96
        %v2180 = vpop.permute.xlu0 %2179
        %2181 = vrot.lane.b32.xlu0 %v1201, 96
        %v2182 = vpop.permute.xlu0 %2181
        %2183 = vrot.lane.b32.xlu0 %v1202, 96
        %v2184 = vpop.permute.xlu0 %2183
        %2185 = vrot.lane.b32.xlu0 %v1203, 96
        %v2186 = vpop.permute.xlu0 %2185
        %2187 = vrot.lane.b32.xlu0 %v1204, 96
        %v2188 = vpop.permute.xlu0 %2187
        %2189 = vrot.lane.b32.xlu0 %v1205, 96
        %v2190 = vpop.permute.xlu0 %2189
        %2191 = vrot.lane.b32.xlu0 %v1206, 96
        %v2192 = vpop.permute.xlu0 %2191
        %2193 = vrot.lane.b32.xlu0 %v1207, 96
        %v2194 = vpop.permute.xlu0 %2193
        %2195 = vrot.lane.b32.xlu0 %v1208, 96
        %v2196 = vpop.permute.xlu0 %2195
        %2197 = vrot.lane.b32.xlu0 %v1209, 96
        %v2198 = vpop.permute.xlu0 %2197
        %2199 = vrot.lane.b32.xlu0 %v1210, 96
        %v2200 = vpop.permute.xlu0 %2199
        %2201 = vrot.lane.b32.xlu0 %v1211, 96
        %v2202 = vpop.permute.xlu0 %2201
        %v2219 = vsel %vm1212, %v2172, 0.0
        %2220 = vadd.xlane.f32.xlu0 %v2219
        %v2221 = vpop.xlane.xlu0 %2220
        %v2222 = vsel %vm1212, %v2174, 0.0
        %2223 = vadd.xlane.f32.xlu0 %v2222
        %v2224 = vpop.xlane.xlu0 %2223
        %v2225 = vsel %vm1212, %v2176, 0.0
        %2226 = vadd.xlane.f32.xlu0 %v2225
        %v2227 = vpop.xlane.xlu0 %2226
        %v2228 = vsel %vm1212, %v2178, 0.0
        %2229 = vadd.xlane.f32.xlu0 %v2228
        %v2230 = vpop.xlane.xlu0 %2229
        %v2231 = vsel %vm1212, %v2180, 0.0
        %2232 = vadd.xlane.f32.xlu0 %v2231
        %v2233 = vpop.xlane.xlu0 %2232
        %v2234 = vsel %vm1212, %v2182, 0.0
        %2235 = vadd.xlane.f32.xlu0 %v2234
        %v2236 = vpop.xlane.xlu0 %2235
        %v2237 = vsel %vm1212, %v2184, 0.0
        %2238 = vadd.xlane.f32.xlu0 %v2237
        %v2239 = vpop.xlane.xlu0 %2238
        %v2240 = vsel %vm1212, %v2186, 0.0
        %2241 = vadd.xlane.f32.xlu0 %v2240
        %v2242 = vpop.xlane.xlu0 %2241
        %v2243 = vsel %vm1212, %v2188, 0.0
        %2244 = vadd.xlane.f32.xlu0 %v2243
        %v2245 = vpop.xlane.xlu0 %2244
        %v2246 = vsel %vm1212, %v2190, 0.0
        %2247 = vadd.xlane.f32.xlu0 %v2246
        %v2248 = vpop.xlane.xlu0 %2247
        %v2249 = vsel %vm1212, %v2192, 0.0
        %2250 = vadd.xlane.f32.xlu0 %v2249
        %v2251 = vpop.xlane.xlu0 %2250
        %v2252 = vsel %vm1212, %v2194, 0.0
        %2253 = vadd.xlane.f32.xlu0 %v2252
        %v2254 = vpop.xlane.xlu0 %2253
        %v2255 = vsel %vm1212, %v2196, 0.0
        %2256 = vadd.xlane.f32.xlu0 %v2255
        %v2257 = vpop.xlane.xlu0 %2256
        %v2258 = vsel %vm1212, %v2198, 0.0
        %2259 = vadd.xlane.f32.xlu0 %v2258
        %v2260 = vpop.xlane.xlu0 %2259
        %v2261 = vsel %vm1212, %v2200, 0.0
        %2262 = vadd.xlane.f32.xlu0 %v2261
        %v2263 = vpop.xlane.xlu0 %2262
        %v2264 = vsel %vm1212, %v2202, 0.0
        %2265 = vadd.xlane.f32.xlu0 %v2264
        %v2266 = vpop.xlane.xlu0 %2265
        %v2267 = vmul.f32 %v2221, %v1261
        %v2268 = vmul.f32 %v2224, %v1261
        %v2269 = vmul.f32 %v2227, %v1261
        %v2270 = vmul.f32 %v2230, %v1261
        %v2271 = vmul.f32 %v2233, %v1261
        %v2272 = vmul.f32 %v2236, %v1261
        %v2273 = vmul.f32 %v2239, %v1261
        %v2274 = vmul.f32 %v2242, %v1261
        %v2275 = vmul.f32 %v2245, %v1261
        %v2276 = vmul.f32 %v2248, %v1261
        %v2277 = vmul.f32 %v2251, %v1261
        %v2278 = vmul.f32 %v2254, %v1261
        %v2279 = vmul.f32 %v2257, %v1261
        %v2280 = vmul.f32 %v2260, %v1261
        %v2281 = vmul.f32 %v2263, %v1261
        %v2282 = vmul.f32 %v2266, %v1261
        %v2283 = vadd.f32 %v2267, 1e-05
        %v2284 = vadd.f32 %v2268, 1e-05
        %v2285 = vadd.f32 %v2269, 1e-05
        %v2286 = vadd.f32 %v2270, 1e-05
        %v2287 = vadd.f32 %v2271, 1e-05
        %v2288 = vadd.f32 %v2272, 1e-05
        %v2289 = vadd.f32 %v2273, 1e-05
        %v2290 = vadd.f32 %v2274, 1e-05
        %v2291 = vadd.f32 %v2275, 1e-05
        %v2292 = vadd.f32 %v2276, 1e-05
        %v2293 = vadd.f32 %v2277, 1e-05
        %v2294 = vadd.f32 %v2278, 1e-05
        %v2295 = vadd.f32 %v2279, 1e-05
        %v2296 = vadd.f32 %v2280, 1e-05
        %v2297 = vadd.f32 %v2281, 1e-05
        %v2298 = vadd.f32 %v2282, 1e-05
        %v2299 = vrsqrt.pop %v2283
        %v2300 = vrsqrt.pop %v2284
        %v2301 = vrsqrt.pop %v2285
        %v2302 = vrsqrt.pop %v2286
        %v2303 = vrsqrt.pop %v2287
        %v2304 = vrsqrt.pop %v2288
        %v2305 = vrsqrt.pop %v2289
        %v2306 = vrsqrt.pop %v2290
        %v2307 = vrsqrt.pop %v2291
        %v2308 = vrsqrt.pop %v2292
        %v2309 = vrsqrt.pop %v2293
        %v2310 = vrsqrt.pop %v2294
        %v2311 = vrsqrt.pop %v2295
        %v2312 = vrsqrt.pop %v2296
        %v2313 = vrsqrt.pop %v2297
        %v2314 = vrsqrt.pop %v2298
        %v2315 = vmul.f32 %v1052, %v2299
        %v2316 = vmul.f32 %v1057, %v2300
        %v2317 = vmul.f32 %v1062, %v2301
        %v2318 = vmul.f32 %v1067, %v2302
        %v2319 = vmul.f32 %v1072, %v2303
        %v2320 = vmul.f32 %v1077, %v2304
        %v2321 = vmul.f32 %v1082, %v2305
        %v2322 = vmul.f32 %v1087, %v2306
        %v2323 = vmul.f32 %v1092, %v2307
        %v2324 = vmul.f32 %v1097, %v2308
        %v2325 = vmul.f32 %v1102, %v2309
        %v2326 = vmul.f32 %v1107, %v2310
        %v2327 = vmul.f32 %v1112, %v2311
        %v2328 = vmul.f32 %v1117, %v2312
        %v2329 = vmul.f32 %v1122, %v2313
        %v2330 = vmul.f32 %v1127, %v2314
        %2331 = vrot.lane.b32.xlu0 %v1330, 32
        %v2332 = vpop.permute.xlu0 %2331
        %v2334 = vmul.f32 %v2315, %v2332
        %v2335 = vmul.f32 %v2316, %v2332
        %v2336 = vmul.f32 %v2317, %v2332
        %v2337 = vmul.f32 %v2318, %v2332
        %v2338 = vmul.f32 %v2319, %v2332
        %v2339 = vmul.f32 %v2320, %v2332
        %v2340 = vmul.f32 %v2321, %v2332
        %v2341 = vmul.f32 %v2322, %v2332
        %v2342 = vmul.f32 %v2323, %v2332
        %v2343 = vmul.f32 %v2324, %v2332
        %v2344 = vmul.f32 %v2325, %v2332
        %v2345 = vmul.f32 %v2326, %v2332
        %v2346 = vmul.f32 %v2327, %v2332
        %v2347 = vmul.f32 %v2328, %v2332
        %v2348 = vmul.f32 %v2329, %v2332
        %v2349 = vmul.f32 %v2330, %v2332
        %2366 = vrot.lane.b32.xlu0 %v2334, 96
        %v2367 = vpop.permute.xlu0 %2366
        %2368 = vrot.lane.b32.xlu0 %v2335, 96
        %v2369 = vpop.permute.xlu0 %2368
        %2370 = vrot.lane.b32.xlu0 %v2336, 96
        %v2371 = vpop.permute.xlu0 %2370
        %2372 = vrot.lane.b32.xlu0 %v2337, 96
        %v2373 = vpop.permute.xlu0 %2372
        %2374 = vrot.lane.b32.xlu0 %v2338, 96
        %v2375 = vpop.permute.xlu0 %2374
        %2376 = vrot.lane.b32.xlu0 %v2339, 96
        %v2377 = vpop.permute.xlu0 %2376
        %2378 = vrot.lane.b32.xlu0 %v2340, 96
        %v2379 = vpop.permute.xlu0 %2378
        %2380 = vrot.lane.b32.xlu0 %v2341, 96
        %v2381 = vpop.permute.xlu0 %2380
        %2382 = vrot.lane.b32.xlu0 %v2342, 96
        %v2383 = vpop.permute.xlu0 %2382
        %2384 = vrot.lane.b32.xlu0 %v2343, 96
        %v2385 = vpop.permute.xlu0 %2384
        %2386 = vrot.lane.b32.xlu0 %v2344, 96
        %v2387 = vpop.permute.xlu0 %2386
        %2388 = vrot.lane.b32.xlu0 %v2345, 96
        %v2389 = vpop.permute.xlu0 %2388
        %2390 = vrot.lane.b32.xlu0 %v2346, 96
        %v2391 = vpop.permute.xlu0 %2390
        %2392 = vrot.lane.b32.xlu0 %v2347, 96
        %v2393 = vpop.permute.xlu0 %2392
        %2394 = vrot.lane.b32.xlu0 %v2348, 96
        %v2395 = vpop.permute.xlu0 %2394
        %2396 = vrot.lane.b32.xlu0 %v2349, 96
        %v2397 = vpop.permute.xlu0 %2396
        %v2414 = vmul.f32 %v1130, %v2367
        %v2415 = vmul.f32 %v1131, %v2369
        %v2416 = vmul.f32 %v1132, %v2371
        %v2417 = vmul.f32 %v1133, %v2373
        %v2418 = vmul.f32 %v1134, %v2375
        %v2419 = vmul.f32 %v1135, %v2377
        %v2420 = vmul.f32 %v1136, %v2379
        %v2421 = vmul.f32 %v1137, %v2381
        %v2422 = vmul.f32 %v1138, %v2383
        %v2423 = vmul.f32 %v1139, %v2385
        %v2424 = vmul.f32 %v1140, %v2387
        %v2425 = vmul.f32 %v1141, %v2389
        %v2426 = vmul.f32 %v1142, %v2391
        %v2427 = vmul.f32 %v1143, %v2393
        %v2428 = vmul.f32 %v1144, %v2395
        %v2429 = vmul.f32 %v1145, %v2397
        %2430 = vrot.lane.b32.xlu0 %v2334, 88
        %v2431 = vpop.permute.xlu0 %2430
        %2432 = vrot.lane.b32.xlu0 %v2335, 88
        %v2433 = vpop.permute.xlu0 %2432
        %2434 = vrot.lane.b32.xlu0 %v2336, 88
        %v2435 = vpop.permute.xlu0 %2434
        %2436 = vrot.lane.b32.xlu0 %v2337, 88
        %v2437 = vpop.permute.xlu0 %2436
        %2438 = vrot.lane.b32.xlu0 %v2338, 88
        %v2439 = vpop.permute.xlu0 %2438
        %2440 = vrot.lane.b32.xlu0 %v2339, 88
        %v2441 = vpop.permute.xlu0 %2440
        %2442 = vrot.lane.b32.xlu0 %v2340, 88
        %v2443 = vpop.permute.xlu0 %2442
        %2444 = vrot.lane.b32.xlu0 %v2341, 88
        %v2445 = vpop.permute.xlu0 %2444
        %2446 = vrot.lane.b32.xlu0 %v2342, 88
        %v2447 = vpop.permute.xlu0 %2446
        %2448 = vrot.lane.b32.xlu0 %v2343, 88
        %v2449 = vpop.permute.xlu0 %2448
        %2450 = vrot.lane.b32.xlu0 %v2344, 88
        %v2451 = vpop.permute.xlu0 %2450
        %2452 = vrot.lane.b32.xlu0 %v2345, 88
        %v2453 = vpop.permute.xlu0 %2452
        %2454 = vrot.lane.b32.xlu0 %v2346, 88
        %v2455 = vpop.permute.xlu0 %2454
        %2456 = vrot.lane.b32.xlu0 %v2347, 88
        %v2457 = vpop.permute.xlu0 %2456
        %2458 = vrot.lane.b32.xlu0 %v2348, 88
        %v2459 = vpop.permute.xlu0 %2458
        %2460 = vrot.lane.b32.xlu0 %v2349, 88
        %v2461 = vpop.permute.xlu0 %2460
        %v2478 = vmul.f32 %v1146, %v2431
        %v2479 = vmul.f32 %v1147, %v2433
        %v2480 = vmul.f32 %v1148, %v2435
        %v2481 = vmul.f32 %v1149, %v2437
        %v2482 = vmul.f32 %v1150, %v2439
        %v2483 = vmul.f32 %v1151, %v2441
        %v2484 = vmul.f32 %v1152, %v2443
        %v2485 = vmul.f32 %v1153, %v2445
        %v2486 = vmul.f32 %v1154, %v2447
        %v2487 = vmul.f32 %v1155, %v2449
        %v2488 = vmul.f32 %v1156, %v2451
        %v2489 = vmul.f32 %v1157, %v2453
        %v2490 = vmul.f32 %v1158, %v2455
        %v2491 = vmul.f32 %v1159, %v2457
        %v2492 = vmul.f32 %v1160, %v2459
        %v2493 = vmul.f32 %v1161, %v2461
        %v2494 = vadd.f32 %v2414, %v2478
        %v2495 = vadd.f32 %v2415, %v2479
        %v2496 = vadd.f32 %v2416, %v2480
        %v2497 = vadd.f32 %v2417, %v2481
        %v2498 = vadd.f32 %v2418, %v2482
        %v2499 = vadd.f32 %v2419, %v2483
        %v2500 = vadd.f32 %v2420, %v2484
        %v2501 = vadd.f32 %v2421, %v2485
        %v2502 = vadd.f32 %v2422, %v2486
        %v2503 = vadd.f32 %v2423, %v2487
        %v2504 = vadd.f32 %v2424, %v2488
        %v2505 = vadd.f32 %v2425, %v2489
        %v2506 = vadd.f32 %v2426, %v2490
        %v2507 = vadd.f32 %v2427, %v2491
        %v2508 = vadd.f32 %v2428, %v2492
        %v2509 = vadd.f32 %v2429, %v2493
        %v2510 = vmul.f32 %v1162, %v2367
        %v2511 = vmul.f32 %v1163, %v2369
        %v2512 = vmul.f32 %v1164, %v2371
        %v2513 = vmul.f32 %v1165, %v2373
        %v2514 = vmul.f32 %v1166, %v2375
        %v2515 = vmul.f32 %v1167, %v2377
        %v2516 = vmul.f32 %v1168, %v2379
        %v2517 = vmul.f32 %v1169, %v2381
        %v2518 = vmul.f32 %v1170, %v2383
        %v2519 = vmul.f32 %v1171, %v2385
        %v2520 = vmul.f32 %v1172, %v2387
        %v2521 = vmul.f32 %v1173, %v2389
        %v2522 = vmul.f32 %v1174, %v2391
        %v2523 = vmul.f32 %v1175, %v2393
        %v2524 = vmul.f32 %v1176, %v2395
        %v2525 = vmul.f32 %v1177, %v2397
        %v2526 = vmul.f32 %v1178, %v2431
        %v2527 = vmul.f32 %v1179, %v2433
        %v2528 = vmul.f32 %v1180, %v2435
        %v2529 = vmul.f32 %v1181, %v2437
        %v2530 = vmul.f32 %v1182, %v2439
        %v2531 = vmul.f32 %v1183, %v2441
        %v2532 = vmul.f32 %v1184, %v2443
        %v2533 = vmul.f32 %v1185, %v2445
        %v2534 = vmul.f32 %v1186, %v2447
        %v2535 = vmul.f32 %v1187, %v2449
        %v2536 = vmul.f32 %v1188, %v2451
        %v2537 = vmul.f32 %v1189, %v2453
        %v2538 = vmul.f32 %v1190, %v2455
        %v2539 = vmul.f32 %v1191, %v2457
        %v2540 = vmul.f32 %v1192, %v2459
        %v2541 = vmul.f32 %v1193, %v2461
        %v2542 = vadd.f32 %v2510, %v2526
        %v2543 = vadd.f32 %v2511, %v2527
        %v2544 = vadd.f32 %v2512, %v2528
        %v2545 = vadd.f32 %v2513, %v2529
        %v2546 = vadd.f32 %v2514, %v2530
        %v2547 = vadd.f32 %v2515, %v2531
        %v2548 = vadd.f32 %v2516, %v2532
        %v2549 = vadd.f32 %v2517, %v2533
        %v2550 = vadd.f32 %v2518, %v2534
        %v2551 = vadd.f32 %v2519, %v2535
        %v2552 = vadd.f32 %v2520, %v2536
        %v2553 = vadd.f32 %v2521, %v2537
        %v2554 = vadd.f32 %v2522, %v2538
        %v2555 = vadd.f32 %v2523, %v2539
        %v2556 = vadd.f32 %v2524, %v2540
        %v2557 = vadd.f32 %v2525, %v2541
        %s2558 = scalar_lea.vmem %s713, 128 [#allocation19]
        %2559 = vst.msk [vmem:[%s2558] sm:$0xff] %vm1508, %v2494
        %2560 = vst.msk [vmem:[%s2558 + $0x8] sm:$0xff] %vm1508, %v2495
        %2561 = vst.msk [vmem:[%s2558 + $0x10] sm:$0xff] %vm1508, %v2496
        %2562 = vst.msk [vmem:[%s2558 + $0x18] sm:$0xff] %vm1508, %v2497
        %2563 = vst.msk [vmem:[%s2558 + $0x20] sm:$0xff] %vm1508, %v2498
        %2564 = vst.msk [vmem:[%s2558 + $0x28] sm:$0xff] %vm1508, %v2499
        %2565 = vst.msk [vmem:[%s2558 + $0x30] sm:$0xff] %vm1508, %v2500
        %2566 = vst.msk [vmem:[%s2558 + $0x38] sm:$0xff] %vm1508, %v2501
        %2567 = vst.msk [vmem:[%s2558 + $0x40] sm:$0xff] %vm1508, %v2502
        %2568 = vst.msk [vmem:[%s2558 + $0x48] sm:$0xff] %vm1508, %v2503
        %2569 = vst.msk [vmem:[%s2558 + $0x50] sm:$0xff] %vm1508, %v2504
        %2570 = vst.msk [vmem:[%s2558 + $0x58] sm:$0xff] %vm1508, %v2505
        %2571 = vst.msk [vmem:[%s2558 + $0x60] sm:$0xff] %vm1508, %v2506
        %2572 = vst.msk [vmem:[%s2558 + $0x68] sm:$0xff] %vm1508, %v2507
        %2573 = vst.msk [vmem:[%s2558 + $0x70] sm:$0xff] %vm1508, %v2508
        %2574 = vst.msk [vmem:[%s2558 + $0x78] sm:$0xff] %vm1508, %v2509
        %2591 = vrot.lane.b32.xlu0 %v2542, 8
        %v2592 = vpop.permute.xlu0 %2591
        %2593 = vrot.lane.b32.xlu0 %v2543, 8
        %v2594 = vpop.permute.xlu0 %2593
        %2595 = vrot.lane.b32.xlu0 %v2544, 8
        %v2596 = vpop.permute.xlu0 %2595
        %2597 = vrot.lane.b32.xlu0 %v2545, 8
        %v2598 = vpop.permute.xlu0 %2597
        %2599 = vrot.lane.b32.xlu0 %v2546, 8
        %v2600 = vpop.permute.xlu0 %2599
        %2601 = vrot.lane.b32.xlu0 %v2547, 8
        %v2602 = vpop.permute.xlu0 %2601
        %2603 = vrot.lane.b32.xlu0 %v2548, 8
        %v2604 = vpop.permute.xlu0 %2603
        %2605 = vrot.lane.b32.xlu0 %v2549, 8
        %v2606 = vpop.permute.xlu0 %2605
        %2607 = vrot.lane.b32.xlu0 %v2550, 8
        %v2608 = vpop.permute.xlu0 %2607
        %2609 = vrot.lane.b32.xlu0 %v2551, 8
        %v2610 = vpop.permute.xlu0 %2609
        %2611 = vrot.lane.b32.xlu0 %v2552, 8
        %v2612 = vpop.permute.xlu0 %2611
        %2613 = vrot.lane.b32.xlu0 %v2553, 8
        %v2614 = vpop.permute.xlu0 %2613
        %2615 = vrot.lane.b32.xlu0 %v2554, 8
        %v2616 = vpop.permute.xlu0 %2615
        %2617 = vrot.lane.b32.xlu0 %v2555, 8
        %v2618 = vpop.permute.xlu0 %2617
        %2619 = vrot.lane.b32.xlu0 %v2556, 8
        %v2620 = vpop.permute.xlu0 %2619
        %2621 = vrot.lane.b32.xlu0 %v2557, 8
        %v2622 = vpop.permute.xlu0 %2621
        %2639 = vst.msk [vmem:[%s2558] sm:$0xff] %vm1589, %v2592
        %2640 = vst.msk [vmem:[%s2558 + $0x8] sm:$0xff] %vm1589, %v2594
        %2641 = vst.msk [vmem:[%s2558 + $0x10] sm:$0xff] %vm1589, %v2596
        %2642 = vst.msk [vmem:[%s2558 + $0x18] sm:$0xff] %vm1589, %v2598
        %2643 = vst.msk [vmem:[%s2558 + $0x20] sm:$0xff] %vm1589, %v2600
        %2644 = vst.msk [vmem:[%s2558 + $0x28] sm:$0xff] %vm1589, %v2602
        %2645 = vst.msk [vmem:[%s2558 + $0x30] sm:$0xff] %vm1589, %v2604
        %2646 = vst.msk [vmem:[%s2558 + $0x38] sm:$0xff] %vm1589, %v2606
        %2647 = vst.msk [vmem:[%s2558 + $0x40] sm:$0xff] %vm1589, %v2608
        %2648 = vst.msk [vmem:[%s2558 + $0x48] sm:$0xff] %vm1589, %v2610
        %2649 = vst.msk [vmem:[%s2558 + $0x50] sm:$0xff] %vm1589, %v2612
        %2650 = vst.msk [vmem:[%s2558 + $0x58] sm:$0xff] %vm1589, %v2614
        %2651 = vst.msk [vmem:[%s2558 + $0x60] sm:$0xff] %vm1589, %v2616
        %2652 = vst.msk [vmem:[%s2558 + $0x68] sm:$0xff] %vm1589, %v2618
        %2653 = vst.msk [vmem:[%s2558 + $0x70] sm:$0xff] %vm1589, %v2620
        %2654 = vst.msk [vmem:[%s2558 + $0x78] sm:$0xff] %vm1589, %v2622
        %2655 = vrot.lane.b32.xlu0 %v1196, 80
        %v2656 = vpop.permute.xlu0 %2655
        %2657 = vrot.lane.b32.xlu0 %v1197, 80
        %v2658 = vpop.permute.xlu0 %2657
        %2659 = vrot.lane.b32.xlu0 %v1198, 80
        %v2660 = vpop.permute.xlu0 %2659
        %2661 = vrot.lane.b32.xlu0 %v1199, 80
        %v2662 = vpop.permute.xlu0 %2661
        %2663 = vrot.lane.b32.xlu0 %v1200, 80
        %v2664 = vpop.permute.xlu0 %2663
        %2665 = vrot.lane.b32.xlu0 %v1201, 80
        %v2666 = vpop.permute.xlu0 %2665
        %2667 = vrot.lane.b32.xlu0 %v1202, 80
        %v2668 = vpop.permute.xlu0 %2667
        %2669 = vrot.lane.b32.xlu0 %v1203, 80
        %v2670 = vpop.permute.xlu0 %2669
        %2671 = vrot.lane.b32.xlu0 %v1204, 80
        %v2672 = vpop.permute.xlu0 %2671
        %2673 = vrot.lane.b32.xlu0 %v1205, 80
        %v2674 = vpop.permute.xlu0 %2673
        %2675 = vrot.lane.b32.xlu0 %v1206, 80
        %v2676 = vpop.permute.xlu0 %2675
        %2677 = vrot.lane.b32.xlu0 %v1207, 80
        %v2678 = vpop.permute.xlu0 %2677
        %2679 = vrot.lane.b32.xlu0 %v1208, 80
        %v2680 = vpop.permute.xlu0 %2679
        %2681 = vrot.lane.b32.xlu0 %v1209, 80
        %v2682 = vpop.permute.xlu0 %2681
        %2683 = vrot.lane.b32.xlu0 %v1210, 80
        %v2684 = vpop.permute.xlu0 %2683
        %2685 = vrot.lane.b32.xlu0 %v1211, 80
        %v2686 = vpop.permute.xlu0 %2685
        %v2703 = vsel %vm1212, %v2656, 0.0
        %2704 = vadd.xlane.f32.xlu0 %v2703
        %v2705 = vpop.xlane.xlu0 %2704
        %v2706 = vsel %vm1212, %v2658, 0.0
        %2707 = vadd.xlane.f32.xlu0 %v2706
        %v2708 = vpop.xlane.xlu0 %2707
        %v2709 = vsel %vm1212, %v2660, 0.0
        %2710 = vadd.xlane.f32.xlu0 %v2709
        %v2711 = vpop.xlane.xlu0 %2710
        %v2712 = vsel %vm1212, %v2662, 0.0
        %2713 = vadd.xlane.f32.xlu0 %v2712
        %v2714 = vpop.xlane.xlu0 %2713
        %v2715 = vsel %vm1212, %v2664, 0.0
        %2716 = vadd.xlane.f32.xlu0 %v2715
        %v2717 = vpop.xlane.xlu0 %2716
        %v2718 = vsel %vm1212, %v2666, 0.0
        %2719 = vadd.xlane.f32.xlu0 %v2718
        %v2720 = vpop.xlane.xlu0 %2719
        %v2721 = vsel %vm1212, %v2668, 0.0
        %2722 = vadd.xlane.f32.xlu0 %v2721
        %v2723 = vpop.xlane.xlu0 %2722
        %v2724 = vsel %vm1212, %v2670, 0.0
        %2725 = vadd.xlane.f32.xlu0 %v2724
        %v2726 = vpop.xlane.xlu0 %2725
        %v2727 = vsel %vm1212, %v2672, 0.0
        %2728 = vadd.xlane.f32.xlu0 %v2727
        %v2729 = vpop.xlane.xlu0 %2728
        %v2730 = vsel %vm1212, %v2674, 0.0
        %2731 = vadd.xlane.f32.xlu0 %v2730
        %v2732 = vpop.xlane.xlu0 %2731
        %v2733 = vsel %vm1212, %v2676, 0.0
        %2734 = vadd.xlane.f32.xlu0 %v2733
        %v2735 = vpop.xlane.xlu0 %2734
        %v2736 = vsel %vm1212, %v2678, 0.0
        %2737 = vadd.xlane.f32.xlu0 %v2736
        %v2738 = vpop.xlane.xlu0 %2737
        %v2739 = vsel %vm1212, %v2680, 0.0
        %2740 = vadd.xlane.f32.xlu0 %v2739
        %v2741 = vpop.xlane.xlu0 %2740
        %v2742 = vsel %vm1212, %v2682, 0.0
        %2743 = vadd.xlane.f32.xlu0 %v2742
        %v2744 = vpop.xlane.xlu0 %2743
        %v2745 = vsel %vm1212, %v2684, 0.0
        %2746 = vadd.xlane.f32.xlu0 %v2745
        %v2747 = vpop.xlane.xlu0 %2746
        %v2748 = vsel %vm1212, %v2686, 0.0
        %2749 = vadd.xlane.f32.xlu0 %v2748
        %v2750 = vpop.xlane.xlu0 %2749
        %v2751 = vmul.f32 %v2705, %v1261
        %v2752 = vmul.f32 %v2708, %v1261
        %v2753 = vmul.f32 %v2711, %v1261
        %v2754 = vmul.f32 %v2714, %v1261
        %v2755 = vmul.f32 %v2717, %v1261
        %v2756 = vmul.f32 %v2720, %v1261
        %v2757 = vmul.f32 %v2723, %v1261
        %v2758 = vmul.f32 %v2726, %v1261
        %v2759 = vmul.f32 %v2729, %v1261
        %v2760 = vmul.f32 %v2732, %v1261
        %v2761 = vmul.f32 %v2735, %v1261
        %v2762 = vmul.f32 %v2738, %v1261
        %v2763 = vmul.f32 %v2741, %v1261
        %v2764 = vmul.f32 %v2744, %v1261
        %v2765 = vmul.f32 %v2747, %v1261
        %v2766 = vmul.f32 %v2750, %v1261
        %v2767 = vadd.f32 %v2751, 1e-05
        %v2768 = vadd.f32 %v2752, 1e-05
        %v2769 = vadd.f32 %v2753, 1e-05
        %v2770 = vadd.f32 %v2754, 1e-05
        %v2771 = vadd.f32 %v2755, 1e-05
        %v2772 = vadd.f32 %v2756, 1e-05
        %v2773 = vadd.f32 %v2757, 1e-05
        %v2774 = vadd.f32 %v2758, 1e-05
        %v2775 = vadd.f32 %v2759, 1e-05
        %v2776 = vadd.f32 %v2760, 1e-05
        %v2777 = vadd.f32 %v2761, 1e-05
        %v2778 = vadd.f32 %v2762, 1e-05
        %v2779 = vadd.f32 %v2763, 1e-05
        %v2780 = vadd.f32 %v2764, 1e-05
        %v2781 = vadd.f32 %v2765, 1e-05
        %v2782 = vadd.f32 %v2766, 1e-05
        %v2783 = vrsqrt.pop %v2767
        %v2784 = vrsqrt.pop %v2768
        %v2785 = vrsqrt.pop %v2769
        %v2786 = vrsqrt.pop %v2770
        %v2787 = vrsqrt.pop %v2771
        %v2788 = vrsqrt.pop %v2772
        %v2789 = vrsqrt.pop %v2773
        %v2790 = vrsqrt.pop %v2774
        %v2791 = vrsqrt.pop %v2775
        %v2792 = vrsqrt.pop %v2776
        %v2793 = vrsqrt.pop %v2777
        %v2794 = vrsqrt.pop %v2778
        %v2795 = vrsqrt.pop %v2779
        %v2796 = vrsqrt.pop %v2780
        %v2797 = vrsqrt.pop %v2781
        %v2798 = vrsqrt.pop %v2782
        %v2799 = vmul.f32 %v1052, %v2783
        %v2800 = vmul.f32 %v1057, %v2784
        %v2801 = vmul.f32 %v1062, %v2785
        %v2802 = vmul.f32 %v1067, %v2786
        %v2803 = vmul.f32 %v1072, %v2787
        %v2804 = vmul.f32 %v1077, %v2788
        %v2805 = vmul.f32 %v1082, %v2789
        %v2806 = vmul.f32 %v1087, %v2790
        %v2807 = vmul.f32 %v1092, %v2791
        %v2808 = vmul.f32 %v1097, %v2792
        %v2809 = vmul.f32 %v1102, %v2793
        %v2810 = vmul.f32 %v1107, %v2794
        %v2811 = vmul.f32 %v1112, %v2795
        %v2812 = vmul.f32 %v1117, %v2796
        %v2813 = vmul.f32 %v1122, %v2797
        %v2814 = vmul.f32 %v1127, %v2798
        %2815 = vrot.lane.b32.xlu0 %v1330, 48
        %v2816 = vpop.permute.xlu0 %2815
        %v2818 = vmul.f32 %v2799, %v2816
        %v2819 = vmul.f32 %v2800, %v2816
        %v2820 = vmul.f32 %v2801, %v2816
        %v2821 = vmul.f32 %v2802, %v2816
        %v2822 = vmul.f32 %v2803, %v2816
        %v2823 = vmul.f32 %v2804, %v2816
        %v2824 = vmul.f32 %v2805, %v2816
        %v2825 = vmul.f32 %v2806, %v2816
        %v2826 = vmul.f32 %v2807, %v2816
        %v2827 = vmul.f32 %v2808, %v2816
        %v2828 = vmul.f32 %v2809, %v2816
        %v2829 = vmul.f32 %v2810, %v2816
        %v2830 = vmul.f32 %v2811, %v2816
        %v2831 = vmul.f32 %v2812, %v2816
        %v2832 = vmul.f32 %v2813, %v2816
        %v2833 = vmul.f32 %v2814, %v2816
        %2850 = vrot.lane.b32.xlu0 %v2818, 80
        %v2851 = vpop.permute.xlu0 %2850
        %2852 = vrot.lane.b32.xlu0 %v2819, 80
        %v2853 = vpop.permute.xlu0 %2852
        %2854 = vrot.lane.b32.xlu0 %v2820, 80
        %v2855 = vpop.permute.xlu0 %2854
        %2856 = vrot.lane.b32.xlu0 %v2821, 80
        %v2857 = vpop.permute.xlu0 %2856
        %2858 = vrot.lane.b32.xlu0 %v2822, 80
        %v2859 = vpop.permute.xlu0 %2858
        %2860 = vrot.lane.b32.xlu0 %v2823, 80
        %v2861 = vpop.permute.xlu0 %2860
        %2862 = vrot.lane.b32.xlu0 %v2824, 80
        %v2863 = vpop.permute.xlu0 %2862
        %2864 = vrot.lane.b32.xlu0 %v2825, 80
        %v2865 = vpop.permute.xlu0 %2864
        %2866 = vrot.lane.b32.xlu0 %v2826, 80
        %v2867 = vpop.permute.xlu0 %2866
        %2868 = vrot.lane.b32.xlu0 %v2827, 80
        %v2869 = vpop.permute.xlu0 %2868
        %2870 = vrot.lane.b32.xlu0 %v2828, 80
        %v2871 = vpop.permute.xlu0 %2870
        %2872 = vrot.lane.b32.xlu0 %v2829, 80
        %v2873 = vpop.permute.xlu0 %2872
        %2874 = vrot.lane.b32.xlu0 %v2830, 80
        %v2875 = vpop.permute.xlu0 %2874
        %2876 = vrot.lane.b32.xlu0 %v2831, 80
        %v2877 = vpop.permute.xlu0 %2876
        %2878 = vrot.lane.b32.xlu0 %v2832, 80
        %v2879 = vpop.permute.xlu0 %2878
        %2880 = vrot.lane.b32.xlu0 %v2833, 80
        %v2881 = vpop.permute.xlu0 %2880
        %v2898 = vmul.f32 %v1130, %v2851
        %v2899 = vmul.f32 %v1131, %v2853
        %v2900 = vmul.f32 %v1132, %v2855
        %v2901 = vmul.f32 %v1133, %v2857
        %v2902 = vmul.f32 %v1134, %v2859
        %v2903 = vmul.f32 %v1135, %v2861
        %v2904 = vmul.f32 %v1136, %v2863
        %v2905 = vmul.f32 %v1137, %v2865
        %v2906 = vmul.f32 %v1138, %v2867
        %v2907 = vmul.f32 %v1139, %v2869
        %v2908 = vmul.f32 %v1140, %v2871
        %v2909 = vmul.f32 %v1141, %v2873
        %v2910 = vmul.f32 %v1142, %v2875
        %v2911 = vmul.f32 %v1143, %v2877
        %v2912 = vmul.f32 %v1144, %v2879
        %v2913 = vmul.f32 %v1145, %v2881
        %2914 = vrot.lane.b32.xlu0 %v2818, 72
        %v2915 = vpop.permute.xlu0 %2914
        %2916 = vrot.lane.b32.xlu0 %v2819, 72
        %v2917 = vpop.permute.xlu0 %2916
        %2918 = vrot.lane.b32.xlu0 %v2820, 72
        %v2919 = vpop.permute.xlu0 %2918
        %2920 = vrot.lane.b32.xlu0 %v2821, 72
        %v2921 = vpop.permute.xlu0 %2920
        %2922 = vrot.lane.b32.xlu0 %v2822, 72
        %v2923 = vpop.permute.xlu0 %2922
        %2924 = vrot.lane.b32.xlu0 %v2823, 72
        %v2925 = vpop.permute.xlu0 %2924
        %2926 = vrot.lane.b32.xlu0 %v2824, 72
        %v2927 = vpop.permute.xlu0 %2926
        %2928 = vrot.lane.b32.xlu0 %v2825, 72
        %v2929 = vpop.permute.xlu0 %2928
        %2930 = vrot.lane.b32.xlu0 %v2826, 72
        %v2931 = vpop.permute.xlu0 %2930
        %2932 = vrot.lane.b32.xlu0 %v2827, 72
        %v2933 = vpop.permute.xlu0 %2932
        %2934 = vrot.lane.b32.xlu0 %v2828, 72
        %v2935 = vpop.permute.xlu0 %2934
        %2936 = vrot.lane.b32.xlu0 %v2829, 72
        %v2937 = vpop.permute.xlu0 %2936
        %2938 = vrot.lane.b32.xlu0 %v2830, 72
        %v2939 = vpop.permute.xlu0 %2938
        %2940 = vrot.lane.b32.xlu0 %v2831, 72
        %v2941 = vpop.permute.xlu0 %2940
        %2942 = vrot.lane.b32.xlu0 %v2832, 72
        %v2943 = vpop.permute.xlu0 %2942
        %2944 = vrot.lane.b32.xlu0 %v2833, 72
        %v2945 = vpop.permute.xlu0 %2944
        %v2962 = vmul.f32 %v1146, %v2915
        %v2963 = vmul.f32 %v1147, %v2917
        %v2964 = vmul.f32 %v1148, %v2919
        %v2965 = vmul.f32 %v1149, %v2921
        %v2966 = vmul.f32 %v1150, %v2923
        %v2967 = vmul.f32 %v1151, %v2925
        %v2968 = vmul.f32 %v1152, %v2927
        %v2969 = vmul.f32 %v1153, %v2929
        %v2970 = vmul.f32 %v1154, %v2931
        %v2971 = vmul.f32 %v1155, %v2933
        %v2972 = vmul.f32 %v1156, %v2935
        %v2973 = vmul.f32 %v1157, %v2937
        %v2974 = vmul.f32 %v1158, %v2939
        %v2975 = vmul.f32 %v1159, %v2941
        %v2976 = vmul.f32 %v1160, %v2943
        %v2977 = vmul.f32 %v1161, %v2945
        %v2978 = vadd.f32 %v2898, %v2962
        %v2979 = vadd.f32 %v2899, %v2963
        %v2980 = vadd.f32 %v2900, %v2964
        %v2981 = vadd.f32 %v2901, %v2965
        %v2982 = vadd.f32 %v2902, %v2966
        %v2983 = vadd.f32 %v2903, %v2967
        %v2984 = vadd.f32 %v2904, %v2968
        %v2985 = vadd.f32 %v2905, %v2969
        %v2986 = vadd.f32 %v2906, %v2970
        %v2987 = vadd.f32 %v2907, %v2971
        %v2988 = vadd.f32 %v2908, %v2972
        %v2989 = vadd.f32 %v2909, %v2973
        %v2990 = vadd.f32 %v2910, %v2974
        %v2991 = vadd.f32 %v2911, %v2975
        %v2992 = vadd.f32 %v2912, %v2976
        %v2993 = vadd.f32 %v2913, %v2977
        %v2994 = vmul.f32 %v1162, %v2851
        %v2995 = vmul.f32 %v1163, %v2853
        %v2996 = vmul.f32 %v1164, %v2855
        %v2997 = vmul.f32 %v1165, %v2857
        %v2998 = vmul.f32 %v1166, %v2859
        %v2999 = vmul.f32 %v1167, %v2861
        %v3000 = vmul.f32 %v1168, %v2863
        %v3001 = vmul.f32 %v1169, %v2865
        %v3002 = vmul.f32 %v1170, %v2867
        %v3003 = vmul.f32 %v1171, %v2869
        %v3004 = vmul.f32 %v1172, %v2871
        %v3005 = vmul.f32 %v1173, %v2873
        %v3006 = vmul.f32 %v1174, %v2875
        %v3007 = vmul.f32 %v1175, %v2877
        %v3008 = vmul.f32 %v1176, %v2879
        %v3009 = vmul.f32 %v1177, %v2881
        %v3010 = vmul.f32 %v1178, %v2915
        %v3011 = vmul.f32 %v1179, %v2917
        %v3012 = vmul.f32 %v1180, %v2919
        %v3013 = vmul.f32 %v1181, %v2921
        %v3014 = vmul.f32 %v1182, %v2923
        %v3015 = vmul.f32 %v1183, %v2925
        %v3016 = vmul.f32 %v1184, %v2927
        %v3017 = vmul.f32 %v1185, %v2929
        %v3018 = vmul.f32 %v1186, %v2931
        %v3019 = vmul.f32 %v1187, %v2933
        %v3020 = vmul.f32 %v1188, %v2935
        %v3021 = vmul.f32 %v1189, %v2937
        %v3022 = vmul.f32 %v1190, %v2939
        %v3023 = vmul.f32 %v1191, %v2941
        %v3024 = vmul.f32 %v1192, %v2943
        %v3025 = vmul.f32 %v1193, %v2945
        %v3026 = vadd.f32 %v2994, %v3010
        %v3027 = vadd.f32 %v2995, %v3011
        %v3028 = vadd.f32 %v2996, %v3012
        %v3029 = vadd.f32 %v2997, %v3013
        %v3030 = vadd.f32 %v2998, %v3014
        %v3031 = vadd.f32 %v2999, %v3015
        %v3032 = vadd.f32 %v3000, %v3016
        %v3033 = vadd.f32 %v3001, %v3017
        %v3034 = vadd.f32 %v3002, %v3018
        %v3035 = vadd.f32 %v3003, %v3019
        %v3036 = vadd.f32 %v3004, %v3020
        %v3037 = vadd.f32 %v3005, %v3021
        %v3038 = vadd.f32 %v3006, %v3022
        %v3039 = vadd.f32 %v3007, %v3023
        %v3040 = vadd.f32 %v3008, %v3024
        %v3041 = vadd.f32 %v3009, %v3025
        %3058 = vrot.lane.b32.xlu0 %v2978, 16
        %v3059 = vpop.permute.xlu0 %3058
        %3060 = vrot.lane.b32.xlu0 %v2979, 16
        %v3061 = vpop.permute.xlu0 %3060
        %3062 = vrot.lane.b32.xlu0 %v2980, 16
        %v3063 = vpop.permute.xlu0 %3062
        %3064 = vrot.lane.b32.xlu0 %v2981, 16
        %v3065 = vpop.permute.xlu0 %3064
        %3066 = vrot.lane.b32.xlu0 %v2982, 16
        %v3067 = vpop.permute.xlu0 %3066
        %3068 = vrot.lane.b32.xlu0 %v2983, 16
        %v3069 = vpop.permute.xlu0 %3068
        %3070 = vrot.lane.b32.xlu0 %v2984, 16
        %v3071 = vpop.permute.xlu0 %3070
        %3072 = vrot.lane.b32.xlu0 %v2985, 16
        %v3073 = vpop.permute.xlu0 %3072
        %3074 = vrot.lane.b32.xlu0 %v2986, 16
        %v3075 = vpop.permute.xlu0 %3074
        %3076 = vrot.lane.b32.xlu0 %v2987, 16
        %v3077 = vpop.permute.xlu0 %3076
        %3078 = vrot.lane.b32.xlu0 %v2988, 16
        %v3079 = vpop.permute.xlu0 %3078
        %3080 = vrot.lane.b32.xlu0 %v2989, 16
        %v3081 = vpop.permute.xlu0 %3080
        %3082 = vrot.lane.b32.xlu0 %v2990, 16
        %v3083 = vpop.permute.xlu0 %3082
        %3084 = vrot.lane.b32.xlu0 %v2991, 16
        %v3085 = vpop.permute.xlu0 %3084
        %3086 = vrot.lane.b32.xlu0 %v2992, 16
        %v3087 = vpop.permute.xlu0 %3086
        %3088 = vrot.lane.b32.xlu0 %v2993, 16
        %v3089 = vpop.permute.xlu0 %3088
        %3106 = vst.msk [vmem:[%s2558] sm:$0xff] %vm2073, %v3059
        %3107 = vst.msk [vmem:[%s2558 + $0x8] sm:$0xff] %vm2073, %v3061
        %3108 = vst.msk [vmem:[%s2558 + $0x10] sm:$0xff] %vm2073, %v3063
        %3109 = vst.msk [vmem:[%s2558 + $0x18] sm:$0xff] %vm2073, %v3065
        %3110 = vst.msk [vmem:[%s2558 + $0x20] sm:$0xff] %vm2073, %v3067
        %3111 = vst.msk [vmem:[%s2558 + $0x28] sm:$0xff] %vm2073, %v3069
        %3112 = vst.msk [vmem:[%s2558 + $0x30] sm:$0xff] %vm2073, %v3071
        %3113 = vst.msk [vmem:[%s2558 + $0x38] sm:$0xff] %vm2073, %v3073
        %3114 = vst.msk [vmem:[%s2558 + $0x40] sm:$0xff] %vm2073, %v3075
        %3115 = vst.msk [vmem:[%s2558 + $0x48] sm:$0xff] %vm2073, %v3077
        %3116 = vst.msk [vmem:[%s2558 + $0x50] sm:$0xff] %vm2073, %v3079
        %3117 = vst.msk [vmem:[%s2558 + $0x58] sm:$0xff] %vm2073, %v3081
        %3118 = vst.msk [vmem:[%s2558 + $0x60] sm:$0xff] %vm2073, %v3083
        %3119 = vst.msk [vmem:[%s2558 + $0x68] sm:$0xff] %vm2073, %v3085
        %3120 = vst.msk [vmem:[%s2558 + $0x70] sm:$0xff] %vm2073, %v3087
        %3121 = vst.msk [vmem:[%s2558 + $0x78] sm:$0xff] %vm2073, %v3089
        %3138 = vrot.lane.b32.xlu0 %v3026, 24
        %v3139 = vpop.permute.xlu0 %3138
        %3140 = vrot.lane.b32.xlu0 %v3027, 24
        %v3141 = vpop.permute.xlu0 %3140
        %3142 = vrot.lane.b32.xlu0 %v3028, 24
        %v3143 = vpop.permute.xlu0 %3142
        %3144 = vrot.lane.b32.xlu0 %v3029, 24
        %v3145 = vpop.permute.xlu0 %3144
        %3146 = vrot.lane.b32.xlu0 %v3030, 24
        %v3147 = vpop.permute.xlu0 %3146
        %3148 = vrot.lane.b32.xlu0 %v3031, 24
        %v3149 = vpop.permute.xlu0 %3148
        %3150 = vrot.lane.b32.xlu0 %v3032, 24
        %v3151 = vpop.permute.xlu0 %3150
        %3152 = vrot.lane.b32.xlu0 %v3033, 24
        %v3153 = vpop.permute.xlu0 %3152
        %3154 = vrot.lane.b32.xlu0 %v3034, 24
        %v3155 = vpop.permute.xlu0 %3154
        %3156 = vrot.lane.b32.xlu0 %v3035, 24
        %v3157 = vpop.permute.xlu0 %3156
        %3158 = vrot.lane.b32.xlu0 %v3036, 24
        %v3159 = vpop.permute.xlu0 %3158
        %3160 = vrot.lane.b32.xlu0 %v3037, 24
        %v3161 = vpop.permute.xlu0 %3160
        %3162 = vrot.lane.b32.xlu0 %v3038, 24
        %v3163 = vpop.permute.xlu0 %3162
        %3164 = vrot.lane.b32.xlu0 %v3039, 24
        %v3165 = vpop.permute.xlu0 %3164
        %3166 = vrot.lane.b32.xlu0 %v3040, 24
        %v3167 = vpop.permute.xlu0 %3166
        %3168 = vrot.lane.b32.xlu0 %v3041, 24
        %v3169 = vpop.permute.xlu0 %3168
        %3186 = vst.msk [vmem:[%s2558] sm:$0xff] %vm2154, %v3139
        %3187 = vst.msk [vmem:[%s2558 + $0x8] sm:$0xff] %vm2154, %v3141
        %3188 = vst.msk [vmem:[%s2558 + $0x10] sm:$0xff] %vm2154, %v3143
        %3189 = vst.msk [vmem:[%s2558 + $0x18] sm:$0xff] %vm2154, %v3145
        %3190 = vst.msk [vmem:[%s2558 + $0x20] sm:$0xff] %vm2154, %v3147
        %3191 = vst.msk [vmem:[%s2558 + $0x28] sm:$0xff] %vm2154, %v3149
        %3192 = vst.msk [vmem:[%s2558 + $0x30] sm:$0xff] %vm2154, %v3151
        %3193 = vst.msk [vmem:[%s2558 + $0x38] sm:$0xff] %vm2154, %v3153
        %3194 = vst.msk [vmem:[%s2558 + $0x40] sm:$0xff] %vm2154, %v3155
        %3195 = vst.msk [vmem:[%s2558 + $0x48] sm:$0xff] %vm2154, %v3157
        %3196 = vst.msk [vmem:[%s2558 + $0x50] sm:$0xff] %vm2154, %v3159
        %3197 = vst.msk [vmem:[%s2558 + $0x58] sm:$0xff] %vm2154, %v3161
        %3198 = vst.msk [vmem:[%s2558 + $0x60] sm:$0xff] %vm2154, %v3163
        %3199 = vst.msk [vmem:[%s2558 + $0x68] sm:$0xff] %vm2154, %v3165
        %3200 = vst.msk [vmem:[%s2558 + $0x70] sm:$0xff] %vm2154, %v3167
        %3201 = vst.msk [vmem:[%s2558 + $0x78] sm:$0xff] %vm2154, %v3169
        %3202 = vrot.lane.b32.xlu0 %v1196, 64
        %v3203 = vpop.permute.xlu0 %3202
        %3204 = vrot.lane.b32.xlu0 %v1197, 64
        %v3205 = vpop.permute.xlu0 %3204
        %3206 = vrot.lane.b32.xlu0 %v1198, 64
        %v3207 = vpop.permute.xlu0 %3206
        %3208 = vrot.lane.b32.xlu0 %v1199, 64
        %v3209 = vpop.permute.xlu0 %3208
        %3210 = vrot.lane.b32.xlu0 %v1200, 64
        %v3211 = vpop.permute.xlu0 %3210
        %3212 = vrot.lane.b32.xlu0 %v1201, 64
        %v3213 = vpop.permute.xlu0 %3212
        %3214 = vrot.lane.b32.xlu0 %v1202, 64
        %v3215 = vpop.permute.xlu0 %3214
        %3216 = vrot.lane.b32.xlu0 %v1203, 64
        %v3217 = vpop.permute.xlu0 %3216
        %3218 = vrot.lane.b32.xlu0 %v1204, 64
        %v3219 = vpop.permute.xlu0 %3218
        %3220 = vrot.lane.b32.xlu0 %v1205, 64
        %v3221 = vpop.permute.xlu0 %3220
        %3222 = vrot.lane.b32.xlu0 %v1206, 64
        %v3223 = vpop.permute.xlu0 %3222
        %3224 = vrot.lane.b32.xlu0 %v1207, 64
        %v3225 = vpop.permute.xlu0 %3224
        %3226 = vrot.lane.b32.xlu0 %v1208, 64
        %v3227 = vpop.permute.xlu0 %3226
        %3228 = vrot.lane.b32.xlu0 %v1209, 64
        %v3229 = vpop.permute.xlu0 %3228
        %3230 = vrot.lane.b32.xlu0 %v1210, 64
        %v3231 = vpop.permute.xlu0 %3230
        %3232 = vrot.lane.b32.xlu0 %v1211, 64
        %v3233 = vpop.permute.xlu0 %3232
        %v3250 = vsel %vm1212, %v3203, 0.0
        %3251 = vadd.xlane.f32.xlu0 %v3250
        %v3252 = vpop.xlane.xlu0 %3251
        %v3253 = vsel %vm1212, %v3205, 0.0
        %3254 = vadd.xlane.f32.xlu0 %v3253
        %v3255 = vpop.xlane.xlu0 %3254
        %v3256 = vsel %vm1212, %v3207, 0.0
        %3257 = vadd.xlane.f32.xlu0 %v3256
        %v3258 = vpop.xlane.xlu0 %3257
        %v3259 = vsel %vm1212, %v3209, 0.0
        %3260 = vadd.xlane.f32.xlu0 %v3259
        %v3261 = vpop.xlane.xlu0 %3260
        %v3262 = vsel %vm1212, %v3211, 0.0
        %3263 = vadd.xlane.f32.xlu0 %v3262
        %v3264 = vpop.xlane.xlu0 %3263
        %v3265 = vsel %vm1212, %v3213, 0.0
        %3266 = vadd.xlane.f32.xlu0 %v3265
        %v3267 = vpop.xlane.xlu0 %3266
        %v3268 = vsel %vm1212, %v3215, 0.0
        %3269 = vadd.xlane.f32.xlu0 %v3268
        %v3270 = vpop.xlane.xlu0 %3269
        %v3271 = vsel %vm1212, %v3217, 0.0
        %3272 = vadd.xlane.f32.xlu0 %v3271
        %v3273 = vpop.xlane.xlu0 %3272
        %v3274 = vsel %vm1212, %v3219, 0.0
        %3275 = vadd.xlane.f32.xlu0 %v3274
        %v3276 = vpop.xlane.xlu0 %3275
        %v3277 = vsel %vm1212, %v3221, 0.0
        %3278 = vadd.xlane.f32.xlu0 %v3277
        %v3279 = vpop.xlane.xlu0 %3278
        %v3280 = vsel %vm1212, %v3223, 0.0
        %3281 = vadd.xlane.f32.xlu0 %v3280
        %v3282 = vpop.xlane.xlu0 %3281
        %v3283 = vsel %vm1212, %v3225, 0.0
        %3284 = vadd.xlane.f32.xlu0 %v3283
        %v3285 = vpop.xlane.xlu0 %3284
        %v3286 = vsel %vm1212, %v3227, 0.0
        %3287 = vadd.xlane.f32.xlu0 %v3286
        %v3288 = vpop.xlane.xlu0 %3287
        %v3289 = vsel %vm1212, %v3229, 0.0
        %3290 = vadd.xlane.f32.xlu0 %v3289
        %v3291 = vpop.xlane.xlu0 %3290
        %v3292 = vsel %vm1212, %v3231, 0.0
        %3293 = vadd.xlane.f32.xlu0 %v3292
        %v3294 = vpop.xlane.xlu0 %3293
        %v3295 = vsel %vm1212, %v3233, 0.0
        %3296 = vadd.xlane.f32.xlu0 %v3295
        %v3297 = vpop.xlane.xlu0 %3296
        %v3298 = vmul.f32 %v3252, %v1261
        %v3299 = vmul.f32 %v3255, %v1261
        %v3300 = vmul.f32 %v3258, %v1261
        %v3301 = vmul.f32 %v3261, %v1261
        %v3302 = vmul.f32 %v3264, %v1261
        %v3303 = vmul.f32 %v3267, %v1261
        %v3304 = vmul.f32 %v3270, %v1261
        %v3305 = vmul.f32 %v3273, %v1261
        %v3306 = vmul.f32 %v3276, %v1261
        %v3307 = vmul.f32 %v3279, %v1261
        %v3308 = vmul.f32 %v3282, %v1261
        %v3309 = vmul.f32 %v3285, %v1261
        %v3310 = vmul.f32 %v3288, %v1261
        %v3311 = vmul.f32 %v3291, %v1261
        %v3312 = vmul.f32 %v3294, %v1261
        %v3313 = vmul.f32 %v3297, %v1261
        %v3314 = vadd.f32 %v3298, 1e-05
        %v3315 = vadd.f32 %v3299, 1e-05
        %v3316 = vadd.f32 %v3300, 1e-05
        %v3317 = vadd.f32 %v3301, 1e-05
        %v3318 = vadd.f32 %v3302, 1e-05
        %v3319 = vadd.f32 %v3303, 1e-05
        %v3320 = vadd.f32 %v3304, 1e-05
        %v3321 = vadd.f32 %v3305, 1e-05
        %v3322 = vadd.f32 %v3306, 1e-05
        %v3323 = vadd.f32 %v3307, 1e-05
        %v3324 = vadd.f32 %v3308, 1e-05
        %v3325 = vadd.f32 %v3309, 1e-05
        %v3326 = vadd.f32 %v3310, 1e-05
        %v3327 = vadd.f32 %v3311, 1e-05
        %v3328 = vadd.f32 %v3312, 1e-05
        %v3329 = vadd.f32 %v3313, 1e-05
        %v3330 = vrsqrt.pop %v3314
        %v3331 = vrsqrt.pop %v3315
        %v3332 = vrsqrt.pop %v3316
        %v3333 = vrsqrt.pop %v3317
        %v3334 = vrsqrt.pop %v3318
        %v3335 = vrsqrt.pop %v3319
        %v3336 = vrsqrt.pop %v3320
        %v3337 = vrsqrt.pop %v3321
        %v3338 = vrsqrt.pop %v3322
        %v3339 = vrsqrt.pop %v3323
        %v3340 = vrsqrt.pop %v3324
        %v3341 = vrsqrt.pop %v3325
        %v3342 = vrsqrt.pop %v3326
        %v3343 = vrsqrt.pop %v3327
        %v3344 = vrsqrt.pop %v3328
        %v3345 = vrsqrt.pop %v3329
        %v3346 = vmul.f32 %v1052, %v3330
        %v3347 = vmul.f32 %v1057, %v3331
        %v3348 = vmul.f32 %v1062, %v3332
        %v3349 = vmul.f32 %v1067, %v3333
        %v3350 = vmul.f32 %v1072, %v3334
        %v3351 = vmul.f32 %v1077, %v3335
        %v3352 = vmul.f32 %v1082, %v3336
        %v3353 = vmul.f32 %v1087, %v3337
        %v3354 = vmul.f32 %v1092, %v3338
        %v3355 = vmul.f32 %v1097, %v3339
        %v3356 = vmul.f32 %v1102, %v3340
        %v3357 = vmul.f32 %v1107, %v3341
        %v3358 = vmul.f32 %v1112, %v3342
        %v3359 = vmul.f32 %v1117, %v3343
        %v3360 = vmul.f32 %v1122, %v3344
        %v3361 = vmul.f32 %v1127, %v3345
        %v3363 = vlaneseq
        %v3364 = vshrl.u32 %v3363, 7
        %v3365 = vsub.s32 0, %v3364
        %v3366 = vrot.slane %v1195, %v3365
        %3367 = vrot.lane.b32.xlu0 %v3366, 64
        %v3368 = vpop.permute.xlu0 %3367
        %v3370 = vmul.f32 %v3346, %v3368
        %v3371 = vmul.f32 %v3347, %v3368
        %v3372 = vmul.f32 %v3348, %v3368
        %v3373 = vmul.f32 %v3349, %v3368
        %v3374 = vmul.f32 %v3350, %v3368
        %v3375 = vmul.f32 %v3351, %v3368
        %v3376 = vmul.f32 %v3352, %v3368
        %v3377 = vmul.f32 %v3353, %v3368
        %v3378 = vmul.f32 %v3354, %v3368
        %v3379 = vmul.f32 %v3355, %v3368
        %v3380 = vmul.f32 %v3356, %v3368
        %v3381 = vmul.f32 %v3357, %v3368
        %v3382 = vmul.f32 %v3358, %v3368
        %v3383 = vmul.f32 %v3359, %v3368
        %v3384 = vmul.f32 %v3360, %v3368
        %v3385 = vmul.f32 %v3361, %v3368
        %3402 = vrot.lane.b32.xlu0 %v3370, 64
        %v3403 = vpop.permute.xlu0 %3402
        %3404 = vrot.lane.b32.xlu0 %v3371, 64
        %v3405 = vpop.permute.xlu0 %3404
        %3406 = vrot.lane.b32.xlu0 %v3372, 64
        %v3407 = vpop.permute.xlu0 %3406
        %3408 = vrot.lane.b32.xlu0 %v3373, 64
        %v3409 = vpop.permute.xlu0 %3408
        %3410 = vrot.lane.b32.xlu0 %v3374, 64
        %v3411 = vpop.permute.xlu0 %3410
        %3412 = vrot.lane.b32.xlu0 %v3375, 64
        %v3413 = vpop.permute.xlu0 %3412
        %3414 = vrot.lane.b32.xlu0 %v3376, 64
        %v3415 = vpop.permute.xlu0 %3414
        %3416 = vrot.lane.b32.xlu0 %v3377, 64
        %v3417 = vpop.permute.xlu0 %3416
        %3418 = vrot.lane.b32.xlu0 %v3378, 64
        %v3419 = vpop.permute.xlu0 %3418
        %3420 = vrot.lane.b32.xlu0 %v3379, 64
        %v3421 = vpop.permute.xlu0 %3420
        %3422 = vrot.lane.b32.xlu0 %v3380, 64
        %v3423 = vpop.permute.xlu0 %3422
        %3424 = vrot.lane.b32.xlu0 %v3381, 64
        %v3425 = vpop.permute.xlu0 %3424
        %3426 = vrot.lane.b32.xlu0 %v3382, 64
        %v3427 = vpop.permute.xlu0 %3426
        %3428 = vrot.lane.b32.xlu0 %v3383, 64
        %v3429 = vpop.permute.xlu0 %3428
        %3430 = vrot.lane.b32.xlu0 %v3384, 64
        %v3431 = vpop.permute.xlu0 %3430
        %3432 = vrot.lane.b32.xlu0 %v3385, 64
        %v3433 = vpop.permute.xlu0 %3432
        %v3450 = vmul.f32 %v1130, %v3403
        %v3451 = vmul.f32 %v1131, %v3405
        %v3452 = vmul.f32 %v1132, %v3407
        %v3453 = vmul.f32 %v1133, %v3409
        %v3454 = vmul.f32 %v1134, %v3411
        %v3455 = vmul.f32 %v1135, %v3413
        %v3456 = vmul.f32 %v1136, %v3415
        %v3457 = vmul.f32 %v1137, %v3417
        %v3458 = vmul.f32 %v1138, %v3419
        %v3459 = vmul.f32 %v1139, %v3421
        %v3460 = vmul.f32 %v1140, %v3423
        %v3461 = vmul.f32 %v1141, %v3425
        %v3462 = vmul.f32 %v1142, %v3427
        %v3463 = vmul.f32 %v1143, %v3429
        %v3464 = vmul.f32 %v1144, %v3431
        %v3465 = vmul.f32 %v1145, %v3433
        %3466 = vrot.lane.b32.xlu0 %v3370, 56
        %v3467 = vpop.permute.xlu0 %3466
        %3468 = vrot.lane.b32.xlu0 %v3371, 56
        %v3469 = vpop.permute.xlu0 %3468
        %3470 = vrot.lane.b32.xlu0 %v3372, 56
        %v3471 = vpop.permute.xlu0 %3470
        %3472 = vrot.lane.b32.xlu0 %v3373, 56
        %v3473 = vpop.permute.xlu0 %3472
        %3474 = vrot.lane.b32.xlu0 %v3374, 56
        %v3475 = vpop.permute.xlu0 %3474
        %3476 = vrot.lane.b32.xlu0 %v3375, 56
        %v3477 = vpop.permute.xlu0 %3476
        %3478 = vrot.lane.b32.xlu0 %v3376, 56
        %v3479 = vpop.permute.xlu0 %3478
        %3480 = vrot.lane.b32.xlu0 %v3377, 56
        %v3481 = vpop.permute.xlu0 %3480
        %3482 = vrot.lane.b32.xlu0 %v3378, 56
        %v3483 = vpop.permute.xlu0 %3482
        %3484 = vrot.lane.b32.xlu0 %v3379, 56
        %v3485 = vpop.permute.xlu0 %3484
        %3486 = vrot.lane.b32.xlu0 %v3380, 56
        %v3487 = vpop.permute.xlu0 %3486
        %3488 = vrot.lane.b32.xlu0 %v3381, 56
        %v3489 = vpop.permute.xlu0 %3488
        %3490 = vrot.lane.b32.xlu0 %v3382, 56
        %v3491 = vpop.permute.xlu0 %3490
        %3492 = vrot.lane.b32.xlu0 %v3383, 56
        %v3493 = vpop.permute.xlu0 %3492
        %3494 = vrot.lane.b32.xlu0 %v3384, 56
        %v3495 = vpop.permute.xlu0 %3494
        %3496 = vrot.lane.b32.xlu0 %v3385, 56
        %v3497 = vpop.permute.xlu0 %3496
        %v3514 = vmul.f32 %v1146, %v3467
        %v3515 = vmul.f32 %v1147, %v3469
        %v3516 = vmul.f32 %v1148, %v3471
        %v3517 = vmul.f32 %v1149, %v3473
        %v3518 = vmul.f32 %v1150, %v3475
        %v3519 = vmul.f32 %v1151, %v3477
        %v3520 = vmul.f32 %v1152, %v3479
        %v3521 = vmul.f32 %v1153, %v3481
        %v3522 = vmul.f32 %v1154, %v3483
        %v3523 = vmul.f32 %v1155, %v3485
        %v3524 = vmul.f32 %v1156, %v3487
        %v3525 = vmul.f32 %v1157, %v3489
        %v3526 = vmul.f32 %v1158, %v3491
        %v3527 = vmul.f32 %v1159, %v3493
        %v3528 = vmul.f32 %v1160, %v3495
        %v3529 = vmul.f32 %v1161, %v3497
        %v3530 = vadd.f32 %v3450, %v3514
        %v3531 = vadd.f32 %v3451, %v3515
        %v3532 = vadd.f32 %v3452, %v3516
        %v3533 = vadd.f32 %v3453, %v3517
        %v3534 = vadd.f32 %v3454, %v3518
        %v3535 = vadd.f32 %v3455, %v3519
        %v3536 = vadd.f32 %v3456, %v3520
        %v3537 = vadd.f32 %v3457, %v3521
        %v3538 = vadd.f32 %v3458, %v3522
        %v3539 = vadd.f32 %v3459, %v3523
        %v3540 = vadd.f32 %v3460, %v3524
        %v3541 = vadd.f32 %v3461, %v3525
        %v3542 = vadd.f32 %v3462, %v3526
        %v3543 = vadd.f32 %v3463, %v3527
        %v3544 = vadd.f32 %v3464, %v3528
        %v3545 = vadd.f32 %v3465, %v3529
        %v3546 = vmul.f32 %v1162, %v3403
        %v3547 = vmul.f32 %v1163, %v3405
        %v3548 = vmul.f32 %v1164, %v3407
        %v3549 = vmul.f32 %v1165, %v3409
        %v3550 = vmul.f32 %v1166, %v3411
        %v3551 = vmul.f32 %v1167, %v3413
        %v3552 = vmul.f32 %v1168, %v3415
        %v3553 = vmul.f32 %v1169, %v3417
        %v3554 = vmul.f32 %v1170, %v3419
        %v3555 = vmul.f32 %v1171, %v3421
        %v3556 = vmul.f32 %v1172, %v3423
        %v3557 = vmul.f32 %v1173, %v3425
        %v3558 = vmul.f32 %v1174, %v3427
        %v3559 = vmul.f32 %v1175, %v3429
        %v3560 = vmul.f32 %v1176, %v3431
        %v3561 = vmul.f32 %v1177, %v3433
        %v3562 = vmul.f32 %v1178, %v3467
        %v3563 = vmul.f32 %v1179, %v3469
        %v3564 = vmul.f32 %v1180, %v3471
        %v3565 = vmul.f32 %v1181, %v3473
        %v3566 = vmul.f32 %v1182, %v3475
        %v3567 = vmul.f32 %v1183, %v3477
        %v3568 = vmul.f32 %v1184, %v3479
        %v3569 = vmul.f32 %v1185, %v3481
        %v3570 = vmul.f32 %v1186, %v3483
        %v3571 = vmul.f32 %v1187, %v3485
        %v3572 = vmul.f32 %v1188, %v3487
        %v3573 = vmul.f32 %v1189, %v3489
        %v3574 = vmul.f32 %v1190, %v3491
        %v3575 = vmul.f32 %v1191, %v3493
        %v3576 = vmul.f32 %v1192, %v3495
        %v3577 = vmul.f32 %v1193, %v3497
        %v3578 = vadd.f32 %v3546, %v3562
        %v3579 = vadd.f32 %v3547, %v3563
        %v3580 = vadd.f32 %v3548, %v3564
        %v3581 = vadd.f32 %v3549, %v3565
        %v3582 = vadd.f32 %v3550, %v3566
        %v3583 = vadd.f32 %v3551, %v3567
        %v3584 = vadd.f32 %v3552, %v3568
        %v3585 = vadd.f32 %v3553, %v3569
        %v3586 = vadd.f32 %v3554, %v3570
        %v3587 = vadd.f32 %v3555, %v3571
        %v3588 = vadd.f32 %v3556, %v3572
        %v3589 = vadd.f32 %v3557, %v3573
        %v3590 = vadd.f32 %v3558, %v3574
        %v3591 = vadd.f32 %v3559, %v3575
        %v3592 = vadd.f32 %v3560, %v3576
        %v3593 = vadd.f32 %v3561, %v3577
        %3594 = vst.msk [vmem:[%s720] sm:$0xff] %vm1508, %v3530
        %3595 = vst.msk [vmem:[%s720 + $0x8] sm:$0xff] %vm1508, %v3531
        %3596 = vst.msk [vmem:[%s720 + $0x10] sm:$0xff] %vm1508, %v3532
        %3597 = vst.msk [vmem:[%s720 + $0x18] sm:$0xff] %vm1508, %v3533
        %3598 = vst.msk [vmem:[%s720 + $0x20] sm:$0xff] %vm1508, %v3534
        %3599 = vst.msk [vmem:[%s720 + $0x28] sm:$0xff] %vm1508, %v3535
        %3600 = vst.msk [vmem:[%s720 + $0x30] sm:$0xff] %vm1508, %v3536
        %3601 = vst.msk [vmem:[%s720 + $0x38] sm:$0xff] %vm1508, %v3537
        %3602 = vst.msk [vmem:[%s720 + $0x40] sm:$0xff] %vm1508, %v3538
        %3603 = vst.msk [vmem:[%s720 + $0x48] sm:$0xff] %vm1508, %v3539
        %3604 = vst.msk [vmem:[%s720 + $0x50] sm:$0xff] %vm1508, %v3540
        %3605 = vst.msk [vmem:[%s720 + $0x58] sm:$0xff] %vm1508, %v3541
        %3606 = vst.msk [vmem:[%s720 + $0x60] sm:$0xff] %vm1508, %v3542
        %3607 = vst.msk [vmem:[%s720 + $0x68] sm:$0xff] %vm1508, %v3543
        %3608 = vst.msk [vmem:[%s720 + $0x70] sm:$0xff] %vm1508, %v3544
        %3609 = vst.msk [vmem:[%s720 + $0x78] sm:$0xff] %vm1508, %v3545
        %3626 = vrot.lane.b32.xlu0 %v3578, 8
        %v3627 = vpop.permute.xlu0 %3626
        %3628 = vrot.lane.b32.xlu0 %v3579, 8
        %v3629 = vpop.permute.xlu0 %3628
        %3630 = vrot.lane.b32.xlu0 %v3580, 8
        %v3631 = vpop.permute.xlu0 %3630
        %3632 = vrot.lane.b32.xlu0 %v3581, 8
        %v3633 = vpop.permute.xlu0 %3632
        %3634 = vrot.lane.b32.xlu0 %v3582, 8
        %v3635 = vpop.permute.xlu0 %3634
        %3636 = vrot.lane.b32.xlu0 %v3583, 8
        %v3637 = vpop.permute.xlu0 %3636
        %3638 = vrot.lane.b32.xlu0 %v3584, 8
        %v3639 = vpop.permute.xlu0 %3638
        %3640 = vrot.lane.b32.xlu0 %v3585, 8
        %v3641 = vpop.permute.xlu0 %3640
        %3642 = vrot.lane.b32.xlu0 %v3586, 8
        %v3643 = vpop.permute.xlu0 %3642
        %3644 = vrot.lane.b32.xlu0 %v3587, 8
        %v3645 = vpop.permute.xlu0 %3644
        %3646 = vrot.lane.b32.xlu0 %v3588, 8
        %v3647 = vpop.permute.xlu0 %3646
        %3648 = vrot.lane.b32.xlu0 %v3589, 8
        %v3649 = vpop.permute.xlu0 %3648
        %3650 = vrot.lane.b32.xlu0 %v3590, 8
        %v3651 = vpop.permute.xlu0 %3650
        %3652 = vrot.lane.b32.xlu0 %v3591, 8
        %v3653 = vpop.permute.xlu0 %3652
        %3654 = vrot.lane.b32.xlu0 %v3592, 8
        %v3655 = vpop.permute.xlu0 %3654
        %3656 = vrot.lane.b32.xlu0 %v3593, 8
        %v3657 = vpop.permute.xlu0 %3656
        %3674 = vst.msk [vmem:[%s720] sm:$0xff] %vm1589, %v3627
        %3675 = vst.msk [vmem:[%s720 + $0x8] sm:$0xff] %vm1589, %v3629
        %3676 = vst.msk [vmem:[%s720 + $0x10] sm:$0xff] %vm1589, %v3631
        %3677 = vst.msk [vmem:[%s720 + $0x18] sm:$0xff] %vm1589, %v3633
        %3678 = vst.msk [vmem:[%s720 + $0x20] sm:$0xff] %vm1589, %v3635
        %3679 = vst.msk [vmem:[%s720 + $0x28] sm:$0xff] %vm1589, %v3637
        %3680 = vst.msk [vmem:[%s720 + $0x30] sm:$0xff] %vm1589, %v3639
        %3681 = vst.msk [vmem:[%s720 + $0x38] sm:$0xff] %vm1589, %v3641
        %3682 = vst.msk [vmem:[%s720 + $0x40] sm:$0xff] %vm1589, %v3643
        %3683 = vst.msk [vmem:[%s720 + $0x48] sm:$0xff] %vm1589, %v3645
        %3684 = vst.msk [vmem:[%s720 + $0x50] sm:$0xff] %vm1589, %v3647
        %3685 = vst.msk [vmem:[%s720 + $0x58] sm:$0xff] %vm1589, %v3649
        %3686 = vst.msk [vmem:[%s720 + $0x60] sm:$0xff] %vm1589, %v3651
        %3687 = vst.msk [vmem:[%s720 + $0x68] sm:$0xff] %vm1589, %v3653
        %3688 = vst.msk [vmem:[%s720 + $0x70] sm:$0xff] %vm1589, %v3655
        %3689 = vst.msk [vmem:[%s720 + $0x78] sm:$0xff] %vm1589, %v3657
        %3690 = vrot.lane.b32.xlu0 %v1196, 48
        %v3691 = vpop.permute.xlu0 %3690
        %3692 = vrot.lane.b32.xlu0 %v1197, 48
        %v3693 = vpop.permute.xlu0 %3692
        %3694 = vrot.lane.b32.xlu0 %v1198, 48
        %v3695 = vpop.permute.xlu0 %3694
        %3696 = vrot.lane.b32.xlu0 %v1199, 48
        %v3697 = vpop.permute.xlu0 %3696
        %3698 = vrot.lane.b32.xlu0 %v1200, 48
        %v3699 = vpop.permute.xlu0 %3698
        %3700 = vrot.lane.b32.xlu0 %v1201, 48
        %v3701 = vpop.permute.xlu0 %3700
        %3702 = vrot.lane.b32.xlu0 %v1202, 48
        %v3703 = vpop.permute.xlu0 %3702
        %3704 = vrot.lane.b32.xlu0 %v1203, 48
        %v3705 = vpop.permute.xlu0 %3704
        %3706 = vrot.lane.b32.xlu0 %v1204, 48
        %v3707 = vpop.permute.xlu0 %3706
        %3708 = vrot.lane.b32.xlu0 %v1205, 48
        %v3709 = vpop.permute.xlu0 %3708
        %3710 = vrot.lane.b32.xlu0 %v1206, 48
        %v3711 = vpop.permute.xlu0 %3710
        %3712 = vrot.lane.b32.xlu0 %v1207, 48
        %v3713 = vpop.permute.xlu0 %3712
        %3714 = vrot.lane.b32.xlu0 %v1208, 48
        %v3715 = vpop.permute.xlu0 %3714
        %3716 = vrot.lane.b32.xlu0 %v1209, 48
        %v3717 = vpop.permute.xlu0 %3716
        %3718 = vrot.lane.b32.xlu0 %v1210, 48
        %v3719 = vpop.permute.xlu0 %3718
        %3720 = vrot.lane.b32.xlu0 %v1211, 48
        %v3721 = vpop.permute.xlu0 %3720
        %v3738 = vsel %vm1212, %v3691, 0.0
        %3739 = vadd.xlane.f32.xlu0 %v3738
        %v3740 = vpop.xlane.xlu0 %3739
        %v3741 = vsel %vm1212, %v3693, 0.0
        %3742 = vadd.xlane.f32.xlu0 %v3741
        %v3743 = vpop.xlane.xlu0 %3742
        %v3744 = vsel %vm1212, %v3695, 0.0
        %3745 = vadd.xlane.f32.xlu0 %v3744
        %v3746 = vpop.xlane.xlu0 %3745
        %v3747 = vsel %vm1212, %v3697, 0.0
        %3748 = vadd.xlane.f32.xlu0 %v3747
        %v3749 = vpop.xlane.xlu0 %3748
        %v3750 = vsel %vm1212, %v3699, 0.0
        %3751 = vadd.xlane.f32.xlu0 %v3750
        %v3752 = vpop.xlane.xlu0 %3751
        %v3753 = vsel %vm1212, %v3701, 0.0
        %3754 = vadd.xlane.f32.xlu0 %v3753
        %v3755 = vpop.xlane.xlu0 %3754
        %v3756 = vsel %vm1212, %v3703, 0.0
        %3757 = vadd.xlane.f32.xlu0 %v3756
        %v3758 = vpop.xlane.xlu0 %3757
        %v3759 = vsel %vm1212, %v3705, 0.0
        %3760 = vadd.xlane.f32.xlu0 %v3759
        %v3761 = vpop.xlane.xlu0 %3760
        %v3762 = vsel %vm1212, %v3707, 0.0
        %3763 = vadd.xlane.f32.xlu0 %v3762
        %v3764 = vpop.xlane.xlu0 %3763
        %v3765 = vsel %vm1212, %v3709, 0.0
        %3766 = vadd.xlane.f32.xlu0 %v3765
        %v3767 = vpop.xlane.xlu0 %3766
        %v3768 = vsel %vm1212, %v3711, 0.0
        %3769 = vadd.xlane.f32.xlu0 %v3768
        %v3770 = vpop.xlane.xlu0 %3769
        %v3771 = vsel %vm1212, %v3713, 0.0
        %3772 = vadd.xlane.f32.xlu0 %v3771
        %v3773 = vpop.xlane.xlu0 %3772
        %v3774 = vsel %vm1212, %v3715, 0.0
        %3775 = vadd.xlane.f32.xlu0 %v3774
        %v3776 = vpop.xlane.xlu0 %3775
        %v3777 = vsel %vm1212, %v3717, 0.0
        %3778 = vadd.xlane.f32.xlu0 %v3777
        %v3779 = vpop.xlane.xlu0 %3778
        %v3780 = vsel %vm1212, %v3719, 0.0
        %3781 = vadd.xlane.f32.xlu0 %v3780
        %v3782 = vpop.xlane.xlu0 %3781
        %v3783 = vsel %vm1212, %v3721, 0.0
        %3784 = vadd.xlane.f32.xlu0 %v3783
        %v3785 = vpop.xlane.xlu0 %3784
        %v3786 = vmul.f32 %v3740, %v1261
        %v3787 = vmul.f32 %v3743, %v1261
        %v3788 = vmul.f32 %v3746, %v1261
        %v3789 = vmul.f32 %v3749, %v1261
        %v3790 = vmul.f32 %v3752, %v1261
        %v3791 = vmul.f32 %v3755, %v1261
        %v3792 = vmul.f32 %v3758, %v1261
        %v3793 = vmul.f32 %v3761, %v1261
        %v3794 = vmul.f32 %v3764, %v1261
        %v3795 = vmul.f32 %v3767, %v1261
        %v3796 = vmul.f32 %v3770, %v1261
        %v3797 = vmul.f32 %v3773, %v1261
        %v3798 = vmul.f32 %v3776, %v1261
        %v3799 = vmul.f32 %v3779, %v1261
        %v3800 = vmul.f32 %v3782, %v1261
        %v3801 = vmul.f32 %v3785, %v1261
        %v3802 = vadd.f32 %v3786, 1e-05
        %v3803 = vadd.f32 %v3787, 1e-05
        %v3804 = vadd.f32 %v3788, 1e-05
        %v3805 = vadd.f32 %v3789, 1e-05
        %v3806 = vadd.f32 %v3790, 1e-05
        %v3807 = vadd.f32 %v3791, 1e-05
        %v3808 = vadd.f32 %v3792, 1e-05
        %v3809 = vadd.f32 %v3793, 1e-05
        %v3810 = vadd.f32 %v3794, 1e-05
        %v3811 = vadd.f32 %v3795, 1e-05
        %v3812 = vadd.f32 %v3796, 1e-05
        %v3813 = vadd.f32 %v3797, 1e-05
        %v3814 = vadd.f32 %v3798, 1e-05
        %v3815 = vadd.f32 %v3799, 1e-05
        %v3816 = vadd.f32 %v3800, 1e-05
        %v3817 = vadd.f32 %v3801, 1e-05
        %v3818 = vrsqrt.pop %v3802
        %v3819 = vrsqrt.pop %v3803
        %v3820 = vrsqrt.pop %v3804
        %v3821 = vrsqrt.pop %v3805
        %v3822 = vrsqrt.pop %v3806
        %v3823 = vrsqrt.pop %v3807
        %v3824 = vrsqrt.pop %v3808
        %v3825 = vrsqrt.pop %v3809
        %v3826 = vrsqrt.pop %v3810
        %v3827 = vrsqrt.pop %v3811
        %v3828 = vrsqrt.pop %v3812
        %v3829 = vrsqrt.pop %v3813
        %v3830 = vrsqrt.pop %v3814
        %v3831 = vrsqrt.pop %v3815
        %v3832 = vrsqrt.pop %v3816
        %v3833 = vrsqrt.pop %v3817
        %v3834 = vmul.f32 %v1052, %v3818
        %v3835 = vmul.f32 %v1057, %v3819
        %v3836 = vmul.f32 %v1062, %v3820
        %v3837 = vmul.f32 %v1067, %v3821
        %v3838 = vmul.f32 %v1072, %v3822
        %v3839 = vmul.f32 %v1077, %v3823
        %v3840 = vmul.f32 %v1082, %v3824
        %v3841 = vmul.f32 %v1087, %v3825
        %v3842 = vmul.f32 %v1092, %v3826
        %v3843 = vmul.f32 %v1097, %v3827
        %v3844 = vmul.f32 %v1102, %v3828
        %v3845 = vmul.f32 %v1107, %v3829
        %v3846 = vmul.f32 %v1112, %v3830
        %v3847 = vmul.f32 %v1117, %v3831
        %v3848 = vmul.f32 %v1122, %v3832
        %v3849 = vmul.f32 %v1127, %v3833
        %3850 = vrot.lane.b32.xlu0 %v3366, 80
        %v3851 = vpop.permute.xlu0 %3850
        %v3853 = vmul.f32 %v3834, %v3851
        %v3854 = vmul.f32 %v3835, %v3851
        %v3855 = vmul.f32 %v3836, %v3851
        %v3856 = vmul.f32 %v3837, %v3851
        %v3857 = vmul.f32 %v3838, %v3851
        %v3858 = vmul.f32 %v3839, %v3851
        %v3859 = vmul.f32 %v3840, %v3851
        %v3860 = vmul.f32 %v3841, %v3851
        %v3861 = vmul.f32 %v3842, %v3851
        %v3862 = vmul.f32 %v3843, %v3851
        %v3863 = vmul.f32 %v3844, %v3851
        %v3864 = vmul.f32 %v3845, %v3851
        %v3865 = vmul.f32 %v3846, %v3851
        %v3866 = vmul.f32 %v3847, %v3851
        %v3867 = vmul.f32 %v3848, %v3851
        %v3868 = vmul.f32 %v3849, %v3851
        %3885 = vrot.lane.b32.xlu0 %v3853, 48
        %v3886 = vpop.permute.xlu0 %3885
        %3887 = vrot.lane.b32.xlu0 %v3854, 48
        %v3888 = vpop.permute.xlu0 %3887
        %3889 = vrot.lane.b32.xlu0 %v3855, 48
        %v3890 = vpop.permute.xlu0 %3889
        %3891 = vrot.lane.b32.xlu0 %v3856, 48
        %v3892 = vpop.permute.xlu0 %3891
        %3893 = vrot.lane.b32.xlu0 %v3857, 48
        %v3894 = vpop.permute.xlu0 %3893
        %3895 = vrot.lane.b32.xlu0 %v3858, 48
        %v3896 = vpop.permute.xlu0 %3895
        %3897 = vrot.lane.b32.xlu0 %v3859, 48
        %v3898 = vpop.permute.xlu0 %3897
        %3899 = vrot.lane.b32.xlu0 %v3860, 48
        %v3900 = vpop.permute.xlu0 %3899
        %3901 = vrot.lane.b32.xlu0 %v3861, 48
        %v3902 = vpop.permute.xlu0 %3901
        %3903 = vrot.lane.b32.xlu0 %v3862, 48
        %v3904 = vpop.permute.xlu0 %3903
        %3905 = vrot.lane.b32.xlu0 %v3863, 48
        %v3906 = vpop.permute.xlu0 %3905
        %3907 = vrot.lane.b32.xlu0 %v3864, 48
        %v3908 = vpop.permute.xlu0 %3907
        %3909 = vrot.lane.b32.xlu0 %v3865, 48
        %v3910 = vpop.permute.xlu0 %3909
        %3911 = vrot.lane.b32.xlu0 %v3866, 48
        %v3912 = vpop.permute.xlu0 %3911
        %3913 = vrot.lane.b32.xlu0 %v3867, 48
        %v3914 = vpop.permute.xlu0 %3913
        %3915 = vrot.lane.b32.xlu0 %v3868, 48
        %v3916 = vpop.permute.xlu0 %3915
        %v3933 = vmul.f32 %v1130, %v3886
        %v3934 = vmul.f32 %v1131, %v3888
        %v3935 = vmul.f32 %v1132, %v3890
        %v3936 = vmul.f32 %v1133, %v3892
        %v3937 = vmul.f32 %v1134, %v3894
        %v3938 = vmul.f32 %v1135, %v3896
        %v3939 = vmul.f32 %v1136, %v3898
        %v3940 = vmul.f32 %v1137, %v3900
        %v3941 = vmul.f32 %v1138, %v3902
        %v3942 = vmul.f32 %v1139, %v3904
        %v3943 = vmul.f32 %v1140, %v3906
        %v3944 = vmul.f32 %v1141, %v3908
        %v3945 = vmul.f32 %v1142, %v3910
        %v3946 = vmul.f32 %v1143, %v3912
        %v3947 = vmul.f32 %v1144, %v3914
        %v3948 = vmul.f32 %v1145, %v3916
        %3949 = vrot.lane.b32.xlu0 %v3853, 40
        %v3950 = vpop.permute.xlu0 %3949
        %3951 = vrot.lane.b32.xlu0 %v3854, 40
        %v3952 = vpop.permute.xlu0 %3951
        %3953 = vrot.lane.b32.xlu0 %v3855, 40
        %v3954 = vpop.permute.xlu0 %3953
        %3955 = vrot.lane.b32.xlu0 %v3856, 40
        %v3956 = vpop.permute.xlu0 %3955
        %3957 = vrot.lane.b32.xlu0 %v3857, 40
        %v3958 = vpop.permute.xlu0 %3957
        %3959 = vrot.lane.b32.xlu0 %v3858, 40
        %v3960 = vpop.permute.xlu0 %3959
        %3961 = vrot.lane.b32.xlu0 %v3859, 40
        %v3962 = vpop.permute.xlu0 %3961
        %3963 = vrot.lane.b32.xlu0 %v3860, 40
        %v3964 = vpop.permute.xlu0 %3963
        %3965 = vrot.lane.b32.xlu0 %v3861, 40
        %v3966 = vpop.permute.xlu0 %3965
        %3967 = vrot.lane.b32.xlu0 %v3862, 40
        %v3968 = vpop.permute.xlu0 %3967
        %3969 = vrot.lane.b32.xlu0 %v3863, 40
        %v3970 = vpop.permute.xlu0 %3969
        %3971 = vrot.lane.b32.xlu0 %v3864, 40
        %v3972 = vpop.permute.xlu0 %3971
        %3973 = vrot.lane.b32.xlu0 %v3865, 40
        %v3974 = vpop.permute.xlu0 %3973
        %3975 = vrot.lane.b32.xlu0 %v3866, 40
        %v3976 = vpop.permute.xlu0 %3975
        %3977 = vrot.lane.b32.xlu0 %v3867, 40
        %v3978 = vpop.permute.xlu0 %3977
        %3979 = vrot.lane.b32.xlu0 %v3868, 40
        %v3980 = vpop.permute.xlu0 %3979
        %v3997 = vmul.f32 %v1146, %v3950
        %v3998 = vmul.f32 %v1147, %v3952
        %v3999 = vmul.f32 %v1148, %v3954
        %v4000 = vmul.f32 %v1149, %v3956
        %v4001 = vmul.f32 %v1150, %v3958
        %v4002 = vmul.f32 %v1151, %v3960
        %v4003 = vmul.f32 %v1152, %v3962
        %v4004 = vmul.f32 %v1153, %v3964
        %v4005 = vmul.f32 %v1154, %v3966
        %v4006 = vmul.f32 %v1155, %v3968
        %v4007 = vmul.f32 %v1156, %v3970
        %v4008 = vmul.f32 %v1157, %v3972
        %v4009 = vmul.f32 %v1158, %v3974
        %v4010 = vmul.f32 %v1159, %v3976
        %v4011 = vmul.f32 %v1160, %v3978
        %v4012 = vmul.f32 %v1161, %v3980
        %v4013 = vadd.f32 %v3933, %v3997
        %v4014 = vadd.f32 %v3934, %v3998
        %v4015 = vadd.f32 %v3935, %v3999
        %v4016 = vadd.f32 %v3936, %v4000
        %v4017 = vadd.f32 %v3937, %v4001
        %v4018 = vadd.f32 %v3938, %v4002
        %v4019 = vadd.f32 %v3939, %v4003
        %v4020 = vadd.f32 %v3940, %v4004
        %v4021 = vadd.f32 %v3941, %v4005
        %v4022 = vadd.f32 %v3942, %v4006
        %v4023 = vadd.f32 %v3943, %v4007
        %v4024 = vadd.f32 %v3944, %v4008
        %v4025 = vadd.f32 %v3945, %v4009
        %v4026 = vadd.f32 %v3946, %v4010
        %v4027 = vadd.f32 %v3947, %v4011
        %v4028 = vadd.f32 %v3948, %v4012
        %v4029 = vmul.f32 %v1162, %v3886
        %v4030 = vmul.f32 %v1163, %v3888
        %v4031 = vmul.f32 %v1164, %v3890
        %v4032 = vmul.f32 %v1165, %v3892
        %v4033 = vmul.f32 %v1166, %v3894
        %v4034 = vmul.f32 %v1167, %v3896
        %v4035 = vmul.f32 %v1168, %v3898
        %v4036 = vmul.f32 %v1169, %v3900
        %v4037 = vmul.f32 %v1170, %v3902
        %v4038 = vmul.f32 %v1171, %v3904
        %v4039 = vmul.f32 %v1172, %v3906
        %v4040 = vmul.f32 %v1173, %v3908
        %v4041 = vmul.f32 %v1174, %v3910
        %v4042 = vmul.f32 %v1175, %v3912
        %v4043 = vmul.f32 %v1176, %v3914
        %v4044 = vmul.f32 %v1177, %v3916
        %v4045 = vmul.f32 %v1178, %v3950
        %v4046 = vmul.f32 %v1179, %v3952
        %v4047 = vmul.f32 %v1180, %v3954
        %v4048 = vmul.f32 %v1181, %v3956
        %v4049 = vmul.f32 %v1182, %v3958
        %v4050 = vmul.f32 %v1183, %v3960
        %v4051 = vmul.f32 %v1184, %v3962
        %v4052 = vmul.f32 %v1185, %v3964
        %v4053 = vmul.f32 %v1186, %v3966
        %v4054 = vmul.f32 %v1187, %v3968
        %v4055 = vmul.f32 %v1188, %v3970
        %v4056 = vmul.f32 %v1189, %v3972
        %v4057 = vmul.f32 %v1190, %v3974
        %v4058 = vmul.f32 %v1191, %v3976
        %v4059 = vmul.f32 %v1192, %v3978
        %v4060 = vmul.f32 %v1193, %v3980
        %v4061 = vadd.f32 %v4029, %v4045
        %v4062 = vadd.f32 %v4030, %v4046
        %v4063 = vadd.f32 %v4031, %v4047
        %v4064 = vadd.f32 %v4032, %v4048
        %v4065 = vadd.f32 %v4033, %v4049
        %v4066 = vadd.f32 %v4034, %v4050
        %v4067 = vadd.f32 %v4035, %v4051
        %v4068 = vadd.f32 %v4036, %v4052
        %v4069 = vadd.f32 %v4037, %v4053
        %v4070 = vadd.f32 %v4038, %v4054
        %v4071 = vadd.f32 %v4039, %v4055
        %v4072 = vadd.f32 %v4040, %v4056
        %v4073 = vadd.f32 %v4041, %v4057
        %v4074 = vadd.f32 %v4042, %v4058
        %v4075 = vadd.f32 %v4043, %v4059
        %v4076 = vadd.f32 %v4044, %v4060
        %s4077 = scalar_lea.vmem %s720, 128 [#allocation20]
        %4078 = vst.msk [vmem:[%s4077] sm:$0xff] %vm1508, %v4013
        %4079 = vst.msk [vmem:[%s4077 + $0x8] sm:$0xff] %vm1508, %v4014
        %4080 = vst.msk [vmem:[%s4077 + $0x10] sm:$0xff] %vm1508, %v4015
        %4081 = vst.msk [vmem:[%s4077 + $0x18] sm:$0xff] %vm1508, %v4016
        %4082 = vst.msk [vmem:[%s4077 + $0x20] sm:$0xff] %vm1508, %v4017
        %4083 = vst.msk [vmem:[%s4077 + $0x28] sm:$0xff] %vm1508, %v4018
        %4084 = vst.msk [vmem:[%s4077 + $0x30] sm:$0xff] %vm1508, %v4019
        %4085 = vst.msk [vmem:[%s4077 + $0x38] sm:$0xff] %vm1508, %v4020
        %4086 = vst.msk [vmem:[%s4077 + $0x40] sm:$0xff] %vm1508, %v4021
        %4087 = vst.msk [vmem:[%s4077 + $0x48] sm:$0xff] %vm1508, %v4022
        %4088 = vst.msk [vmem:[%s4077 + $0x50] sm:$0xff] %vm1508, %v4023
        %4089 = vst.msk [vmem:[%s4077 + $0x58] sm:$0xff] %vm1508, %v4024
        %4090 = vst.msk [vmem:[%s4077 + $0x60] sm:$0xff] %vm1508, %v4025
        %4091 = vst.msk [vmem:[%s4077 + $0x68] sm:$0xff] %vm1508, %v4026
        %4092 = vst.msk [vmem:[%s4077 + $0x70] sm:$0xff] %vm1508, %v4027
        %4093 = vst.msk [vmem:[%s4077 + $0x78] sm:$0xff] %vm1508, %v4028
        %4110 = vrot.lane.b32.xlu0 %v4061, 8
        %v4111 = vpop.permute.xlu0 %4110
        %4112 = vrot.lane.b32.xlu0 %v4062, 8
        %v4113 = vpop.permute.xlu0 %4112
        %4114 = vrot.lane.b32.xlu0 %v4063, 8
        %v4115 = vpop.permute.xlu0 %4114
        %4116 = vrot.lane.b32.xlu0 %v4064, 8
        %v4117 = vpop.permute.xlu0 %4116
        %4118 = vrot.lane.b32.xlu0 %v4065, 8
        %v4119 = vpop.permute.xlu0 %4118
        %4120 = vrot.lane.b32.xlu0 %v4066, 8
        %v4121 = vpop.permute.xlu0 %4120
        %4122 = vrot.lane.b32.xlu0 %v4067, 8
        %v4123 = vpop.permute.xlu0 %4122
        %4124 = vrot.lane.b32.xlu0 %v4068, 8
        %v4125 = vpop.permute.xlu0 %4124
        %4126 = vrot.lane.b32.xlu0 %v4069, 8
        %v4127 = vpop.permute.xlu0 %4126
        %4128 = vrot.lane.b32.xlu0 %v4070, 8
        %v4129 = vpop.permute.xlu0 %4128
        %4130 = vrot.lane.b32.xlu0 %v4071, 8
        %v4131 = vpop.permute.xlu0 %4130
        %4132 = vrot.lane.b32.xlu0 %v4072, 8
        %v4133 = vpop.permute.xlu0 %4132
        %4134 = vrot.lane.b32.xlu0 %v4073, 8
        %v4135 = vpop.permute.xlu0 %4134
        %4136 = vrot.lane.b32.xlu0 %v4074, 8
        %v4137 = vpop.permute.xlu0 %4136
        %4138 = vrot.lane.b32.xlu0 %v4075, 8
        %v4139 = vpop.permute.xlu0 %4138
        %4140 = vrot.lane.b32.xlu0 %v4076, 8
        %v4141 = vpop.permute.xlu0 %4140
        %4158 = vst.msk [vmem:[%s4077] sm:$0xff] %vm1589, %v4111
        %4159 = vst.msk [vmem:[%s4077 + $0x8] sm:$0xff] %vm1589, %v4113
        %4160 = vst.msk [vmem:[%s4077 + $0x10] sm:$0xff] %vm1589, %v4115
        %4161 = vst.msk [vmem:[%s4077 + $0x18] sm:$0xff] %vm1589, %v4117
        %4162 = vst.msk [vmem:[%s4077 + $0x20] sm:$0xff] %vm1589, %v4119
        %4163 = vst.msk [vmem:[%s4077 + $0x28] sm:$0xff] %vm1589, %v4121
        %4164 = vst.msk [vmem:[%s4077 + $0x30] sm:$0xff] %vm1589, %v4123
        %4165 = vst.msk [vmem:[%s4077 + $0x38] sm:$0xff] %vm1589, %v4125
        %4166 = vst.msk [vmem:[%s4077 + $0x40] sm:$0xff] %vm1589, %v4127
        %4167 = vst.msk [vmem:[%s4077 + $0x48] sm:$0xff] %vm1589, %v4129
        %4168 = vst.msk [vmem:[%s4077 + $0x50] sm:$0xff] %vm1589, %v4131
        %4169 = vst.msk [vmem:[%s4077 + $0x58] sm:$0xff] %vm1589, %v4133
        %4170 = vst.msk [vmem:[%s4077 + $0x60] sm:$0xff] %vm1589, %v4135
        %4171 = vst.msk [vmem:[%s4077 + $0x68] sm:$0xff] %vm1589, %v4137
        %4172 = vst.msk [vmem:[%s4077 + $0x70] sm:$0xff] %vm1589, %v4139
        %4173 = vst.msk [vmem:[%s4077 + $0x78] sm:$0xff] %vm1589, %v4141
        %4190 = vrot.lane.b32.xlu0 %v1052, 32
        %v4191 = vpop.permute.xlu0 %4190
        %4192 = vrot.lane.b32.xlu0 %v1057, 32
        %v4193 = vpop.permute.xlu0 %4192
        %4194 = vrot.lane.b32.xlu0 %v1062, 32
        %v4195 = vpop.permute.xlu0 %4194
        %4196 = vrot.lane.b32.xlu0 %v1067, 32
        %v4197 = vpop.permute.xlu0 %4196
        %4198 = vrot.lane.b32.xlu0 %v1072, 32
        %v4199 = vpop.permute.xlu0 %4198
        %4200 = vrot.lane.b32.xlu0 %v1077, 32
        %v4201 = vpop.permute.xlu0 %4200
        %4202 = vrot.lane.b32.xlu0 %v1082, 32
        %v4203 = vpop.permute.xlu0 %4202
        %4204 = vrot.lane.b32.xlu0 %v1087, 32
        %v4205 = vpop.permute.xlu0 %4204
        %4206 = vrot.lane.b32.xlu0 %v1092, 32
        %v4207 = vpop.permute.xlu0 %4206
        %4208 = vrot.lane.b32.xlu0 %v1097, 32
        %v4209 = vpop.permute.xlu0 %4208
        %4210 = vrot.lane.b32.xlu0 %v1102, 32
        %v4211 = vpop.permute.xlu0 %4210
        %4212 = vrot.lane.b32.xlu0 %v1107, 32
        %v4213 = vpop.permute.xlu0 %4212
        %4214 = vrot.lane.b32.xlu0 %v1112, 32
        %v4215 = vpop.permute.xlu0 %4214
        %4216 = vrot.lane.b32.xlu0 %v1117, 32
        %v4217 = vpop.permute.xlu0 %4216
        %4218 = vrot.lane.b32.xlu0 %v1122, 32
        %v4219 = vpop.permute.xlu0 %4218
        %4220 = vrot.lane.b32.xlu0 %v1127, 32
        %v4221 = vpop.permute.xlu0 %4220
        %4238 = vst.msk [vmem:[%s727] sm:$0xff] %vm1212, %v4191
        %4239 = vst.msk [vmem:[%s727 + $0x8] sm:$0xff] %vm1212, %v4193
        %4240 = vst.msk [vmem:[%s727 + $0x10] sm:$0xff] %vm1212, %v4195
        %4241 = vst.msk [vmem:[%s727 + $0x18] sm:$0xff] %vm1212, %v4197
        %4242 = vst.msk [vmem:[%s727 + $0x20] sm:$0xff] %vm1212, %v4199
        %4243 = vst.msk [vmem:[%s727 + $0x28] sm:$0xff] %vm1212, %v4201
        %4244 = vst.msk [vmem:[%s727 + $0x30] sm:$0xff] %vm1212, %v4203
        %4245 = vst.msk [vmem:[%s727 + $0x38] sm:$0xff] %vm1212, %v4205
        %4246 = vst.msk [vmem:[%s727 + $0x40] sm:$0xff] %vm1212, %v4207
        %4247 = vst.msk [vmem:[%s727 + $0x48] sm:$0xff] %vm1212, %v4209
        %4248 = vst.msk [vmem:[%s727 + $0x50] sm:$0xff] %vm1212, %v4211
        %4249 = vst.msk [vmem:[%s727 + $0x58] sm:$0xff] %vm1212, %v4213
        %4250 = vst.msk [vmem:[%s727 + $0x60] sm:$0xff] %vm1212, %v4215
        %4251 = vst.msk [vmem:[%s727 + $0x68] sm:$0xff] %vm1212, %v4217
        %4252 = vst.msk [vmem:[%s727 + $0x70] sm:$0xff] %vm1212, %v4219
        %4253 = vst.msk [vmem:[%s727 + $0x78] sm:$0xff] %vm1212, %v4221
        %4254 = vrot.lane.b32.xlu0 %v1052, 16
        %v4255 = vpop.permute.xlu0 %4254
        %4256 = vrot.lane.b32.xlu0 %v1057, 16
        %v4257 = vpop.permute.xlu0 %4256
        %4258 = vrot.lane.b32.xlu0 %v1062, 16
        %v4259 = vpop.permute.xlu0 %4258
        %4260 = vrot.lane.b32.xlu0 %v1067, 16
        %v4261 = vpop.permute.xlu0 %4260
        %4262 = vrot.lane.b32.xlu0 %v1072, 16
        %v4263 = vpop.permute.xlu0 %4262
        %4264 = vrot.lane.b32.xlu0 %v1077, 16
        %v4265 = vpop.permute.xlu0 %4264
        %4266 = vrot.lane.b32.xlu0 %v1082, 16
        %v4267 = vpop.permute.xlu0 %4266
        %4268 = vrot.lane.b32.xlu0 %v1087, 16
        %v4269 = vpop.permute.xlu0 %4268
        %4270 = vrot.lane.b32.xlu0 %v1092, 16
        %v4271 = vpop.permute.xlu0 %4270
        %4272 = vrot.lane.b32.xlu0 %v1097, 16
        %v4273 = vpop.permute.xlu0 %4272
        %4274 = vrot.lane.b32.xlu0 %v1102, 16
        %v4275 = vpop.permute.xlu0 %4274
        %4276 = vrot.lane.b32.xlu0 %v1107, 16
        %v4277 = vpop.permute.xlu0 %4276
        %4278 = vrot.lane.b32.xlu0 %v1112, 16
        %v4279 = vpop.permute.xlu0 %4278
        %4280 = vrot.lane.b32.xlu0 %v1117, 16
        %v4281 = vpop.permute.xlu0 %4280
        %4282 = vrot.lane.b32.xlu0 %v1122, 16
        %v4283 = vpop.permute.xlu0 %4282
        %4284 = vrot.lane.b32.xlu0 %v1127, 16
        %v4285 = vpop.permute.xlu0 %4284
        %s4302 = scalar_lea.vmem %s727, 128 [#allocation22]
        %4303 = vst.msk [vmem:[%s4302] sm:$0xff] %vm1212, %v4255
        %4304 = vst.msk [vmem:[%s4302 + $0x8] sm:$0xff] %vm1212, %v4257
        %4305 = vst.msk [vmem:[%s4302 + $0x10] sm:$0xff] %vm1212, %v4259
        %4306 = vst.msk [vmem:[%s4302 + $0x18] sm:$0xff] %vm1212, %v4261
        %4307 = vst.msk [vmem:[%s4302 + $0x20] sm:$0xff] %vm1212, %v4263
        %4308 = vst.msk [vmem:[%s4302 + $0x28] sm:$0xff] %vm1212, %v4265
        %4309 = vst.msk [vmem:[%s4302 + $0x30] sm:$0xff] %vm1212, %v4267
        %4310 = vst.msk [vmem:[%s4302 + $0x38] sm:$0xff] %vm1212, %v4269
        %4311 = vst.msk [vmem:[%s4302 + $0x40] sm:$0xff] %vm1212, %v4271
        %4312 = vst.msk [vmem:[%s4302 + $0x48] sm:$0xff] %vm1212, %v4273
        %4313 = vst.msk [vmem:[%s4302 + $0x50] sm:$0xff] %vm1212, %v4275
        %4314 = vst.msk [vmem:[%s4302 + $0x58] sm:$0xff] %vm1212, %v4277
        %4315 = vst.msk [vmem:[%s4302 + $0x60] sm:$0xff] %vm1212, %v4279
        %4316 = vst.msk [vmem:[%s4302 + $0x68] sm:$0xff] %vm1212, %v4281
        %4317 = vst.msk [vmem:[%s4302 + $0x70] sm:$0xff] %vm1212, %v4283
        %4318 = vst.msk [vmem:[%s4302 + $0x78] sm:$0xff] %vm1212, %v4285
        %s4319 = sand.u32 %s316, 1
        %s4320 = scalar_lea.sflag [#allocation4], %s4319
        %s4321 = sand.u32 %s316, 1
        %s4322 = smul.addr %s4321, 256
        %s4323 = scalar_lea.vmem [#allocation19], %s4322
        %s4324 = sand.u32 %s44, 1
        %s4325 = scalar_lea.sflag [#allocation21], %s4324
        %s4326 = sand.u32 %s344, 1
        %s4327 = smul.addr %s4326, 256
        %s4328 = scalar_lea.vmem [#allocation20], %s4327
        %s4329 = sand.u32 %s44, 1
        %s4330 = scalar_lea.sflag [#allocation21], %s4329
        %s4331 = sand.u32 %s372, 1
        %s4332 = smul.addr %s4331, 256
        %s4333 = scalar_lea.vmem [#allocation22], %s4332
        // Predicated region
        $region101: #{tpu_custom_call.1} parent=59 // pred_check
          %p4334 = pneg %p326
        $region102: #{tpu_custom_call.1} parent=59 // pred_check_branch
          %4336 = sbr.rel (%p4334) target = $region104
        $region103: #{tpu_custom_call.1} parent=59 // pred_region
          #allocation24 [shape = 'u32[6]{0}', space=smem, size = 0x18, scoped, tag = 'DMA stride descriptor']
          %s4337 = smul.u32 16, %s49
          %s4339 = ssub.s32 4096, 4096
          %4340 = vsyncadd %s4320, %s4339
          %s4341 = smul.addr %s48, 64
          %s4342 = sadd.s32 %s4337, %s4341
          %s4343 = smul.addr %s4342, 128
          %s4344 = scalar_lea.hbm %s10, %s4343
          %s4346 = sshll.u32 1, 14
          %s4347 = sxor.u32 4294967295, %s4346
          %s4350 = sshll.u32 7, 18
          %s4351 = sxor.u32 4294967295, %s4350
          %s4352 = sand.u32 0, %s4351
          %s4354 = sor.u32 %s4352, 0
          %s4356 = sshll.u32 3, 24
          %s4357 = sxor.u32 4294967295, %s4356
          %s4358 = sand.u32 %s4354, %s4357
          %s4360 = sor.u32 %s4358, 0
          %s4361 = sshll.u32 %s4323, 4
          %s4362 = int_to_ptr.vmem [resolvable:$true] %s4361
          %4368 = sst [smem:[#allocation24]] 2048
          %s4369 = scalar_lea.smem [#allocation24], 1
          %4370 = sst [smem:[%s4369]] 4096
          %s4371 = scalar_lea.smem [#allocation24], 2
          %4372 = sst [smem:[%s4371]] 16
          %s4373 = scalar_lea.smem [#allocation24], 3
          %4374 = sst [smem:[%s4373]] 128
          %s4375 = scalar_lea.smem [#allocation24], 4
          %4376 = sst [smem:[%s4375]] 128
          %s4377 = scalar_lea.smem [#allocation24], 5
          %4378 = sst [smem:[%s4377]] 8
          %4380 = dma.general %s4362, 4096, %s4344, %s4320, [#allocation23], [#allocation24], %s4360, 0
        $region104: #{tpu_custom_call.1} parent=59 // pred_fallthru
          _
        // Predicated region
        $region105: #{tpu_custom_call.1} parent=59 // pred_check
          %p4381 = pneg %p354
        $region106: #{tpu_custom_call.1} parent=59 // pred_check_branch
          %4383 = sbr.rel (%p4381) target = $region108
        $region107: #{tpu_custom_call.1} parent=59 // pred_region
          #allocation26 [shape = 'u32[6]{0}', space=smem, size = 0x18, scoped, tag = 'DMA stride descriptor']
          %s4384 = smul.u32 16, %s49
          %s4386 = ssub.s32 4096, 4096
          %4387 = vsyncadd %s4325, %s4386
          %s4388 = smul.addr %s48, 64
          %s4389 = sadd.s32 %s4384, %s4388
          %s4390 = smul.addr %s4389, 128
          %s4391 = scalar_lea.hbm %s11, %s4390
          %s4393 = sshll.u32 1, 14
          %s4394 = sxor.u32 4294967295, %s4393
          %s4397 = sshll.u32 7, 18
          %s4398 = sxor.u32 4294967295, %s4397
          %s4399 = sand.u32 0, %s4398
          %s4401 = sor.u32 %s4399, 0
          %s4403 = sshll.u32 3, 24
          %s4404 = sxor.u32 4294967295, %s4403
          %s4405 = sand.u32 %s4401, %s4404
          %s4407 = sor.u32 %s4405, 0
          %s4408 = sshll.u32 %s4328, 4
          %s4409 = int_to_ptr.vmem [resolvable:$true] %s4408
          %4415 = sst [smem:[#allocation26]] 2048
          %s4416 = scalar_lea.smem [#allocation26], 1
          %4417 = sst [smem:[%s4416]] 4096
          %s4418 = scalar_lea.smem [#allocation26], 2
          %4419 = sst [smem:[%s4418]] 16
          %s4420 = scalar_lea.smem [#allocation26], 3
          %4421 = sst [smem:[%s4420]] 128
          %s4422 = scalar_lea.smem [#allocation26], 4
          %4423 = sst [smem:[%s4422]] 128
          %s4424 = scalar_lea.smem [#allocation26], 5
          %4425 = sst [smem:[%s4424]] 8
          %4427 = dma.general %s4409, 4096, %s4391, %s4325, [#allocation25], [#allocation26], %s4407, 0
        $region108: #{tpu_custom_call.1} parent=59 // pred_fallthru
          _
        // Predicated region
        $region109: #{tpu_custom_call.1} parent=59 // pred_check
          %p4428 = pneg %p382
        $region110: #{tpu_custom_call.1} parent=59 // pred_check_branch
          %4430 = sbr.rel (%p4428) target = $region112
        $region111: #{tpu_custom_call.1} parent=59 // pred_region
          #allocation28 [shape = 'u32[6]{0}', space=smem, size = 0x18, scoped, tag = 'DMA stride descriptor']
          %s4431 = smul.u32 16, %s49
          %s4433 = ssub.s32 4096, 4096
          %4434 = vsyncadd %s4330, %s4433
          %s4435 = smul.addr %s48, 64
          %s4436 = sadd.s32 %s4431, %s4435
          %s4437 = smul.addr %s4436, 128
          %s4438 = scalar_lea.hbm %s12, %s4437
          %s4440 = sshll.u32 1, 14
          %s4441 = sxor.u32 4294967295, %s4440
          %s4444 = sshll.u32 7, 18
          %s4445 = sxor.u32 4294967295, %s4444
          %s4446 = sand.u32 0, %s4445
          %s4448 = sor.u32 %s4446, 0
          %s4450 = sshll.u32 3, 24
          %s4451 = sxor.u32 4294967295, %s4450
          %s4452 = sand.u32 %s4448, %s4451
          %s4454 = sor.u32 %s4452, 0
          %s4455 = sshll.u32 %s4333, 4
          %s4456 = int_to_ptr.vmem [resolvable:$true] %s4455
          %4462 = sst [smem:[#allocation28]] 2048
          %s4463 = scalar_lea.smem [#allocation28], 1
          %4464 = sst [smem:[%s4463]] 4096
          %s4465 = scalar_lea.smem [#allocation28], 2
          %4466 = sst [smem:[%s4465]] 16
          %s4467 = scalar_lea.smem [#allocation28], 3
          %4468 = sst [smem:[%s4467]] 128
          %s4469 = scalar_lea.smem [#allocation28], 4
          %4470 = sst [smem:[%s4469]] 128
          %s4471 = scalar_lea.smem [#allocation28], 5
          %4472 = sst [smem:[%s4471]] 8
          %4474 = dma.general %s4456, 4096, %s4438, %s4330, [#allocation27], [#allocation28], %s4454, 0
        $region112: #{tpu_custom_call.1} parent=59 // pred_fallthru
          _
      $region60: #{tpu_custom_call.1} parent=5 // pred_fallthru
        _
      %p4475 = scmp.le.s32.totalorder 2, %s39
      // Predicated region
      $region113: #{tpu_custom_call.1} parent=5 // pred_check
        %p4476 = pneg %p4475
      $region114: #{tpu_custom_call.1} parent=5 // pred_check_branch
        %4478 = sbr.rel (%p4476) target = $region116
      $region115: #{tpu_custom_call.1} parent=5 // pred_region
        %s4479 = ssub.s32 %s39, 2
        // Predicated region
        $region117: #{tpu_custom_call.1} parent=115 // pred_check
          %p4480 = pneg %p332
        $region118: #{tpu_custom_call.1} parent=115 // pred_check_branch
          %4482 = sbr.rel (%p4480) target = $region120
        $region119: #{tpu_custom_call.1} parent=115 // pred_region
          %s4483 = sand.u32 %s317, 1
          %s4484 = scalar_lea.sflag [#allocation4], %s4483
          %s4485 = sand.u32 %s317, 1
          %s4486 = smul.addr %s4485, 256
          %s4487 = scalar_lea.vmem [#allocation19], %s4486
          %4488 = dma.done %s4484, 4096
        $region120: #{tpu_custom_call.1} parent=115 // pred_fallthru
          _
        // Predicated region
        $region121: #{tpu_custom_call.1} parent=115 // pred_check
          %p4489 = pneg %p360
        $region122: #{tpu_custom_call.1} parent=115 // pred_check_branch
          %4491 = sbr.rel (%p4489) target = $region124
        $region123: #{tpu_custom_call.1} parent=115 // pred_region
          %s4492 = sand.u32 %s45, 1
          %s4493 = scalar_lea.sflag [#allocation21], %s4492
          %s4494 = sand.u32 %s345, 1
          %s4495 = smul.addr %s4494, 256
          %s4496 = scalar_lea.vmem [#allocation20], %s4495
          %4497 = dma.done %s4493, 4096
        $region124: #{tpu_custom_call.1} parent=115 // pred_fallthru
          _
        // Predicated region
        $region125: #{tpu_custom_call.1} parent=115 // pred_check
          %p4498 = pneg %p388
        $region126: #{tpu_custom_call.1} parent=115 // pred_check_branch
          %4500 = sbr.rel (%p4498) target = $region128
        $region127: #{tpu_custom_call.1} parent=115 // pred_region
          %s4501 = sand.u32 %s45, 1
          %s4502 = scalar_lea.sflag [#allocation21], %s4501
          %s4503 = sand.u32 %s373, 1
          %s4504 = smul.addr %s4503, 256
          %s4505 = scalar_lea.vmem [#allocation22], %s4504
          %4506 = dma.done %s4502, 4096
        $region128: #{tpu_custom_call.1} parent=115 // pred_fallthru
          _
      $region116: #{tpu_custom_call.1} parent=5 // pred_fallthru
        _
    $region6: #{tpu_custom_call.1} parent=1 // loop_footer
      %s43 = sadd.s32 1, %s39
    $region7: #{tpu_custom_call.1} parent=1 // loop_footer_branch
      %38 = sbr.rel target = $region3
    $region8: #{tpu_custom_call.1} parent=1 // loop_exit
      _
    %4507 = vsyncpa [#allocation3], 1
    %s4508 = scalar_lea.sflag [#allocation3], 1
    %4509 = vsyncpa %s4508, 1
    %4510 = vsyncpa [#allocation6], 1
    %s4511 = scalar_lea.sflag [#allocation6], 1
    %4512 = vsyncpa %s4511, 1
    %4513 = vsyncpa [#allocation9], 1
    %s4514 = scalar_lea.sflag [#allocation9], 1
    %4515 = vsyncpa %s4514, 1
    %4516 = vsyncpa [#allocation12], 1
    %s4517 = scalar_lea.sflag [#allocation12], 1
    %4518 = vsyncpa %s4517, 1
    %4519 = vsyncpa [#allocation15], 1
    %4520 = vsyncpa [#allocation18], 1
    %4521 = vsyncpa [#allocation4], 1
    %s4522 = scalar_lea.sflag [#allocation4], 1
    %4523 = vsyncpa %s4522, 1
    %4524 = vsyncpa [#allocation21], 1
    %s4525 = scalar_lea.sflag [#allocation21], 1
    %4526 = vsyncpa %s4525, 1

// kernel: tpu_custom_call.1
$region0: #{tpu_custom_call.1}
  #allocation0 [shape = 'u32[]', space=smem, size = 0x4, offset = 0x4, fixed_abs, tag = 'smem constant byte address 0x4 - core index']
  #allocation1 [shape = 'u32[144,128]{1,0:T(1,128)}', space=vmem, size = 0x12000, scoped, tag = 'internal scratch']
  #allocation23 [shape = 's32[]', space=sflag, size = 0x4, offset = 0, fixed_abs, tag = 'sflag constant byte address 0x0 - dummy sync flag']
  #allocation25 [shape = 's32[]', space=sflag, size = 0x4, offset = 0, fixed_abs, tag = 'sflag constant byte address 0x0 - dummy sync flag']
  #allocation27 [shape = 's32[]', space=sflag, size = 0x4, offset = 0, fixed_abs, tag = 'sflag constant byte address 0x0 - dummy sync flag']
  %s0 = inlined_call_operand.hbm [shape: f32[2,256,64], index: 0, kind: input, shape index: {}]
  %s1 = inlined_call_operand.hbm [shape: f32[2,1,64], index: 1, kind: input, shape index: {}]
  %s2 = inlined_call_operand.hbm [shape: f32[1,64], index: 2, kind: input, shape index: {}]
  %s3 = inlined_call_operand.hbm [shape: f32[2,256,8], index: 3, kind: input, shape index: {}]
  %s4 = inlined_call_operand.hbm [shape: f32[2,256,8], index: 4, kind: input, shape index: {}]
  %s5 = inlined_call_operand.hbm [shape: f32[2,256,8], index: 5, kind: input, shape index: {}]
  %s6 = inlined_call_operand.hbm [shape: f32[2,256,8], index: 6, kind: input, shape index: {}]
  %s7 = inlined_call_operand.hbm [shape: f32[64,128], index: 7, kind: input, shape index: {}]
  %s8 = inlined_call_operand.hbm [shape: f32[1,16], index: 8, kind: input, shape index: {}]
  %s9 = inlined_call_operand.hbm [shape: f32[1,16], index: 9, kind: input, shape index: {}]
  %s10 = inlined_call_operand.hbm [shape: f32[2,2,256,32], index: 10, kind: output, shape index: {0}]
  %s11 = inlined_call_operand.hbm [shape: f32[2,2,256,16], index: 11, kind: output, shape index: {1}]
  %s12 = inlined_call_operand.hbm [shape: f32[2,2,256,16], index: 12, kind: output, shape index: {2}]
  %13 = xla_tuple %s10, %s11, %s12
  %s14 = sld [smem:[#allocation0]]
  $region129: #{tpu_custom_call.1} parent=0
    _
  %s16 = ssub.s32 1, %s14
  %s17 = scalar_select 0, %s16, %s14
  $region1: #{tpu_custom_call.1} parent=0
    #allocation2 [shape = 'u8[131072]{0}', space=vmem, size = 0x20000, scoped, tag = 'input window, operand 0']
    #allocation3 [shape = 's32[2]{0}', space=sflag, size = 0x8, scoped, tag = 'scoped memory for tpu_custom_call.1']
    #allocation4 [shape = 's32[2]{0}', space=sflag, size = 0x8, scoped, tag = 'scoped memory for tpu_custom_call.1']
    #allocation5 [shape = 'u8[1024]{0}', space=vmem, size = 0x400, scoped, tag = 'input window, operand 1']
    #allocation6 [shape = 's32[2]{0}', space=sflag, size = 0x8, scoped, tag = 'scoped memory for tpu_custom_call.1']
    #allocation7 [shape = 'u8[512]{0}', space=vmem, size = 0x400, scoped, tag = 'input window, operand 2, single buffered']
    #allocation8 [shape = 'u8[131072]{0}', space=vmem, size = 0x20000, scoped, tag = 'input window, operand 3']
    #allocation9 [shape = 's32[2]{0}', space=sflag, size = 0x8, scoped, tag = 'scoped memory for tpu_custom_call.1']
    #allocation10 [shape = 'u8[131072]{0}', space=vmem, size = 0x20000, scoped, tag = 'input window, operand 4']
    #allocation11 [shape = 'u8[131072]{0}', space=vmem, size = 0x20000, scoped, tag = 'input window, operand 5']
    #allocation12 [shape = 's32[2]{0}', space=sflag, size = 0x8, scoped, tag = 'scoped memory for tpu_custom_call.1']
    #allocation13 [shape = 'u8[131072]{0}', space=vmem, size = 0x20000, scoped, tag = 'input window, operand 6']
    #allocation14 [shape = 'u8[32768]{0}', space=vmem, size = 0x8000, scoped, tag = 'input window, operand 7, single buffered']
    #allocation15 [shape = 's32[1]{0}', space=sflag, size = 0x4, scoped, tag = 'scoped memory for tpu_custom_call.1']
    #allocation16 [shape = 'u8[512]{0}', space=vmem, size = 0x400, scoped, tag = 'input window, operand 8, single buffered']
    #allocation17 [shape = 'u8[512]{0}', space=vmem, size = 0x400, scoped, tag = 'input window, operand 9, single buffered']
    #allocation18 [shape = 's32[1]{0}', space=sflag, size = 0x4, scoped, tag = 'scoped memory for tpu_custom_call.1']
    #allocation19 [shape = 'u8[262144]{0}', space=vmem, size = 0x40000, scoped, tag = 'output window, operand 0']
    #allocation20 [shape = 'u8[262144]{0}', space=vmem, size = 0x40000, scoped, tag = 'output window, operand 1']
    #allocation21 [shape = 's32[2]{0}', space=sflag, size = 0x8, scoped, tag = 'scoped memory for tpu_custom_call.1']
    #allocation22 [shape = 'u8[262144]{0}', space=vmem, size = 0x40000, scoped, tag = 'output window, operand 2']
    %18 = vsyncpa [#allocation3], 0
    %s19 = scalar_lea.sflag [#allocation3], 1
    %20 = vsyncpa %s19, 0
    %21 = vsyncpa [#allocation6], 0
    %s22 = scalar_lea.sflag [#allocation6], 1
    %23 = vsyncpa %s22, 0
    %24 = vsyncpa [#allocation9], 0
    %s25 = scalar_lea.sflag [#allocation9], 1
    %26 = vsyncpa %s25, 0
    %27 = vsyncpa [#allocation12], 0
    %s28 = scalar_lea.sflag [#allocation12], 1
    %29 = vsyncpa %s28, 0
    %30 = vsyncpa [#allocation15], 0
    %31 = vsyncpa [#allocation18], 0
    %32 = vsyncpa [#allocation4], 0
    %s33 = scalar_lea.sflag [#allocation4], 1
    %34 = vsyncpa %s33, 0
    %35 = vsyncpa [#allocation21], 0
    %s36 = scalar_lea.sflag [#allocation21], 1
    %37 = vsyncpa %s36, 0
    loop: start=0, step=1, limit=6
    $region2: #{tpu_custom_call.1} parent=1 // loop_pre_header
      _
    $region3: #{tpu_custom_call.1} parent=1 // loop_header
      %s39 = sphi 0, %s43
      %p40 = scmp.ge.s32.totalorder %s39, 6
      %s46 = sphi 0, %s58
      %s47 = sphi 0, %s54
      %s48 = sphi 0, %s46
      %s49 = sphi 0, %s47
      %s50 = sphi 0, %s48
      %s51 = sphi 0, %s49
      %s63 = sphi 0, %s65
      %s66 = sphi 0, %s63
      %s67 = sphi 0, %s66
      %s83 = sphi 0, %s67
      %s89 = sphi 0, %s91
      %s92 = sphi 0, %s89
      %s93 = sphi 0, %s92
      %s109 = sphi 0, %s93
      %s113 = sphi 0, %s113
      %s115 = sphi 0, %s113
      %s116 = sphi 0, %s115
      %s130 = sphi 0, %s116
      %s138 = sphi 0, %s140
      %s141 = sphi 0, %s138
      %s142 = sphi 0, %s141
      %s158 = sphi 0, %s142
      %s166 = sphi 0, %s168
      %s169 = sphi 0, %s166
      %s170 = sphi 0, %s169
      %s186 = sphi 0, %s170
      %s194 = sphi 0, %s196
      %s197 = sphi 0, %s194
      %s198 = sphi 0, %s197
      %s214 = sphi 0, %s198
      %s222 = sphi 0, %s224
      %s225 = sphi 0, %s222
      %s226 = sphi 0, %s225
      %s242 = sphi 0, %s226
      %s246 = sphi 0, %s246
      %s248 = sphi 0, %s246
      %s249 = sphi 0, %s248
      %s263 = sphi 0, %s249
      %s267 = sphi 0, %s267
      %s269 = sphi 0, %s267
      %s270 = sphi 0, %s269
      %s284 = sphi 0, %s270
      %s288 = sphi 0, %s288
      %s290 = sphi 0, %s288
      %s291 = sphi 0, %s290
      %s305 = sphi 0, %s291
      %s313 = sphi 0, %s315
      %s316 = sphi 0, %s313
      %s317 = sphi 0, %s316
      %s333 = sphi 0, %s317
      %s341 = sphi 0, %s343
      %s344 = sphi 0, %s341
      %s345 = sphi 0, %s344
      %s361 = sphi 0, %s345
      %s369 = sphi 0, %s371
      %s372 = sphi 0, %s369
      %s373 = sphi 0, %s372
      %s389 = sphi 0, %s373
    $region4: #{tpu_custom_call.1} parent=1 // loop_header_branch
      %42 = sbr.rel (%p40) target = $region8
    $region5: #{tpu_custom_call.1} parent=1 // loop_body
      %s44 = ssub.s32 %s39, 1
      %s45 = ssub.s32 %s39, 2
      %s52 = sadd.s32 1, %s47
      %p53 = scmp.ge.s32.totalorder %s52, 2
      %s54 = scalar_select %p53, 0, %s52
      %s55 = sadd.s32 1, %s46
      %s56 = scalar_select %p53, %s55, %s46
      %p57 = scmp.ge.s32.totalorder %s56, 2
      %s58 = scalar_select %p57, 0, %s56
      %s59 = ssub.s32 %s46, %s58
      %s60 = ssub.s32 %s47, %s54
      %s61 = sor.u32 %s59, %s60
      %p62 = scmp.eq.s32.totalorder %s61, 0
      %s64 = sadd.s32 %s63, 1
      %s65 = scalar_select %p62, %s63, %s64
      %p68 = pneg %p62
      %p69 = scmp.eq.s32.totalorder %s39, 3
      %p70 = por %p68, %p69
      %p71 = scmp.ne.s32.totalorder %s63, %s66
      %p72 = scmp.eq.s32.totalorder %s39, 0
      %p73 = por %p71, %p72
      %p74 = scmp.ne.s32.totalorder %s63, %s66
      %p75 = scmp.eq.s32.totalorder %s44, 3
      %p76 = por %p74, %p75
      %p77 = scmp.ne.s32.totalorder %s66, %s67
      %p78 = scmp.eq.s32.totalorder %s44, 0
      %p79 = por %p77, %p78
      %p80 = scmp.ne.s32.totalorder %s66, %s67
      %p81 = scmp.eq.s32.totalorder %s45, 3
      %p82 = por %p80, %p81
      %p84 = scmp.ne.s32.totalorder %s67, %s83
      %p85 = scmp.eq.s32.totalorder %s45, 0
      %p86 = por %p84, %p85
      %s87 = ssub.s32 %s46, %s58
      %p88 = scmp.eq.s32.totalorder %s87, 0
      %s90 = sadd.s32 %s89, 1
      %s91 = scalar_select %p88, %s89, %s90
      %p94 = pneg %p88
      %p95 = scmp.eq.s32.totalorder %s39, 3
      %p96 = por %p94, %p95
      %p97 = scmp.ne.s32.totalorder %s89, %s92
      %p98 = scmp.eq.s32.totalorder %s39, 0
      %p99 = por %p97, %p98
      %p100 = scmp.ne.s32.totalorder %s89, %s92
      %p101 = scmp.eq.s32.totalorder %s44, 3
      %p102 = por %p100, %p101
      %p103 = scmp.ne.s32.totalorder %s92, %s93
      %p104 = scmp.eq.s32.totalorder %s44, 0
      %p105 = por %p103, %p104
      %p106 = scmp.ne.s32.totalorder %s92, %s93
      %p107 = scmp.eq.s32.totalorder %s45, 3
      %p108 = por %p106, %p107
      %p110 = scmp.ne.s32.totalorder %s93, %s109
      %p111 = scmp.eq.s32.totalorder %s45, 0
      %p112 = por %p110, %p111
      %s114 = sadd.s32 %s113, 1
      %p117 = scmp.eq.s32.totalorder %s39, 3
      %p118 = scmp.ne.s32.totalorder %s113, %s115
      %p119 = scmp.eq.s32.totalorder %s39, 0
      %p120 = por %p118, %p119
      %p121 = scmp.ne.s32.totalorder %s113, %s115
      %p122 = scmp.eq.s32.totalorder %s44, 3
      %p123 = por %p121, %p122
      %p124 = scmp.ne.s32.totalorder %s115, %s116
      %p125 = scmp.eq.s32.totalorder %s44, 0
      %p126 = por %p124, %p125
      %p127 = scmp.ne.s32.totalorder %s115, %s116
      %p128 = scmp.eq.s32.totalorder %s45, 3
      %p129 = por %p127, %p128
      %p131 = scmp.ne.s32.totalorder %s116, %s130
      %p132 = scmp.eq.s32.totalorder %s45, 0
      %p133 = por %p131, %p132
      %s134 = ssub.s32 %s46, %s58
      %s135 = ssub.s32 %s47, %s54
      %s136 = sor.u32 %s134, %s135
      %p137 = scmp.eq.s32.totalorder %s136, 0
      %s139 = sadd.s32 %s138, 1
      %s140 = scalar_select %p137, %s138, %s139
      %p143 = pneg %p137
      %p144 = scmp.eq.s32.totalorder %s39, 3
      %p145 = por %p143, %p144
      %p146 = scmp.ne.s32.totalorder %s138, %s141
      %p147 = scmp.eq.s32.totalorder %s39, 0
      %p148 = por %p146, %p147
      %p149 = scmp.ne.s32.totalorder %s138, %s141
      %p150 = scmp.eq.s32.totalorder %s44, 3
      %p151 = por %p149, %p150
      %p152 = scmp.ne.s32.totalorder %s141, %s142
      %p153 = scmp.eq.s32.totalorder %s44, 0
      %p154 = por %p152, %p153
      %p155 = scmp.ne.s32.totalorder %s141, %s142
      %p156 = scmp.eq.s32.totalorder %s45, 3
      %p157 = por %p155, %p156
      %p159 = scmp.ne.s32.totalorder %s142, %s158
      %p160 = scmp.eq.s32.totalorder %s45, 0
      %p161 = por %p159, %p160
      %s162 = ssub.s32 %s46, %s58
      %s163 = ssub.s32 %s47, %s54
      %s164 = sor.u32 %s162, %s163
      %p165 = scmp.eq.s32.totalorder %s164, 0
      %s167 = sadd.s32 %s166, 1
      %s168 = scalar_select %p165, %s166, %s167
      %p171 = pneg %p165
      %p172 = scmp.eq.s32.totalorder %s39, 3
      %p173 = por %p171, %p172
      %p174 = scmp.ne.s32.totalorder %s166, %s169
      %p175 = scmp.eq.s32.totalorder %s39, 0
      %p176 = por %p174, %p175
      %p177 = scmp.ne.s32.totalorder %s166, %s169
      %p178 = scmp.eq.s32.totalorder %s44, 3
      %p179 = por %p177, %p178
      %p180 = scmp.ne.s32.totalorder %s169, %s170
      %p181 = scmp.eq.s32.totalorder %s44, 0
      %p182 = por %p180, %p181
      %p183 = scmp.ne.s32.totalorder %s169, %s170
      %p184 = scmp.eq.s32.totalorder %s45, 3
      %p185 = por %p183, %p184
      %p187 = scmp.ne.s32.totalorder %s170, %s186
      %p188 = scmp.eq.s32.totalorder %s45, 0
      %p189 = por %p187, %p188
      %s190 = ssub.s32 %s46, %s58
      %s191 = ssub.s32 %s47, %s54
      %s192 = sor.u32 %s190, %s191
      %p193 = scmp.eq.s32.totalorder %s192, 0
      %s195 = sadd.s32 %s194, 1
      %s196 = scalar_select %p193, %s194, %s195
      %p199 = pneg %p193
      %p200 = scmp.eq.s32.totalorder %s39, 3
      %p201 = por %p199, %p200
      %p202 = scmp.ne.s32.totalorder %s194, %s197
      %p203 = scmp.eq.s32.totalorder %s39, 0
      %p204 = por %p202, %p203
      %p205 = scmp.ne.s32.totalorder %s194, %s197
      %p206 = scmp.eq.s32.totalorder %s44, 3
      %p207 = por %p205, %p206
      %p208 = scmp.ne.s32.totalorder %s197, %s198
      %p209 = scmp.eq.s32.totalorder %s44, 0
      %p210 = por %p208, %p209
      %p211 = scmp.ne.s32.totalorder %s197, %s198
      %p212 = scmp.eq.s32.totalorder %s45, 3
      %p213 = por %p211, %p212
      %p215 = scmp.ne.s32.totalorder %s198, %s214
      %p216 = scmp.eq.s32.totalorder %s45, 0
      %p217 = por %p215, %p216
      %s218 = ssub.s32 %s46, %s58
      %s219 = ssub.s32 %s47, %s54
      %s220 = sor.u32 %s218, %s219
      %p221 = scmp.eq.s32.totalorder %s220, 0
      %s223 = sadd.s32 %s222, 1
      %s224 = scalar_select %p221, %s222, %s223
      %p227 = pneg %p221
      %p228 = scmp.eq.s32.totalorder %s39, 3
      %p229 = por %p227, %p228
      %p230 = scmp.ne.s32.totalorder %s222, %s225
      %p231 = scmp.eq.s32.totalorder %s39, 0
      %p232 = por %p230, %p231
      %p233 = scmp.ne.s32.totalorder %s222, %s225
      %p234 = scmp.eq.s32.totalorder %s44, 3
      %p235 = por %p233, %p234
      %p236 = scmp.ne.s32.totalorder %s225, %s226
      %p237 = scmp.eq.s32.totalorder %s44, 0
      %p238 = por %p236, %p237
      %p239 = scmp.ne.s32.totalorder %s225, %s226
      %p240 = scmp.eq.s32.totalorder %s45, 3
      %p241 = por %p239, %p240
      %p243 = scmp.ne.s32.totalorder %s226, %s242
      %p244 = scmp.eq.s32.totalorder %s45, 0
      %p245 = por %p243, %p244
      %s247 = sadd.s32 %s246, 1
      %p250 = scmp.eq.s32.totalorder %s39, 3
      %p251 = scmp.ne.s32.totalorder %s246, %s248
      %p252 = scmp.eq.s32.totalorder %s39, 0
      %p253 = por %p251, %p252
      %p254 = scmp.ne.s32.totalorder %s246, %s248
      %p255 = scmp.eq.s32.totalorder %s44, 3
      %p256 = por %p254, %p255
      %p257 = scmp.ne.s32.totalorder %s248, %s249
      %p258 = scmp.eq.s32.totalorder %s44, 0
      %p259 = por %p257, %p258
      %p260 = scmp.ne.s32.totalorder %s248, %s249
      %p261 = scmp.eq.s32.totalorder %s45, 3
      %p262 = por %p260, %p261
      %p264 = scmp.ne.s32.totalorder %s249, %s263
      %p265 = scmp.eq.s32.totalorder %s45, 0
      %p266 = por %p264, %p265
      %s268 = sadd.s32 %s267, 1
      %p271 = scmp.eq.s32.totalorder %s39, 3
      %p272 = scmp.ne.s32.totalorder %s267, %s269
      %p273 = scmp.eq.s32.totalorder %s39, 0
      %p274 = por %p272, %p273
      %p275 = scmp.ne.s32.totalorder %s267, %s269
      %p276 = scmp.eq.s32.totalorder %s44, 3
      %p277 = por %p275, %p276
      %p278 = scmp.ne.s32.totalorder %s269, %s270
      %p279 = scmp.eq.s32.totalorder %s44, 0
      %p280 = por %p278, %p279
      %p281 = scmp.ne.s32.totalorder %s269, %s270
      %p282 = scmp.eq.s32.totalorder %s45, 3
      %p283 = por %p281, %p282
      %p285 = scmp.ne.s32.totalorder %s270, %s284
      %p286 = scmp.eq.s32.totalorder %s45, 0
      %p287 = por %p285, %p286
      %s289 = sadd.s32 %s288, 1
      %p292 = scmp.eq.s32.totalorder %s39, 3
      %p293 = scmp.ne.s32.totalorder %s288, %s290
      %p294 = scmp.eq.s32.totalorder %s39, 0
      %p295 = por %p293, %p294
      %p296 = scmp.ne.s32.totalorder %s288, %s290
      %p297 = scmp.eq.s32.totalorder %s44, 3
      %p298 = por %p296, %p297
      %p299 = scmp.ne.s32.totalorder %s290, %s291
      %p300 = scmp.eq.s32.totalorder %s44, 0
      %p301 = por %p299, %p300
      %p302 = scmp.ne.s32.totalorder %s290, %s291
      %p303 = scmp.eq.s32.totalorder %s45, 3
      %p304 = por %p302, %p303
      %p306 = scmp.ne.s32.totalorder %s291, %s305
      %p307 = scmp.eq.s32.totalorder %s45, 0
      %p308 = por %p306, %p307
      %s309 = ssub.s32 %s46, %s58
      %s310 = ssub.s32 %s47, %s54
      %s311 = sor.u32 %s309, %s310
      %p312 = scmp.eq.s32.totalorder %s311, 0
      %s314 = sadd.s32 %s313, 1
      %s315 = scalar_select %p312, %s313, %s314
      %p318 = pneg %p312
      %p319 = scmp.eq.s32.totalorder %s39, 3
      %p320 = por %p318, %p319
      %p321 = scmp.ne.s32.totalorder %s313, %s316
      %p322 = scmp.eq.s32.totalorder %s39, 0
      %p323 = por %p321, %p322
      %p324 = scmp.ne.s32.totalorder %s313, %s316
      %p325 = scmp.eq.s32.totalorder %s44, 3
      %p326 = por %p324, %p325
      %p327 = scmp.ne.s32.totalorder %s316, %s317
      %p328 = scmp.eq.s32.totalorder %s44, 0
      %p329 = por %p327, %p328
      %p330 = scmp.ne.s32.totalorder %s316, %s317
      %p331 = scmp.eq.s32.totalorder %s45, 3
      %p332 = por %p330, %p331
      %p334 = scmp.ne.s32.totalorder %s317, %s333
      %p335 = scmp.eq.s32.totalorder %s45, 0
      %p336 = por %p334, %p335
      %s337 = ssub.s32 %s46, %s58
      %s338 = ssub.s32 %s47, %s54
      %s339 = sor.u32 %s337, %s338
      %p340 = scmp.eq.s32.totalorder %s339, 0
      %s342 = sadd.s32 %s341, 1
      %s343 = scalar_select %p340, %s341, %s342
      %p346 = pneg %p340
      %p347 = scmp.eq.s32.totalorder %s39, 3
      %p348 = por %p346, %p347
      %p349 = scmp.ne.s32.totalorder %s341, %s344
      %p350 = scmp.eq.s32.totalorder %s39, 0
      %p351 = por %p349, %p350
      %p352 = scmp.ne.s32.totalorder %s341, %s344
      %p353 = scmp.eq.s32.totalorder %s44, 3
      %p354 = por %p352, %p353
      %p355 = scmp.ne.s32.totalorder %s344, %s345
      %p356 = scmp.eq.s32.totalorder %s44, 0
      %p357 = por %p355, %p356
      %p358 = scmp.ne.s32.totalorder %s344, %s345
      %p359 = scmp.eq.s32.totalorder %s45, 3
      %p360 = por %p358, %p359
      %p362 = scmp.ne.s32.totalorder %s345, %s361
      %p363 = scmp.eq.s32.totalorder %s45, 0
      %p364 = por %p362, %p363
      %s365 = ssub.s32 %s46, %s58
      %s366 = ssub.s32 %s47, %s54
      %s367 = sor.u32 %s365, %s366
      %p368 = scmp.eq.s32.totalorder %s367, 0
      %s370 = sadd.s32 %s369, 1
      %s371 = scalar_select %p368, %s369, %s370
      %p374 = pneg %p368
      %p375 = scmp.eq.s32.totalorder %s39, 3
      %p376 = por %p374, %p375
      %p377 = scmp.ne.s32.totalorder %s369, %s372
      %p378 = scmp.eq.s32.totalorder %s39, 0
      %p379 = por %p377, %p378
      %p380 = scmp.ne.s32.totalorder %s369, %s372
      %p381 = scmp.eq.s32.totalorder %s44, 3
      %p382 = por %p380, %p381
      %p383 = scmp.ne.s32.totalorder %s372, %s373
      %p384 = scmp.eq.s32.totalorder %s44, 0
      %p385 = por %p383, %p384
      %p386 = scmp.ne.s32.totalorder %s372, %s373
      %p387 = scmp.eq.s32.totalorder %s45, 3
      %p388 = por %p386, %p387
      %p390 = scmp.ne.s32.totalorder %s373, %s389
      %p391 = scmp.eq.s32.totalorder %s45, 0
      %p392 = por %p390, %p391
      %p393 = scmp.le.s32.totalorder 1, %s39
      %p394 = scmp.lt.s32.totalorder %s39, 5
      %p395 = pnand %p393, %p394
      %p396 = pneg %p395
      // Predicated region
      $region9: #{tpu_custom_call.1} parent=5 // pred_check
        _
      $region10: #{tpu_custom_call.1} parent=5 // pred_check_branch
        %398 = sbr.rel (%p395) target = $region12
      $region11: #{tpu_custom_call.1} parent=5 // pred_region
        %s399 = ssub.s32 %s39, 1
        // Predicated region
        $region13: #{tpu_custom_call.1} parent=11 // pred_check
          %p400 = pneg %p126
        $region14: #{tpu_custom_call.1} parent=11 // pred_check_branch
          %402 = sbr.rel (%p400) target = $region16
        $region15: #{tpu_custom_call.1} parent=11 // pred_region
          %s404 = ssub.s32 16, 16
          %405 = vsyncadd [#allocation6], %s404
          %s407 = sshll.u32 [#allocation7], 4
          %s408 = int_to_ptr.vmem [resolvable:$true] %s407
          %410 = dma.hbm_to_vmem [thread:$0]  %s2, 16, %s408, [#allocation6]
        $region16: #{tpu_custom_call.1} parent=11 // pred_fallthru
          _
        // Predicated region
        $region17: #{tpu_custom_call.1} parent=11 // pred_check
          %p411 = pneg %p259
        $region18: #{tpu_custom_call.1} parent=11 // pred_check_branch
          %413 = sbr.rel (%p411) target = $region20
        $region19: #{tpu_custom_call.1} parent=11 // pred_region
          %s415 = ssub.s32 1024, 1024
          %416 = vsyncadd [#allocation15], %s415
          %s417 = sshll.u32 [#allocation14], 4
          %s418 = int_to_ptr.vmem [resolvable:$true] %s417
          %423 = dma.hbm_to_vmem [thread:$0]  %s7, 1024, %s418, [#allocation15], 128, 128, 8
        $region20: #{tpu_custom_call.1} parent=11 // pred_fallthru
          _
        // Predicated region
        $region21: #{tpu_custom_call.1} parent=11 // pred_check
          %p424 = pneg %p280
        $region22: #{tpu_custom_call.1} parent=11 // pred_check_branch
          %426 = sbr.rel (%p424) target = $region24
        $region23: #{tpu_custom_call.1} parent=11 // pred_region
          %s428 = ssub.s32 16, 16
          %429 = vsyncadd [#allocation15], %s428
          %s431 = sshll.u32 [#allocation16], 4
          %s432 = int_to_ptr.vmem [resolvable:$true] %s431
          %434 = dma.hbm_to_vmem [thread:$0]  %s8, 16, %s432, [#allocation15]
        $region24: #{tpu_custom_call.1} parent=11 // pred_fallthru
          _
        // Predicated region
        $region25: #{tpu_custom_call.1} parent=11 // pred_check
          %p435 = pneg %p301
        $region26: #{tpu_custom_call.1} parent=11 // pred_check_branch
          %437 = sbr.rel (%p435) target = $region28
        $region27: #{tpu_custom_call.1} parent=11 // pred_region
          %s439 = ssub.s32 16, 16
          %440 = vsyncadd [#allocation18], %s439
          %s442 = sshll.u32 [#allocation17], 4
          %s443 = int_to_ptr.vmem [resolvable:$true] %s442
          %445 = dma.hbm_to_vmem [thread:$0]  %s9, 16, %s443, [#allocation18]
        $region28: #{tpu_custom_call.1} parent=11 // pred_fallthru
          _
      $region12: #{tpu_custom_call.1} parent=5 // pred_fallthru
        _
      %p446 = scmp.lt.s32.totalorder %s39, 4
      // Predicated region
      $region29: #{tpu_custom_call.1} parent=5 // pred_check
        %p447 = pneg %p446
      $region30: #{tpu_custom_call.1} parent=5 // pred_check_branch
        %449 = sbr.rel (%p447) target = $region32
      $region31: #{tpu_custom_call.1} parent=5 // pred_region
        // Predicated region
        $region33: #{tpu_custom_call.1} parent=31 // pred_check
          %p450 = pneg %p73
        $region34: #{tpu_custom_call.1} parent=31 // pred_check_branch
          %452 = sbr.rel (%p450) target = $region36
        $region35: #{tpu_custom_call.1} parent=31 // pred_region
          %s453 = sand.u32 %s63, 1
          %s454 = scalar_lea.sflag [#allocation3], %s453
          %s455 = sand.u32 %s63, 1
          %s456 = smul.addr %s455, 128
          %s457 = scalar_lea.vmem [#allocation2], %s456
          %s458 = smul.u32 16, %s47
          %s460 = ssub.s32 2048, 2048
          %461 = vsyncadd %s454, %s460
          %s462 = smul.addr %s46, 32
          %s463 = sadd.s32 %s458, %s462
          %s464 = smul.addr %s463, 128
          %s465 = scalar_lea.hbm %s0, %s464
          %s466 = sshll.u32 %s457, 4
          %s467 = int_to_ptr.vmem [resolvable:$true] %s466
          %472 = dma.hbm_to_vmem [thread:$0]  %s465, 2048, %s467, %s454, 128, 128, 8
        $region36: #{tpu_custom_call.1} parent=31 // pred_fallthru
          _
        // Predicated region
        $region37: #{tpu_custom_call.1} parent=31 // pred_check
          %p473 = pneg %p99
        $region38: #{tpu_custom_call.1} parent=31 // pred_check_branch
          %475 = sbr.rel (%p473) target = $region40
        $region39: #{tpu_custom_call.1} parent=31 // pred_region
          %s476 = sand.u32 %s39, 1
          %s477 = scalar_lea.sflag [#allocation6], %s476
          %s478 = sand.u32 %s89, 1
          %s479 = scalar_lea.vmem [#allocation5], %s478
          %s481 = ssub.s32 16, 16
          %482 = vsyncadd %s477, %s481
          %s483 = smul.addr %s46, 16
          %s484 = scalar_lea.hbm %s1, %s483
          %s486 = sshll.u32 %s479, 4
          %s487 = int_to_ptr.vmem [resolvable:$true] %s486
          %489 = dma.hbm_to_vmem [thread:$0]  %s484, 16, %s487, %s477
        $region40: #{tpu_custom_call.1} parent=31 // pred_fallthru
          _
        // Predicated region
        $region41: #{tpu_custom_call.1} parent=31 // pred_check
          %p490 = pneg %p148
        $region42: #{tpu_custom_call.1} parent=31 // pred_check_branch
          %492 = sbr.rel (%p490) target = $region44
        $region43: #{tpu_custom_call.1} parent=31 // pred_region
          %s493 = sand.u32 %s39, 1
          %s494 = scalar_lea.sflag [#allocation9], %s493
          %s495 = sand.u32 %s138, 1
          %s496 = smul.addr %s495, 128
          %s497 = scalar_lea.vmem [#allocation8], %s496
          %s498 = smul.u32 16, %s47
          %s500 = ssub.s32 2048, 2048
          %501 = vsyncadd %s494, %s500
          %s502 = smul.addr %s46, 32
          %s503 = sadd.s32 %s498, %s502
          %s504 = smul.addr %s503, 128
          %s505 = scalar_lea.hbm %s3, %s504
          %s506 = sshll.u32 %s497, 4
          %s507 = int_to_ptr.vmem [resolvable:$true] %s506
          %512 = dma.hbm_to_vmem [thread:$0]  %s505, 2048, %s507, %s494, 128, 128, 8
        $region44: #{tpu_custom_call.1} parent=31 // pred_fallthru
          _
        // Predicated region
        $region45: #{tpu_custom_call.1} parent=31 // pred_check
          %p513 = pneg %p176
        $region46: #{tpu_custom_call.1} parent=31 // pred_check_branch
          %515 = sbr.rel (%p513) target = $region48
        $region47: #{tpu_custom_call.1} parent=31 // pred_region
          %s516 = sand.u32 %s39, 1
          %s517 = scalar_lea.sflag [#allocation9], %s516
          %s518 = sand.u32 %s166, 1
          %s519 = smul.addr %s518, 128
          %s520 = scalar_lea.vmem [#allocation10], %s519
          %s521 = smul.u32 16, %s47
          %s523 = ssub.s32 2048, 2048
          %524 = vsyncadd %s517, %s523
          %s525 = smul.addr %s46, 32
          %s526 = sadd.s32 %s521, %s525
          %s527 = smul.addr %s526, 128
          %s528 = scalar_lea.hbm %s4, %s527
          %s529 = sshll.u32 %s520, 4
          %s530 = int_to_ptr.vmem [resolvable:$true] %s529
          %535 = dma.hbm_to_vmem [thread:$0]  %s528, 2048, %s530, %s517, 128, 128, 8
        $region48: #{tpu_custom_call.1} parent=31 // pred_fallthru
          _
        // Predicated region
        $region49: #{tpu_custom_call.1} parent=31 // pred_check
          %p536 = pneg %p204
        $region50: #{tpu_custom_call.1} parent=31 // pred_check_branch
          %538 = sbr.rel (%p536) target = $region52
        $region51: #{tpu_custom_call.1} parent=31 // pred_region
          %s539 = sand.u32 %s39, 1
          %s540 = scalar_lea.sflag [#allocation12], %s539
          %s541 = sand.u32 %s194, 1
          %s542 = smul.addr %s541, 128
          %s543 = scalar_lea.vmem [#allocation11], %s542
          %s544 = smul.u32 16, %s47
          %s546 = ssub.s32 2048, 2048
          %547 = vsyncadd %s540, %s546
          %s548 = smul.addr %s46, 32
          %s549 = sadd.s32 %s544, %s548
          %s550 = smul.addr %s549, 128
          %s551 = scalar_lea.hbm %s5, %s550
          %s552 = sshll.u32 %s543, 4
          %s553 = int_to_ptr.vmem [resolvable:$true] %s552
          %558 = dma.hbm_to_vmem [thread:$0]  %s551, 2048, %s553, %s540, 128, 128, 8
        $region52: #{tpu_custom_call.1} parent=31 // pred_fallthru
          _
        // Predicated region
        $region53: #{tpu_custom_call.1} parent=31 // pred_check
          %p559 = pneg %p232
        $region54: #{tpu_custom_call.1} parent=31 // pred_check_branch
          %561 = sbr.rel (%p559) target = $region56
        $region55: #{tpu_custom_call.1} parent=31 // pred_region
          %s562 = sand.u32 %s39, 1
          %s563 = scalar_lea.sflag [#allocation12], %s562
          %s564 = sand.u32 %s222, 1
          %s565 = smul.addr %s564, 128
          %s566 = scalar_lea.vmem [#allocation13], %s565
          %s567 = smul.u32 16, %s47
          %s569 = ssub.s32 2048, 2048
          %570 = vsyncadd %s563, %s569
          %s571 = smul.addr %s46, 32
          %s572 = sadd.s32 %s567, %s571
          %s573 = smul.addr %s572, 128
          %s574 = scalar_lea.hbm %s6, %s573
          %s575 = sshll.u32 %s566, 4
          %s576 = int_to_ptr.vmem [resolvable:$true] %s575
          %581 = dma.hbm_to_vmem [thread:$0]  %s574, 2048, %s576, %s563, 128, 128, 8
        $region56: #{tpu_custom_call.1} parent=31 // pred_fallthru
          _
      $region32: #{tpu_custom_call.1} parent=5 // pred_fallthru
        _
      %p582 = scmp.le.s32.totalorder 1, %s39
      %p583 = scmp.lt.s32.totalorder %s39, 5
      %p584 = pnand %p582, %p583
      %p585 = pneg %p584
      // Predicated region
      $region57: #{tpu_custom_call.1} parent=5 // pred_check
        _
      $region58: #{tpu_custom_call.1} parent=5 // pred_check_branch
        %587 = sbr.rel (%p584) target = $region60
      $region59: #{tpu_custom_call.1} parent=5 // pred_region
        %s588 = ssub.s32 %s39, 1
        %s589 = sand.u32 %s66, 1
        %s590 = scalar_lea.sflag [#allocation3], %s589
        %s591 = sand.u32 %s66, 1
        %s592 = smul.addr %s591, 128
        %s593 = scalar_lea.vmem [#allocation2], %s592
        // Predicated region
        $region61: #{tpu_custom_call.1} parent=59 // pred_check
          %p594 = pneg %p79
        $region62: #{tpu_custom_call.1} parent=59 // pred_check_branch
          %596 = sbr.rel (%p594) target = $region64
        $region63: #{tpu_custom_call.1} parent=59 // pred_region
          %597 = dma.done %s590, 2048
        $region64: #{tpu_custom_call.1} parent=59 // pred_fallthru
          _
        %s598 = sand.u32 %s44, 1
        %s599 = scalar_lea.sflag [#allocation6], %s598
        %s600 = sand.u32 %s92, 1
        %s601 = scalar_lea.vmem [#allocation5], %s600
        // Predicated region
        $region65: #{tpu_custom_call.1} parent=59 // pred_check
          %p602 = pneg %p105
        $region66: #{tpu_custom_call.1} parent=59 // pred_check_branch
          %604 = sbr.rel (%p602) target = $region68
        $region67: #{tpu_custom_call.1} parent=59 // pred_region
          %605 = dma.done %s599, 16
        $region68: #{tpu_custom_call.1} parent=59 // pred_fallthru
          _
        // Predicated region
        $region69: #{tpu_custom_call.1} parent=59 // pred_check
          %p606 = pneg %p126
        $region70: #{tpu_custom_call.1} parent=59 // pred_check_branch
          %608 = sbr.rel (%p606) target = $region72
        $region71: #{tpu_custom_call.1} parent=59 // pred_region
          %609 = dma.done [#allocation6], 16
        $region72: #{tpu_custom_call.1} parent=59 // pred_fallthru
          _
        %s610 = sand.u32 %s44, 1
        %s611 = scalar_lea.sflag [#allocation9], %s610
        %s612 = sand.u32 %s141, 1
        %s613 = smul.addr %s612, 128
        %s614 = scalar_lea.vmem [#allocation8], %s613
        // Predicated region
        $region73: #{tpu_custom_call.1} parent=59 // pred_check
          %p615 = pneg %p154
        $region74: #{tpu_custom_call.1} parent=59 // pred_check_branch
          %617 = sbr.rel (%p615) target = $region76
        $region75: #{tpu_custom_call.1} parent=59 // pred_region
          %618 = dma.done %s611, 2048
        $region76: #{tpu_custom_call.1} parent=59 // pred_fallthru
          _
        %s619 = sand.u32 %s44, 1
        %s620 = scalar_lea.sflag [#allocation9], %s619
        %s621 = sand.u32 %s169, 1
        %s622 = smul.addr %s621, 128
        %s623 = scalar_lea.vmem [#allocation10], %s622
        // Predicated region
        $region77: #{tpu_custom_call.1} parent=59 // pred_check
          %p624 = pneg %p182
        $region78: #{tpu_custom_call.1} parent=59 // pred_check_branch
          %626 = sbr.rel (%p624) target = $region80
        $region79: #{tpu_custom_call.1} parent=59 // pred_region
          %627 = dma.done %s620, 2048
        $region80: #{tpu_custom_call.1} parent=59 // pred_fallthru
          _
        %s628 = sand.u32 %s44, 1
        %s629 = scalar_lea.sflag [#allocation12], %s628
        %s630 = sand.u32 %s197, 1
        %s631 = smul.addr %s630, 128
        %s632 = scalar_lea.vmem [#allocation11], %s631
        // Predicated region
        $region81: #{tpu_custom_call.1} parent=59 // pred_check
          %p633 = pneg %p210
        $region82: #{tpu_custom_call.1} parent=59 // pred_check_branch
          %635 = sbr.rel (%p633) target = $region84
        $region83: #{tpu_custom_call.1} parent=59 // pred_region
          %636 = dma.done %s629, 2048
        $region84: #{tpu_custom_call.1} parent=59 // pred_fallthru
          _
        %s637 = sand.u32 %s44, 1
        %s638 = scalar_lea.sflag [#allocation12], %s637
        %s639 = sand.u32 %s225, 1
        %s640 = smul.addr %s639, 128
        %s641 = scalar_lea.vmem [#allocation13], %s640
        // Predicated region
        $region85: #{tpu_custom_call.1} parent=59 // pred_check
          %p642 = pneg %p238
        $region86: #{tpu_custom_call.1} parent=59 // pred_check_branch
          %644 = sbr.rel (%p642) target = $region88
        $region87: #{tpu_custom_call.1} parent=59 // pred_region
          %645 = dma.done %s638, 2048
        $region88: #{tpu_custom_call.1} parent=59 // pred_fallthru
          _
        // Predicated region
        $region89: #{tpu_custom_call.1} parent=59 // pred_check
          %p646 = pneg %p259
        $region90: #{tpu_custom_call.1} parent=59 // pred_check_branch
          %648 = sbr.rel (%p646) target = $region92
        $region91: #{tpu_custom_call.1} parent=59 // pred_region
          %649 = dma.done [#allocation15], 1024
        $region92: #{tpu_custom_call.1} parent=59 // pred_fallthru
          _
        // Predicated region
        $region93: #{tpu_custom_call.1} parent=59 // pred_check
          %p650 = pneg %p280
        $region94: #{tpu_custom_call.1} parent=59 // pred_check_branch
          %652 = sbr.rel (%p650) target = $region96
        $region95: #{tpu_custom_call.1} parent=59 // pred_region
          %653 = dma.done [#allocation15], 16
        $region96: #{tpu_custom_call.1} parent=59 // pred_fallthru
          _
        // Predicated region
        $region97: #{tpu_custom_call.1} parent=59 // pred_check
          %p654 = pneg %p301
        $region98: #{tpu_custom_call.1} parent=59 // pred_check_branch
          %656 = sbr.rel (%p654) target = $region100
        $region99: #{tpu_custom_call.1} parent=59 // pred_region
          %657 = dma.done [#allocation18], 16
        $region100: #{tpu_custom_call.1} parent=59 // pred_fallthru
          _
        %s658 = sand.u32 %s66, 1
        %s659 = scalar_lea.sflag [#allocation3], %s658
        %s660 = sand.u32 %s66, 1
        %s661 = smul.addr %s660, 128
        %s662 = scalar_lea.vmem [#allocation2], %s661
        %p663 = pneg %p79
        %p664 = pneg %p76
        %s665 = sand.u32 %s44, 1
        %s666 = scalar_lea.sflag [#allocation6], %s665
        %s667 = sand.u32 %s92, 1
        %s668 = scalar_lea.vmem [#allocation5], %s667
        %p669 = pneg %p105
        %p670 = pneg %p102
        %p671 = pneg %p126
        %p672 = pneg %p123
        %s673 = sand.u32 %s44, 1
        %s674 = scalar_lea.sflag [#allocation9], %s673
        %s675 = sand.u32 %s141, 1
        %s676 = smul.addr %s675, 128
        %s677 = scalar_lea.vmem [#allocation8], %s676
        %p678 = pneg %p154
        %p679 = pneg %p151
        %s680 = sand.u32 %s44, 1
        %s681 = scalar_lea.sflag [#allocation9], %s680
        %s682 = sand.u32 %s169, 1
        %s683 = smul.addr %s682, 128
        %s684 = scalar_lea.vmem [#allocation10], %s683
        %p685 = pneg %p182
        %p686 = pneg %p179
        %s687 = sand.u32 %s44, 1
        %s688 = scalar_lea.sflag [#allocation12], %s687
        %s689 = sand.u32 %s197, 1
        %s690 = smul.addr %s689, 128
        %s691 = scalar_lea.vmem [#allocation11], %s690
        %p692 = pneg %p210
        %p693 = pneg %p207
        %s694 = sand.u32 %s44, 1
        %s695 = scalar_lea.sflag [#allocation12], %s694
        %s696 = sand.u32 %s225, 1
        %s697 = smul.addr %s696, 128
        %s698 = scalar_lea.vmem [#allocation13], %s697
        %p699 = pneg %p238
        %p700 = pneg %p235
        %p701 = pneg %p259
        %p702 = pneg %p256
        %p703 = pneg %p280
        %p704 = pneg %p277
        %p705 = pneg %p301
        %p706 = pneg %p298
        %p707 = pneg %p329
        %p708 = pneg %p326
        %s709 = sand.u32 %s316, 1
        %s710 = scalar_lea.sflag [#allocation4], %s709
        %s711 = sand.u32 %s316, 1
        %s712 = smul.addr %s711, 256
        %s713 = scalar_lea.vmem [#allocation19], %s712
        %p714 = pneg %p357
        %p715 = pneg %p354
        %s716 = sand.u32 %s44, 1
        %s717 = scalar_lea.sflag [#allocation21], %s716
        %s718 = sand.u32 %s344, 1
        %s719 = smul.addr %s718, 256
        %s720 = scalar_lea.vmem [#allocation20], %s719
        %p721 = pneg %p385
        %p722 = pneg %p382
        %s723 = sand.u32 %s44, 1
        %s724 = scalar_lea.sflag [#allocation21], %s723
        %s725 = sand.u32 %s372, 1
        %s726 = smul.addr %s725, 256
        %s727 = scalar_lea.vmem [#allocation22], %s726
        %s728 = smul.u32 16, %s49
        %s729 = smul.u32 16, %s49
        %s730 = smul.u32 16, %s49
        %s731 = smul.u32 16, %s49
        %s732 = smul.u32 16, %s49
        %s733 = smul.u32 16, %s49
        %s734 = smul.u32 16, %s49
        %s735 = smul.u32 16, %s49
        %v736 = vld [vmem:[%s593] sm:$0xff]
        %v737 = vld [vmem:[%s593 + $0x8] sm:$0xff]
        %v738 = vld [vmem:[%s593 + $0x10] sm:$0xff]
        %v739 = vld [vmem:[%s593 + $0x18] sm:$0xff]
        %v740 = vld [vmem:[%s593 + $0x20] sm:$0xff]
        %v741 = vld [vmem:[%s593 + $0x28] sm:$0xff]
        %v742 = vld [vmem:[%s593 + $0x30] sm:$0xff]
        %v743 = vld [vmem:[%s593 + $0x38] sm:$0xff]
        %v744 = vld [vmem:[%s593 + $0x40] sm:$0xff]
        %v745 = vld [vmem:[%s593 + $0x48] sm:$0xff]
        %v746 = vld [vmem:[%s593 + $0x50] sm:$0xff]
        %v747 = vld [vmem:[%s593 + $0x58] sm:$0xff]
        %v748 = vld [vmem:[%s593 + $0x60] sm:$0xff]
        %v749 = vld [vmem:[%s593 + $0x68] sm:$0xff]
        %v750 = vld [vmem:[%s593 + $0x70] sm:$0xff]
        %v751 = vld [vmem:[%s593 + $0x78] sm:$0xff]
        %v752 = vld [vmem:[#allocation7] sm:$0x1]
        %v753 = vmul.f32 %v736, %v736
        %v754 = vmul.f32 %v737, %v737
        %v755 = vmul.f32 %v738, %v738
        %v756 = vmul.f32 %v739, %v739
        %v757 = vmul.f32 %v740, %v740
        %v758 = vmul.f32 %v741, %v741
        %v759 = vmul.f32 %v742, %v742
        %v760 = vmul.f32 %v743, %v743
        %v761 = vmul.f32 %v744, %v744
        %v762 = vmul.f32 %v745, %v745
        %v763 = vmul.f32 %v746, %v746
        %v764 = vmul.f32 %v747, %v747
        %v765 = vmul.f32 %v748, %v748
        %v766 = vmul.f32 %v749, %v749
        %v767 = vmul.f32 %v750, %v750
        %v768 = vmul.f32 %v751, %v751
        %vm769 = vcmask 523264
        %v770 = vsel %vm769, %v753, 0.0
        %771 = vadd.xlane.f32.xlu0 %v770
        %v772 = vpop.xlane.xlu0 %771
        %v773 = vsel %vm769, %v754, 0.0
        %774 = vadd.xlane.f32.xlu0 %v773
        %v775 = vpop.xlane.xlu0 %774
        %v776 = vsel %vm769, %v755, 0.0
        %777 = vadd.xlane.f32.xlu0 %v776
        %v778 = vpop.xlane.xlu0 %777
        %v779 = vsel %vm769, %v756, 0.0
        %780 = vadd.xlane.f32.xlu0 %v779
        %v781 = vpop.xlane.xlu0 %780
        %v782 = vsel %vm769, %v757, 0.0
        %783 = vadd.xlane.f32.xlu0 %v782
        %v784 = vpop.xlane.xlu0 %783
        %v785 = vsel %vm769, %v758, 0.0
        %786 = vadd.xlane.f32.xlu0 %v785
        %v787 = vpop.xlane.xlu0 %786
        %v788 = vsel %vm769, %v759, 0.0
        %789 = vadd.xlane.f32.xlu0 %v788
        %v790 = vpop.xlane.xlu0 %789
        %v791 = vsel %vm769, %v760, 0.0
        %792 = vadd.xlane.f32.xlu0 %v791
        %v793 = vpop.xlane.xlu0 %792
        %v794 = vsel %vm769, %v761, 0.0
        %795 = vadd.xlane.f32.xlu0 %v794
        %v796 = vpop.xlane.xlu0 %795
        %v797 = vsel %vm769, %v762, 0.0
        %798 = vadd.xlane.f32.xlu0 %v797
        %v799 = vpop.xlane.xlu0 %798
        %v800 = vsel %vm769, %v763, 0.0
        %801 = vadd.xlane.f32.xlu0 %v800
        %v802 = vpop.xlane.xlu0 %801
        %v803 = vsel %vm769, %v764, 0.0
        %804 = vadd.xlane.f32.xlu0 %v803
        %v805 = vpop.xlane.xlu0 %804
        %v806 = vsel %vm769, %v765, 0.0
        %807 = vadd.xlane.f32.xlu0 %v806
        %v808 = vpop.xlane.xlu0 %807
        %v809 = vsel %vm769, %v766, 0.0
        %810 = vadd.xlane.f32.xlu0 %v809
        %v811 = vpop.xlane.xlu0 %810
        %v812 = vsel %vm769, %v767, 0.0
        %813 = vadd.xlane.f32.xlu0 %v812
        %v814 = vpop.xlane.xlu0 %813
        %v815 = vsel %vm769, %v768, 0.0
        %816 = vadd.xlane.f32.xlu0 %v815
        %v817 = vpop.xlane.xlu0 %816
        %v818 = vrcp.pop 64.0
        %v819 = vmul.f32 %v772, %v818
        %v820 = vmul.f32 %v775, %v818
        %v821 = vmul.f32 %v778, %v818
        %v822 = vmul.f32 %v781, %v818
        %v823 = vmul.f32 %v784, %v818
        %v824 = vmul.f32 %v787, %v818
        %v825 = vmul.f32 %v790, %v818
        %v826 = vmul.f32 %v793, %v818
        %v827 = vmul.f32 %v796, %v818
        %v828 = vmul.f32 %v799, %v818
        %v829 = vmul.f32 %v802, %v818
        %v830 = vmul.f32 %v805, %v818
        %v831 = vmul.f32 %v808, %v818
        %v832 = vmul.f32 %v811, %v818
        %v833 = vmul.f32 %v814, %v818
        %v834 = vmul.f32 %v817, %v818
        %v835 = vadd.f32 %v819, 1e-05
        %v836 = vadd.f32 %v820, 1e-05
        %v837 = vadd.f32 %v821, 1e-05
        %v838 = vadd.f32 %v822, 1e-05
        %v839 = vadd.f32 %v823, 1e-05
        %v840 = vadd.f32 %v824, 1e-05
        %v841 = vadd.f32 %v825, 1e-05
        %v842 = vadd.f32 %v826, 1e-05
        %v843 = vadd.f32 %v827, 1e-05
        %v844 = vadd.f32 %v828, 1e-05
        %v845 = vadd.f32 %v829, 1e-05
        %v846 = vadd.f32 %v830, 1e-05
        %v847 = vadd.f32 %v831, 1e-05
        %v848 = vadd.f32 %v832, 1e-05
        %v849 = vadd.f32 %v833, 1e-05
        %v850 = vadd.f32 %v834, 1e-05
        %v851 = vrsqrt.pop %v835
        %v852 = vrsqrt.pop %v836
        %v853 = vrsqrt.pop %v837
        %v854 = vrsqrt.pop %v838
        %v855 = vrsqrt.pop %v839
        %v856 = vrsqrt.pop %v840
        %v857 = vrsqrt.pop %v841
        %v858 = vrsqrt.pop %v842
        %v859 = vrsqrt.pop %v843
        %v860 = vrsqrt.pop %v844
        %v861 = vrsqrt.pop %v845
        %v862 = vrsqrt.pop %v846
        %v863 = vrsqrt.pop %v847
        %v864 = vrsqrt.pop %v848
        %v865 = vrsqrt.pop %v849
        %v866 = vrsqrt.pop %v850
        %v867 = vmul.f32 %v736, %v851
        %v868 = vmul.f32 %v737, %v852
        %v869 = vmul.f32 %v738, %v853
        %v870 = vmul.f32 %v739, %v854
        %v871 = vmul.f32 %v740, %v855
        %v872 = vmul.f32 %v741, %v856
        %v873 = vmul.f32 %v742, %v857
        %v874 = vmul.f32 %v743, %v858
        %v875 = vmul.f32 %v744, %v859
        %v876 = vmul.f32 %v745, %v860
        %v877 = vmul.f32 %v746, %v861
        %v878 = vmul.f32 %v747, %v862
        %v879 = vmul.f32 %v748, %v863
        %v880 = vmul.f32 %v749, %v864
        %v881 = vmul.f32 %v750, %v865
        %v882 = vmul.f32 %v751, %v866
        %v884 = vlaneseq
        %v885 = vshrl.u32 %v884, 7
        %v886 = vsub.s32 0, %v885
        %v887 = vrot.slane %v752, %v886
        %v889 = vmul.f32 %v867, %v887
        %v890 = vmul.f32 %v868, %v887
        %v891 = vmul.f32 %v869, %v887
        %v892 = vmul.f32 %v870, %v887
        %v893 = vmul.f32 %v871, %v887
        %v894 = vmul.f32 %v872, %v887
        %v895 = vmul.f32 %v873, %v887
        %v896 = vmul.f32 %v874, %v887
        %v897 = vmul.f32 %v875, %v887
        %v898 = vmul.f32 %v876, %v887
        %v899 = vmul.f32 %v877, %v887
        %v900 = vmul.f32 %v878, %v887
        %v901 = vmul.f32 %v879, %v887
        %v902 = vmul.f32 %v880, %v887
        %v903 = vmul.f32 %v881, %v887
        %v904 = vmul.f32 %v882, %v887
        %v905 = vld [vmem:[%s601] sm:$0x1]
        %v906 = vadd.f32 %v905, 1.0
        %v908 = vlaneseq
        %v909 = vshrl.u32 %v908, 7
        %v910 = vsub.s32 0, %v909
        %v911 = vrot.slane %v906, %v910
        %v913 = vmul.f32 %v889, %v911
        %v914 = vmul.f32 %v890, %v911
        %v915 = vmul.f32 %v891, %v911
        %v916 = vmul.f32 %v892, %v911
        %v917 = vmul.f32 %v893, %v911
        %v918 = vmul.f32 %v894, %v911
        %v919 = vmul.f32 %v895, %v911
        %v920 = vmul.f32 %v896, %v911
        %v921 = vmul.f32 %v897, %v911
        %v922 = vmul.f32 %v898, %v911
        %v923 = vmul.f32 %v899, %v911
        %v924 = vmul.f32 %v900, %v911
        %v925 = vmul.f32 %v901, %v911
        %v926 = vmul.f32 %v902, %v911
        %v927 = vmul.f32 %v903, %v911
        %v928 = vmul.f32 %v904, %v911
        %v929 = vld [vmem:[#allocation14] sm:$0xff]
        %v930 = vld [vmem:[#allocation14 + $0x8] sm:$0xff]
        %v931 = vld [vmem:[#allocation14 + $0x10] sm:$0xff]
        %v932 = vld [vmem:[#allocation14 + $0x18] sm:$0xff]
        %v933 = vld [vmem:[#allocation14 + $0x20] sm:$0xff]
        %v934 = vld [vmem:[#allocation14 + $0x28] sm:$0xff]
        %v935 = vld [vmem:[#allocation14 + $0x30] sm:$0xff]
        %v936 = vld [vmem:[#allocation14 + $0x38] sm:$0xff]
        %v938 = vsel %vm769, %v913, 0
        %v941 = vsel %vm769, %v914, 0
        %v944 = vsel %vm769, %v915, 0
        %v947 = vsel %vm769, %v916, 0
        %v950 = vsel %vm769, %v917, 0
        %v953 = vsel %vm769, %v918, 0
        %v956 = vsel %vm769, %v919, 0
        %v959 = vsel %vm769, %v920, 0
        %v962 = vsel %vm769, %v921, 0
        %v965 = vsel %vm769, %v922, 0
        %v968 = vsel %vm769, %v923, 0
        %v971 = vsel %vm769, %v924, 0
        %v974 = vsel %vm769, %v925, 0
        %v977 = vsel %vm769, %v926, 0
        %v980 = vsel %vm769, %v927, 0
        %v983 = vsel %vm769, %v928, 0
        %985 = vmatprep.subr.mxu0 0.0
        %986 = vmatpush1.msra.mxu0 %v929
        %987 = vmatprep.subr.mxu0 0.0
        %988 = vmatpush1.msra.mxu0 %v930
        %989 = vmatprep.subr.mxu0 0.0
        %990 = vmatpush1.msra.mxu0 %v931
        %991 = vmatprep.subr.mxu0 0.0
        %992 = vmatpush1.msra.mxu0 %v932
        %993 = vmatprep.subr.mxu0 0.0
        %994 = vmatpush1.msra.mxu0 %v933
        %995 = vmatprep.subr.mxu0 0.0
        %996 = vmatpush1.msra.mxu0 %v934
        %997 = vmatprep.subr.mxu0 0.0
        %998 = vmatpush1.msra.mxu0 %v935
        %999 = vmatprep.subr.mxu0 0.0
        %1000 = vmatpush1.msra.mxu0 %v936
        %1001 = vmatprep.subr.mxu0 0.0
        %1002 = vmatpush1.msra.mxu0 0.0
        %1003 = vmatprep.subr.mxu0 0.0
        %1004 = vmatpush1.msra.mxu0 0.0
        %1005 = vmatprep.subr.mxu0 0.0
        %1006 = vmatpush1.msra.mxu0 0.0
        %1007 = vmatprep.subr.mxu0 0.0
        %1008 = vmatpush1.msra.mxu0 0.0
        %1009 = vmatprep.subr.mxu0 0.0
        %1010 = vmatpush1.msra.mxu0 0.0
        %1011 = vmatprep.subr.mxu0 0.0
        %1012 = vmatpush1.msra.mxu0 0.0
        %1013 = vmatprep.subr.mxu0 0.0
        %1014 = vmatpush1.msra.mxu0 0.0
        %1015 = vmatprep.subr.mxu0 0.0
        %1016 = vmatpush1.msra.mxu0 0.0
        %1017 = vmatprep.subr.mxu0 0.0
        %1018 = vmatpush1.msra.mxu0 0.0
        %1019 = vmatprep.subr.mxu0 0.0
        %1020 = vmatpush1.msra.mxu0 0.0
        %1021 = vmatprep.subr.mxu0 0.0
        %1022 = vmatpush1.msra.mxu0 0.0
        %1023 = vmatprep.subr.mxu0 0.0
        %1024 = vmatpush1.msra.mxu0 0.0
        %1025 = vmatprep.subr.mxu0 0.0
        %1026 = vmatpush1.msra.mxu0 0.0
        %1027 = vmatprep.subr.mxu0 0.0
        %1028 = vmatpush1.msra.mxu0 0.0
        %1029 = vmatprep.subr.mxu0 0.0
        %1030 = vmatpush1.msra.mxu0 0.0
        %1031 = vmatprep.subr.mxu0 0.0
        %1032 = vmatpush1.msra.mxu0 0.0
        %1033 = vmatprep.subr.mxu0 0.0
        %1034 = vmatpush1.msra.mxu0 0.0
        %1035 = vmatprep.subr.mxu0 0.0
        %1036 = vmatpush1.msra.mxu0 0.0
        %1037 = vmatprep.subr.mxu0 0.0
        %1038 = vmatpush1.msra.mxu0 0.0
        %1039 = vmatprep.subr.mxu0 0.0
        %1040 = vmatpush1.msra.mxu0 0.0
        %1041 = vmatprep.subr.mxu0 0.0
        %1042 = vmatpush1.msra.mxu0 0.0
        %1043 = vmatprep.subr.mxu0 0.0
        %1044 = vmatpush1.msra.mxu0 0.0
        %1045 = vmatprep.subr.mxu0 0.0
        %1046 = vmatpush1.msra.mxu0 0.0
        %1047 = vmatprep.subr.mxu0 0.0
        %1048 = vmatpush1.msra.mxu0 0.0
        %1049 = vmatprep.mubr.f32.mxu0 0.0
        %1050 = vmatmul.mubr.f32.gmra.mrb[0].mxu0 %v938
        %v1051 = vpop.f32.mrb[0].mxu0
        %v1052 = vadd.f32 0.0, %v1051
        %v1053 = vpop.f32.mrb[0].mxu0
        %1054 = vmatprep.mubr.f32.mxu0 0.0
        %1055 = vmatmul.mubr.f32.gmra.mrb[0].mxu0 %v941
        %v1056 = vpop.f32.mrb[0].mxu0
        %v1057 = vadd.f32 0.0, %v1056
        %v1058 = vpop.f32.mrb[0].mxu0
        %1059 = vmatprep.mubr.f32.mxu0 0.0
        %1060 = vmatmul.mubr.f32.gmra.mrb[0].mxu0 %v944
        %v1061 = vpop.f32.mrb[0].mxu0
        %v1062 = vadd.f32 0.0, %v1061
        %v1063 = vpop.f32.mrb[0].mxu0
        %1064 = vmatprep.mubr.f32.mxu0 0.0
        %1065 = vmatmul.mubr.f32.gmra.mrb[0].mxu0 %v947
        %v1066 = vpop.f32.mrb[0].mxu0
        %v1067 = vadd.f32 0.0, %v1066
        %v1068 = vpop.f32.mrb[0].mxu0
        %1069 = vmatprep.mubr.f32.mxu0 0.0
        %1070 = vmatmul.mubr.f32.gmra.mrb[0].mxu0 %v950
        %v1071 = vpop.f32.mrb[0].mxu0
        %v1072 = vadd.f32 0.0, %v1071
        %v1073 = vpop.f32.mrb[0].mxu0
        %1074 = vmatprep.mubr.f32.mxu0 0.0
        %1075 = vmatmul.mubr.f32.gmra.mrb[0].mxu0 %v953
        %v1076 = vpop.f32.mrb[0].mxu0
        %v1077 = vadd.f32 0.0, %v1076
        %v1078 = vpop.f32.mrb[0].mxu0
        %1079 = vmatprep.mubr.f32.mxu0 0.0
        %1080 = vmatmul.mubr.f32.gmra.mrb[0].mxu0 %v956
        %v1081 = vpop.f32.mrb[0].mxu0
        %v1082 = vadd.f32 0.0, %v1081
        %v1083 = vpop.f32.mrb[0].mxu0
        %1084 = vmatprep.mubr.f32.mxu0 0.0
        %1085 = vmatmul.mubr.f32.gmra.mrb[0].mxu0 %v959
        %v1086 = vpop.f32.mrb[0].mxu0
        %v1087 = vadd.f32 0.0, %v1086
        %v1088 = vpop.f32.mrb[0].mxu0
        %1089 = vmatprep.mubr.f32.mxu0 0.0
        %1090 = vmatmul.mubr.f32.gmra.mrb[0].mxu0 %v962
        %v1091 = vpop.f32.mrb[0].mxu0
        %v1092 = vadd.f32 0.0, %v1091
        %v1093 = vpop.f32.mrb[0].mxu0
        %1094 = vmatprep.mubr.f32.mxu0 0.0
        %1095 = vmatmul.mubr.f32.gmra.mrb[0].mxu0 %v965
        %v1096 = vpop.f32.mrb[0].mxu0
        %v1097 = vadd.f32 0.0, %v1096
        %v1098 = vpop.f32.mrb[0].mxu0
        %1099 = vmatprep.mubr.f32.mxu0 0.0
        %1100 = vmatmul.mubr.f32.gmra.mrb[0].mxu0 %v968
        %v1101 = vpop.f32.mrb[0].mxu0
        %v1102 = vadd.f32 0.0, %v1101
        %v1103 = vpop.f32.mrb[0].mxu0
        %1104 = vmatprep.mubr.f32.mxu0 0.0
        %1105 = vmatmul.mubr.f32.gmra.mrb[0].mxu0 %v971
        %v1106 = vpop.f32.mrb[0].mxu0
        %v1107 = vadd.f32 0.0, %v1106
        %v1108 = vpop.f32.mrb[0].mxu0
        %1109 = vmatprep.mubr.f32.mxu0 0.0
        %1110 = vmatmul.mubr.f32.gmra.mrb[0].mxu0 %v974
        %v1111 = vpop.f32.mrb[0].mxu0
        %v1112 = vadd.f32 0.0, %v1111
        %v1113 = vpop.f32.mrb[0].mxu0
        %1114 = vmatprep.mubr.f32.mxu0 0.0
        %1115 = vmatmul.mubr.f32.gmra.mrb[0].mxu0 %v977
        %v1116 = vpop.f32.mrb[0].mxu0
        %v1117 = vadd.f32 0.0, %v1116
        %v1118 = vpop.f32.mrb[0].mxu0
        %1119 = vmatprep.mubr.f32.mxu0 0.0
        %1120 = vmatmul.mubr.f32.gmra.mrb[0].mxu0 %v980
        %v1121 = vpop.f32.mrb[0].mxu0
        %v1122 = vadd.f32 0.0, %v1121
        %v1123 = vpop.f32.mrb[0].mxu0
        %1124 = vmatprep.mubr.f32.mxu0 0.0
        %1125 = vmatmul.mubr.f32.gmra.mrb[0].mxu0 %v983
        %v1126 = vpop.f32.mrb[0].mxu0
        %v1127 = vadd.f32 0.0, %v1126
        %v1128 = vpop.f32.mrb[0].mxu0
        %1129 = vdwg.mxu0
        %v1130 = vld [vmem:[%s614] sm:$0xff]
        %v1131 = vld [vmem:[%s614 + $0x8] sm:$0xff]
        %v1132 = vld [vmem:[%s614 + $0x10] sm:$0xff]
        %v1133 = vld [vmem:[%s614 + $0x18] sm:$0xff]
        %v1134 = vld [vmem:[%s614 + $0x20] sm:$0xff]
        %v1135 = vld [vmem:[%s614 + $0x28] sm:$0xff]
        %v1136 = vld [vmem:[%s614 + $0x30] sm:$0xff]
        %v1137 = vld [vmem:[%s614 + $0x38] sm:$0xff]
        %v1138 = vld [vmem:[%s614 + $0x40] sm:$0xff]
        %v1139 = vld [vmem:[%s614 + $0x48] sm:$0xff]
        %v1140 = vld [vmem:[%s614 + $0x50] sm:$0xff]
        %v1141 = vld [vmem:[%s614 + $0x58] sm:$0xff]
        %v1142 = vld [vmem:[%s614 + $0x60] sm:$0xff]
        %v1143 = vld [vmem:[%s614 + $0x68] sm:$0xff]
        %v1144 = vld [vmem:[%s614 + $0x70] sm:$0xff]
        %v1145 = vld [vmem:[%s614 + $0x78] sm:$0xff]
        %v1146 = vld [vmem:[%s623] sm:$0xff]
        %v1147 = vld [vmem:[%s623 + $0x8] sm:$0xff]
        %v1148 = vld [vmem:[%s623 + $0x10] sm:$0xff]
        %v1149 = vld [vmem:[%s623 + $0x18] sm:$0xff]
        %v1150 = vld [vmem:[%s623 + $0x20] sm:$0xff]
        %v1151 = vld [vmem:[%s623 + $0x28] sm:$0xff]
        %v1152 = vld [vmem:[%s623 + $0x30] sm:$0xff]
        %v1153 = vld [vmem:[%s623 + $0x38] sm:$0xff]
        %v1154 = vld [vmem:[%s623 + $0x40] sm:$0xff]
        %v1155 = vld [vmem:[%s623 + $0x48] sm:$0xff]
        %v1156 = vld [vmem:[%s623 + $0x50] sm:$0xff]
        %v1157 = vld [vmem:[%s623 + $0x58] sm:$0xff]
        %v1158 = vld [vmem:[%s623 + $0x60] sm:$0xff]
        %v1159 = vld [vmem:[%s623 + $0x68] sm:$0xff]
        %v1160 = vld [vmem:[%s623 + $0x70] sm:$0xff]
        %v1161 = vld [vmem:[%s623 + $0x78] sm:$0xff]
        %v1162 = vld [vmem:[%s632] sm:$0xff]
        %v1163 = vld [vmem:[%s632 + $0x8] sm:$0xff]
        %v1164 = vld [vmem:[%s632 + $0x10] sm:$0xff]
        %v1165 = vld [vmem:[%s632 + $0x18] sm:$0xff]
        %v1166 = vld [vmem:[%s632 + $0x20] sm:$0xff]
        %v1167 = vld [vmem:[%s632 + $0x28] sm:$0xff]
        %v1168 = vld [vmem:[%s632 + $0x30] sm:$0xff]
        %v1169 = vld [vmem:[%s632 + $0x38] sm:$0xff]
        %v1170 = vld [vmem:[%s632 + $0x40] sm:$0xff]
        %v1171 = vld [vmem:[%s632 + $0x48] sm:$0xff]
        %v1172 = vld [vmem:[%s632 + $0x50] sm:$0xff]
        %v1173 = vld [vmem:[%s632 + $0x58] sm:$0xff]
        %v1174 = vld [vmem:[%s632 + $0x60] sm:$0xff]
        %v1175 = vld [vmem:[%s632 + $0x68] sm:$0xff]
        %v1176 = vld [vmem:[%s632 + $0x70] sm:$0xff]
        %v1177 = vld [vmem:[%s632 + $0x78] sm:$0xff]
        %v1178 = vld [vmem:[%s641] sm:$0xff]
        %v1179 = vld [vmem:[%s641 + $0x8] sm:$0xff]
        %v1180 = vld [vmem:[%s641 + $0x10] sm:$0xff]
        %v1181 = vld [vmem:[%s641 + $0x18] sm:$0xff]
        %v1182 = vld [vmem:[%s641 + $0x20] sm:$0xff]
        %v1183 = vld [vmem:[%s641 + $0x28] sm:$0xff]
        %v1184 = vld [vmem:[%s641 + $0x30] sm:$0xff]
        %v1185 = vld [vmem:[%s641 + $0x38] sm:$0xff]
        %v1186 = vld [vmem:[%s641 + $0x40] sm:$0xff]
        %v1187 = vld [vmem:[%s641 + $0x48] sm:$0xff]
        %v1188 = vld [vmem:[%s641 + $0x50] sm:$0xff]
        %v1189 = vld [vmem:[%s641 + $0x58] sm:$0xff]
        %v1190 = vld [vmem:[%s641 + $0x60] sm:$0xff]
        %v1191 = vld [vmem:[%s641 + $0x68] sm:$0xff]
        %v1192 = vld [vmem:[%s641 + $0x70] sm:$0xff]
        %v1193 = vld [vmem:[%s641 + $0x78] sm:$0xff]
        %v1194 = vld [vmem:[#allocation16] sm:$0x1]
        %v1195 = vld [vmem:[#allocation17] sm:$0x1]
        %v1196 = vmul.f32 %v1052, %v1052
        %v1197 = vmul.f32 %v1057, %v1057
        %v1198 = vmul.f32 %v1062, %v1062
        %v1199 = vmul.f32 %v1067, %v1067
        %v1200 = vmul.f32 %v1072, %v1072
        %v1201 = vmul.f32 %v1077, %v1077
        %v1202 = vmul.f32 %v1082, %v1082
        %v1203 = vmul.f32 %v1087, %v1087
        %v1204 = vmul.f32 %v1092, %v1092
        %v1205 = vmul.f32 %v1097, %v1097
        %v1206 = vmul.f32 %v1102, %v1102
        %v1207 = vmul.f32 %v1107, %v1107
        %v1208 = vmul.f32 %v1112, %v1112
        %v1209 = vmul.f32 %v1117, %v1117
        %v1210 = vmul.f32 %v1122, %v1122
        %v1211 = vmul.f32 %v1127, %v1127
        %vm1212 = vcmask 130048
        %v1213 = vsel %vm1212, %v1196, 0.0
        %1214 = vadd.xlane.f32.xlu0 %v1213
        %v1215 = vpop.xlane.xlu0 %1214
        %v1216 = vsel %vm1212, %v1197, 0.0
        %1217 = vadd.xlane.f32.xlu0 %v1216
        %v1218 = vpop.xlane.xlu0 %1217
        %v1219 = vsel %vm1212, %v1198, 0.0
        %1220 = vadd.xlane.f32.xlu0 %v1219
        %v1221 = vpop.xlane.xlu0 %1220
        %v1222 = vsel %vm1212, %v1199, 0.0
        %1223 = vadd.xlane.f32.xlu0 %v1222
        %v1224 = vpop.xlane.xlu0 %1223
        %v1225 = vsel %vm1212, %v1200, 0.0
        %1226 = vadd.xlane.f32.xlu0 %v1225
        %v1227 = vpop.xlane.xlu0 %1226
        %v1228 = vsel %vm1212, %v1201, 0.0
        %1229 = vadd.xlane.f32.xlu0 %v1228
        %v1230 = vpop.xlane.xlu0 %1229
        %v1231 = vsel %vm1212, %v1202, 0.0
        %1232 = vadd.xlane.f32.xlu0 %v1231
        %v1233 = vpop.xlane.xlu0 %1232
        %v1234 = vsel %vm1212, %v1203, 0.0
        %1235 = vadd.xlane.f32.xlu0 %v1234
        %v1236 = vpop.xlane.xlu0 %1235
        %v1237 = vsel %vm1212, %v1204, 0.0
        %1238 = vadd.xlane.f32.xlu0 %v1237
        %v1239 = vpop.xlane.xlu0 %1238
        %v1240 = vsel %vm1212, %v1205, 0.0
        %1241 = vadd.xlane.f32.xlu0 %v1240
        %v1242 = vpop.xlane.xlu0 %1241
        %v1243 = vsel %vm1212, %v1206, 0.0
        %1244 = vadd.xlane.f32.xlu0 %v1243
        %v1245 = vpop.xlane.xlu0 %1244
        %v1246 = vsel %vm1212, %v1207, 0.0
        %1247 = vadd.xlane.f32.xlu0 %v1246
        %v1248 = vpop.xlane.xlu0 %1247
        %v1249 = vsel %vm1212, %v1208, 0.0
        %1250 = vadd.xlane.f32.xlu0 %v1249
        %v1251 = vpop.xlane.xlu0 %1250
        %v1252 = vsel %vm1212, %v1209, 0.0
        %1253 = vadd.xlane.f32.xlu0 %v1252
        %v1254 = vpop.xlane.xlu0 %1253
        %v1255 = vsel %vm1212, %v1210, 0.0
        %1256 = vadd.xlane.f32.xlu0 %v1255
        %v1257 = vpop.xlane.xlu0 %1256
        %v1258 = vsel %vm1212, %v1211, 0.0
        %1259 = vadd.xlane.f32.xlu0 %v1258
        %v1260 = vpop.xlane.xlu0 %1259
        %v1261 = vrcp.pop 16.0
        %v1262 = vmul.f32 %v1215, %v1261
        %v1263 = vmul.f32 %v1218, %v1261
        %v1264 = vmul.f32 %v1221, %v1261
        %v1265 = vmul.f32 %v1224, %v1261
        %v1266 = vmul.f32 %v1227, %v1261
        %v1267 = vmul.f32 %v1230, %v1261
        %v1268 = vmul.f32 %v1233, %v1261
        %v1269 = vmul.f32 %v1236, %v1261
        %v1270 = vmul.f32 %v1239, %v1261
        %v1271 = vmul.f32 %v1242, %v1261
        %v1272 = vmul.f32 %v1245, %v1261
        %v1273 = vmul.f32 %v1248, %v1261
        %v1274 = vmul.f32 %v1251, %v1261
        %v1275 = vmul.f32 %v1254, %v1261
        %v1276 = vmul.f32 %v1257, %v1261
        %v1277 = vmul.f32 %v1260, %v1261
        %v1278 = vadd.f32 %v1262, 1e-05
        %v1279 = vadd.f32 %v1263, 1e-05
        %v1280 = vadd.f32 %v1264, 1e-05
        %v1281 = vadd.f32 %v1265, 1e-05
        %v1282 = vadd.f32 %v1266, 1e-05
        %v1283 = vadd.f32 %v1267, 1e-05
        %v1284 = vadd.f32 %v1268, 1e-05
        %v1285 = vadd.f32 %v1269, 1e-05
        %v1286 = vadd.f32 %v1270, 1e-05
        %v1287 = vadd.f32 %v1271, 1e-05
        %v1288 = vadd.f32 %v1272, 1e-05
        %v1289 = vadd.f32 %v1273, 1e-05
        %v1290 = vadd.f32 %v1274, 1e-05
        %v1291 = vadd.f32 %v1275, 1e-05
        %v1292 = vadd.f32 %v1276, 1e-05
        %v1293 = vadd.f32 %v1277, 1e-05
        %v1294 = vrsqrt.pop %v1278
        %v1295 = vrsqrt.pop %v1279
        %v1296 = vrsqrt.pop %v1280
        %v1297 = vrsqrt.pop %v1281
        %v1298 = vrsqrt.pop %v1282
        %v1299 = vrsqrt.pop %v1283
        %v1300 = vrsqrt.pop %v1284
        %v1301 = vrsqrt.pop %v1285
        %v1302 = vrsqrt.pop %v1286
        %v1303 = vrsqrt.pop %v1287
        %v1304 = vrsqrt.pop %v1288
        %v1305 = vrsqrt.pop %v1289
        %v1306 = vrsqrt.pop %v1290
        %v1307 = vrsqrt.pop %v1291
        %v1308 = vrsqrt.pop %v1292
        %v1309 = vrsqrt.pop %v1293
        %v1310 = vmul.f32 %v1052, %v1294
        %v1311 = vmul.f32 %v1057, %v1295
        %v1312 = vmul.f32 %v1062, %v1296
        %v1313 = vmul.f32 %v1067, %v1297
        %v1314 = vmul.f32 %v1072, %v1298
        %v1315 = vmul.f32 %v1077, %v1299
        %v1316 = vmul.f32 %v1082, %v1300
        %v1317 = vmul.f32 %v1087, %v1301
        %v1318 = vmul.f32 %v1092, %v1302
        %v1319 = vmul.f32 %v1097, %v1303
        %v1320 = vmul.f32 %v1102, %v1304
        %v1321 = vmul.f32 %v1107, %v1305
        %v1322 = vmul.f32 %v1112, %v1306
        %v1323 = vmul.f32 %v1117, %v1307
        %v1324 = vmul.f32 %v1122, %v1308
        %v1325 = vmul.f32 %v1127, %v1309
        %v1327 = vlaneseq
        %v1328 = vshrl.u32 %v1327, 7
        %v1329 = vsub.s32 0, %v1328
        %v1330 = vrot.slane %v1194, %v1329
        %v1332 = vmul.f32 %v1310, %v1330
        %v1333 = vmul.f32 %v1311, %v1330
        %v1334 = vmul.f32 %v1312, %v1330
        %v1335 = vmul.f32 %v1313, %v1330
        %v1336 = vmul.f32 %v1314, %v1330
        %v1337 = vmul.f32 %v1315, %v1330
        %v1338 = vmul.f32 %v1316, %v1330
        %v1339 = vmul.f32 %v1317, %v1330
        %v1340 = vmul.f32 %v1318, %v1330
        %v1341 = vmul.f32 %v1319, %v1330
        %v1342 = vmul.f32 %v1320, %v1330
        %v1343 = vmul.f32 %v1321, %v1330
        %v1344 = vmul.f32 %v1322, %v1330
        %v1345 = vmul.f32 %v1323, %v1330
        %v1346 = vmul.f32 %v1324, %v1330
        %v1347 = vmul.f32 %v1325, %v1330
        %v1348 = vmul.f32 %v1130, %v1332
        %v1349 = vmul.f32 %v1131, %v1333
        %v1350 = vmul.f32 %v1132, %v1334
        %v1351 = vmul.f32 %v1133, %v1335
        %v1352 = vmul.f32 %v1134, %v1336
        %v1353 = vmul.f32 %v1135, %v1337
        %v1354 = vmul.f32 %v1136, %v1338
        %v1355 = vmul.f32 %v1137, %v1339
        %v1356 = vmul.f32 %v1138, %v1340
        %v1357 = vmul.f32 %v1139, %v1341
        %v1358 = vmul.f32 %v1140, %v1342
        %v1359 = vmul.f32 %v1141, %v1343
        %v1360 = vmul.f32 %v1142, %v1344
        %v1361 = vmul.f32 %v1143, %v1345
        %v1362 = vmul.f32 %v1144, %v1346
        %v1363 = vmul.f32 %v1145, %v1347
        %1380 = vrot.lane.b32.xlu0 %v1332, 120
        %v1381 = vpop.permute.xlu0 %1380
        %1382 = vrot.lane.b32.xlu0 %v1333, 120
        %v1383 = vpop.permute.xlu0 %1382
        %1384 = vrot.lane.b32.xlu0 %v1334, 120
        %v1385 = vpop.permute.xlu0 %1384
        %1386 = vrot.lane.b32.xlu0 %v1335, 120
        %v1387 = vpop.permute.xlu0 %1386
        %1388 = vrot.lane.b32.xlu0 %v1336, 120
        %v1389 = vpop.permute.xlu0 %1388
        %1390 = vrot.lane.b32.xlu0 %v1337, 120
        %v1391 = vpop.permute.xlu0 %1390
        %1392 = vrot.lane.b32.xlu0 %v1338, 120
        %v1393 = vpop.permute.xlu0 %1392
        %1394 = vrot.lane.b32.xlu0 %v1339, 120
        %v1395 = vpop.permute.xlu0 %1394
        %1396 = vrot.lane.b32.xlu0 %v1340, 120
        %v1397 = vpop.permute.xlu0 %1396
        %1398 = vrot.lane.b32.xlu0 %v1341, 120
        %v1399 = vpop.permute.xlu0 %1398
        %1400 = vrot.lane.b32.xlu0 %v1342, 120
        %v1401 = vpop.permute.xlu0 %1400
        %1402 = vrot.lane.b32.xlu0 %v1343, 120
        %v1403 = vpop.permute.xlu0 %1402
        %1404 = vrot.lane.b32.xlu0 %v1344, 120
        %v1405 = vpop.permute.xlu0 %1404
        %1406 = vrot.lane.b32.xlu0 %v1345, 120
        %v1407 = vpop.permute.xlu0 %1406
        %1408 = vrot.lane.b32.xlu0 %v1346, 120
        %v1409 = vpop.permute.xlu0 %1408
        %1410 = vrot.lane.b32.xlu0 %v1347, 120
        %v1411 = vpop.permute.xlu0 %1410
        %v1428 = vmul.f32 %v1146, %v1381
        %v1429 = vmul.f32 %v1147, %v1383
        %v1430 = vmul.f32 %v1148, %v1385
        %v1431 = vmul.f32 %v1149, %v1387
        %v1432 = vmul.f32 %v1150, %v1389
        %v1433 = vmul.f32 %v1151, %v1391
        %v1434 = vmul.f32 %v1152, %v1393
        %v1435 = vmul.f32 %v1153, %v1395
        %v1436 = vmul.f32 %v1154, %v1397
        %v1437 = vmul.f32 %v1155, %v1399
        %v1438 = vmul.f32 %v1156, %v1401
        %v1439 = vmul.f32 %v1157, %v1403
        %v1440 = vmul.f32 %v1158, %v1405
        %v1441 = vmul.f32 %v1159, %v1407
        %v1442 = vmul.f32 %v1160, %v1409
        %v1443 = vmul.f32 %v1161, %v1411
        %v1444 = vadd.f32 %v1348, %v1428
        %v1445 = vadd.f32 %v1349, %v1429
        %v1446 = vadd.f32 %v1350, %v1430
        %v1447 = vadd.f32 %v1351, %v1431
        %v1448 = vadd.f32 %v1352, %v1432
        %v1449 = vadd.f32 %v1353, %v1433
        %v1450 = vadd.f32 %v1354, %v1434
        %v1451 = vadd.f32 %v1355, %v1435
        %v1452 = vadd.f32 %v1356, %v1436
        %v1453 = vadd.f32 %v1357, %v1437
        %v1454 = vadd.f32 %v1358, %v1438
        %v1455 = vadd.f32 %v1359, %v1439
        %v1456 = vadd.f32 %v1360, %v1440
        %v1457 = vadd.f32 %v1361, %v1441
        %v1458 = vadd.f32 %v1362, %v1442
        %v1459 = vadd.f32 %v1363, %v1443
        %v1460 = vmul.f32 %v1162, %v1332
        %v1461 = vmul.f32 %v1163, %v1333
        %v1462 = vmul.f32 %v1164, %v1334
        %v1463 = vmul.f32 %v1165, %v1335
        %v1464 = vmul.f32 %v1166, %v1336
        %v1465 = vmul.f32 %v1167, %v1337
        %v1466 = vmul.f32 %v1168, %v1338
        %v1467 = vmul.f32 %v1169, %v1339
        %v1468 = vmul.f32 %v1170, %v1340
        %v1469 = vmul.f32 %v1171, %v1341
        %v1470 = vmul.f32 %v1172, %v1342
        %v1471 = vmul.f32 %v1173, %v1343
        %v1472 = vmul.f32 %v1174, %v1344
        %v1473 = vmul.f32 %v1175, %v1345
        %v1474 = vmul.f32 %v1176, %v1346
        %v1475 = vmul.f32 %v1177, %v1347
        %v1476 = vmul.f32 %v1178, %v1381
        %v1477 = vmul.f32 %v1179, %v1383
        %v1478 = vmul.f32 %v1180, %v1385
        %v1479 = vmul.f32 %v1181, %v1387
        %v1480 = vmul.f32 %v1182, %v1389
        %v1481 = vmul.f32 %v1183, %v1391
        %v1482 = vmul.f32 %v1184, %v1393
        %v1483 = vmul.f32 %v1185, %v1395
        %v1484 = vmul.f32 %v1186, %v1397
        %v1485 = vmul.f32 %v1187, %v1399
        %v1486 = vmul.f32 %v1188, %v1401
        %v1487 = vmul.f32 %v1189, %v1403
        %v1488 = vmul.f32 %v1190, %v1405
        %v1489 = vmul.f32 %v1191, %v1407
        %v1490 = vmul.f32 %v1192, %v1409
        %v1491 = vmul.f32 %v1193, %v1411
        %v1492 = vadd.f32 %v1460, %v1476
        %v1493 = vadd.f32 %v1461, %v1477
        %v1494 = vadd.f32 %v1462, %v1478
        %v1495 = vadd.f32 %v1463, %v1479
        %v1496 = vadd.f32 %v1464, %v1480
        %v1497 = vadd.f32 %v1465, %v1481
        %v1498 = vadd.f32 %v1466, %v1482
        %v1499 = vadd.f32 %v1467, %v1483
        %v1500 = vadd.f32 %v1468, %v1484
        %v1501 = vadd.f32 %v1469, %v1485
        %v1502 = vadd.f32 %v1470, %v1486
        %v1503 = vadd.f32 %v1471, %v1487
        %v1504 = vadd.f32 %v1472, %v1488
        %v1505 = vadd.f32 %v1473, %v1489
        %v1506 = vadd.f32 %v1474, %v1490
        %v1507 = vadd.f32 %v1475, %v1491
        %vm1508 = vcmask 64512
        %1509 = vst.msk [vmem:[%s713] sm:$0xff] %vm1508, %v1444
        %1510 = vst.msk [vmem:[%s713 + $0x8] sm:$0xff] %vm1508, %v1445
        %1511 = vst.msk [vmem:[%s713 + $0x10] sm:$0xff] %vm1508, %v1446
        %1512 = vst.msk [vmem:[%s713 + $0x18] sm:$0xff] %vm1508, %v1447
        %1513 = vst.msk [vmem:[%s713 + $0x20] sm:$0xff] %vm1508, %v1448
        %1514 = vst.msk [vmem:[%s713 + $0x28] sm:$0xff] %vm1508, %v1449
        %1515 = vst.msk [vmem:[%s713 + $0x30] sm:$0xff] %vm1508, %v1450
        %1516 = vst.msk [vmem:[%s713 + $0x38] sm:$0xff] %vm1508, %v1451
        %1517 = vst.msk [vmem:[%s713 + $0x40] sm:$0xff] %vm1508, %v1452
        %1518 = vst.msk [vmem:[%s713 + $0x48] sm:$0xff] %vm1508, %v1453
        %1519 = vst.msk [vmem:[%s713 + $0x50] sm:$0xff] %vm1508, %v1454
        %1520 = vst.msk [vmem:[%s713 + $0x58] sm:$0xff] %vm1508, %v1455
        %1521 = vst.msk [vmem:[%s713 + $0x60] sm:$0xff] %vm1508, %v1456
        %1522 = vst.msk [vmem:[%s713 + $0x68] sm:$0xff] %vm1508, %v1457
        %1523 = vst.msk [vmem:[%s713 + $0x70] sm:$0xff] %vm1508, %v1458
        %1524 = vst.msk [vmem:[%s713 + $0x78] sm:$0xff] %vm1508, %v1459
        %1541 = vrot.lane.b32.xlu0 %v1492, 8
        %v1542 = vpop.permute.xlu0 %1541
        %1543 = vrot.lane.b32.xlu0 %v1493, 8
        %v1544 = vpop.permute.xlu0 %1543
        %1545 = vrot.lane.b32.xlu0 %v1494, 8
        %v1546 = vpop.permute.xlu0 %1545
        %1547 = vrot.lane.b32.xlu0 %v1495, 8
        %v1548 = vpop.permute.xlu0 %1547
        %1549 = vrot.lane.b32.xlu0 %v1496, 8
        %v1550 = vpop.permute.xlu0 %1549
        %1551 = vrot.lane.b32.xlu0 %v1497, 8
        %v1552 = vpop.permute.xlu0 %1551
        %1553 = vrot.lane.b32.xlu0 %v1498, 8
        %v1554 = vpop.permute.xlu0 %1553
        %1555 = vrot.lane.b32.xlu0 %v1499, 8
        %v1556 = vpop.permute.xlu0 %1555
        %1557 = vrot.lane.b32.xlu0 %v1500, 8
        %v1558 = vpop.permute.xlu0 %1557
        %1559 = vrot.lane.b32.xlu0 %v1501, 8
        %v1560 = vpop.permute.xlu0 %1559
        %1561 = vrot.lane.b32.xlu0 %v1502, 8
        %v1562 = vpop.permute.xlu0 %1561
        %1563 = vrot.lane.b32.xlu0 %v1503, 8
        %v1564 = vpop.permute.xlu0 %1563
        %1565 = vrot.lane.b32.xlu0 %v1504, 8
        %v1566 = vpop.permute.xlu0 %1565
        %1567 = vrot.lane.b32.xlu0 %v1505, 8
        %v1568 = vpop.permute.xlu0 %1567
        %1569 = vrot.lane.b32.xlu0 %v1506, 8
        %v1570 = vpop.permute.xlu0 %1569
        %1571 = vrot.lane.b32.xlu0 %v1507, 8
        %v1572 = vpop.permute.xlu0 %1571
        %vm1589 = vcmask 130112
        %1590 = vst.msk [vmem:[%s713] sm:$0xff] %vm1589, %v1542
        %1591 = vst.msk [vmem:[%s713 + $0x8] sm:$0xff] %vm1589, %v1544
        %1592 = vst.msk [vmem:[%s713 + $0x10] sm:$0xff] %vm1589, %v1546
        %1593 = vst.msk [vmem:[%s713 + $0x18] sm:$0xff] %vm1589, %v1548
        %1594 = vst.msk [vmem:[%s713 + $0x20] sm:$0xff] %vm1589, %v1550
        %1595 = vst.msk [vmem:[%s713 + $0x28] sm:$0xff] %vm1589, %v1552
        %1596 = vst.msk [vmem:[%s713 + $0x30] sm:$0xff] %vm1589, %v1554
        %1597 = vst.msk [vmem:[%s713 + $0x38] sm:$0xff] %vm1589, %v1556
        %1598 = vst.msk [vmem:[%s713 + $0x40] sm:$0xff] %vm1589, %v1558
        %1599 = vst.msk [vmem:[%s713 + $0x48] sm:$0xff] %vm1589, %v1560
        %1600 = vst.msk [vmem:[%s713 + $0x50] sm:$0xff] %vm1589, %v1562
        %1601 = vst.msk [vmem:[%s713 + $0x58] sm:$0xff] %vm1589, %v1564
        %1602 = vst.msk [vmem:[%s713 + $0x60] sm:$0xff] %vm1589, %v1566
        %1603 = vst.msk [vmem:[%s713 + $0x68] sm:$0xff] %vm1589, %v1568
        %1604 = vst.msk [vmem:[%s713 + $0x70] sm:$0xff] %vm1589, %v1570
        %1605 = vst.msk [vmem:[%s713 + $0x78] sm:$0xff] %vm1589, %v1572
        %1622 = vrot.lane.b32.xlu0 %v1196, 112
        %v1623 = vpop.permute.xlu0 %1622
        %1624 = vrot.lane.b32.xlu0 %v1197, 112
        %v1625 = vpop.permute.xlu0 %1624
        %1626 = vrot.lane.b32.xlu0 %v1198, 112
        %v1627 = vpop.permute.xlu0 %1626
        %1628 = vrot.lane.b32.xlu0 %v1199, 112
        %v1629 = vpop.permute.xlu0 %1628
        %1630 = vrot.lane.b32.xlu0 %v1200, 112
        %v1631 = vpop.permute.xlu0 %1630
        %1632 = vrot.lane.b32.xlu0 %v1201, 112
        %v1633 = vpop.permute.xlu0 %1632
        %1634 = vrot.lane.b32.xlu0 %v1202, 112
        %v1635 = vpop.permute.xlu0 %1634
        %1636 = vrot.lane.b32.xlu0 %v1203, 112
        %v1637 = vpop.permute.xlu0 %1636
        %1638 = vrot.lane.b32.xlu0 %v1204, 112
        %v1639 = vpop.permute.xlu0 %1638
        %1640 = vrot.lane.b32.xlu0 %v1205, 112
        %v1641 = vpop.permute.xlu0 %1640
        %1642 = vrot.lane.b32.xlu0 %v1206, 112
        %v1643 = vpop.permute.xlu0 %1642
        %1644 = vrot.lane.b32.xlu0 %v1207, 112
        %v1645 = vpop.permute.xlu0 %1644
        %1646 = vrot.lane.b32.xlu0 %v1208, 112
        %v1647 = vpop.permute.xlu0 %1646
        %1648 = vrot.lane.b32.xlu0 %v1209, 112
        %v1649 = vpop.permute.xlu0 %1648
        %1650 = vrot.lane.b32.xlu0 %v1210, 112
        %v1651 = vpop.permute.xlu0 %1650
        %1652 = vrot.lane.b32.xlu0 %v1211, 112
        %v1653 = vpop.permute.xlu0 %1652
        %v1670 = vsel %vm1212, %v1623, 0.0
        %1671 = vadd.xlane.f32.xlu0 %v1670
        %v1672 = vpop.xlane.xlu0 %1671
        %v1673 = vsel %vm1212, %v1625, 0.0
        %1674 = vadd.xlane.f32.xlu0 %v1673
        %v1675 = vpop.xlane.xlu0 %1674
        %v1676 = vsel %vm1212, %v1627, 0.0
        %1677 = vadd.xlane.f32.xlu0 %v1676
        %v1678 = vpop.xlane.xlu0 %1677
        %v1679 = vsel %vm1212, %v1629, 0.0
        %1680 = vadd.xlane.f32.xlu0 %v1679
        %v1681 = vpop.xlane.xlu0 %1680
        %v1682 = vsel %vm1212, %v1631, 0.0
        %1683 = vadd.xlane.f32.xlu0 %v1682
        %v1684 = vpop.xlane.xlu0 %1683
        %v1685 = vsel %vm1212, %v1633, 0.0
        %1686 = vadd.xlane.f32.xlu0 %v1685
        %v1687 = vpop.xlane.xlu0 %1686
        %v1688 = vsel %vm1212, %v1635, 0.0
        %1689 = vadd.xlane.f32.xlu0 %v1688
        %v1690 = vpop.xlane.xlu0 %1689
        %v1691 = vsel %vm1212, %v1637, 0.0
        %1692 = vadd.xlane.f32.xlu0 %v1691
        %v1693 = vpop.xlane.xlu0 %1692
        %v1694 = vsel %vm1212, %v1639, 0.0
        %1695 = vadd.xlane.f32.xlu0 %v1694
        %v1696 = vpop.xlane.xlu0 %1695
        %v1697 = vsel %vm1212, %v1641, 0.0
        %1698 = vadd.xlane.f32.xlu0 %v1697
        %v1699 = vpop.xlane.xlu0 %1698
        %v1700 = vsel %vm1212, %v1643, 0.0
        %1701 = vadd.xlane.f32.xlu0 %v1700
        %v1702 = vpop.xlane.xlu0 %1701
        %v1703 = vsel %vm1212, %v1645, 0.0
        %1704 = vadd.xlane.f32.xlu0 %v1703
        %v1705 = vpop.xlane.xlu0 %1704
        %v1706 = vsel %vm1212, %v1647, 0.0
        %1707 = vadd.xlane.f32.xlu0 %v1706
        %v1708 = vpop.xlane.xlu0 %1707
        %v1709 = vsel %vm1212, %v1649, 0.0
        %1710 = vadd.xlane.f32.xlu0 %v1709
        %v1711 = vpop.xlane.xlu0 %1710
        %v1712 = vsel %vm1212, %v1651, 0.0
        %1713 = vadd.xlane.f32.xlu0 %v1712
        %v1714 = vpop.xlane.xlu0 %1713
        %v1715 = vsel %vm1212, %v1653, 0.0
        %1716 = vadd.xlane.f32.xlu0 %v1715
        %v1717 = vpop.xlane.xlu0 %1716
        %v1718 = vmul.f32 %v1672, %v1261
        %v1719 = vmul.f32 %v1675, %v1261
        %v1720 = vmul.f32 %v1678, %v1261
        %v1721 = vmul.f32 %v1681, %v1261
        %v1722 = vmul.f32 %v1684, %v1261
        %v1723 = vmul.f32 %v1687, %v1261
        %v1724 = vmul.f32 %v1690, %v1261
        %v1725 = vmul.f32 %v1693, %v1261
        %v1726 = vmul.f32 %v1696, %v1261
        %v1727 = vmul.f32 %v1699, %v1261
        %v1728 = vmul.f32 %v1702, %v1261
        %v1729 = vmul.f32 %v1705, %v1261
        %v1730 = vmul.f32 %v1708, %v1261
        %v1731 = vmul.f32 %v1711, %v1261
        %v1732 = vmul.f32 %v1714, %v1261
        %v1733 = vmul.f32 %v1717, %v1261
        %v1734 = vadd.f32 %v1718, 1e-05
        %v1735 = vadd.f32 %v1719, 1e-05
        %v1736 = vadd.f32 %v1720, 1e-05
        %v1737 = vadd.f32 %v1721, 1e-05
        %v1738 = vadd.f32 %v1722, 1e-05
        %v1739 = vadd.f32 %v1723, 1e-05
        %v1740 = vadd.f32 %v1724, 1e-05
        %v1741 = vadd.f32 %v1725, 1e-05
        %v1742 = vadd.f32 %v1726, 1e-05
        %v1743 = vadd.f32 %v1727, 1e-05
        %v1744 = vadd.f32 %v1728, 1e-05
        %v1745 = vadd.f32 %v1729, 1e-05
        %v1746 = vadd.f32 %v1730, 1e-05
        %v1747 = vadd.f32 %v1731, 1e-05
        %v1748 = vadd.f32 %v1732, 1e-05
        %v1749 = vadd.f32 %v1733, 1e-05
        %v1750 = vrsqrt.pop %v1734
        %v1751 = vrsqrt.pop %v1735
        %v1752 = vrsqrt.pop %v1736
        %v1753 = vrsqrt.pop %v1737
        %v1754 = vrsqrt.pop %v1738
        %v1755 = vrsqrt.pop %v1739
        %v1756 = vrsqrt.pop %v1740
        %v1757 = vrsqrt.pop %v1741
        %v1758 = vrsqrt.pop %v1742
        %v1759 = vrsqrt.pop %v1743
        %v1760 = vrsqrt.pop %v1744
        %v1761 = vrsqrt.pop %v1745
        %v1762 = vrsqrt.pop %v1746
        %v1763 = vrsqrt.pop %v1747
        %v1764 = vrsqrt.pop %v1748
        %v1765 = vrsqrt.pop %v1749
        %v1766 = vmul.f32 %v1052, %v1750
        %v1767 = vmul.f32 %v1057, %v1751
        %v1768 = vmul.f32 %v1062, %v1752
        %v1769 = vmul.f32 %v1067, %v1753
        %v1770 = vmul.f32 %v1072, %v1754
        %v1771 = vmul.f32 %v1077, %v1755
        %v1772 = vmul.f32 %v1082, %v1756
        %v1773 = vmul.f32 %v1087, %v1757
        %v1774 = vmul.f32 %v1092, %v1758
        %v1775 = vmul.f32 %v1097, %v1759
        %v1776 = vmul.f32 %v1102, %v1760
        %v1777 = vmul.f32 %v1107, %v1761
        %v1778 = vmul.f32 %v1112, %v1762
        %v1779 = vmul.f32 %v1117, %v1763
        %v1780 = vmul.f32 %v1122, %v1764
        %v1781 = vmul.f32 %v1127, %v1765
        %1782 = vrot.lane.b32.xlu0 %v1330, 16
        %v1783 = vpop.permute.xlu0 %1782
        %v1785 = vmul.f32 %v1766, %v1783
        %v1786 = vmul.f32 %v1767, %v1783
        %v1787 = vmul.f32 %v1768, %v1783
        %v1788 = vmul.f32 %v1769, %v1783
        %v1789 = vmul.f32 %v1770, %v1783
        %v1790 = vmul.f32 %v1771, %v1783
        %v1791 = vmul.f32 %v1772, %v1783
        %v1792 = vmul.f32 %v1773, %v1783
        %v1793 = vmul.f32 %v1774, %v1783
        %v1794 = vmul.f32 %v1775, %v1783
        %v1795 = vmul.f32 %v1776, %v1783
        %v1796 = vmul.f32 %v1777, %v1783
        %v1797 = vmul.f32 %v1778, %v1783
        %v1798 = vmul.f32 %v1779, %v1783
        %v1799 = vmul.f32 %v1780, %v1783
        %v1800 = vmul.f32 %v1781, %v1783
        %1817 = vrot.lane.b32.xlu0 %v1785, 112
        %v1818 = vpop.permute.xlu0 %1817
        %1819 = vrot.lane.b32.xlu0 %v1786, 112
        %v1820 = vpop.permute.xlu0 %1819
        %1821 = vrot.lane.b32.xlu0 %v1787, 112
        %v1822 = vpop.permute.xlu0 %1821
        %1823 = vrot.lane.b32.xlu0 %v1788, 112
        %v1824 = vpop.permute.xlu0 %1823
        %1825 = vrot.lane.b32.xlu0 %v1789, 112
        %v1826 = vpop.permute.xlu0 %1825
        %1827 = vrot.lane.b32.xlu0 %v1790, 112
        %v1828 = vpop.permute.xlu0 %1827
        %1829 = vrot.lane.b32.xlu0 %v1791, 112
        %v1830 = vpop.permute.xlu0 %1829
        %1831 = vrot.lane.b32.xlu0 %v1792, 112
        %v1832 = vpop.permute.xlu0 %1831
        %1833 = vrot.lane.b32.xlu0 %v1793, 112
        %v1834 = vpop.permute.xlu0 %1833
        %1835 = vrot.lane.b32.xlu0 %v1794, 112
        %v1836 = vpop.permute.xlu0 %1835
        %1837 = vrot.lane.b32.xlu0 %v1795, 112
        %v1838 = vpop.permute.xlu0 %1837
        %1839 = vrot.lane.b32.xlu0 %v1796, 112
        %v1840 = vpop.permute.xlu0 %1839
        %1841 = vrot.lane.b32.xlu0 %v1797, 112
        %v1842 = vpop.permute.xlu0 %1841
        %1843 = vrot.lane.b32.xlu0 %v1798, 112
        %v1844 = vpop.permute.xlu0 %1843
        %1845 = vrot.lane.b32.xlu0 %v1799, 112
        %v1846 = vpop.permute.xlu0 %1845
        %1847 = vrot.lane.b32.xlu0 %v1800, 112
        %v1848 = vpop.permute.xlu0 %1847
        %v1865 = vmul.f32 %v1130, %v1818
        %v1866 = vmul.f32 %v1131, %v1820
        %v1867 = vmul.f32 %v1132, %v1822
        %v1868 = vmul.f32 %v1133, %v1824
        %v1869 = vmul.f32 %v1134, %v1826
        %v1870 = vmul.f32 %v1135, %v1828
        %v1871 = vmul.f32 %v1136, %v1830
        %v1872 = vmul.f32 %v1137, %v1832
        %v1873 = vmul.f32 %v1138, %v1834
        %v1874 = vmul.f32 %v1139, %v1836
        %v1875 = vmul.f32 %v1140, %v1838
        %v1876 = vmul.f32 %v1141, %v1840
        %v1877 = vmul.f32 %v1142, %v1842
        %v1878 = vmul.f32 %v1143, %v1844
        %v1879 = vmul.f32 %v1144, %v1846
        %v1880 = vmul.f32 %v1145, %v1848
        %1881 = vrot.lane.b32.xlu0 %v1785, 104
        %v1882 = vpop.permute.xlu0 %1881
        %1883 = vrot.lane.b32.xlu0 %v1786, 104
        %v1884 = vpop.permute.xlu0 %1883
        %1885 = vrot.lane.b32.xlu0 %v1787, 104
        %v1886 = vpop.permute.xlu0 %1885
        %1887 = vrot.lane.b32.xlu0 %v1788, 104
        %v1888 = vpop.permute.xlu0 %1887
        %1889 = vrot.lane.b32.xlu0 %v1789, 104
        %v1890 = vpop.permute.xlu0 %1889
        %1891 = vrot.lane.b32.xlu0 %v1790, 104
        %v1892 = vpop.permute.xlu0 %1891
        %1893 = vrot.lane.b32.xlu0 %v1791, 104
        %v1894 = vpop.permute.xlu0 %1893
        %1895 = vrot.lane.b32.xlu0 %v1792, 104
        %v1896 = vpop.permute.xlu0 %1895
        %1897 = vrot.lane.b32.xlu0 %v1793, 104
        %v1898 = vpop.permute.xlu0 %1897
        %1899 = vrot.lane.b32.xlu0 %v1794, 104
        %v1900 = vpop.permute.xlu0 %1899
        %1901 = vrot.lane.b32.xlu0 %v1795, 104
        %v1902 = vpop.permute.xlu0 %1901
        %1903 = vrot.lane.b32.xlu0 %v1796, 104
        %v1904 = vpop.permute.xlu0 %1903
        %1905 = vrot.lane.b32.xlu0 %v1797, 104
        %v1906 = vpop.permute.xlu0 %1905
        %1907 = vrot.lane.b32.xlu0 %v1798, 104
        %v1908 = vpop.permute.xlu0 %1907
        %1909 = vrot.lane.b32.xlu0 %v1799, 104
        %v1910 = vpop.permute.xlu0 %1909
        %1911 = vrot.lane.b32.xlu0 %v1800, 104
        %v1912 = vpop.permute.xlu0 %1911
        %v1929 = vmul.f32 %v1146, %v1882
        %v1930 = vmul.f32 %v1147, %v1884
        %v1931 = vmul.f32 %v1148, %v1886
        %v1932 = vmul.f32 %v1149, %v1888
        %v1933 = vmul.f32 %v1150, %v1890
        %v1934 = vmul.f32 %v1151, %v1892
        %v1935 = vmul.f32 %v1152, %v1894
        %v1936 = vmul.f32 %v1153, %v1896
        %v1937 = vmul.f32 %v1154, %v1898
        %v1938 = vmul.f32 %v1155, %v1900
        %v1939 = vmul.f32 %v1156, %v1902
        %v1940 = vmul.f32 %v1157, %v1904
        %v1941 = vmul.f32 %v1158, %v1906
        %v1942 = vmul.f32 %v1159, %v1908
        %v1943 = vmul.f32 %v1160, %v1910
        %v1944 = vmul.f32 %v1161, %v1912
        %v1945 = vadd.f32 %v1865, %v1929
        %v1946 = vadd.f32 %v1866, %v1930
        %v1947 = vadd.f32 %v1867, %v1931
        %v1948 = vadd.f32 %v1868, %v1932
        %v1949 = vadd.f32 %v1869, %v1933
        %v1950 = vadd.f32 %v1870, %v1934
        %v1951 = vadd.f32 %v1871, %v1935
        %v1952 = vadd.f32 %v1872, %v1936
        %v1953 = vadd.f32 %v1873, %v1937
        %v1954 = vadd.f32 %v1874, %v1938
        %v1955 = vadd.f32 %v1875, %v1939
        %v1956 = vadd.f32 %v1876, %v1940
        %v1957 = vadd.f32 %v1877, %v1941
        %v1958 = vadd.f32 %v1878, %v1942
        %v1959 = vadd.f32 %v1879, %v1943
        %v1960 = vadd.f32 %v1880, %v1944
        %v1961 = vmul.f32 %v1162, %v1818
        %v1962 = vmul.f32 %v1163, %v1820
        %v1963 = vmul.f32 %v1164, %v1822
        %v1964 = vmul.f32 %v1165, %v1824
        %v1965 = vmul.f32 %v1166, %v1826
        %v1966 = vmul.f32 %v1167, %v1828
        %v1967 = vmul.f32 %v1168, %v1830
        %v1968 = vmul.f32 %v1169, %v1832
        %v1969 = vmul.f32 %v1170, %v1834
        %v1970 = vmul.f32 %v1171, %v1836
        %v1971 = vmul.f32 %v1172, %v1838
        %v1972 = vmul.f32 %v1173, %v1840
        %v1973 = vmul.f32 %v1174, %v1842
        %v1974 = vmul.f32 %v1175, %v1844
        %v1975 = vmul.f32 %v1176, %v1846
        %v1976 = vmul.f32 %v1177, %v1848
        %v1977 = vmul.f32 %v1178, %v1882
        %v1978 = vmul.f32 %v1179, %v1884
        %v1979 = vmul.f32 %v1180, %v1886
        %v1980 = vmul.f32 %v1181, %v1888
        %v1981 = vmul.f32 %v1182, %v1890
        %v1982 = vmul.f32 %v1183, %v1892
        %v1983 = vmul.f32 %v1184, %v1894
        %v1984 = vmul.f32 %v1185, %v1896
        %v1985 = vmul.f32 %v1186, %v1898
        %v1986 = vmul.f32 %v1187, %v1900
        %v1987 = vmul.f32 %v1188, %v1902
        %v1988 = vmul.f32 %v1189, %v1904
        %v1989 = vmul.f32 %v1190, %v1906
        %v1990 = vmul.f32 %v1191, %v1908
        %v1991 = vmul.f32 %v1192, %v1910
        %v1992 = vmul.f32 %v1193, %v1912
        %v1993 = vadd.f32 %v1961, %v1977
        %v1994 = vadd.f32 %v1962, %v1978
        %v1995 = vadd.f32 %v1963, %v1979
        %v1996 = vadd.f32 %v1964, %v1980
        %v1997 = vadd.f32 %v1965, %v1981
        %v1998 = vadd.f32 %v1966, %v1982
        %v1999 = vadd.f32 %v1967, %v1983
        %v2000 = vadd.f32 %v1968, %v1984
        %v2001 = vadd.f32 %v1969, %v1985
        %v2002 = vadd.f32 %v1970, %v1986
        %v2003 = vadd.f32 %v1971, %v1987
        %v2004 = vadd.f32 %v1972, %v1988
        %v2005 = vadd.f32 %v1973, %v1989
        %v2006 = vadd.f32 %v1974, %v1990
        %v2007 = vadd.f32 %v1975, %v1991
        %v2008 = vadd.f32 %v1976, %v1992
        %2025 = vrot.lane.b32.xlu0 %v1945, 16
        %v2026 = vpop.permute.xlu0 %2025
        %2027 = vrot.lane.b32.xlu0 %v1946, 16
        %v2028 = vpop.permute.xlu0 %2027
        %2029 = vrot.lane.b32.xlu0 %v1947, 16
        %v2030 = vpop.permute.xlu0 %2029
        %2031 = vrot.lane.b32.xlu0 %v1948, 16
        %v2032 = vpop.permute.xlu0 %2031
        %2033 = vrot.lane.b32.xlu0 %v1949, 16
        %v2034 = vpop.permute.xlu0 %2033
        %2035 = vrot.lane.b32.xlu0 %v1950, 16
        %v2036 = vpop.permute.xlu0 %2035
        %2037 = vrot.lane.b32.xlu0 %v1951, 16
        %v2038 = vpop.permute.xlu0 %2037
        %2039 = vrot.lane.b32.xlu0 %v1952, 16
        %v2040 = vpop.permute.xlu0 %2039
        %2041 = vrot.lane.b32.xlu0 %v1953, 16
        %v2042 = vpop.permute.xlu0 %2041
        %2043 = vrot.lane.b32.xlu0 %v1954, 16
        %v2044 = vpop.permute.xlu0 %2043
        %2045 = vrot.lane.b32.xlu0 %v1955, 16
        %v2046 = vpop.permute.xlu0 %2045
        %2047 = vrot.lane.b32.xlu0 %v1956, 16
        %v2048 = vpop.permute.xlu0 %2047
        %2049 = vrot.lane.b32.xlu0 %v1957, 16
        %v2050 = vpop.permute.xlu0 %2049
        %2051 = vrot.lane.b32.xlu0 %v1958, 16
        %v2052 = vpop.permute.xlu0 %2051
        %2053 = vrot.lane.b32.xlu0 %v1959, 16
        %v2054 = vpop.permute.xlu0 %2053
        %2055 = vrot.lane.b32.xlu0 %v1960, 16
        %v2056 = vpop.permute.xlu0 %2055
        %vm2073 = vcmask 195712
        %2074 = vst.msk [vmem:[%s713] sm:$0xff] %vm2073, %v2026
        %2075 = vst.msk [vmem:[%s713 + $0x8] sm:$0xff] %vm2073, %v2028
        %2076 = vst.msk [vmem:[%s713 + $0x10] sm:$0xff] %vm2073, %v2030
        %2077 = vst.msk [vmem:[%s713 + $0x18] sm:$0xff] %vm2073, %v2032
        %2078 = vst.msk [vmem:[%s713 + $0x20] sm:$0xff] %vm2073, %v2034
        %2079 = vst.msk [vmem:[%s713 + $0x28] sm:$0xff] %vm2073, %v2036
        %2080 = vst.msk [vmem:[%s713 + $0x30] sm:$0xff] %vm2073, %v2038
        %2081 = vst.msk [vmem:[%s713 + $0x38] sm:$0xff] %vm2073, %v2040
        %2082 = vst.msk [vmem:[%s713 + $0x40] sm:$0xff] %vm2073, %v2042
        %2083 = vst.msk [vmem:[%s713 + $0x48] sm:$0xff] %vm2073, %v2044
        %2084 = vst.msk [vmem:[%s713 + $0x50] sm:$0xff] %vm2073, %v2046
        %2085 = vst.msk [vmem:[%s713 + $0x58] sm:$0xff] %vm2073, %v2048
        %2086 = vst.msk [vmem:[%s713 + $0x60] sm:$0xff] %vm2073, %v2050
        %2087 = vst.msk [vmem:[%s713 + $0x68] sm:$0xff] %vm2073, %v2052
        %2088 = vst.msk [vmem:[%s713 + $0x70] sm:$0xff] %vm2073, %v2054
        %2089 = vst.msk [vmem:[%s713 + $0x78] sm:$0xff] %vm2073, %v2056
        %2106 = vrot.lane.b32.xlu0 %v1993, 24
        %v2107 = vpop.permute.xlu0 %2106
        %2108 = vrot.lane.b32.xlu0 %v1994, 24
        %v2109 = vpop.permute.xlu0 %2108
        %2110 = vrot.lane.b32.xlu0 %v1995, 24
        %v2111 = vpop.permute.xlu0 %2110
        %2112 = vrot.lane.b32.xlu0 %v1996, 24
        %v2113 = vpop.permute.xlu0 %2112
        %2114 = vrot.lane.b32.xlu0 %v1997, 24
        %v2115 = vpop.permute.xlu0 %2114
        %2116 = vrot.lane.b32.xlu0 %v1998, 24
        %v2117 = vpop.permute.xlu0 %2116
        %2118 = vrot.lane.b32.xlu0 %v1999, 24
        %v2119 = vpop.permute.xlu0 %2118
        %2120 = vrot.lane.b32.xlu0 %v2000, 24
        %v2121 = vpop.permute.xlu0 %2120
        %2122 = vrot.lane.b32.xlu0 %v2001, 24
        %v2123 = vpop.permute.xlu0 %2122
        %2124 = vrot.lane.b32.xlu0 %v2002, 24
        %v2125 = vpop.permute.xlu0 %2124
        %2126 = vrot.lane.b32.xlu0 %v2003, 24
        %v2127 = vpop.permute.xlu0 %2126
        %2128 = vrot.lane.b32.xlu0 %v2004, 24
        %v2129 = vpop.permute.xlu0 %2128
        %2130 = vrot.lane.b32.xlu0 %v2005, 24
        %v2131 = vpop.permute.xlu0 %2130
        %2132 = vrot.lane.b32.xlu0 %v2006, 24
        %v2133 = vpop.permute.xlu0 %2132
        %2134 = vrot.lane.b32.xlu0 %v2007, 24
        %v2135 = vpop.permute.xlu0 %2134
        %2136 = vrot.lane.b32.xlu0 %v2008, 24
        %v2137 = vpop.permute.xlu0 %2136
        %vm2154 = vcmask 261312
        %2155 = vst.msk [vmem:[%s713] sm:$0xff] %vm2154, %v2107
        %2156 = vst.msk [vmem:[%s713 + $0x8] sm:$0xff] %vm2154, %v2109
        %2157 = vst.msk [vmem:[%s713 + $0x10] sm:$0xff] %vm2154, %v2111
        %2158 = vst.msk [vmem:[%s713 + $0x18] sm:$0xff] %vm2154, %v2113
        %2159 = vst.msk [vmem:[%s713 + $0x20] sm:$0xff] %vm2154, %v2115
        %2160 = vst.msk [vmem:[%s713 + $0x28] sm:$0xff] %vm2154, %v2117
        %2161 = vst.msk [vmem:[%s713 + $0x30] sm:$0xff] %vm2154, %v2119
        %2162 = vst.msk [vmem:[%s713 + $0x38] sm:$0xff] %vm2154, %v2121
        %2163 = vst.msk [vmem:[%s713 + $0x40] sm:$0xff] %vm2154, %v2123
        %2164 = vst.msk [vmem:[%s713 + $0x48] sm:$0xff] %vm2154, %v2125
        %2165 = vst.msk [vmem:[%s713 + $0x50] sm:$0xff] %vm2154, %v2127
        %2166 = vst.msk [vmem:[%s713 + $0x58] sm:$0xff] %vm2154, %v2129
        %2167 = vst.msk [vmem:[%s713 + $0x60] sm:$0xff] %vm2154, %v2131
        %2168 = vst.msk [vmem:[%s713 + $0x68] sm:$0xff] %vm2154, %v2133
        %2169 = vst.msk [vmem:[%s713 + $0x70] sm:$0xff] %vm2154, %v2135
        %2170 = vst.msk [vmem:[%s713 + $0x78] sm:$0xff] %vm2154, %v2137
        %2171 = vrot.lane.b32.xlu0 %v1196, 96
        %v2172 = vpop.permute.xlu0 %2171
        %2173 = vrot.lane.b32.xlu0 %v1197, 96
        %v2174 = vpop.permute.xlu0 %2173
        %2175 = vrot.lane.b32.xlu0 %v1198, 96
        %v2176 = vpop.permute.xlu0 %2175
        %2177 = vrot.lane.b32.xlu0 %v1199, 96
        %v2178 = vpop.permute.xlu0 %2177
        %2179 = vrot.lane.b32.xlu0 %v1200, 96
        %v2180 = vpop.permute.xlu0 %2179
        %2181 = vrot.lane.b32.xlu0 %v1201, 96
        %v2182 = vpop.permute.xlu0 %2181
        %2183 = vrot.lane.b32.xlu0 %v1202, 96
        %v2184 = vpop.permute.xlu0 %2183
        %2185 = vrot.lane.b32.xlu0 %v1203, 96
        %v2186 = vpop.permute.xlu0 %2185
        %2187 = vrot.lane.b32.xlu0 %v1204, 96
        %v2188 = vpop.permute.xlu0 %2187
        %2189 = vrot.lane.b32.xlu0 %v1205, 96
        %v2190 = vpop.permute.xlu0 %2189
        %2191 = vrot.lane.b32.xlu0 %v1206, 96
        %v2192 = vpop.permute.xlu0 %2191
        %2193 = vrot.lane.b32.xlu0 %v1207, 96
        %v2194 = vpop.permute.xlu0 %2193
        %2195 = vrot.lane.b32.xlu0 %v1208, 96
        %v2196 = vpop.permute.xlu0 %2195
        %2197 = vrot.lane.b32.xlu0 %v1209, 96
        %v2198 = vpop.permute.xlu0 %2197
        %2199 = vrot.lane.b32.xlu0 %v1210, 96
        %v2200 = vpop.permute.xlu0 %2199
        %2201 = vrot.lane.b32.xlu0 %v1211, 96
        %v2202 = vpop.permute.xlu0 %2201
        %v2219 = vsel %vm1212, %v2172, 0.0
        %2220 = vadd.xlane.f32.xlu0 %v2219
        %v2221 = vpop.xlane.xlu0 %2220
        %v2222 = vsel %vm1212, %v2174, 0.0
        %2223 = vadd.xlane.f32.xlu0 %v2222
        %v2224 = vpop.xlane.xlu0 %2223
        %v2225 = vsel %vm1212, %v2176, 0.0
        %2226 = vadd.xlane.f32.xlu0 %v2225
        %v2227 = vpop.xlane.xlu0 %2226
        %v2228 = vsel %vm1212, %v2178, 0.0
        %2229 = vadd.xlane.f32.xlu0 %v2228
        %v2230 = vpop.xlane.xlu0 %2229
        %v2231 = vsel %vm1212, %v2180, 0.0
        %2232 = vadd.xlane.f32.xlu0 %v2231
        %v2233 = vpop.xlane.xlu0 %2232
        %v2234 = vsel %vm1212, %v2182, 0.0
        %2235 = vadd.xlane.f32.xlu0 %v2234
        %v2236 = vpop.xlane.xlu0 %2235
        %v2237 = vsel %vm1212, %v2184, 0.0
        %2238 = vadd.xlane.f32.xlu0 %v2237
        %v2239 = vpop.xlane.xlu0 %2238
        %v2240 = vsel %vm1212, %v2186, 0.0
        %2241 = vadd.xlane.f32.xlu0 %v2240
        %v2242 = vpop.xlane.xlu0 %2241
        %v2243 = vsel %vm1212, %v2188, 0.0
        %2244 = vadd.xlane.f32.xlu0 %v2243
        %v2245 = vpop.xlane.xlu0 %2244
        %v2246 = vsel %vm1212, %v2190, 0.0
        %2247 = vadd.xlane.f32.xlu0 %v2246
        %v2248 = vpop.xlane.xlu0 %2247
        %v2249 = vsel %vm1212, %v2192, 0.0
        %2250 = vadd.xlane.f32.xlu0 %v2249
        %v2251 = vpop.xlane.xlu0 %2250
        %v2252 = vsel %vm1212, %v2194, 0.0
        %2253 = vadd.xlane.f32.xlu0 %v2252
        %v2254 = vpop.xlane.xlu0 %2253
        %v2255 = vsel %vm1212, %v2196, 0.0
        %2256 = vadd.xlane.f32.xlu0 %v2255
        %v2257 = vpop.xlane.xlu0 %2256
        %v2258 = vsel %vm1212, %v2198, 0.0
        %2259 = vadd.xlane.f32.xlu0 %v2258
        %v2260 = vpop.xlane.xlu0 %2259
        %v2261 = vsel %vm1212, %v2200, 0.0
        %2262 = vadd.xlane.f32.xlu0 %v2261
        %v2263 = vpop.xlane.xlu0 %2262
        %v2264 = vsel %vm1212, %v2202, 0.0
        %2265 = vadd.xlane.f32.xlu0 %v2264
        %v2266 = vpop.xlane.xlu0 %2265
        %v2267 = vmul.f32 %v2221, %v1261
        %v2268 = vmul.f32 %v2224, %v1261
        %v2269 = vmul.f32 %v2227, %v1261
        %v2270 = vmul.f32 %v2230, %v1261
        %v2271 = vmul.f32 %v2233, %v1261
        %v2272 = vmul.f32 %v2236, %v1261
        %v2273 = vmul.f32 %v2239, %v1261
        %v2274 = vmul.f32 %v2242, %v1261
        %v2275 = vmul.f32 %v2245, %v1261
        %v2276 = vmul.f32 %v2248, %v1261
        %v2277 = vmul.f32 %v2251, %v1261
        %v2278 = vmul.f32 %v2254, %v1261
        %v2279 = vmul.f32 %v2257, %v1261
        %v2280 = vmul.f32 %v2260, %v1261
        %v2281 = vmul.f32 %v2263, %v1261
        %v2282 = vmul.f32 %v2266, %v1261
        %v2283 = vadd.f32 %v2267, 1e-05
        %v2284 = vadd.f32 %v2268, 1e-05
        %v2285 = vadd.f32 %v2269, 1e-05
        %v2286 = vadd.f32 %v2270, 1e-05
        %v2287 = vadd.f32 %v2271, 1e-05
        %v2288 = vadd.f32 %v2272, 1e-05
        %v2289 = vadd.f32 %v2273, 1e-05
        %v2290 = vadd.f32 %v2274, 1e-05
        %v2291 = vadd.f32 %v2275, 1e-05
        %v2292 = vadd.f32 %v2276, 1e-05
        %v2293 = vadd.f32 %v2277, 1e-05
        %v2294 = vadd.f32 %v2278, 1e-05
        %v2295 = vadd.f32 %v2279, 1e-05
        %v2296 = vadd.f32 %v2280, 1e-05
        %v2297 = vadd.f32 %v2281, 1e-05
        %v2298 = vadd.f32 %v2282, 1e-05
        %v2299 = vrsqrt.pop %v2283
        %v2300 = vrsqrt.pop %v2284
        %v2301 = vrsqrt.pop %v2285
        %v2302 = vrsqrt.pop %v2286
        %v2303 = vrsqrt.pop %v2287
        %v2304 = vrsqrt.pop %v2288
        %v2305 = vrsqrt.pop %v2289
        %v2306 = vrsqrt.pop %v2290
        %v2307 = vrsqrt.pop %v2291
        %v2308 = vrsqrt.pop %v2292
        %v2309 = vrsqrt.pop %v2293
        %v2310 = vrsqrt.pop %v2294
        %v2311 = vrsqrt.pop %v2295
        %v2312 = vrsqrt.pop %v2296
        %v2313 = vrsqrt.pop %v2297
        %v2314 = vrsqrt.pop %v2298
        %v2315 = vmul.f32 %v1052, %v2299
        %v2316 = vmul.f32 %v1057, %v2300
        %v2317 = vmul.f32 %v1062, %v2301
        %v2318 = vmul.f32 %v1067, %v2302
        %v2319 = vmul.f32 %v1072, %v2303
        %v2320 = vmul.f32 %v1077, %v2304
        %v2321 = vmul.f32 %v1082, %v2305
        %v2322 = vmul.f32 %v1087, %v2306
        %v2323 = vmul.f32 %v1092, %v2307
        %v2324 = vmul.f32 %v1097, %v2308
        %v2325 = vmul.f32 %v1102, %v2309
        %v2326 = vmul.f32 %v1107, %v2310
        %v2327 = vmul.f32 %v1112, %v2311
        %v2328 = vmul.f32 %v1117, %v2312
        %v2329 = vmul.f32 %v1122, %v2313
        %v2330 = vmul.f32 %v1127, %v2314
        %2331 = vrot.lane.b32.xlu0 %v1330, 32
        %v2332 = vpop.permute.xlu0 %2331
        %v2334 = vmul.f32 %v2315, %v2332
        %v2335 = vmul.f32 %v2316, %v2332
        %v2336 = vmul.f32 %v2317, %v2332
        %v2337 = vmul.f32 %v2318, %v2332
        %v2338 = vmul.f32 %v2319, %v2332
        %v2339 = vmul.f32 %v2320, %v2332
        %v2340 = vmul.f32 %v2321, %v2332
        %v2341 = vmul.f32 %v2322, %v2332
        %v2342 = vmul.f32 %v2323, %v2332
        %v2343 = vmul.f32 %v2324, %v2332
        %v2344 = vmul.f32 %v2325, %v2332
        %v2345 = vmul.f32 %v2326, %v2332
        %v2346 = vmul.f32 %v2327, %v2332
        %v2347 = vmul.f32 %v2328, %v2332
        %v2348 = vmul.f32 %v2329, %v2332
        %v2349 = vmul.f32 %v2330, %v2332
        %2366 = vrot.lane.b32.xlu0 %v2334, 96
        %v2367 = vpop.permute.xlu0 %2366
        %2368 = vrot.lane.b32.xlu0 %v2335, 96
        %v2369 = vpop.permute.xlu0 %2368
        %2370 = vrot.lane.b32.xlu0 %v2336, 96
        %v2371 = vpop.permute.xlu0 %2370
        %2372 = vrot.lane.b32.xlu0 %v2337, 96
        %v2373 = vpop.permute.xlu0 %2372
        %2374 = vrot.lane.b32.xlu0 %v2338, 96
        %v2375 = vpop.permute.xlu0 %2374
        %2376 = vrot.lane.b32.xlu0 %v2339, 96
        %v2377 = vpop.permute.xlu0 %2376
        %2378 = vrot.lane.b32.xlu0 %v2340, 96
        %v2379 = vpop.permute.xlu0 %2378
        %2380 = vrot.lane.b32.xlu0 %v2341, 96
        %v2381 = vpop.permute.xlu0 %2380
        %2382 = vrot.lane.b32.xlu0 %v2342, 96
        %v2383 = vpop.permute.xlu0 %2382
        %2384 = vrot.lane.b32.xlu0 %v2343, 96
        %v2385 = vpop.permute.xlu0 %2384
        %2386 = vrot.lane.b32.xlu0 %v2344, 96
        %v2387 = vpop.permute.xlu0 %2386
        %2388 = vrot.lane.b32.xlu0 %v2345, 96
        %v2389 = vpop.permute.xlu0 %2388
        %2390 = vrot.lane.b32.xlu0 %v2346, 96
        %v2391 = vpop.permute.xlu0 %2390
        %2392 = vrot.lane.b32.xlu0 %v2347, 96
        %v2393 = vpop.permute.xlu0 %2392
        %2394 = vrot.lane.b32.xlu0 %v2348, 96
        %v2395 = vpop.permute.xlu0 %2394
        %2396 = vrot.lane.b32.xlu0 %v2349, 96
        %v2397 = vpop.permute.xlu0 %2396
        %v2414 = vmul.f32 %v1130, %v2367
        %v2415 = vmul.f32 %v1131, %v2369
        %v2416 = vmul.f32 %v1132, %v2371
        %v2417 = vmul.f32 %v1133, %v2373
        %v2418 = vmul.f32 %v1134, %v2375
        %v2419 = vmul.f32 %v1135, %v2377
        %v2420 = vmul.f32 %v1136, %v2379
        %v2421 = vmul.f32 %v1137, %v2381
        %v2422 = vmul.f32 %v1138, %v2383
        %v2423 = vmul.f32 %v1139, %v2385
        %v2424 = vmul.f32 %v1140, %v2387
        %v2425 = vmul.f32 %v1141, %v2389
        %v2426 = vmul.f32 %v1142, %v2391
        %v2427 = vmul.f32 %v1143, %v2393
        %v2428 = vmul.f32 %v1144, %v2395
        %v2429 = vmul.f32 %v1145, %v2397
        %2430 = vrot.lane.b32.xlu0 %v2334, 88
        %v2431 = vpop.permute.xlu0 %2430
        %2432 = vrot.lane.b32.xlu0 %v2335, 88
        %v2433 = vpop.permute.xlu0 %2432
        %2434 = vrot.lane.b32.xlu0 %v2336, 88
        %v2435 = vpop.permute.xlu0 %2434
        %2436 = vrot.lane.b32.xlu0 %v2337, 88
        %v2437 = vpop.permute.xlu0 %2436
        %2438 = vrot.lane.b32.xlu0 %v2338, 88
        %v2439 = vpop.permute.xlu0 %2438
        %2440 = vrot.lane.b32.xlu0 %v2339, 88
        %v2441 = vpop.permute.xlu0 %2440
        %2442 = vrot.lane.b32.xlu0 %v2340, 88
        %v2443 = vpop.permute.xlu0 %2442
        %2444 = vrot.lane.b32.xlu0 %v2341, 88
        %v2445 = vpop.permute.xlu0 %2444
        %2446 = vrot.lane.b32.xlu0 %v2342, 88
        %v2447 = vpop.permute.xlu0 %2446
        %2448 = vrot.lane.b32.xlu0 %v2343, 88
        %v2449 = vpop.permute.xlu0 %2448
        %2450 = vrot.lane.b32.xlu0 %v2344, 88
        %v2451 = vpop.permute.xlu0 %2450
        %2452 = vrot.lane.b32.xlu0 %v2345, 88
        %v2453 = vpop.permute.xlu0 %2452
        %2454 = vrot.lane.b32.xlu0 %v2346, 88
        %v2455 = vpop.permute.xlu0 %2454
        %2456 = vrot.lane.b32.xlu0 %v2347, 88
        %v2457 = vpop.permute.xlu0 %2456
        %2458 = vrot.lane.b32.xlu0 %v2348, 88
        %v2459 = vpop.permute.xlu0 %2458
        %2460 = vrot.lane.b32.xlu0 %v2349, 88
        %v2461 = vpop.permute.xlu0 %2460
        %v2478 = vmul.f32 %v1146, %v2431
        %v2479 = vmul.f32 %v1147, %v2433
        %v2480 = vmul.f32 %v1148, %v2435
        %v2481 = vmul.f32 %v1149, %v2437
        %v2482 = vmul.f32 %v1150, %v2439
        %v2483 = vmul.f32 %v1151, %v2441
        %v2484 = vmul.f32 %v1152, %v2443
        %v2485 = vmul.f32 %v1153, %v2445
        %v2486 = vmul.f32 %v1154, %v2447
        %v2487 = vmul.f32 %v1155, %v2449
        %v2488 = vmul.f32 %v1156, %v2451
        %v2489 = vmul.f32 %v1157, %v2453
        %v2490 = vmul.f32 %v1158, %v2455
        %v2491 = vmul.f32 %v1159, %v2457
        %v2492 = vmul.f32 %v1160, %v2459
        %v2493 = vmul.f32 %v1161, %v2461
        %v2494 = vadd.f32 %v2414, %v2478
        %v2495 = vadd.f32 %v2415, %v2479
        %v2496 = vadd.f32 %v2416, %v2480
        %v2497 = vadd.f32 %v2417, %v2481
        %v2498 = vadd.f32 %v2418, %v2482
        %v2499 = vadd.f32 %v2419, %v2483
        %v2500 = vadd.f32 %v2420, %v2484
        %v2501 = vadd.f32 %v2421, %v2485
        %v2502 = vadd.f32 %v2422, %v2486
        %v2503 = vadd.f32 %v2423, %v2487
        %v2504 = vadd.f32 %v2424, %v2488
        %v2505 = vadd.f32 %v2425, %v2489
        %v2506 = vadd.f32 %v2426, %v2490
        %v2507 = vadd.f32 %v2427, %v2491
        %v2508 = vadd.f32 %v2428, %v2492
        %v2509 = vadd.f32 %v2429, %v2493
        %v2510 = vmul.f32 %v1162, %v2367
        %v2511 = vmul.f32 %v1163, %v2369
        %v2512 = vmul.f32 %v1164, %v2371
        %v2513 = vmul.f32 %v1165, %v2373
        %v2514 = vmul.f32 %v1166, %v2375
        %v2515 = vmul.f32 %v1167, %v2377
        %v2516 = vmul.f32 %v1168, %v2379
        %v2517 = vmul.f32 %v1169, %v2381
        %v2518 = vmul.f32 %v1170, %v2383
        %v2519 = vmul.f32 %v1171, %v2385
        %v2520 = vmul.f32 %v1172, %v2387
        %v2521 = vmul.f32 %v1173, %v2389
        %v2522 = vmul.f32 %v1174, %v2391
        %v2523 = vmul.f32 %v1175, %v2393
        %v2524 = vmul.f32 %v1176, %v2395
        %v2525 = vmul.f32 %v1177, %v2397
        %v2526 = vmul.f32 %v1178, %v2431
        %v2527 = vmul.f32 %v1179, %v2433
        %v2528 = vmul.f32 %v1180, %v2435
        %v2529 = vmul.f32 %v1181, %v2437
        %v2530 = vmul.f32 %v1182, %v2439
        %v2531 = vmul.f32 %v1183, %v2441
        %v2532 = vmul.f32 %v1184, %v2443
        %v2533 = vmul.f32 %v1185, %v2445
        %v2534 = vmul.f32 %v1186, %v2447
        %v2535 = vmul.f32 %v1187, %v2449
        %v2536 = vmul.f32 %v1188, %v2451
        %v2537 = vmul.f32 %v1189, %v2453
        %v2538 = vmul.f32 %v1190, %v2455
        %v2539 = vmul.f32 %v1191, %v2457
        %v2540 = vmul.f32 %v1192, %v2459
        %v2541 = vmul.f32 %v1193, %v2461
        %v2542 = vadd.f32 %v2510, %v2526
        %v2543 = vadd.f32 %v2511, %v2527
        %v2544 = vadd.f32 %v2512, %v2528
        %v2545 = vadd.f32 %v2513, %v2529
        %v2546 = vadd.f32 %v2514, %v2530
        %v2547 = vadd.f32 %v2515, %v2531
        %v2548 = vadd.f32 %v2516, %v2532
        %v2549 = vadd.f32 %v2517, %v2533
        %v2550 = vadd.f32 %v2518, %v2534
        %v2551 = vadd.f32 %v2519, %v2535
        %v2552 = vadd.f32 %v2520, %v2536
        %v2553 = vadd.f32 %v2521, %v2537
        %v2554 = vadd.f32 %v2522, %v2538
        %v2555 = vadd.f32 %v2523, %v2539
        %v2556 = vadd.f32 %v2524, %v2540
        %v2557 = vadd.f32 %v2525, %v2541
        %s2558 = scalar_lea.vmem %s713, 128 [#allocation19]
        %2559 = vst.msk [vmem:[%s2558] sm:$0xff] %vm1508, %v2494
        %2560 = vst.msk [vmem:[%s2558 + $0x8] sm:$0xff] %vm1508, %v2495
        %2561 = vst.msk [vmem:[%s2558 + $0x10] sm:$0xff] %vm1508, %v2496
        %2562 = vst.msk [vmem:[%s2558 + $0x18] sm:$0xff] %vm1508, %v2497
        %2563 = vst.msk [vmem:[%s2558 + $0x20] sm:$0xff] %vm1508, %v2498
        %2564 = vst.msk [vmem:[%s2558 + $0x28] sm:$0xff] %vm1508, %v2499
        %2565 = vst.msk [vmem:[%s2558 + $0x30] sm:$0xff] %vm1508, %v2500
        %2566 = vst.msk [vmem:[%s2558 + $0x38] sm:$0xff] %vm1508, %v2501
        %2567 = vst.msk [vmem:[%s2558 + $0x40] sm:$0xff] %vm1508, %v2502
        %2568 = vst.msk [vmem:[%s2558 + $0x48] sm:$0xff] %vm1508, %v2503
        %2569 = vst.msk [vmem:[%s2558 + $0x50] sm:$0xff] %vm1508, %v2504
        %2570 = vst.msk [vmem:[%s2558 + $0x58] sm:$0xff] %vm1508, %v2505
        %2571 = vst.msk [vmem:[%s2558 + $0x60] sm:$0xff] %vm1508, %v2506
        %2572 = vst.msk [vmem:[%s2558 + $0x68] sm:$0xff] %vm1508, %v2507
        %2573 = vst.msk [vmem:[%s2558 + $0x70] sm:$0xff] %vm1508, %v2508
        %2574 = vst.msk [vmem:[%s2558 + $0x78] sm:$0xff] %vm1508, %v2509
        %2591 = vrot.lane.b32.xlu0 %v2542, 8
        %v2592 = vpop.permute.xlu0 %2591
        %2593 = vrot.lane.b32.xlu0 %v2543, 8
        %v2594 = vpop.permute.xlu0 %2593
        %2595 = vrot.lane.b32.xlu0 %v2544, 8
        %v2596 = vpop.permute.xlu0 %2595
        %2597 = vrot.lane.b32.xlu0 %v2545, 8
        %v2598 = vpop.permute.xlu0 %2597
        %2599 = vrot.lane.b32.xlu0 %v2546, 8
        %v2600 = vpop.permute.xlu0 %2599
        %2601 = vrot.lane.b32.xlu0 %v2547, 8
        %v2602 = vpop.permute.xlu0 %2601
        %2603 = vrot.lane.b32.xlu0 %v2548, 8
        %v2604 = vpop.permute.xlu0 %2603
        %2605 = vrot.lane.b32.xlu0 %v2549, 8
        %v2606 = vpop.permute.xlu0 %2605
        %2607 = vrot.lane.b32.xlu0 %v2550, 8
        %v2608 = vpop.permute.xlu0 %2607
        %2609 = vrot.lane.b32.xlu0 %v2551, 8
        %v2610 = vpop.permute.xlu0 %2609
        %2611 = vrot.lane.b32.xlu0 %v2552, 8
        %v2612 = vpop.permute.xlu0 %2611
        %2613 = vrot.lane.b32.xlu0 %v2553, 8
        %v2614 = vpop.permute.xlu0 %2613
        %2615 = vrot.lane.b32.xlu0 %v2554, 8
        %v2616 = vpop.permute.xlu0 %2615
        %2617 = vrot.lane.b32.xlu0 %v2555, 8
        %v2618 = vpop.permute.xlu0 %2617
        %2619 = vrot.lane.b32.xlu0 %v2556, 8
        %v2620 = vpop.permute.xlu0 %2619
        %2621 = vrot.lane.b32.xlu0 %v2557, 8
        %v2622 = vpop.permute.xlu0 %2621
        %2639 = vst.msk [vmem:[%s2558] sm:$0xff] %vm1589, %v2592
        %2640 = vst.msk [vmem:[%s2558 + $0x8] sm:$0xff] %vm1589, %v2594
        %2641 = vst.msk [vmem:[%s2558 + $0x10] sm:$0xff] %vm1589, %v2596
        %2642 = vst.msk [vmem:[%s2558 + $0x18] sm:$0xff] %vm1589, %v2598
        %2643 = vst.msk [vmem:[%s2558 + $0x20] sm:$0xff] %vm1589, %v2600
        %2644 = vst.msk [vmem:[%s2558 + $0x28] sm:$0xff] %vm1589, %v2602
        %2645 = vst.msk [vmem:[%s2558 + $0x30] sm:$0xff] %vm1589, %v2604
        %2646 = vst.msk [vmem:[%s2558 + $0x38] sm:$0xff] %vm1589, %v2606
        %2647 = vst.msk [vmem:[%s2558 + $0x40] sm:$0xff] %vm1589, %v2608
        %2648 = vst.msk [vmem:[%s2558 + $0x48] sm:$0xff] %vm1589, %v2610
        %2649 = vst.msk [vmem:[%s2558 + $0x50] sm:$0xff] %vm1589, %v2612
        %2650 = vst.msk [vmem:[%s2558 + $0x58] sm:$0xff] %vm1589, %v2614
        %2651 = vst.msk [vmem:[%s2558 + $0x60] sm:$0xff] %vm1589, %v2616
        %2652 = vst.msk [vmem:[%s2558 + $0x68] sm:$0xff] %vm1589, %v2618
        %2653 = vst.msk [vmem:[%s2558 + $0x70] sm:$0xff] %vm1589, %v2620
        %2654 = vst.msk [vmem:[%s2558 + $0x78] sm:$0xff] %vm1589, %v2622
        %2655 = vrot.lane.b32.xlu0 %v1196, 80
        %v2656 = vpop.permute.xlu0 %2655
        %2657 = vrot.lane.b32.xlu0 %v1197, 80
        %v2658 = vpop.permute.xlu0 %2657
        %2659 = vrot.lane.b32.xlu0 %v1198, 80
        %v2660 = vpop.permute.xlu0 %2659
        %2661 = vrot.lane.b32.xlu0 %v1199, 80
        %v2662 = vpop.permute.xlu0 %2661
        %2663 = vrot.lane.b32.xlu0 %v1200, 80
        %v2664 = vpop.permute.xlu0 %2663
        %2665 = vrot.lane.b32.xlu0 %v1201, 80
        %v2666 = vpop.permute.xlu0 %2665
        %2667 = vrot.lane.b32.xlu0 %v1202, 80
        %v2668 = vpop.permute.xlu0 %2667
        %2669 = vrot.lane.b32.xlu0 %v1203, 80
        %v2670 = vpop.permute.xlu0 %2669
        %2671 = vrot.lane.b32.xlu0 %v1204, 80
        %v2672 = vpop.permute.xlu0 %2671
        %2673 = vrot.lane.b32.xlu0 %v1205, 80
        %v2674 = vpop.permute.xlu0 %2673
        %2675 = vrot.lane.b32.xlu0 %v1206, 80
        %v2676 = vpop.permute.xlu0 %2675
        %2677 = vrot.lane.b32.xlu0 %v1207, 80
        %v2678 = vpop.permute.xlu0 %2677
        %2679 = vrot.lane.b32.xlu0 %v1208, 80
        %v2680 = vpop.permute.xlu0 %2679
        %2681 = vrot.lane.b32.xlu0 %v1209, 80
        %v2682 = vpop.permute.xlu0 %2681
        %2683 = vrot.lane.b32.xlu0 %v1210, 80
        %v2684 = vpop.permute.xlu0 %2683
        %2685 = vrot.lane.b32.xlu0 %v1211, 80
        %v2686 = vpop.permute.xlu0 %2685
        %v2703 = vsel %vm1212, %v2656, 0.0
        %2704 = vadd.xlane.f32.xlu0 %v2703
        %v2705 = vpop.xlane.xlu0 %2704
        %v2706 = vsel %vm1212, %v2658, 0.0
        %2707 = vadd.xlane.f32.xlu0 %v2706
        %v2708 = vpop.xlane.xlu0 %2707
        %v2709 = vsel %vm1212, %v2660, 0.0
        %2710 = vadd.xlane.f32.xlu0 %v2709
        %v2711 = vpop.xlane.xlu0 %2710
        %v2712 = vsel %vm1212, %v2662, 0.0
        %2713 = vadd.xlane.f32.xlu0 %v2712
        %v2714 = vpop.xlane.xlu0 %2713
        %v2715 = vsel %vm1212, %v2664, 0.0
        %2716 = vadd.xlane.f32.xlu0 %v2715
        %v2717 = vpop.xlane.xlu0 %2716
        %v2718 = vsel %vm1212, %v2666, 0.0
        %2719 = vadd.xlane.f32.xlu0 %v2718
        %v2720 = vpop.xlane.xlu0 %2719
        %v2721 = vsel %vm1212, %v2668, 0.0
        %2722 = vadd.xlane.f32.xlu0 %v2721
        %v2723 = vpop.xlane.xlu0 %2722
        %v2724 = vsel %vm1212, %v2670, 0.0
        %2725 = vadd.xlane.f32.xlu0 %v2724
        %v2726 = vpop.xlane.xlu0 %2725
        %v2727 = vsel %vm1212, %v2672, 0.0
        %2728 = vadd.xlane.f32.xlu0 %v2727
        %v2729 = vpop.xlane.xlu0 %2728
        %v2730 = vsel %vm1212, %v2674, 0.0
        %2731 = vadd.xlane.f32.xlu0 %v2730
        %v2732 = vpop.xlane.xlu0 %2731
        %v2733 = vsel %vm1212, %v2676, 0.0
        %2734 = vadd.xlane.f32.xlu0 %v2733
        %v2735 = vpop.xlane.xlu0 %2734
        %v2736 = vsel %vm1212, %v2678, 0.0
        %2737 = vadd.xlane.f32.xlu0 %v2736
        %v2738 = vpop.xlane.xlu0 %2737
        %v2739 = vsel %vm1212, %v2680, 0.0
        %2740 = vadd.xlane.f32.xlu0 %v2739
        %v2741 = vpop.xlane.xlu0 %2740
        %v2742 = vsel %vm1212, %v2682, 0.0
        %2743 = vadd.xlane.f32.xlu0 %v2742
        %v2744 = vpop.xlane.xlu0 %2743
        %v2745 = vsel %vm1212, %v2684, 0.0
        %2746 = vadd.xlane.f32.xlu0 %v2745
        %v2747 = vpop.xlane.xlu0 %2746
        %v2748 = vsel %vm1212, %v2686, 0.0
        %2749 = vadd.xlane.f32.xlu0 %v2748
        %v2750 = vpop.xlane.xlu0 %2749
        %v2751 = vmul.f32 %v2705, %v1261
        %v2752 = vmul.f32 %v2708, %v1261
        %v2753 = vmul.f32 %v2711, %v1261
        %v2754 = vmul.f32 %v2714, %v1261
        %v2755 = vmul.f32 %v2717, %v1261
        %v2756 = vmul.f32 %v2720, %v1261
        %v2757 = vmul.f32 %v2723, %v1261
        %v2758 = vmul.f32 %v2726, %v1261
        %v2759 = vmul.f32 %v2729, %v1261
        %v2760 = vmul.f32 %v2732, %v1261
        %v2761 = vmul.f32 %v2735, %v1261
        %v2762 = vmul.f32 %v2738, %v1261
        %v2763 = vmul.f32 %v2741, %v1261
        %v2764 = vmul.f32 %v2744, %v1261
        %v2765 = vmul.f32 %v2747, %v1261
        %v2766 = vmul.f32 %v2750, %v1261
        %v2767 = vadd.f32 %v2751, 1e-05
        %v2768 = vadd.f32 %v2752, 1e-05
        %v2769 = vadd.f32 %v2753, 1e-05
        %v2770 = vadd.f32 %v2754, 1e-05
        %v2771 = vadd.f32 %v2755, 1e-05
        %v2772 = vadd.f32 %v2756, 1e-05
        %v2773 = vadd.f32 %v2757, 1e-05
        %v2774 = vadd.f32 %v2758, 1e-05
        %v2775 = vadd.f32 %v2759, 1e-05
        %v2776 = vadd.f32 %v2760, 1e-05
        %v2777 = vadd.f32 %v2761, 1e-05
        %v2778 = vadd.f32 %v2762, 1e-05
        %v2779 = vadd.f32 %v2763, 1e-05
        %v2780 = vadd.f32 %v2764, 1e-05
        %v2781 = vadd.f32 %v2765, 1e-05
        %v2782 = vadd.f32 %v2766, 1e-05
        %v2783 = vrsqrt.pop %v2767
        %v2784 = vrsqrt.pop %v2768
        %v2785 = vrsqrt.pop %v2769
        %v2786 = vrsqrt.pop %v2770
        %v2787 = vrsqrt.pop %v2771
        %v2788 = vrsqrt.pop %v2772
        %v2789 = vrsqrt.pop %v2773
        %v2790 = vrsqrt.pop %v2774
        %v2791 = vrsqrt.pop %v2775
        %v2792 = vrsqrt.pop %v2776
        %v2793 = vrsqrt.pop %v2777
        %v2794 = vrsqrt.pop %v2778
        %v2795 = vrsqrt.pop %v2779
        %v2796 = vrsqrt.pop %v2780
        %v2797 = vrsqrt.pop %v2781
        %v2798 = vrsqrt.pop %v2782
        %v2799 = vmul.f32 %v1052, %v2783
        %v2800 = vmul.f32 %v1057, %v2784
        %v2801 = vmul.f32 %v1062, %v2785
        %v2802 = vmul.f32 %v1067, %v2786
        %v2803 = vmul.f32 %v1072, %v2787
        %v2804 = vmul.f32 %v1077, %v2788
        %v2805 = vmul.f32 %v1082, %v2789
        %v2806 = vmul.f32 %v1087, %v2790
        %v2807 = vmul.f32 %v1092, %v2791
        %v2808 = vmul.f32 %v1097, %v2792
        %v2809 = vmul.f32 %v1102, %v2793
        %v2810 = vmul.f32 %v1107, %v2794
        %v2811 = vmul.f32 %v1112, %v2795
        %v2812 = vmul.f32 %v1117, %v2796
        %v2813 = vmul.f32 %v1122, %v2797
        %v2814 = vmul.f32 %v1127, %v2798
        %2815 = vrot.lane.b32.xlu0 %v1330, 48
        %v2816 = vpop.permute.xlu0 %2815
        %v2818 = vmul.f32 %v2799, %v2816
        %v2819 = vmul.f32 %v2800, %v2816
        %v2820 = vmul.f32 %v2801, %v2816
        %v2821 = vmul.f32 %v2802, %v2816
        %v2822 = vmul.f32 %v2803, %v2816
        %v2823 = vmul.f32 %v2804, %v2816
        %v2824 = vmul.f32 %v2805, %v2816
        %v2825 = vmul.f32 %v2806, %v2816
        %v2826 = vmul.f32 %v2807, %v2816
        %v2827 = vmul.f32 %v2808, %v2816
        %v2828 = vmul.f32 %v2809, %v2816
        %v2829 = vmul.f32 %v2810, %v2816
        %v2830 = vmul.f32 %v2811, %v2816
        %v2831 = vmul.f32 %v2812, %v2816
        %v2832 = vmul.f32 %v2813, %v2816
        %v2833 = vmul.f32 %v2814, %v2816
        %2850 = vrot.lane.b32.xlu0 %v2818, 80
        %v2851 = vpop.permute.xlu0 %2850
        %2852 = vrot.lane.b32.xlu0 %v2819, 80
        %v2853 = vpop.permute.xlu0 %2852
        %2854 = vrot.lane.b32.xlu0 %v2820, 80
        %v2855 = vpop.permute.xlu0 %2854
        %2856 = vrot.lane.b32.xlu0 %v2821, 80
        %v2857 = vpop.permute.xlu0 %2856
        %2858 = vrot.lane.b32.xlu0 %v2822, 80
        %v2859 = vpop.permute.xlu0 %2858
        %2860 = vrot.lane.b32.xlu0 %v2823, 80
        %v2861 = vpop.permute.xlu0 %2860
        %2862 = vrot.lane.b32.xlu0 %v2824, 80
        %v2863 = vpop.permute.xlu0 %2862
        %2864 = vrot.lane.b32.xlu0 %v2825, 80
        %v2865 = vpop.permute.xlu0 %2864
        %2866 = vrot.lane.b32.xlu0 %v2826, 80
        %v2867 = vpop.permute.xlu0 %2866
        %2868 = vrot.lane.b32.xlu0 %v2827, 80
        %v2869 = vpop.permute.xlu0 %2868
        %2870 = vrot.lane.b32.xlu0 %v2828, 80
        %v2871 = vpop.permute.xlu0 %2870
        %2872 = vrot.lane.b32.xlu0 %v2829, 80
        %v2873 = vpop.permute.xlu0 %2872
        %2874 = vrot.lane.b32.xlu0 %v2830, 80
        %v2875 = vpop.permute.xlu0 %2874
        %2876 = vrot.lane.b32.xlu0 %v2831, 80
        %v2877 = vpop.permute.xlu0 %2876
        %2878 = vrot.lane.b32.xlu0 %v2832, 80
        %v2879 = vpop.permute.xlu0 %2878
        %2880 = vrot.lane.b32.xlu0 %v2833, 80
        %v2881 = vpop.permute.xlu0 %2880
        %v2898 = vmul.f32 %v1130, %v2851
        %v2899 = vmul.f32 %v1131, %v2853
        %v2900 = vmul.f32 %v1132, %v2855
        %v2901 = vmul.f32 %v1133, %v2857
        %v2902 = vmul.f32 %v1134, %v2859
        %v2903 = vmul.f32 %v1135, %v2861
        %v2904 = vmul.f32 %v1136, %v2863
        %v2905 = vmul.f32 %v1137, %v2865
        %v2906 = vmul.f32 %v1138, %v2867
        %v2907 = vmul.f32 %v1139, %v2869
        %v2908 = vmul.f32 %v1140, %v2871
        %v2909 = vmul.f32 %v1141, %v2873
        %v2910 = vmul.f32 %v1142, %v2875
        %v2911 = vmul.f32 %v1143, %v2877
        %v2912 = vmul.f32 %v1144, %v2879
        %v2913 = vmul.f32 %v1145, %v2881
        %2914 = vrot.lane.b32.xlu0 %v2818, 72
        %v2915 = vpop.permute.xlu0 %2914
        %2916 = vrot.lane.b32.xlu0 %v2819, 72
        %v2917 = vpop.permute.xlu0 %2916
        %2918 = vrot.lane.b32.xlu0 %v2820, 72
        %v2919 = vpop.permute.xlu0 %2918
        %2920 = vrot.lane.b32.xlu0 %v2821, 72
        %v2921 = vpop.permute.xlu0 %2920
        %2922 = vrot.lane.b32.xlu0 %v2822, 72
        %v2923 = vpop.permute.xlu0 %2922
        %2924 = vrot.lane.b32.xlu0 %v2823, 72
        %v2925 = vpop.permute.xlu0 %2924
        %2926 = vrot.lane.b32.xlu0 %v2824, 72
        %v2927 = vpop.permute.xlu0 %2926
        %2928 = vrot.lane.b32.xlu0 %v2825, 72
        %v2929 = vpop.permute.xlu0 %2928
        %2930 = vrot.lane.b32.xlu0 %v2826, 72
        %v2931 = vpop.permute.xlu0 %2930
        %2932 = vrot.lane.b32.xlu0 %v2827, 72
        %v2933 = vpop.permute.xlu0 %2932
        %2934 = vrot.lane.b32.xlu0 %v2828, 72
        %v2935 = vpop.permute.xlu0 %2934
        %2936 = vrot.lane.b32.xlu0 %v2829, 72
        %v2937 = vpop.permute.xlu0 %2936
        %2938 = vrot.lane.b32.xlu0 %v2830, 72
        %v2939 = vpop.permute.xlu0 %2938
        %2940 = vrot.lane.b32.xlu0 %v2831, 72
        %v2941 = vpop.permute.xlu0 %2940
        %2942 = vrot.lane.b32.xlu0 %v2832, 72
        %v2943 = vpop.permute.xlu0 %2942
        %2944 = vrot.lane.b32.xlu0 %v2833, 72
        %v2945 = vpop.permute.xlu0 %2944
        %v2962 = vmul.f32 %v1146, %v2915
        %v2963 = vmul.f32 %v1147, %v2917
        %v2964 = vmul.f32 %v1148, %v2919
        %v2965 = vmul.f32 %v1149, %v2921
        %v2966 = vmul.f32 %v1150, %v2923
        %v2967 = vmul.f32 %v1151, %v2925
        %v2968 = vmul.f32 %v1152, %v2927
        %v2969 = vmul.f32 %v1153, %v2929
        %v2970 = vmul.f32 %v1154, %v2931
        %v2971 = vmul.f32 %v1155, %v2933
        %v2972 = vmul.f32 %v1156, %v2935
        %v2973 = vmul.f32 %v1157, %v2937
        %v2974 = vmul.f32 %v1158, %v2939
        %v2975 = vmul.f32 %v1159, %v2941
        %v2976 = vmul.f32 %v1160, %v2943
        %v2977 = vmul.f32 %v1161, %v2945
        %v2978 = vadd.f32 %v2898, %v2962
        %v2979 = vadd.f32 %v2899, %v2963
        %v2980 = vadd.f32 %v2900, %v2964
        %v2981 = vadd.f32 %v2901, %v2965
        %v2982 = vadd.f32 %v2902, %v2966
        %v2983 = vadd.f32 %v2903, %v2967
        %v2984 = vadd.f32 %v2904, %v2968
        %v2985 = vadd.f32 %v2905, %v2969
        %v2986 = vadd.f32 %v2906, %v2970
        %v2987 = vadd.f32 %v2907, %v2971
        %v2988 = vadd.f32 %v2908, %v2972
        %v2989 = vadd.f32 %v2909, %v2973
        %v2990 = vadd.f32 %v2910, %v2974
        %v2991 = vadd.f32 %v2911, %v2975
        %v2992 = vadd.f32 %v2912, %v2976
        %v2993 = vadd.f32 %v2913, %v2977
        %v2994 = vmul.f32 %v1162, %v2851
        %v2995 = vmul.f32 %v1163, %v2853
        %v2996 = vmul.f32 %v1164, %v2855
        %v2997 = vmul.f32 %v1165, %v2857
        %v2998 = vmul.f32 %v1166, %v2859
        %v2999 = vmul.f32 %v1167, %v2861
        %v3000 = vmul.f32 %v1168, %v2863
        %v3001 = vmul.f32 %v1169, %v2865
        %v3002 = vmul.f32 %v1170, %v2867
        %v3003 = vmul.f32 %v1171, %v2869
        %v3004 = vmul.f32 %v1172, %v2871
        %v3005 = vmul.f32 %v1173, %v2873
        %v3006 = vmul.f32 %v1174, %v2875
        %v3007 = vmul.f32 %v1175, %v2877
        %v3008 = vmul.f32 %v1176, %v2879
        %v3009 = vmul.f32 %v1177, %v2881
        %v3010 = vmul.f32 %v1178, %v2915
        %v3011 = vmul.f32 %v1179, %v2917
        %v3012 = vmul.f32 %v1180, %v2919
        %v3013 = vmul.f32 %v1181, %v2921
        %v3014 = vmul.f32 %v1182, %v2923
        %v3015 = vmul.f32 %v1183, %v2925
        %v3016 = vmul.f32 %v1184, %v2927
        %v3017 = vmul.f32 %v1185, %v2929
        %v3018 = vmul.f32 %v1186, %v2931
        %v3019 = vmul.f32 %v1187, %v2933
        %v3020 = vmul.f32 %v1188, %v2935
        %v3021 = vmul.f32 %v1189, %v2937
        %v3022 = vmul.f32 %v1190, %v2939
        %v3023 = vmul.f32 %v1191, %v2941
        %v3024 = vmul.f32 %v1192, %v2943
        %v3025 = vmul.f32 %v1193, %v2945
        %v3026 = vadd.f32 %v2994, %v3010
        %v3027 = vadd.f32 %v2995, %v3011
        %v3028 = vadd.f32 %v2996, %v3012
        %v3029 = vadd.f32 %v2997, %v3013
        %v3030 = vadd.f32 %v2998, %v3014
        %v3031 = vadd.f32 %v2999, %v3015
        %v3032 = vadd.f32 %v3000, %v3016
        %v3033 = vadd.f32 %v3001, %v3017
        %v3034 = vadd.f32 %v3002, %v3018
        %v3035 = vadd.f32 %v3003, %v3019
        %v3036 = vadd.f32 %v3004, %v3020
        %v3037 = vadd.f32 %v3005, %v3021
        %v3038 = vadd.f32 %v3006, %v3022
        %v3039 = vadd.f32 %v3007, %v3023
        %v3040 = vadd.f32 %v3008, %v3024
        %v3041 = vadd.f32 %v3009, %v3025
        %3058 = vrot.lane.b32.xlu0 %v2978, 16
        %v3059 = vpop.permute.xlu0 %3058
        %3060 = vrot.lane.b32.xlu0 %v2979, 16
        %v3061 = vpop.permute.xlu0 %3060
        %3062 = vrot.lane.b32.xlu0 %v2980, 16
        %v3063 = vpop.permute.xlu0 %3062
        %3064 = vrot.lane.b32.xlu0 %v2981, 16
        %v3065 = vpop.permute.xlu0 %3064
        %3066 = vrot.lane.b32.xlu0 %v2982, 16
        %v3067 = vpop.permute.xlu0 %3066
        %3068 = vrot.lane.b32.xlu0 %v2983, 16
        %v3069 = vpop.permute.xlu0 %3068
        %3070 = vrot.lane.b32.xlu0 %v2984, 16
        %v3071 = vpop.permute.xlu0 %3070
        %3072 = vrot.lane.b32.xlu0 %v2985, 16
        %v3073 = vpop.permute.xlu0 %3072
        %3074 = vrot.lane.b32.xlu0 %v2986, 16
        %v3075 = vpop.permute.xlu0 %3074
        %3076 = vrot.lane.b32.xlu0 %v2987, 16
        %v3077 = vpop.permute.xlu0 %3076
        %3078 = vrot.lane.b32.xlu0 %v2988, 16
        %v3079 = vpop.permute.xlu0 %3078
        %3080 = vrot.lane.b32.xlu0 %v2989, 16
        %v3081 = vpop.permute.xlu0 %3080
        %3082 = vrot.lane.b32.xlu0 %v2990, 16
        %v3083 = vpop.permute.xlu0 %3082
        %3084 = vrot.lane.b32.xlu0 %v2991, 16
        %v3085 = vpop.permute.xlu0 %3084
        %3086 = vrot.lane.b32.xlu0 %v2992, 16
        %v3087 = vpop.permute.xlu0 %3086
        %3088 = vrot.lane.b32.xlu0 %v2993, 16
        %v3089 = vpop.permute.xlu0 %3088
        %3106 = vst.msk [vmem:[%s2558] sm:$0xff] %vm2073, %v3059
        %3107 = vst.msk [vmem:[%s2558 + $0x8] sm:$0xff] %vm2073, %v3061
        %3108 = vst.msk [vmem:[%s2558 + $0x10] sm:$0xff] %vm2073, %v3063
        %3109 = vst.msk [vmem:[%s2558 + $0x18] sm:$0xff] %vm2073, %v3065
        %3110 = vst.msk [vmem:[%s2558 + $0x20] sm:$0xff] %vm2073, %v3067
        %3111 = vst.msk [vmem:[%s2558 + $0x28] sm:$0xff] %vm2073, %v3069
        %3112 = vst.msk [vmem:[%s2558 + $0x30] sm:$0xff] %vm2073, %v3071
        %3113 = vst.msk [vmem:[%s2558 + $0x38] sm:$0xff] %vm2073, %v3073
        %3114 = vst.msk [vmem:[%s2558 + $0x40] sm:$0xff] %vm2073, %v3075
        %3115 = vst.msk [vmem:[%s2558 + $0x48] sm:$0xff] %vm2073, %v3077
        %3116 = vst.msk [vmem:[%s2558 + $0x50] sm:$0xff] %vm2073, %v3079
        %3117 = vst.msk [vmem:[%s2558 + $0x58] sm:$0xff] %vm2073, %v3081
        %3118 = vst.msk [vmem:[%s2558 + $0x60] sm:$0xff] %vm2073, %v3083
        %3119 = vst.msk [vmem:[%s2558 + $0x68] sm:$0xff] %vm2073, %v3085
        %3120 = vst.msk [vmem:[%s2558 + $0x70] sm:$0xff] %vm2073, %v3087
        %3121 = vst.msk [vmem:[%s2558 + $0x78] sm:$0xff] %vm2073, %v3089
        %3138 = vrot.lane.b32.xlu0 %v3026, 24
        %v3139 = vpop.permute.xlu0 %3138
        %3140 = vrot.lane.b32.xlu0 %v3027, 24
        %v3141 = vpop.permute.xlu0 %3140
        %3142 = vrot.lane.b32.xlu0 %v3028, 24
        %v3143 = vpop.permute.xlu0 %3142
        %3144 = vrot.lane.b32.xlu0 %v3029, 24
        %v3145 = vpop.permute.xlu0 %3144
        %3146 = vrot.lane.b32.xlu0 %v3030, 24
        %v3147 = vpop.permute.xlu0 %3146
        %3148 = vrot.lane.b32.xlu0 %v3031, 24
        %v3149 = vpop.permute.xlu0 %3148
        %3150 = vrot.lane.b32.xlu0 %v3032, 24
        %v3151 = vpop.permute.xlu0 %3150
        %3152 = vrot.lane.b32.xlu0 %v3033, 24
        %v3153 = vpop.permute.xlu0 %3152
        %3154 = vrot.lane.b32.xlu0 %v3034, 24
        %v3155 = vpop.permute.xlu0 %3154
        %3156 = vrot.lane.b32.xlu0 %v3035, 24
        %v3157 = vpop.permute.xlu0 %3156
        %3158 = vrot.lane.b32.xlu0 %v3036, 24
        %v3159 = vpop.permute.xlu0 %3158
        %3160 = vrot.lane.b32.xlu0 %v3037, 24
        %v3161 = vpop.permute.xlu0 %3160
        %3162 = vrot.lane.b32.xlu0 %v3038, 24
        %v3163 = vpop.permute.xlu0 %3162
        %3164 = vrot.lane.b32.xlu0 %v3039, 24
        %v3165 = vpop.permute.xlu0 %3164
        %3166 = vrot.lane.b32.xlu0 %v3040, 24
        %v3167 = vpop.permute.xlu0 %3166
        %3168 = vrot.lane.b32.xlu0 %v3041, 24
        %v3169 = vpop.permute.xlu0 %3168
        %3186 = vst.msk [vmem:[%s2558] sm:$0xff] %vm2154, %v3139
        %3187 = vst.msk [vmem:[%s2558 + $0x8] sm:$0xff] %vm2154, %v3141
        %3188 = vst.msk [vmem:[%s2558 + $0x10] sm:$0xff] %vm2154, %v3143
        %3189 = vst.msk [vmem:[%s2558 + $0x18] sm:$0xff] %vm2154, %v3145
        %3190 = vst.msk [vmem:[%s2558 + $0x20] sm:$0xff] %vm2154, %v3147
        %3191 = vst.msk [vmem:[%s2558 + $0x28] sm:$0xff] %vm2154, %v3149
        %3192 = vst.msk [vmem:[%s2558 + $0x30] sm:$0xff] %vm2154, %v3151
        %3193 = vst.msk [vmem:[%s2558 + $0x38] sm:$0xff] %vm2154, %v3153
        %3194 = vst.msk [vmem:[%s2558 + $0x40] sm:$0xff] %vm2154, %v3155
        %3195 = vst.msk [vmem:[%s2558 + $0x48] sm:$0xff] %vm2154, %v3157
        %3196 = vst.msk [vmem:[%s2558 + $0x50] sm:$0xff] %vm2154, %v3159
        %3197 = vst.msk [vmem:[%s2558 + $0x58] sm:$0xff] %vm2154, %v3161
        %3198 = vst.msk [vmem:[%s2558 + $0x60] sm:$0xff] %vm2154, %v3163
        %3199 = vst.msk [vmem:[%s2558 + $0x68] sm:$0xff] %vm2154, %v3165
        %3200 = vst.msk [vmem:[%s2558 + $0x70] sm:$0xff] %vm2154, %v3167
        %3201 = vst.msk [vmem:[%s2558 + $0x78] sm:$0xff] %vm2154, %v3169
        %3202 = vrot.lane.b32.xlu0 %v1196, 64
        %v3203 = vpop.permute.xlu0 %3202
        %3204 = vrot.lane.b32.xlu0 %v1197, 64
        %v3205 = vpop.permute.xlu0 %3204
        %3206 = vrot.lane.b32.xlu0 %v1198, 64
        %v3207 = vpop.permute.xlu0 %3206
        %3208 = vrot.lane.b32.xlu0 %v1199, 64
        %v3209 = vpop.permute.xlu0 %3208
        %3210 = vrot.lane.b32.xlu0 %v1200, 64
        %v3211 = vpop.permute.xlu0 %3210
        %3212 = vrot.lane.b32.xlu0 %v1201, 64
        %v3213 = vpop.permute.xlu0 %3212
        %3214 = vrot.lane.b32.xlu0 %v1202, 64
        %v3215 = vpop.permute.xlu0 %3214
        %3216 = vrot.lane.b32.xlu0 %v1203, 64
        %v3217 = vpop.permute.xlu0 %3216
        %3218 = vrot.lane.b32.xlu0 %v1204, 64
        %v3219 = vpop.permute.xlu0 %3218
        %3220 = vrot.lane.b32.xlu0 %v1205, 64
        %v3221 = vpop.permute.xlu0 %3220
        %3222 = vrot.lane.b32.xlu0 %v1206, 64
        %v3223 = vpop.permute.xlu0 %3222
        %3224 = vrot.lane.b32.xlu0 %v1207, 64
        %v3225 = vpop.permute.xlu0 %3224
        %3226 = vrot.lane.b32.xlu0 %v1208, 64
        %v3227 = vpop.permute.xlu0 %3226
        %3228 = vrot.lane.b32.xlu0 %v1209, 64
        %v3229 = vpop.permute.xlu0 %3228
        %3230 = vrot.lane.b32.xlu0 %v1210, 64
        %v3231 = vpop.permute.xlu0 %3230
        %3232 = vrot.lane.b32.xlu0 %v1211, 64
        %v3233 = vpop.permute.xlu0 %3232
        %v3250 = vsel %vm1212, %v3203, 0.0
        %3251 = vadd.xlane.f32.xlu0 %v3250
        %v3252 = vpop.xlane.xlu0 %3251
        %v3253 = vsel %vm1212, %v3205, 0.0
        %3254 = vadd.xlane.f32.xlu0 %v3253
        %v3255 = vpop.xlane.xlu0 %3254
        %v3256 = vsel %vm1212, %v3207, 0.0
        %3257 = vadd.xlane.f32.xlu0 %v3256
        %v3258 = vpop.xlane.xlu0 %3257
        %v3259 = vsel %vm1212, %v3209, 0.0
        %3260 = vadd.xlane.f32.xlu0 %v3259
        %v3261 = vpop.xlane.xlu0 %3260
        %v3262 = vsel %vm1212, %v3211, 0.0
        %3263 = vadd.xlane.f32.xlu0 %v3262
        %v3264 = vpop.xlane.xlu0 %3263
        %v3265 = vsel %vm1212, %v3213, 0.0
        %3266 = vadd.xlane.f32.xlu0 %v3265
        %v3267 = vpop.xlane.xlu0 %3266
        %v3268 = vsel %vm1212, %v3215, 0.0
        %3269 = vadd.xlane.f32.xlu0 %v3268
        %v3270 = vpop.xlane.xlu0 %3269
        %v3271 = vsel %vm1212, %v3217, 0.0
        %3272 = vadd.xlane.f32.xlu0 %v3271
        %v3273 = vpop.xlane.xlu0 %3272
        %v3274 = vsel %vm1212, %v3219, 0.0
        %3275 = vadd.xlane.f32.xlu0 %v3274
        %v3276 = vpop.xlane.xlu0 %3275
        %v3277 = vsel %vm1212, %v3221, 0.0
        %3278 = vadd.xlane.f32.xlu0 %v3277
        %v3279 = vpop.xlane.xlu0 %3278
        %v3280 = vsel %vm1212, %v3223, 0.0
        %3281 = vadd.xlane.f32.xlu0 %v3280
        %v3282 = vpop.xlane.xlu0 %3281
        %v3283 = vsel %vm1212, %v3225, 0.0
        %3284 = vadd.xlane.f32.xlu0 %v3283
        %v3285 = vpop.xlane.xlu0 %3284
        %v3286 = vsel %vm1212, %v3227, 0.0
        %3287 = vadd.xlane.f32.xlu0 %v3286
        %v3288 = vpop.xlane.xlu0 %3287
        %v3289 = vsel %vm1212, %v3229, 0.0
        %3290 = vadd.xlane.f32.xlu0 %v3289
        %v3291 = vpop.xlane.xlu0 %3290
        %v3292 = vsel %vm1212, %v3231, 0.0
        %3293 = vadd.xlane.f32.xlu0 %v3292
        %v3294 = vpop.xlane.xlu0 %3293
        %v3295 = vsel %vm1212, %v3233, 0.0
        %3296 = vadd.xlane.f32.xlu0 %v3295
        %v3297 = vpop.xlane.xlu0 %3296
        %v3298 = vmul.f32 %v3252, %v1261
        %v3299 = vmul.f32 %v3255, %v1261
        %v3300 = vmul.f32 %v3258, %v1261
        %v3301 = vmul.f32 %v3261, %v1261
        %v3302 = vmul.f32 %v3264, %v1261
        %v3303 = vmul.f32 %v3267, %v1261
        %v3304 = vmul.f32 %v3270, %v1261
        %v3305 = vmul.f32 %v3273, %v1261
        %v3306 = vmul.f32 %v3276, %v1261
        %v3307 = vmul.f32 %v3279, %v1261
        %v3308 = vmul.f32 %v3282, %v1261
        %v3309 = vmul.f32 %v3285, %v1261
        %v3310 = vmul.f32 %v3288, %v1261
        %v3311 = vmul.f32 %v3291, %v1261
        %v3312 = vmul.f32 %v3294, %v1261
        %v3313 = vmul.f32 %v3297, %v1261
        %v3314 = vadd.f32 %v3298, 1e-05
        %v3315 = vadd.f32 %v3299, 1e-05
        %v3316 = vadd.f32 %v3300, 1e-05
        %v3317 = vadd.f32 %v3301, 1e-05
        %v3318 = vadd.f32 %v3302, 1e-05
        %v3319 = vadd.f32 %v3303, 1e-05
        %v3320 = vadd.f32 %v3304, 1e-05
        %v3321 = vadd.f32 %v3305, 1e-05
        %v3322 = vadd.f32 %v3306, 1e-05
        %v3323 = vadd.f32 %v3307, 1e-05
        %v3324 = vadd.f32 %v3308, 1e-05
        %v3325 = vadd.f32 %v3309, 1e-05
        %v3326 = vadd.f32 %v3310, 1e-05
        %v3327 = vadd.f32 %v3311, 1e-05
        %v3328 = vadd.f32 %v3312, 1e-05
        %v3329 = vadd.f32 %v3313, 1e-05
        %v3330 = vrsqrt.pop %v3314
        %v3331 = vrsqrt.pop %v3315
        %v3332 = vrsqrt.pop %v3316
        %v3333 = vrsqrt.pop %v3317
        %v3334 = vrsqrt.pop %v3318
        %v3335 = vrsqrt.pop %v3319
        %v3336 = vrsqrt.pop %v3320
        %v3337 = vrsqrt.pop %v3321
        %v3338 = vrsqrt.pop %v3322
        %v3339 = vrsqrt.pop %v3323
        %v3340 = vrsqrt.pop %v3324
        %v3341 = vrsqrt.pop %v3325
        %v3342 = vrsqrt.pop %v3326
        %v3343 = vrsqrt.pop %v3327
        %v3344 = vrsqrt.pop %v3328
        %v3345 = vrsqrt.pop %v3329
        %v3346 = vmul.f32 %v1052, %v3330
        %v3347 = vmul.f32 %v1057, %v3331
        %v3348 = vmul.f32 %v1062, %v3332
        %v3349 = vmul.f32 %v1067, %v3333
        %v3350 = vmul.f32 %v1072, %v3334
        %v3351 = vmul.f32 %v1077, %v3335
        %v3352 = vmul.f32 %v1082, %v3336
        %v3353 = vmul.f32 %v1087, %v3337
        %v3354 = vmul.f32 %v1092, %v3338
        %v3355 = vmul.f32 %v1097, %v3339
        %v3356 = vmul.f32 %v1102, %v3340
        %v3357 = vmul.f32 %v1107, %v3341
        %v3358 = vmul.f32 %v1112, %v3342
        %v3359 = vmul.f32 %v1117, %v3343
        %v3360 = vmul.f32 %v1122, %v3344
        %v3361 = vmul.f32 %v1127, %v3345
        %v3363 = vlaneseq
        %v3364 = vshrl.u32 %v3363, 7
        %v3365 = vsub.s32 0, %v3364
        %v3366 = vrot.slane %v1195, %v3365
        %3367 = vrot.lane.b32.xlu0 %v3366, 64
        %v3368 = vpop.permute.xlu0 %3367
        %v3370 = vmul.f32 %v3346, %v3368
        %v3371 = vmul.f32 %v3347, %v3368
        %v3372 = vmul.f32 %v3348, %v3368
        %v3373 = vmul.f32 %v3349, %v3368
        %v3374 = vmul.f32 %v3350, %v3368
        %v3375 = vmul.f32 %v3351, %v3368
        %v3376 = vmul.f32 %v3352, %v3368
        %v3377 = vmul.f32 %v3353, %v3368
        %v3378 = vmul.f32 %v3354, %v3368
        %v3379 = vmul.f32 %v3355, %v3368
        %v3380 = vmul.f32 %v3356, %v3368
        %v3381 = vmul.f32 %v3357, %v3368
        %v3382 = vmul.f32 %v3358, %v3368
        %v3383 = vmul.f32 %v3359, %v3368
        %v3384 = vmul.f32 %v3360, %v3368
        %v3385 = vmul.f32 %v3361, %v3368
        %3402 = vrot.lane.b32.xlu0 %v3370, 64
        %v3403 = vpop.permute.xlu0 %3402
        %3404 = vrot.lane.b32.xlu0 %v3371, 64
        %v3405 = vpop.permute.xlu0 %3404
        %3406 = vrot.lane.b32.xlu0 %v3372, 64
        %v3407 = vpop.permute.xlu0 %3406
        %3408 = vrot.lane.b32.xlu0 %v3373, 64
        %v3409 = vpop.permute.xlu0 %3408
        %3410 = vrot.lane.b32.xlu0 %v3374, 64
        %v3411 = vpop.permute.xlu0 %3410
        %3412 = vrot.lane.b32.xlu0 %v3375, 64
        %v3413 = vpop.permute.xlu0 %3412
        %3414 = vrot.lane.b32.xlu0 %v3376, 64
        %v3415 = vpop.permute.xlu0 %3414
        %3416 = vrot.lane.b32.xlu0 %v3377, 64
        %v3417 = vpop.permute.xlu0 %3416
        %3418 = vrot.lane.b32.xlu0 %v3378, 64
        %v3419 = vpop.permute.xlu0 %3418
        %3420 = vrot.lane.b32.xlu0 %v3379, 64
        %v3421 = vpop.permute.xlu0 %3420
        %3422 = vrot.lane.b32.xlu0 %v3380, 64
        %v3423 = vpop.permute.xlu0 %3422
        %3424 = vrot.lane.b32.xlu0 %v3381, 64
        %v3425 = vpop.permute.xlu0 %3424
        %3426 = vrot.lane.b32.xlu0 %v3382, 64
        %v3427 = vpop.permute.xlu0 %3426
        %3428 = vrot.lane.b32.xlu0 %v3383, 64
        %v3429 = vpop.permute.xlu0 %3428
        %3430 = vrot.lane.b32.xlu0 %v3384, 64
        %v3431 = vpop.permute.xlu0 %3430
        %3432 = vrot.lane.b32.xlu0 %v3385, 64
        %v3433 = vpop.permute.xlu0 %3432
        %v3450 = vmul.f32 %v1130, %v3403
        %v3451 = vmul.f32 %v1131, %v3405
        %v3452 = vmul.f32 %v1132, %v3407
        %v3453 = vmul.f32 %v1133, %v3409
        %v3454 = vmul.f32 %v1134, %v3411
        %v3455 = vmul.f32 %v1135, %v3413
        %v3456 = vmul.f32 %v1136, %v3415
        %v3457 = vmul.f32 %v1137, %v3417
        %v3458 = vmul.f32 %v1138, %v3419
        %v3459 = vmul.f32 %v1139, %v3421
        %v3460 = vmul.f32 %v1140, %v3423
        %v3461 = vmul.f32 %v1141, %v3425
        %v3462 = vmul.f32 %v1142, %v3427
        %v3463 = vmul.f32 %v1143, %v3429
        %v3464 = vmul.f32 %v1144, %v3431
        %v3465 = vmul.f32 %v1145, %v3433
        %3466 = vrot.lane.b32.xlu0 %v3370, 56
        %v3467 = vpop.permute.xlu0 %3466
        %3468 = vrot.lane.b32.xlu0 %v3371, 56
        %v3469 = vpop.permute.xlu0 %3468
        %3470 = vrot.lane.b32.xlu0 %v3372, 56
        %v3471 = vpop.permute.xlu0 %3470
        %3472 = vrot.lane.b32.xlu0 %v3373, 56
        %v3473 = vpop.permute.xlu0 %3472
        %3474 = vrot.lane.b32.xlu0 %v3374, 56
        %v3475 = vpop.permute.xlu0 %3474
        %3476 = vrot.lane.b32.xlu0 %v3375, 56
        %v3477 = vpop.permute.xlu0 %3476
        %3478 = vrot.lane.b32.xlu0 %v3376, 56
        %v3479 = vpop.permute.xlu0 %3478
        %3480 = vrot.lane.b32.xlu0 %v3377, 56
        %v3481 = vpop.permute.xlu0 %3480
        %3482 = vrot.lane.b32.xlu0 %v3378, 56
        %v3483 = vpop.permute.xlu0 %3482
        %3484 = vrot.lane.b32.xlu0 %v3379, 56
        %v3485 = vpop.permute.xlu0 %3484
        %3486 = vrot.lane.b32.xlu0 %v3380, 56
        %v3487 = vpop.permute.xlu0 %3486
        %3488 = vrot.lane.b32.xlu0 %v3381, 56
        %v3489 = vpop.permute.xlu0 %3488
        %3490 = vrot.lane.b32.xlu0 %v3382, 56
        %v3491 = vpop.permute.xlu0 %3490
        %3492 = vrot.lane.b32.xlu0 %v3383, 56
        %v3493 = vpop.permute.xlu0 %3492
        %3494 = vrot.lane.b32.xlu0 %v3384, 56
        %v3495 = vpop.permute.xlu0 %3494
        %3496 = vrot.lane.b32.xlu0 %v3385, 56
        %v3497 = vpop.permute.xlu0 %3496
        %v3514 = vmul.f32 %v1146, %v3467
        %v3515 = vmul.f32 %v1147, %v3469
        %v3516 = vmul.f32 %v1148, %v3471
        %v3517 = vmul.f32 %v1149, %v3473
        %v3518 = vmul.f32 %v1150, %v3475
        %v3519 = vmul.f32 %v1151, %v3477
        %v3520 = vmul.f32 %v1152, %v3479
        %v3521 = vmul.f32 %v1153, %v3481
        %v3522 = vmul.f32 %v1154, %v3483
        %v3523 = vmul.f32 %v1155, %v3485
        %v3524 = vmul.f32 %v1156, %v3487
        %v3525 = vmul.f32 %v1157, %v3489
        %v3526 = vmul.f32 %v1158, %v3491
        %v3527 = vmul.f32 %v1159, %v3493
        %v3528 = vmul.f32 %v1160, %v3495
        %v3529 = vmul.f32 %v1161, %v3497
        %v3530 = vadd.f32 %v3450, %v3514
        %v3531 = vadd.f32 %v3451, %v3515
        %v3532 = vadd.f32 %v3452, %v3516
        %v3533 = vadd.f32 %v3453, %v3517
        %v3534 = vadd.f32 %v3454, %v3518
        %v3535 = vadd.f32 %v3455, %v3519
        %v3536 = vadd.f32 %v3456, %v3520
        %v3537 = vadd.f32 %v3457, %v3521
        %v3538 = vadd.f32 %v3458, %v3522
        %v3539 = vadd.f32 %v3459, %v3523
        %v3540 = vadd.f32 %v3460, %v3524
        %v3541 = vadd.f32 %v3461, %v3525
        %v3542 = vadd.f32 %v3462, %v3526
        %v3543 = vadd.f32 %v3463, %v3527
        %v3544 = vadd.f32 %v3464, %v3528
        %v3545 = vadd.f32 %v3465, %v3529
        %v3546 = vmul.f32 %v1162, %v3403
        %v3547 = vmul.f32 %v1163, %v3405
        %v3548 = vmul.f32 %v1164, %v3407
        %v3549 = vmul.f32 %v1165, %v3409
        %v3550 = vmul.f32 %v1166, %v3411
        %v3551 = vmul.f32 %v1167, %v3413
        %v3552 = vmul.f32 %v1168, %v3415
        %v3553 = vmul.f32 %v1169, %v3417
        %v3554 = vmul.f32 %v1170, %v3419
        %v3555 = vmul.f32 %v1171, %v3421
        %v3556 = vmul.f32 %v1172, %v3423
        %v3557 = vmul.f32 %v1173, %v3425
        %v3558 = vmul.f32 %v1174, %v3427
        %v3559 = vmul.f32 %v1175, %v3429
        %v3560 = vmul.f32 %v1176, %v3431
        %v3561 = vmul.f32 %v1177, %v3433
        %v3562 = vmul.f32 %v1178, %v3467
        %v3563 = vmul.f32 %v1179, %v3469
        %v3564 = vmul.f32 %v1180, %v3471
        %v3565 = vmul.f32 %v1181, %v3473
        %v3566 = vmul.f32 %v1182, %v3475
        %v3567 = vmul.f32 %v1183, %v3477
        %v3568 = vmul.f32 %v1184, %v3479
        %v3569 = vmul.f32 %v1185, %v3481
        %v3570 = vmul.f32 %v1186, %v3483
        %v3571 = vmul.f32 %v1187, %v3485
        %v3572 = vmul.f32 %v1188, %v3487
        %v3573 = vmul.f32 %v1189, %v3489
        %v3574 = vmul.f32 %v1190, %v3491
        %v3575 = vmul.f32 %v1191, %v3493
        %v3576 = vmul.f32 %v1192, %v3495
        %v3577 = vmul.f32 %v1193, %v3497
        %v3578 = vadd.f32 %v3546, %v3562
        %v3579 = vadd.f32 %v3547, %v3563
        %v3580 = vadd.f32 %v3548, %v3564
        %v3581 = vadd.f32 %v3549, %v3565
        %v3582 = vadd.f32 %v3550, %v3566
        %v3583 = vadd.f32 %v3551, %v3567
        %v3584 = vadd.f32 %v3552, %v3568
        %v3585 = vadd.f32 %v3553, %v3569
        %v3586 = vadd.f32 %v3554, %v3570
        %v3587 = vadd.f32 %v3555, %v3571
        %v3588 = vadd.f32 %v3556, %v3572
        %v3589 = vadd.f32 %v3557, %v3573
        %v3590 = vadd.f32 %v3558, %v3574
        %v3591 = vadd.f32 %v3559, %v3575
        %v3592 = vadd.f32 %v3560, %v3576
        %v3593 = vadd.f32 %v3561, %v3577
        %3594 = vst.msk [vmem:[%s720] sm:$0xff] %vm1508, %v3530
        %3595 = vst.msk [vmem:[%s720 + $0x8] sm:$0xff] %vm1508, %v3531
        %3596 = vst.msk [vmem:[%s720 + $0x10] sm:$0xff] %vm1508, %v3532
        %3597 = vst.msk [vmem:[%s720 + $0x18] sm:$0xff] %vm1508, %v3533
        %3598 = vst.msk [vmem:[%s720 + $0x20] sm:$0xff] %vm1508, %v3534
        %3599 = vst.msk [vmem:[%s720 + $0x28] sm:$0xff] %vm1508, %v3535
        %3600 = vst.msk [vmem:[%s720 + $0x30] sm:$0xff] %vm1508, %v3536
        %3601 = vst.msk [vmem:[%s720 + $0x38] sm:$0xff] %vm1508, %v3537
        %3602 = vst.msk [vmem:[%s720 + $0x40] sm:$0xff] %vm1508, %v3538
        %3603 = vst.msk [vmem:[%s720 + $0x48] sm:$0xff] %vm1508, %v3539
        %3604 = vst.msk [vmem:[%s720 + $0x50] sm:$0xff] %vm1508, %v3540
        %3605 = vst.msk [vmem:[%s720 + $0x58] sm:$0xff] %vm1508, %v3541
        %3606 = vst.msk [vmem:[%s720 + $0x60] sm:$0xff] %vm1508, %v3542
        %3607 = vst.msk [vmem:[%s720 + $0x68] sm:$0xff] %vm1508, %v3543
        %3608 = vst.msk [vmem:[%s720 + $0x70] sm:$0xff] %vm1508, %v3544
        %3609 = vst.msk [vmem:[%s720 + $0x78] sm:$0xff] %vm1508, %v3545
        %3626 = vrot.lane.b32.xlu0 %v3578, 8
        %v3627 = vpop.permute.xlu0 %3626
        %3628 = vrot.lane.b32.xlu0 %v3579, 8
        %v3629 = vpop.permute.xlu0 %3628
        %3630 = vrot.lane.b32.xlu0 %v3580, 8
        %v3631 = vpop.permute.xlu0 %3630
        %3632 = vrot.lane.b32.xlu0 %v3581, 8
        %v3633 = vpop.permute.xlu0 %3632
        %3634 = vrot.lane.b32.xlu0 %v3582, 8
        %v3635 = vpop.permute.xlu0 %3634
        %3636 = vrot.lane.b32.xlu0 %v3583, 8
        %v3637 = vpop.permute.xlu0 %3636
        %3638 = vrot.lane.b32.xlu0 %v3584, 8
        %v3639 = vpop.permute.xlu0 %3638
        %3640 = vrot.lane.b32.xlu0 %v3585, 8
        %v3641 = vpop.permute.xlu0 %3640
        %3642 = vrot.lane.b32.xlu0 %v3586, 8
        %v3643 = vpop.permute.xlu0 %3642
        %3644 = vrot.lane.b32.xlu0 %v3587, 8
        %v3645 = vpop.permute.xlu0 %3644
        %3646 = vrot.lane.b32.xlu0 %v3588, 8
        %v3647 = vpop.permute.xlu0 %3646
        %3648 = vrot.lane.b32.xlu0 %v3589, 8
        %v3649 = vpop.permute.xlu0 %3648
        %3650 = vrot.lane.b32.xlu0 %v3590, 8
        %v3651 = vpop.permute.xlu0 %3650
        %3652 = vrot.lane.b32.xlu0 %v3591, 8
        %v3653 = vpop.permute.xlu0 %3652
        %3654 = vrot.lane.b32.xlu0 %v3592, 8
        %v3655 = vpop.permute.xlu0 %3654
        %3656 = vrot.lane.b32.xlu0 %v3593, 8
        %v3657 = vpop.permute.xlu0 %3656
        %3674 = vst.msk [vmem:[%s720] sm:$0xff] %vm1589, %v3627
        %3675 = vst.msk [vmem:[%s720 + $0x8] sm:$0xff] %vm1589, %v3629
        %3676 = vst.msk [vmem:[%s720 + $0x10] sm:$0xff] %vm1589, %v3631
        %3677 = vst.msk [vmem:[%s720 + $0x18] sm:$0xff] %vm1589, %v3633
        %3678 = vst.msk [vmem:[%s720 + $0x20] sm:$0xff] %vm1589, %v3635
        %3679 = vst.msk [vmem:[%s720 + $0x28] sm:$0xff] %vm1589, %v3637
        %3680 = vst.msk [vmem:[%s720 + $0x30] sm:$0xff] %vm1589, %v3639
        %3681 = vst.msk [vmem:[%s720 + $0x38] sm:$0xff] %vm1589, %v3641
        %3682 = vst.msk [vmem:[%s720 + $0x40] sm:$0xff] %vm1589, %v3643
        %3683 = vst.msk [vmem:[%s720 + $0x48] sm:$0xff] %vm1589, %v3645
        %3684 = vst.msk [vmem:[%s720 + $0x50] sm:$0xff] %vm1589, %v3647
        %3685 = vst.msk [vmem:[%s720 + $0x58] sm:$0xff] %vm1589, %v3649
        %3686 = vst.msk [vmem:[%s720 + $0x60] sm:$0xff] %vm1589, %v3651
        %3687 = vst.msk [vmem:[%s720 + $0x68] sm:$0xff] %vm1589, %v3653
        %3688 = vst.msk [vmem:[%s720 + $0x70] sm:$0xff] %vm1589, %v3655
        %3689 = vst.msk [vmem:[%s720 + $0x78] sm:$0xff] %vm1589, %v3657
        %3690 = vrot.lane.b32.xlu0 %v1196, 48
        %v3691 = vpop.permute.xlu0 %3690
        %3692 = vrot.lane.b32.xlu0 %v1197, 48
        %v3693 = vpop.permute.xlu0 %3692
        %3694 = vrot.lane.b32.xlu0 %v1198, 48
        %v3695 = vpop.permute.xlu0 %3694
        %3696 = vrot.lane.b32.xlu0 %v1199, 48
        %v3697 = vpop.permute.xlu0 %3696
        %3698 = vrot.lane.b32.xlu0 %v1200, 48
        %v3699 = vpop.permute.xlu0 %3698
        %3700 = vrot.lane.b32.xlu0 %v1201, 48
        %v3701 = vpop.permute.xlu0 %3700
        %3702 = vrot.lane.b32.xlu0 %v1202, 48
        %v3703 = vpop.permute.xlu0 %3702
        %3704 = vrot.lane.b32.xlu0 %v1203, 48
        %v3705 = vpop.permute.xlu0 %3704
        %3706 = vrot.lane.b32.xlu0 %v1204, 48
        %v3707 = vpop.permute.xlu0 %3706
        %3708 = vrot.lane.b32.xlu0 %v1205, 48
        %v3709 = vpop.permute.xlu0 %3708
        %3710 = vrot.lane.b32.xlu0 %v1206, 48
        %v3711 = vpop.permute.xlu0 %3710
        %3712 = vrot.lane.b32.xlu0 %v1207, 48
        %v3713 = vpop.permute.xlu0 %3712
        %3714 = vrot.lane.b32.xlu0 %v1208, 48
        %v3715 = vpop.permute.xlu0 %3714
        %3716 = vrot.lane.b32.xlu0 %v1209, 48
        %v3717 = vpop.permute.xlu0 %3716
        %3718 = vrot.lane.b32.xlu0 %v1210, 48
        %v3719 = vpop.permute.xlu0 %3718
        %3720 = vrot.lane.b32.xlu0 %v1211, 48
        %v3721 = vpop.permute.xlu0 %3720
        %v3738 = vsel %vm1212, %v3691, 0.0
        %3739 = vadd.xlane.f32.xlu0 %v3738
        %v3740 = vpop.xlane.xlu0 %3739
        %v3741 = vsel %vm1212, %v3693, 0.0
        %3742 = vadd.xlane.f32.xlu0 %v3741
        %v3743 = vpop.xlane.xlu0 %3742
        %v3744 = vsel %vm1212, %v3695, 0.0
        %3745 = vadd.xlane.f32.xlu0 %v3744
        %v3746 = vpop.xlane.xlu0 %3745
        %v3747 = vsel %vm1212, %v3697, 0.0
        %3748 = vadd.xlane.f32.xlu0 %v3747
        %v3749 = vpop.xlane.xlu0 %3748
        %v3750 = vsel %vm1212, %v3699, 0.0
        %3751 = vadd.xlane.f32.xlu0 %v3750
        %v3752 = vpop.xlane.xlu0 %3751
        %v3753 = vsel %vm1212, %v3701, 0.0
        %3754 = vadd.xlane.f32.xlu0 %v3753
        %v3755 = vpop.xlane.xlu0 %3754
        %v3756 = vsel %vm1212, %v3703, 0.0
        %3757 = vadd.xlane.f32.xlu0 %v3756
        %v3758 = vpop.xlane.xlu0 %3757
        %v3759 = vsel %vm1212, %v3705, 0.0
        %3760 = vadd.xlane.f32.xlu0 %v3759
        %v3761 = vpop.xlane.xlu0 %3760
        %v3762 = vsel %vm1212, %v3707, 0.0
        %3763 = vadd.xlane.f32.xlu0 %v3762
        %v3764 = vpop.xlane.xlu0 %3763
        %v3765 = vsel %vm1212, %v3709, 0.0
        %3766 = vadd.xlane.f32.xlu0 %v3765
        %v3767 = vpop.xlane.xlu0 %3766
        %v3768 = vsel %vm1212, %v3711, 0.0
        %3769 = vadd.xlane.f32.xlu0 %v3768
        %v3770 = vpop.xlane.xlu0 %3769
        %v3771 = vsel %vm1212, %v3713, 0.0
        %3772 = vadd.xlane.f32.xlu0 %v3771
        %v3773 = vpop.xlane.xlu0 %3772
        %v3774 = vsel %vm1212, %v3715, 0.0
        %3775 = vadd.xlane.f32.xlu0 %v3774
        %v3776 = vpop.xlane.xlu0 %3775
        %v3777 = vsel %vm1212, %v3717, 0.0
        %3778 = vadd.xlane.f32.xlu0 %v3777
        %v3779 = vpop.xlane.xlu0 %3778
        %v3780 = vsel %vm1212, %v3719, 0.0
        %3781 = vadd.xlane.f32.xlu0 %v3780
        %v3782 = vpop.xlane.xlu0 %3781
        %v3783 = vsel %vm1212, %v3721, 0.0
        %3784 = vadd.xlane.f32.xlu0 %v3783
        %v3785 = vpop.xlane.xlu0 %3784
        %v3786 = vmul.f32 %v3740, %v1261
        %v3787 = vmul.f32 %v3743, %v1261
        %v3788 = vmul.f32 %v3746, %v1261
        %v3789 = vmul.f32 %v3749, %v1261
        %v3790 = vmul.f32 %v3752, %v1261
        %v3791 = vmul.f32 %v3755, %v1261
        %v3792 = vmul.f32 %v3758, %v1261
        %v3793 = vmul.f32 %v3761, %v1261
        %v3794 = vmul.f32 %v3764, %v1261
        %v3795 = vmul.f32 %v3767, %v1261
        %v3796 = vmul.f32 %v3770, %v1261
        %v3797 = vmul.f32 %v3773, %v1261
        %v3798 = vmul.f32 %v3776, %v1261
        %v3799 = vmul.f32 %v3779, %v1261
        %v3800 = vmul.f32 %v3782, %v1261
        %v3801 = vmul.f32 %v3785, %v1261
        %v3802 = vadd.f32 %v3786, 1e-05
        %v3803 = vadd.f32 %v3787, 1e-05
        %v3804 = vadd.f32 %v3788, 1e-05
        %v3805 = vadd.f32 %v3789, 1e-05
        %v3806 = vadd.f32 %v3790, 1e-05
        %v3807 = vadd.f32 %v3791, 1e-05
        %v3808 = vadd.f32 %v3792, 1e-05
        %v3809 = vadd.f32 %v3793, 1e-05
        %v3810 = vadd.f32 %v3794, 1e-05
        %v3811 = vadd.f32 %v3795, 1e-05
        %v3812 = vadd.f32 %v3796, 1e-05
        %v3813 = vadd.f32 %v3797, 1e-05
        %v3814 = vadd.f32 %v3798, 1e-05
        %v3815 = vadd.f32 %v3799, 1e-05
        %v3816 = vadd.f32 %v3800, 1e-05
        %v3817 = vadd.f32 %v3801, 1e-05
        %v3818 = vrsqrt.pop %v3802
        %v3819 = vrsqrt.pop %v3803
        %v3820 = vrsqrt.pop %v3804
        %v3821 = vrsqrt.pop %v3805
        %v3822 = vrsqrt.pop %v3806
        %v3823 = vrsqrt.pop %v3807
        %v3824 = vrsqrt.pop %v3808
        %v3825 = vrsqrt.pop %v3809
        %v3826 = vrsqrt.pop %v3810
        %v3827 = vrsqrt.pop %v3811
        %v3828 = vrsqrt.pop %v3812
        %v3829 = vrsqrt.pop %v3813
        %v3830 = vrsqrt.pop %v3814
        %v3831 = vrsqrt.pop %v3815
        %v3832 = vrsqrt.pop %v3816
        %v3833 = vrsqrt.pop %v3817
        %v3834 = vmul.f32 %v1052, %v3818
        %v3835 = vmul.f32 %v1057, %v3819
        %v3836 = vmul.f32 %v1062, %v3820
        %v3837 = vmul.f32 %v1067, %v3821
        %v3838 = vmul.f32 %v1072, %v3822
        %v3839 = vmul.f32 %v1077, %v3823
        %v3840 = vmul.f32 %v1082, %v3824
        %v3841 = vmul.f32 %v1087, %v3825
        %v3842 = vmul.f32 %v1092, %v3826
        %v3843 = vmul.f32 %v1097, %v3827
        %v3844 = vmul.f32 %v1102, %v3828
        %v3845 = vmul.f32 %v1107, %v3829
        %v3846 = vmul.f32 %v1112, %v3830
        %v3847 = vmul.f32 %v1117, %v3831
        %v3848 = vmul.f32 %v1122, %v3832
        %v3849 = vmul.f32 %v1127, %v3833
        %3850 = vrot.lane.b32.xlu0 %v3366, 80
        %v3851 = vpop.permute.xlu0 %3850
        %v3853 = vmul.f32 %v3834, %v3851
        %v3854 = vmul.f32 %v3835, %v3851
        %v3855 = vmul.f32 %v3836, %v3851
        %v3856 = vmul.f32 %v3837, %v3851
        %v3857 = vmul.f32 %v3838, %v3851
        %v3858 = vmul.f32 %v3839, %v3851
        %v3859 = vmul.f32 %v3840, %v3851
        %v3860 = vmul.f32 %v3841, %v3851
        %v3861 = vmul.f32 %v3842, %v3851
        %v3862 = vmul.f32 %v3843, %v3851
        %v3863 = vmul.f32 %v3844, %v3851
        %v3864 = vmul.f32 %v3845, %v3851
        %v3865 = vmul.f32 %v3846, %v3851
        %v3866 = vmul.f32 %v3847, %v3851
        %v3867 = vmul.f32 %v3848, %v3851
        %v3868 = vmul.f32 %v3849, %v3851
        %3885 = vrot.lane.b32.xlu0 %v3853, 48
        %v3886 = vpop.permute.xlu0 %3885
        %3887 = vrot.lane.b32.xlu0 %v3854, 48
        %v3888 = vpop.permute.xlu0 %3887
        %3889 = vrot.lane.b32.xlu0 %v3855, 48
        %v3890 = vpop.permute.xlu0 %3889
        %3891 = vrot.lane.b32.xlu0 %v3856, 48
        %v3892 = vpop.permute.xlu0 %3891
        %3893 = vrot.lane.b32.xlu0 %v3857, 48
        %v3894 = vpop.permute.xlu0 %3893
        %3895 = vrot.lane.b32.xlu0 %v3858, 48
        %v3896 = vpop.permute.xlu0 %3895
        %3897 = vrot.lane.b32.xlu0 %v3859, 48
        %v3898 = vpop.permute.xlu0 %3897
        %3899 = vrot.lane.b32.xlu0 %v3860, 48
        %v3900 = vpop.permute.xlu0 %3899
        %3901 = vrot.lane.b32.xlu0 %v3861, 48
        %v3902 = vpop.permute.xlu0 %3901
        %3903 = vrot.lane.b32.xlu0 %v3862, 48
        %v3904 = vpop.permute.xlu0 %3903
        %3905 = vrot.lane.b32.xlu0 %v3863, 48
        %v3906 = vpop.permute.xlu0 %3905
        %3907 = vrot.lane.b32.xlu0 %v3864, 48
        %v3908 = vpop.permute.xlu0 %3907
        %3909 = vrot.lane.b32.xlu0 %v3865, 48
        %v3910 = vpop.permute.xlu0 %3909
        %3911 = vrot.lane.b32.xlu0 %v3866, 48
        %v3912 = vpop.permute.xlu0 %3911
        %3913 = vrot.lane.b32.xlu0 %v3867, 48
        %v3914 = vpop.permute.xlu0 %3913
        %3915 = vrot.lane.b32.xlu0 %v3868, 48
        %v3916 = vpop.permute.xlu0 %3915
        %v3933 = vmul.f32 %v1130, %v3886
        %v3934 = vmul.f32 %v1131, %v3888
        %v3935 = vmul.f32 %v1132, %v3890
        %v3936 = vmul.f32 %v1133, %v3892
        %v3937 = vmul.f32 %v1134, %v3894
        %v3938 = vmul.f32 %v1135, %v3896
        %v3939 = vmul.f32 %v1136, %v3898
        %v3940 = vmul.f32 %v1137, %v3900
        %v3941 = vmul.f32 %v1138, %v3902
        %v3942 = vmul.f32 %v1139, %v3904
        %v3943 = vmul.f32 %v1140, %v3906
        %v3944 = vmul.f32 %v1141, %v3908
        %v3945 = vmul.f32 %v1142, %v3910
        %v3946 = vmul.f32 %v1143, %v3912
        %v3947 = vmul.f32 %v1144, %v3914
        %v3948 = vmul.f32 %v1145, %v3916
        %3949 = vrot.lane.b32.xlu0 %v3853, 40
        %v3950 = vpop.permute.xlu0 %3949
        %3951 = vrot.lane.b32.xlu0 %v3854, 40
        %v3952 = vpop.permute.xlu0 %3951
        %3953 = vrot.lane.b32.xlu0 %v3855, 40
        %v3954 = vpop.permute.xlu0 %3953
        %3955 = vrot.lane.b32.xlu0 %v3856, 40
        %v3956 = vpop.permute.xlu0 %3955
        %3957 = vrot.lane.b32.xlu0 %v3857, 40
        %v3958 = vpop.permute.xlu0 %3957
        %3959 = vrot.lane.b32.xlu0 %v3858, 40
        %v3960 = vpop.permute.xlu0 %3959
        %3961 = vrot.lane.b32.xlu0 %v3859, 40
        %v3962 = vpop.permute.xlu0 %3961
        %3963 = vrot.lane.b32.xlu0 %v3860, 40
        %v3964 = vpop.permute.xlu0 %3963
        %3965 = vrot.lane.b32.xlu0 %v3861, 40
        %v3966 = vpop.permute.xlu0 %3965
        %3967 = vrot.lane.b32.xlu0 %v3862, 40
        %v3968 = vpop.permute.xlu0 %3967
        %3969 = vrot.lane.b32.xlu0 %v3863, 40
        %v3970 = vpop.permute.xlu0 %3969
        %3971 = vrot.lane.b32.xlu0 %v3864, 40
        %v3972 = vpop.permute.xlu0 %3971
        %3973 = vrot.lane.b32.xlu0 %v3865, 40
        %v3974 = vpop.permute.xlu0 %3973
        %3975 = vrot.lane.b32.xlu0 %v3866, 40
        %v3976 = vpop.permute.xlu0 %3975
        %3977 = vrot.lane.b32.xlu0 %v3867, 40
        %v3978 = vpop.permute.xlu0 %3977
        %3979 = vrot.lane.b32.xlu0 %v3868, 40
        %v3980 = vpop.permute.xlu0 %3979
        %v3997 = vmul.f32 %v1146, %v3950
        %v3998 = vmul.f32 %v1147, %v3952
        %v3999 = vmul.f32 %v1148, %v3954
        %v4000 = vmul.f32 %v1149, %v3956
        %v4001 = vmul.f32 %v1150, %v3958
        %v4002 = vmul.f32 %v1151, %v3960
        %v4003 = vmul.f32 %v1152, %v3962
        %v4004 = vmul.f32 %v1153, %v3964
        %v4005 = vmul.f32 %v1154, %v3966
        %v4006 = vmul.f32 %v1155, %v3968
        %v4007 = vmul.f32 %v1156, %v3970
        %v4008 = vmul.f32 %v1157, %v3972
        %v4009 = vmul.f32 %v1158, %v3974
        %v4010 = vmul.f32 %v1159, %v3976
        %v4011 = vmul.f32 %v1160, %v3978
        %v4012 = vmul.f32 %v1161, %v3980
        %v4013 = vadd.f32 %v3933, %v3997
        %v4014 = vadd.f32 %v3934, %v3998
        %v4015 = vadd.f32 %v3935, %v3999
        %v4016 = vadd.f32 %v3936, %v4000
        %v4017 = vadd.f32 %v3937, %v4001
        %v4018 = vadd.f32 %v3938, %v4002
        %v4019 = vadd.f32 %v3939, %v4003
        %v4020 = vadd.f32 %v3940, %v4004
        %v4021 = vadd.f32 %v3941, %v4005
        %v4022 = vadd.f32 %v3942, %v4006
        %v4023 = vadd.f32 %v3943, %v4007
        %v4024 = vadd.f32 %v3944, %v4008
        %v4025 = vadd.f32 %v3945, %v4009
        %v4026 = vadd.f32 %v3946, %v4010
        %v4027 = vadd.f32 %v3947, %v4011
        %v4028 = vadd.f32 %v3948, %v4012
        %v4029 = vmul.f32 %v1162, %v3886
        %v4030 = vmul.f32 %v1163, %v3888
        %v4031 = vmul.f32 %v1164, %v3890
        %v4032 = vmul.f32 %v1165, %v3892
        %v4033 = vmul.f32 %v1166, %v3894
        %v4034 = vmul.f32 %v1167, %v3896
        %v4035 = vmul.f32 %v1168, %v3898
        %v4036 = vmul.f32 %v1169, %v3900
        %v4037 = vmul.f32 %v1170, %v3902
        %v4038 = vmul.f32 %v1171, %v3904
        %v4039 = vmul.f32 %v1172, %v3906
        %v4040 = vmul.f32 %v1173, %v3908
        %v4041 = vmul.f32 %v1174, %v3910
        %v4042 = vmul.f32 %v1175, %v3912
        %v4043 = vmul.f32 %v1176, %v3914
        %v4044 = vmul.f32 %v1177, %v3916
        %v4045 = vmul.f32 %v1178, %v3950
        %v4046 = vmul.f32 %v1179, %v3952
        %v4047 = vmul.f32 %v1180, %v3954
        %v4048 = vmul.f32 %v1181, %v3956
        %v4049 = vmul.f32 %v1182, %v3958
        %v4050 = vmul.f32 %v1183, %v3960
        %v4051 = vmul.f32 %v1184, %v3962
        %v4052 = vmul.f32 %v1185, %v3964
        %v4053 = vmul.f32 %v1186, %v3966
        %v4054 = vmul.f32 %v1187, %v3968
        %v4055 = vmul.f32 %v1188, %v3970
        %v4056 = vmul.f32 %v1189, %v3972
        %v4057 = vmul.f32 %v1190, %v3974
        %v4058 = vmul.f32 %v1191, %v3976
        %v4059 = vmul.f32 %v1192, %v3978
        %v4060 = vmul.f32 %v1193, %v3980
        %v4061 = vadd.f32 %v4029, %v4045
        %v4062 = vadd.f32 %v4030, %v4046
        %v4063 = vadd.f32 %v4031, %v4047
        %v4064 = vadd.f32 %v4032, %v4048
        %v4065 = vadd.f32 %v4033, %v4049
        %v4066 = vadd.f32 %v4034, %v4050
        %v4067 = vadd.f32 %v4035, %v4051
        %v4068 = vadd.f32 %v4036, %v4052
        %v4069 = vadd.f32 %v4037, %v4053
        %v4070 = vadd.f32 %v4038, %v4054
        %v4071 = vadd.f32 %v4039, %v4055
        %v4072 = vadd.f32 %v4040, %v4056
        %v4073 = vadd.f32 %v4041, %v4057
        %v4074 = vadd.f32 %v4042, %v4058
        %v4075 = vadd.f32 %v4043, %v4059
        %v4076 = vadd.f32 %v4044, %v4060
        %s4077 = scalar_lea.vmem %s720, 128 [#allocation20]
        %4078 = vst.msk [vmem:[%s4077] sm:$0xff] %vm1508, %v4013
        %4079 = vst.msk [vmem:[%s4077 + $0x8] sm:$0xff] %vm1508, %v4014
        %4080 = vst.msk [vmem:[%s4077 + $0x10] sm:$0xff] %vm1508, %v4015
        %4081 = vst.msk [vmem:[%s4077 + $0x18] sm:$0xff] %vm1508, %v4016
        %4082 = vst.msk [vmem:[%s4077 + $0x20] sm:$0xff] %vm1508, %v4017
        %4083 = vst.msk [vmem:[%s4077 + $0x28] sm:$0xff] %vm1508, %v4018
        %4084 = vst.msk [vmem:[%s4077 + $0x30] sm:$0xff] %vm1508, %v4019
        %4085 = vst.msk [vmem:[%s4077 + $0x38] sm:$0xff] %vm1508, %v4020
        %4086 = vst.msk [vmem:[%s4077 + $0x40] sm:$0xff] %vm1508, %v4021
        %4087 = vst.msk [vmem:[%s4077 + $0x48] sm:$0xff] %vm1508, %v4022
        %4088 = vst.msk [vmem:[%s4077 + $0x50] sm:$0xff] %vm1508, %v4023
        %4089 = vst.msk [vmem:[%s4077 + $0x58] sm:$0xff] %vm1508, %v4024
        %4090 = vst.msk [vmem:[%s4077 + $0x60] sm:$0xff] %vm1508, %v4025
        %4091 = vst.msk [vmem:[%s4077 + $0x68] sm:$0xff] %vm1508, %v4026
        %4092 = vst.msk [vmem:[%s4077 + $0x70] sm:$0xff] %vm1508, %v4027
        %4093 = vst.msk [vmem:[%s4077 + $0x78] sm:$0xff] %vm1508, %v4028
        %4110 = vrot.lane.b32.xlu0 %v4061, 8
        %v4111 = vpop.permute.xlu0 %4110
        %4112 = vrot.lane.b32.xlu0 %v4062, 8
        %v4113 = vpop.permute.xlu0 %4112
        %4114 = vrot.lane.b32.xlu0 %v4063, 8
        %v4115 = vpop.permute.xlu0 %4114
        %4116 = vrot.lane.b32.xlu0 %v4064, 8
        %v4117 = vpop.permute.xlu0 %4116
        %4118 = vrot.lane.b32.xlu0 %v4065, 8
        %v4119 = vpop.permute.xlu0 %4118
        %4120 = vrot.lane.b32.xlu0 %v4066, 8
        %v4121 = vpop.permute.xlu0 %4120
        %4122 = vrot.lane.b32.xlu0 %v4067, 8
        %v4123 = vpop.permute.xlu0 %4122
        %4124 = vrot.lane.b32.xlu0 %v4068, 8
        %v4125 = vpop.permute.xlu0 %4124
        %4126 = vrot.lane.b32.xlu0 %v4069, 8
        %v4127 = vpop.permute.xlu0 %4126
        %4128 = vrot.lane.b32.xlu0 %v4070, 8
        %v4129 = vpop.permute.xlu0 %4128
        %4130 = vrot.lane.b32.xlu0 %v4071, 8
        %v4131 = vpop.permute.xlu0 %4130
        %4132 = vrot.lane.b32.xlu0 %v4072, 8
        %v4133 = vpop.permute.xlu0 %4132
        %4134 = vrot.lane.b32.xlu0 %v4073, 8
        %v4135 = vpop.permute.xlu0 %4134
        %4136 = vrot.lane.b32.xlu0 %v4074, 8
        %v4137 = vpop.permute.xlu0 %4136
        %4138 = vrot.lane.b32.xlu0 %v4075, 8
        %v4139 = vpop.permute.xlu0 %4138
        %4140 = vrot.lane.b32.xlu0 %v4076, 8
        %v4141 = vpop.permute.xlu0 %4140
        %4158 = vst.msk [vmem:[%s4077] sm:$0xff] %vm1589, %v4111
        %4159 = vst.msk [vmem:[%s4077 + $0x8] sm:$0xff] %vm1589, %v4113
        %4160 = vst.msk [vmem:[%s4077 + $0x10] sm:$0xff] %vm1589, %v4115
        %4161 = vst.msk [vmem:[%s4077 + $0x18] sm:$0xff] %vm1589, %v4117
        %4162 = vst.msk [vmem:[%s4077 + $0x20] sm:$0xff] %vm1589, %v4119
        %4163 = vst.msk [vmem:[%s4077 + $0x28] sm:$0xff] %vm1589, %v4121
        %4164 = vst.msk [vmem:[%s4077 + $0x30] sm:$0xff] %vm1589, %v4123
        %4165 = vst.msk [vmem:[%s4077 + $0x38] sm:$0xff] %vm1589, %v4125
        %4166 = vst.msk [vmem:[%s4077 + $0x40] sm:$0xff] %vm1589, %v4127
        %4167 = vst.msk [vmem:[%s4077 + $0x48] sm:$0xff] %vm1589, %v4129
        %4168 = vst.msk [vmem:[%s4077 + $0x50] sm:$0xff] %vm1589, %v4131
        %4169 = vst.msk [vmem:[%s4077 + $0x58] sm:$0xff] %vm1589, %v4133
        %4170 = vst.msk [vmem:[%s4077 + $0x60] sm:$0xff] %vm1589, %v4135
        %4171 = vst.msk [vmem:[%s4077 + $0x68] sm:$0xff] %vm1589, %v4137
        %4172 = vst.msk [vmem:[%s4077 + $0x70] sm:$0xff] %vm1589, %v4139
        %4173 = vst.msk [vmem:[%s4077 + $0x78] sm:$0xff] %vm1589, %v4141
        %4190 = vrot.lane.b32.xlu0 %v1052, 32
        %v4191 = vpop.permute.xlu0 %4190
        %4192 = vrot.lane.b32.xlu0 %v1057, 32
        %v4193 = vpop.permute.xlu0 %4192
        %4194 = vrot.lane.b32.xlu0 %v1062, 32
        %v4195 = vpop.permute.xlu0 %4194
        %4196 = vrot.lane.b32.xlu0 %v1067, 32
        %v4197 = vpop.permute.xlu0 %4196
        %4198 = vrot.lane.b32.xlu0 %v1072, 32
        %v4199 = vpop.permute.xlu0 %4198
        %4200 = vrot.lane.b32.xlu0 %v1077, 32
        %v4201 = vpop.permute.xlu0 %4200
        %4202 = vrot.lane.b32.xlu0 %v1082, 32
        %v4203 = vpop.permute.xlu0 %4202
        %4204 = vrot.lane.b32.xlu0 %v1087, 32
        %v4205 = vpop.permute.xlu0 %4204
        %4206 = vrot.lane.b32.xlu0 %v1092, 32
        %v4207 = vpop.permute.xlu0 %4206
        %4208 = vrot.lane.b32.xlu0 %v1097, 32
        %v4209 = vpop.permute.xlu0 %4208
        %4210 = vrot.lane.b32.xlu0 %v1102, 32
        %v4211 = vpop.permute.xlu0 %4210
        %4212 = vrot.lane.b32.xlu0 %v1107, 32
        %v4213 = vpop.permute.xlu0 %4212
        %4214 = vrot.lane.b32.xlu0 %v1112, 32
        %v4215 = vpop.permute.xlu0 %4214
        %4216 = vrot.lane.b32.xlu0 %v1117, 32
        %v4217 = vpop.permute.xlu0 %4216
        %4218 = vrot.lane.b32.xlu0 %v1122, 32
        %v4219 = vpop.permute.xlu0 %4218
        %4220 = vrot.lane.b32.xlu0 %v1127, 32
        %v4221 = vpop.permute.xlu0 %4220
        %4238 = vst.msk [vmem:[%s727] sm:$0xff] %vm1212, %v4191
        %4239 = vst.msk [vmem:[%s727 + $0x8] sm:$0xff] %vm1212, %v4193
        %4240 = vst.msk [vmem:[%s727 + $0x10] sm:$0xff] %vm1212, %v4195
        %4241 = vst.msk [vmem:[%s727 + $0x18] sm:$0xff] %vm1212, %v4197
        %4242 = vst.msk [vmem:[%s727 + $0x20] sm:$0xff] %vm1212, %v4199
        %4243 = vst.msk [vmem:[%s727 + $0x28] sm:$0xff] %vm1212, %v4201
        %4244 = vst.msk [vmem:[%s727 + $0x30] sm:$0xff] %vm1212, %v4203
        %4245 = vst.msk [vmem:[%s727 + $0x38] sm:$0xff] %vm1212, %v4205
        %4246 = vst.msk [vmem:[%s727 + $0x40] sm:$0xff] %vm1212, %v4207
        %4247 = vst.msk [vmem:[%s727 + $0x48] sm:$0xff] %vm1212, %v4209
        %4248 = vst.msk [vmem:[%s727 + $0x50] sm:$0xff] %vm1212, %v4211
        %4249 = vst.msk [vmem:[%s727 + $0x58] sm:$0xff] %vm1212, %v4213
        %4250 = vst.msk [vmem:[%s727 + $0x60] sm:$0xff] %vm1212, %v4215
        %4251 = vst.msk [vmem:[%s727 + $0x68] sm:$0xff] %vm1212, %v4217
        %4252 = vst.msk [vmem:[%s727 + $0x70] sm:$0xff] %vm1212, %v4219
        %4253 = vst.msk [vmem:[%s727 + $0x78] sm:$0xff] %vm1212, %v4221
        %4254 = vrot.lane.b32.xlu0 %v1052, 16
        %v4255 = vpop.permute.xlu0 %4254
        %4256 = vrot.lane.b32.xlu0 %v1057, 16
        %v4257 = vpop.permute.xlu0 %4256
        %4258 = vrot.lane.b32.xlu0 %v1062, 16
        %v4259 = vpop.permute.xlu0 %4258
        %4260 = vrot.lane.b32.xlu0 %v1067, 16
        %v4261 = vpop.permute.xlu0 %4260
        %4262 = vrot.lane.b32.xlu0 %v1072, 16
        %v4263 = vpop.permute.xlu0 %4262
        %4264 = vrot.lane.b32.xlu0 %v1077, 16
        %v4265 = vpop.permute.xlu0 %4264
        %4266 = vrot.lane.b32.xlu0 %v1082, 16
        %v4267 = vpop.permute.xlu0 %4266
        %4268 = vrot.lane.b32.xlu0 %v1087, 16
        %v4269 = vpop.permute.xlu0 %4268
        %4270 = vrot.lane.b32.xlu0 %v1092, 16
        %v4271 = vpop.permute.xlu0 %4270
        %4272 = vrot.lane.b32.xlu0 %v1097, 16
        %v4273 = vpop.permute.xlu0 %4272
        %4274 = vrot.lane.b32.xlu0 %v1102, 16
        %v4275 = vpop.permute.xlu0 %4274
        %4276 = vrot.lane.b32.xlu0 %v1107, 16
        %v4277 = vpop.permute.xlu0 %4276
        %4278 = vrot.lane.b32.xlu0 %v1112, 16
        %v4279 = vpop.permute.xlu0 %4278
        %4280 = vrot.lane.b32.xlu0 %v1117, 16
        %v4281 = vpop.permute.xlu0 %4280
        %4282 = vrot.lane.b32.xlu0 %v1122, 16
        %v4283 = vpop.permute.xlu0 %4282
        %4284 = vrot.lane.b32.xlu0 %v1127, 16
        %v4285 = vpop.permute.xlu0 %4284
        %s4302 = scalar_lea.vmem %s727, 128 [#allocation22]
        %4303 = vst.msk [vmem:[%s4302] sm:$0xff] %vm1212, %v4255
        %4304 = vst.msk [vmem:[%s4302 + $0x8] sm:$0xff] %vm1212, %v4257
        %4305 = vst.msk [vmem:[%s4302 + $0x10] sm:$0xff] %vm1212, %v4259
        %4306 = vst.msk [vmem:[%s4302 + $0x18] sm:$0xff] %vm1212, %v4261
        %4307 = vst.msk [vmem:[%s4302 + $0x20] sm:$0xff] %vm1212, %v4263
        %4308 = vst.msk [vmem:[%s4302 + $0x28] sm:$0xff] %vm1212, %v4265
        %4309 = vst.msk [vmem:[%s4302 + $0x30] sm:$0xff] %vm1212, %v4267
        %4310 = vst.msk [vmem:[%s4302 + $0x38] sm:$0xff] %vm1212, %v4269
        %4311 = vst.msk [vmem:[%s4302 + $0x40] sm:$0xff] %vm1212, %v4271
        %4312 = vst.msk [vmem:[%s4302 + $0x48] sm:$0xff] %vm1212, %v4273
        %4313 = vst.msk [vmem:[%s4302 + $0x50] sm:$0xff] %vm1212, %v4275
        %4314 = vst.msk [vmem:[%s4302 + $0x58] sm:$0xff] %vm1212, %v4277
        %4315 = vst.msk [vmem:[%s4302 + $0x60] sm:$0xff] %vm1212, %v4279
        %4316 = vst.msk [vmem:[%s4302 + $0x68] sm:$0xff] %vm1212, %v4281
        %4317 = vst.msk [vmem:[%s4302 + $0x70] sm:$0xff] %vm1212, %v4283
        %4318 = vst.msk [vmem:[%s4302 + $0x78] sm:$0xff] %vm1212, %v4285
        %s4319 = sand.u32 %s316, 1
        %s4320 = scalar_lea.sflag [#allocation4], %s4319
        %s4321 = sand.u32 %s316, 1
        %s4322 = smul.addr %s4321, 256
        %s4323 = scalar_lea.vmem [#allocation19], %s4322
        %s4324 = sand.u32 %s44, 1
        %s4325 = scalar_lea.sflag [#allocation21], %s4324
        %s4326 = sand.u32 %s344, 1
        %s4327 = smul.addr %s4326, 256
        %s4328 = scalar_lea.vmem [#allocation20], %s4327
        %s4329 = sand.u32 %s44, 1
        %s4330 = scalar_lea.sflag [#allocation21], %s4329
        %s4331 = sand.u32 %s372, 1
        %s4332 = smul.addr %s4331, 256
        %s4333 = scalar_lea.vmem [#allocation22], %s4332
        // Predicated region
        $region101: #{tpu_custom_call.1} parent=59 // pred_check
          %p4334 = pneg %p326
        $region102: #{tpu_custom_call.1} parent=59 // pred_check_branch
          %4336 = sbr.rel (%p4334) target = $region104
        $region103: #{tpu_custom_call.1} parent=59 // pred_region
          #allocation24 [shape = 'u32[6]{0}', space=smem, size = 0x18, scoped, tag = 'DMA stride descriptor']
          %s4337 = smul.u32 16, %s49
          %s4339 = ssub.s32 4096, 4096
          %4340 = vsyncadd %s4320, %s4339
          %s4341 = smul.addr %s48, 64
          %s4342 = sadd.s32 %s4337, %s4341
          %s4343 = smul.addr %s4342, 128
          %s4344 = scalar_lea.hbm %s10, %s4343
          %s4346 = sshll.u32 1, 14
          %s4347 = sxor.u32 4294967295, %s4346
          %s4350 = sshll.u32 7, 18
          %s4351 = sxor.u32 4294967295, %s4350
          %s4352 = sand.u32 0, %s4351
          %s4354 = sor.u32 %s4352, 0
          %s4356 = sshll.u32 3, 24
          %s4357 = sxor.u32 4294967295, %s4356
          %s4358 = sand.u32 %s4354, %s4357
          %s4360 = sor.u32 %s4358, 0
          %s4361 = sshll.u32 %s4323, 4
          %s4362 = int_to_ptr.vmem [resolvable:$true] %s4361
          %4368 = sst [smem:[#allocation24]] 2048
          %s4369 = scalar_lea.smem [#allocation24], 1
          %4370 = sst [smem:[%s4369]] 4096
          %s4371 = scalar_lea.smem [#allocation24], 2
          %4372 = sst [smem:[%s4371]] 16
          %s4373 = scalar_lea.smem [#allocation24], 3
          %4374 = sst [smem:[%s4373]] 128
          %s4375 = scalar_lea.smem [#allocation24], 4
          %4376 = sst [smem:[%s4375]] 128
          %s4377 = scalar_lea.smem [#allocation24], 5
          %4378 = sst [smem:[%s4377]] 8
          %4380 = dma.general %s4362, 4096, %s4344, %s4320, [#allocation23], [#allocation24], %s4360, 0
        $region104: #{tpu_custom_call.1} parent=59 // pred_fallthru
          _
        // Predicated region
        $region105: #{tpu_custom_call.1} parent=59 // pred_check
          %p4381 = pneg %p354
        $region106: #{tpu_custom_call.1} parent=59 // pred_check_branch
          %4383 = sbr.rel (%p4381) target = $region108
        $region107: #{tpu_custom_call.1} parent=59 // pred_region
          #allocation26 [shape = 'u32[6]{0}', space=smem, size = 0x18, scoped, tag = 'DMA stride descriptor']
          %s4384 = smul.u32 16, %s49
          %s4386 = ssub.s32 4096, 4096
          %4387 = vsyncadd %s4325, %s4386
          %s4388 = smul.addr %s48, 64
          %s4389 = sadd.s32 %s4384, %s4388
          %s4390 = smul.addr %s4389, 128
          %s4391 = scalar_lea.hbm %s11, %s4390
          %s4393 = sshll.u32 1, 14
          %s4394 = sxor.u32 4294967295, %s4393
          %s4397 = sshll.u32 7, 18
          %s4398 = sxor.u32 4294967295, %s4397
          %s4399 = sand.u32 0, %s4398
          %s4401 = sor.u32 %s4399, 0
          %s4403 = sshll.u32 3, 24
          %s4404 = sxor.u32 4294967295, %s4403
          %s4405 = sand.u32 %s4401, %s4404
          %s4407 = sor.u32 %s4405, 0
          %s4408 = sshll.u32 %s4328, 4
          %s4409 = int_to_ptr.vmem [resolvable:$true] %s4408
          %4415 = sst [smem:[#allocation26]] 2048
          %s4416 = scalar_lea.smem [#allocation26], 1
          %4417 = sst [smem:[%s4416]] 4096
          %s4418 = scalar_lea.smem [#allocation26], 2
          %4419 = sst [smem:[%s4418]] 16
          %s4420 = scalar_lea.smem [#allocation26], 3
          %4421 = sst [smem:[%s4420]] 128
          %s4422 = scalar_lea.smem [#allocation26], 4
          %4423 = sst [smem:[%s4422]] 128
          %s4424 = scalar_lea.smem [#allocation26], 5
          %4425 = sst [smem:[%s4424]] 8
          %4427 = dma.general %s4409, 4096, %s4391, %s4325, [#allocation25], [#allocation26], %s4407, 0
        $region108: #{tpu_custom_call.1} parent=59 // pred_fallthru
          _
        // Predicated region
        $region109: #{tpu_custom_call.1} parent=59 // pred_check
          %p4428 = pneg %p382
        $region110: #{tpu_custom_call.1} parent=59 // pred_check_branch
          %4430 = sbr.rel (%p4428) target = $region112
        $region111: #{tpu_custom_call.1} parent=59 // pred_region
          #allocation28 [shape = 'u32[6]{0}', space=smem, size = 0x18, scoped, tag = 'DMA stride descriptor']
          %s4431 = smul.u32 16, %s49
          %s4433 = ssub.s32 4096, 4096
          %4434 = vsyncadd %s4330, %s4433
          %s4435 = smul.addr %s48, 64
          %s4436 = sadd.s32 %s4431, %s4435
          %s4437 = smul.addr %s4436, 128
          %s4438 = scalar_lea.hbm %s12, %s4437
          %s4440 = sshll.u32 1, 14
          %s4441 = sxor.u32 4294967295, %s4440
          %s4444 = sshll.u32 7, 18
          %s4445 = sxor.u32 4294967295, %s4444
          %s4446 = sand.u32 0, %s4445
          %s4448 = sor.u32 %s4446, 0
          %s4450 = sshll.u32 3, 24
          %s4451 = sxor.u32 4294967295, %s4450
          %s4452 = sand.u32 %s4448, %s4451
          %s4454 = sor.u32 %s4452, 0
          %s4455 = sshll.u32 %s4333, 4
          %s4456 = int_to_ptr.vmem [resolvable:$true] %s4455
          %4462 = sst [smem:[#allocation28]] 2048
          %s4463 = scalar_lea.smem [#allocation28], 1
          %4464 = sst [smem:[%s4463]] 4096
          %s4465 = scalar_lea.smem [#allocation28], 2
          %4466 = sst [smem:[%s4465]] 16
          %s4467 = scalar_lea.smem [#allocation28], 3
          %4468 = sst [smem:[%s4467]] 128
          %s4469 = scalar_lea.smem [#allocation28], 4
          %4470 = sst [smem:[%s4469]] 128
          %s4471 = scalar_lea.smem [#allocation28], 5
          %4472 = sst [smem:[%s4471]] 8
          %4474 = dma.general %s4456, 4096, %s4438, %s4330, [#allocation27], [#allocation28], %s4454, 0
        $region112: #{tpu_custom_call.1} parent=59 // pred_fallthru
          _
      $region60: #{tpu_custom_call.1} parent=5 // pred_fallthru
        _
      %p4475 = scmp.le.s32.totalorder 2, %s39
      // Predicated region
      $region113: #{tpu_custom_call.1} parent=5 // pred_check
        %p4476 = pneg %p4475
      $region114: #{tpu_custom_call.1} parent=5 // pred_check_branch
        %4478 = sbr.rel (%p4476) target = $region116
      $region115: #{tpu_custom_call.1} parent=5 // pred_region
        %s4479 = ssub.s32 %s39, 2
        // Predicated region
        $region117: #{tpu_custom_call.1} parent=115 // pred_check
          %p4480 = pneg %p332
        $region118: #{tpu_custom_call.1} parent=115 // pred_check_branch
          %4482 = sbr.rel (%p4480) target = $region120
        $region119: #{tpu_custom_call.1} parent=115 // pred_region
          %s4483 = sand.u32 %s317, 1
          %s4484 = scalar_lea.sflag [#allocation4], %s4483
          %s4485 = sand.u32 %s317, 1
          %s4486 = smul.addr %s4485, 256
          %s4487 = scalar_lea.vmem [#allocation19], %s4486
          %4488 = dma.done %s4484, 4096
        $region120: #{tpu_custom_call.1} parent=115 // pred_fallthru
          _
        // Predicated region
        $region121: #{tpu_custom_call.1} parent=115 // pred_check
          %p4489 = pneg %p360
        $region122: #{tpu_custom_call.1} parent=115 // pred_check_branch
          %4491 = sbr.rel (%p4489) target = $region124
        $region123: #{tpu_custom_call.1} parent=115 // pred_region
          %s4492 = sand.u32 %s45, 1
          %s4493 = scalar_lea.sflag [#allocation21], %s4492
          %s4494 = sand.u32 %s345, 1
          %s4495 = smul.addr %s4494, 256
          %s4496 = scalar_lea.vmem [#allocation20], %s4495
          %4497 = dma.done %s4493, 4096
        $region124: #{tpu_custom_call.1} parent=115 // pred_fallthru
          _
        // Predicated region
        $region125: #{tpu_custom_call.1} parent=115 // pred_check
          %p4498 = pneg %p388
        $region126: #{tpu_custom_call.1} parent=115 // pred_check_branch
          %4500 = sbr.rel (%p4498) target = $region128
        $region127: #{tpu_custom_call.1} parent=115 // pred_region
          %s4501 = sand.u32 %s45, 1
          %s4502 = scalar_lea.sflag [#allocation21], %s4501
          %s4503 = sand.u32 %s373, 1
          %s4504 = smul.addr %s4503, 256
          %s4505 = scalar_lea.vmem [#allocation22], %s4504
          %4506 = dma.done %s4502, 4096
        $region128: #{tpu_custom_call.1} parent=115 // pred_fallthru
          _
      $region116: #{tpu_custom_call.1} parent=5 // pred_fallthru
        _
    $region6: #{tpu_custom_call.1} parent=1 // loop_footer
      %s43 = sadd.s32 1, %s39
    $region7: #{tpu_custom_call.1} parent=1 // loop_footer_branch
      %38 = sbr.rel target = $region3
    $region8: #{tpu_custom_call.1} parent=1 // loop_exit
      _
    %4507 = vsyncpa [#allocation3], 1
    %s4508 = scalar_lea.sflag [#allocation3], 1
    %4509 = vsyncpa %s4508, 1
    %4510 = vsyncpa [#allocation6], 1
    %s4511 = scalar_lea.sflag [#allocation6], 1
    %4512 = vsyncpa %s4511, 1
    %4513 = vsyncpa [#allocation9], 1
    %s4514 = scalar_lea.sflag [#allocation9], 1
    %4515 = vsyncpa %s4514, 1
    %4516 = vsyncpa [#allocation12], 1
    %s4517 = scalar_lea.sflag [#allocation12], 1
    %4518 = vsyncpa %s4517, 1
    %4519 = vsyncpa [#allocation15], 1
    %4520 = vsyncpa [#allocation18], 1
    %4521 = vsyncpa [#allocation4], 1
    %s4522 = scalar_lea.sflag [#allocation4], 1
    %4523 = vsyncpa %s4522, 1
    %4524 = vsyncpa [#allocation21], 1
    %s4525 = scalar_lea.sflag [#allocation21], 1
    %4526 = vsyncpa %s4525, 1

</llo_original>
